<compile_context>
chip_gen: v7x
topology: tpu7x:2x2x1
jax: 0.10.0
libtpu: 0.0.40
codegen_flags: <defaults>
</compile_context>

<pallas_src>
import functools

import jax
import jax.numpy as jnp
from jax.experimental import pallas as pl
from jax.experimental.pallas import tpu as pltpu


# ---------------------------------------------------------------------------
# Hardware / feature detection (wrapper-side, cached)
# ---------------------------------------------------------------------------

@functools.lru_cache(maxsize=None)
def _vmem_capacity_bytes() -> int:
    try:
        return int(pltpu.get_tpu_info().vmem_capacity_bytes)
    except Exception:
        return 64 << 20          # v7x worst case — conservative default


@functools.lru_cache(maxsize=None)
def _bf16_eup_supported() -> bool:
    """bf16 EUP (exp) exists on v6e/v7x; v5e and older do exp in f32."""
    try:
        kind = jax.devices()[0].device_kind.lower()
    except Exception:
        return False
    return not any(v in kind for v in ("v2", "v3", "v4", "v5"))


def _probe_kernel(w_ref, x_ref, o_ref):
    o_ref[...] = x_ref[...] + w_ref[...]


@functools.lru_cache(maxsize=None)
def _single_buffer_supported() -> bool:
    """Capability probe (runs a tiny throwaway kernel once, NOT a retry of the
    real kernel): can grid-invariant operands be single-buffered via
    BlockSpec(pipeline_mode=pl.Buffered(1))?"""
    if not hasattr(pl, "Buffered"):
        return False
    try:
        wspec = pl.BlockSpec((8, 128), lambda i: (0, 0),
                             pipeline_mode=pl.Buffered(1))
    except TypeError:
        return False
    try:
        fn = pl.pallas_call(
            _probe_kernel,
            out_shape=jax.ShapeDtypeStruct((16, 128), jnp.float32),
            grid_spec=pltpu.PrefetchScalarGridSpec(
                num_scalar_prefetch=0,
                grid=(2,),
                in_specs=[wspec,
                          pl.BlockSpec((8, 128), lambda i: (i, 0))],
                out_specs=pl.BlockSpec((8, 128), lambda i: (i, 0)),
            ),
        )
        jax.block_until_ready(fn(jnp.zeros((8, 128), jnp.float32),
                                 jnp.zeros((16, 128), jnp.float32)))
        return True
    except Exception:
        return False


# ---------------------------------------------------------------------------
# Kernel
# ---------------------------------------------------------------------------

def _lora_attention_kernel(
    x_ref,        # (1, N, C)  bf16 activations for this batch element (resident)
    wq_ref,       # (C, C)     bf16 effective Q weight (LoRA + softmax scale folded)
    wk_ref,       # (C, C)     bf16 effective K weight (LoRA folded)
    wv_ref,       # (C, C)     bf16 effective V weight (LoRA folded)
    wp_ref,       # (C, C)     bf16 output-projection weight (pre-transposed)
    bp_ref,       # (1, C)     f32  output-projection bias
    o_ref,        # (1, tq, C) output tile
    k_sc,         # (N, C) bf16 scratch: keys for the whole sequence
    v_sc,         # (N, C) bf16 scratch: values for the whole sequence
    acc_sc,       # (tq, C) bf16 scratch: per-head attention outputs
    *, num_heads: int, tq: int, heads_per_group: int, bf16_exp: bool,
):
    qi = pl.program_id(1)
    _, n, c = x_ref.shape
    hd = c // num_heads

    # ---- K/V projection: once per batch element, reused by every q tile ----
    # (relies on the qi grid axis being "arbitrary"/sequential)
    @pl.when(qi == 0)
    def _():
        x_full = x_ref[0]                                          # (N, C) bf16
        k_sc[...] = jnp.dot(x_full, wk_ref[...],
                            preferred_element_type=jnp.float32).astype(jnp.bfloat16)
        v_sc[...] = jnp.dot(x_full, wv_ref[...],
                            preferred_element_type=jnp.float32).astype(jnp.bfloat16)

    # ---- Q projection for this query tile (scale already folded into Wq) ----
    row0 = qi * tq
    if tq % 8 == 0:
        row0 = pl.multiple_of(row0, tq)
    x_tile = x_ref[0, pl.ds(row0, tq), :]                          # (tq, C) bf16
    q_bf = jnp.dot(x_tile, wq_ref[...],
                   preferred_element_type=jnp.float32).astype(jnp.bfloat16)

    # ---- Per-head attention; heads grouped so acc_sc stores are 128-lane wide ----
    for g0 in range(0, num_heads, heads_per_group):
        group_out = []
        for h in range(g0, g0 + heads_per_group):
            lo = h * hd
            qh = q_bf[:, lo:lo + hd]                               # (tq, hd) bf16
            kh = k_sc[:, lo:lo + hd]                               # (N, hd)  bf16
            vh = v_sc[:, lo:lo + hd]                               # (N, hd)  bf16
            s = jax.lax.dot_general(qh, kh, (((1,), (1,)), ((), ())),
                                    preferred_element_type=jnp.float32)   # (tq, N) f32
            s = s - jnp.max(s, axis=-1, keepdims=True)
            if bf16_exp:
                p = jnp.exp(s.astype(jnp.bfloat16))                # bf16 EUP (v6e/v7x)
                denom = jnp.sum(p, axis=-1, keepdims=True, dtype=jnp.float32)
            else:
                p_f32 = jnp.exp(s)                                 # f32 EUP (v5e-safe)
                denom = jnp.sum(p_f32, axis=-1, keepdims=True)
                p = p_f32.astype(jnp.bfloat16)
            pv = jnp.dot(p, vh, preferred_element_type=jnp.float32)   # (tq, hd) f32
            # Deferred softmax normalization: multiply (tq, hd), not (tq, N).
            oh = pv * pl.reciprocal(denom, approx=True)
            group_out.append(oh.astype(jnp.bfloat16))
        blk = group_out[0] if len(group_out) == 1 else jnp.concatenate(group_out, axis=1)
        acc_sc[:, g0 * hd:(g0 + heads_per_group) * hd] = blk

    # ---- Output projection (plain Linear with bias), bf16 MXU inputs ----
    out = jnp.dot(acc_sc[...], wp_ref[...],
                  preferred_element_type=jnp.float32) + bp_ref[...]
    o_ref[0] = out.astype(o_ref.dtype)


# ---------------------------------------------------------------------------
# Tiling / VMEM budgeting helpers
# ---------------------------------------------------------------------------

def _heads_per_group(num_heads: int, hd: int) -> int:
    """Group heads so grouped acc stores are 128-lane wide and aligned."""
    if hd >= 128 or hd % 8 != 0 or 128 % hd != 0:
        return 1
    g = min(num_heads, 128 // hd)
    return g if num_heads % g == 0 else 1


def _vmem_footprint_bytes(N, C, tq, heads_per_group, out_itemsize):
    bf16, f32 = 2, 4
    x_blk = 2 * N * C * bf16                     # per-batch x block (double-buffered)
    weights = 2 * (4 * C * C * bf16 + C * f32)   # wq/wk/wv/wp + bias, worst-case 2 bufs
    out_blk = 2 * tq * C * out_itemsize
    kv_scr = 2 * N * C * bf16                    # K + V whole-sequence scratch
    acc_scr = tq * C * bf16
    scores = heads_per_group * tq * N * (2 * f32 + bf16)   # in-flight s / p temporaries
    return x_blk + weights + out_blk + kv_scr + acc_scr + scores


def _pick_query_tile(N, C, heads_per_group, out_itemsize):
    cands = [c for c in (256, 128) if N % c == 0]
    if not cands:
        return N                                  # small / irregular N: one full tile
    budget = int(0.75 * _vmem_capacity_bytes())
    for c in cands:                               # prefer the biggest tile that fits
        if _vmem_footprint_bytes(N, C, c, heads_per_group, out_itemsize) <= budget:
            return c
    return cands[-1]


def _build_call(B, N, C, tq, num_heads, heads_per_group, out_dtype, *,
                bf16_exp, single_buffer_weights):
    nq = N // tq
    out_itemsize = jnp.dtype(out_dtype).itemsize
    wkw = {"pipeline_mode": pl.Buffered(1)} if single_buffer_weights else {}

    def wspec(shape):
        # Grid-invariant operands; single-buffered when supported.
        return pl.BlockSpec(shape, lambda b, qi: (0,) * len(shape), **wkw)

    kernel = functools.partial(
        _lora_attention_kernel, num_heads=num_heads, tq=tq,
        heads_per_group=heads_per_group, bf16_exp=bf16_exp)

    flops = int(B * (8 * N * C * C       # q + k + v + output projections
                     + 4 * N * N * C))   # QK^T + PV summed over heads
    transcendentals = int(B * num_heads * N * N)
    bytes_accessed = int(B * N * C * 2                 # bf16 x in
                         + 4 * C * C * 2 + C * 4        # bf16 weights + f32 bias
                         + B * N * C * out_itemsize)    # output write

    footprint = _vmem_footprint_bytes(N, C, tq, heads_per_group, out_itemsize)
    vmem_limit = max(16 << 20,
                     min(max(32 << 20, int(footprint * 1.3) + (2 << 20)),
                         int(0.85 * _vmem_capacity_bytes())))

    return pl.pallas_call(
        kernel,
        out_shape=jax.ShapeDtypeStruct((B, N, C), out_dtype),
        grid_spec=pltpu.PrefetchScalarGridSpec(
            num_scalar_prefetch=0,
            grid=(B, nq),
            in_specs=[
                pl.BlockSpec((1, N, C), lambda b, qi: (b, 0, 0)),  # x (per-batch resident)
                wspec((C, C)),          # effective Wq (LoRA + scale folded)
                wspec((C, C)),          # effective Wk
                wspec((C, C)),          # effective Wv
                wspec((C, C)),          # Wp
                wspec((1, C)),          # bp
            ],
            out_specs=pl.BlockSpec((1, tq, C), lambda b, qi: (b, qi, 0)),
            scratch_shapes=[
                pltpu.VMEM((N, C), jnp.bfloat16),    # K (whole sequence)
                pltpu.VMEM((N, C), jnp.bfloat16),    # V (whole sequence)
                pltpu.VMEM((tq, C), jnp.bfloat16),   # per-head attention outputs
            ],
        ),
        compiler_params=pltpu.CompilerParams(
            dimension_semantics=("parallel", "arbitrary"),
            vmem_limit_bytes=vmem_limit,
        ),
        cost_estimate=pl.CostEstimate(
            flops=flops,
            transcendentals=transcendentals,
            bytes_accessed=bytes_accessed),
    )


# ---------------------------------------------------------------------------
# Public wrapper + pure-JAX reference
# ---------------------------------------------------------------------------

def lora_attention(x, params, *, num_heads):
    """x: (B, N, C). params in PyTorch layout (W: (out,in), A: (r,in), B: (out,r))."""
    B, N, C = x.shape
    hd = C // num_heads
    scale = hd ** -0.5   # F.scaled_dot_product_attention default scale

    def fuse(w, a, b):
        # x @ W.T + (x @ A.T) @ B.T  ==  x @ (W.T + A.T @ B.T)
        return (jnp.asarray(w, jnp.float32).T
                + jnp.asarray(a, jnp.float32).T @ jnp.asarray(b, jnp.float32).T)

    # One-time parameter prep: LoRA folded, softmax scale folded into Wq, bf16 cast.
    w_q = (fuse(params['wq'], params['aq'], params['bq']) * scale).astype(jnp.bfloat16)
    w_k = fuse(params['wk'], params['ak'], params['bk']).astype(jnp.bfloat16)
    w_v = fuse(params['wv'], params['av'], params['bv']).astype(jnp.bfloat16)
    w_p = jnp.asarray(params['wp'], jnp.float32).T.astype(jnp.bfloat16)
    b_p = jnp.asarray(params['bp'], jnp.float32).reshape(1, C)

    x_bf = x.astype(jnp.bfloat16)

    hpg = _heads_per_group(num_heads, hd)
    out_itemsize = jnp.dtype(x.dtype).itemsize
    tq = _pick_query_tile(N, C, hpg, out_itemsize)

    call = _build_call(
        B, N, C, tq, num_heads, hpg, x.dtype,
        bf16_exp=_bf16_eup_supported(),
        single_buffer_weights=_single_buffer_supported())
    return call(x_bf, w_q, w_k, w_v, w_p, b_p)


def lora_attention_ref(x, params, *, num_heads):
    """Pure-JAX fp32 reference of the PyTorch forward pass."""
    B, N, C = x.shape
    hd = C // num_heads
    scale = hd ** -0.5

    def lora_lin(x, w, a, b):
        return x @ w.T + (x @ a.T) @ b.T

    q = lora_lin(x, params['wq'], params['aq'], params['bq'])
    k = lora_lin(x, params['wk'], params['ak'], params['bk'])
    v = lora_lin(x, params['wv'], params['av'], params['bv'])

    def heads(t):
        return t.reshape(B, N, num_heads, hd).transpose(0, 2, 1, 3)

    qh, kh, vh = heads(q), heads(k), heads(v)
    s = jnp.einsum('bhqd,bhkd->bhqk', qh, kh) * scale
    p = jax.nn.softmax(s, axis=-1)
    oh = jnp.einsum('bhqk,bhkd->bhqd', p, vh)
    attn = oh.transpose(0, 2, 1, 3).reshape(B, N, C)
    return attn @ params['wp'].T + params['bp']
    # TODO(synk): attn_drop / proj_drop are 0.0 by default; training-time dropout not implemented.


if __name__ == "__main__":
    # Small but TPU-layout-friendly ViT-style shapes: seq 512, dim 256, 4 heads
    # (head_dim 64 -> head-pair 128-lane stores), query tile 256 -> 2 q tiles.
    B, N, C = 2, 512, 256
    num_heads = 4
    rank = 16

    key = jax.random.PRNGKey(0)
    keys = jax.random.split(key, 12)

    # PyTorch shape conventions: W is (out, in), lora_A is (r, in), lora_B is
    # (out, r). lora_B is nonzero so the LoRA path actually contributes here.
    params = {
        'wq': jax.random.normal(keys[0], (C, C), jnp.float32) * 0.05,
        'aq': jax.random.normal(keys[1], (rank, C), jnp.float32) * 0.05,
        'bq': jax.random.normal(keys[2], (C, rank), jnp.float32) * 0.05,
        'wk': jax.random.normal(keys[3], (C, C), jnp.float32) * 0.05,
        'ak': jax.random.normal(keys[4], (rank, C), jnp.float32) * 0.05,
        'bk': jax.random.normal(keys[5], (C, rank), jnp.float32) * 0.05,
        'wv': jax.random.normal(keys[6], (C, C), jnp.float32) * 0.05,
        'av': jax.random.normal(keys[7], (rank, C), jnp.float32) * 0.05,
        'bv': jax.random.normal(keys[8], (C, rank), jnp.float32) * 0.05,
        'wp': jax.random.normal(keys[9], (C, C), jnp.float32) * 0.05,
        'bp': jax.random.normal(keys[10], (C,), jnp.float32) * 0.05,
    }

    x = jax.random.normal(keys[11], (B, N, C), jnp.float32)

    out = lora_attention(x, params, num_heads=num_heads)
    out = jax.block_until_ready(out)

    ref = lora_attention_ref(x, params, num_heads=num_heads)
    assert out.shape == (B, N, C)
    # Tolerance accounts for bf16 MXU inputs throughout (f32 accumulation,
    # f32/bf16 softmax math) against an all-fp32 reference.
    assert jnp.allclose(out, ref, atol=3e-2, rtol=3e-2), "mismatch vs reference"

    print("KERNEL_OK")
</pallas_src>

<mosaic_0001>
module attributes {stable_mosaic.version = 11 : i64} {
  func.func @_probe_kernel(%arg0: i32, %arg1: memref<8x128xf32, #tpu.memory_space<vmem>>, %arg2: memref<8x128xf32, #tpu.memory_space<vmem>>, %arg3: memref<8x128xf32, #tpu.memory_space<vmem>>) attributes {dimension_semantics = [#tpu.dimension_semantics<arbitrary>], iteration_bounds = array<i64: 2>, scalar_prefetch = 0 : i64, scratch_operands = 0 : i64, tpu.core_type = #tpu.core_type<tc>, window_params = [{pipeline_mode = #tpu.pipeline_mode<synchronous>, transform_indices = @transform_0, window_bounds = array<i64: 8, 128>}, {transform_indices = @transform_1, window_bounds = array<i64: 8, 128>}, {transform_indices = @transform_2, window_bounds = array<i64: 8, 128>}]} {
    %c0 = arith.constant 0 : index
    %c0_0 = arith.constant 0 : index
    %0 = vector.load %arg2[%c0, %c0_0] : memref<8x128xf32, #tpu.memory_space<vmem>>, vector<8x128xf32>
    %c0_1 = arith.constant 0 : index
    %c0_2 = arith.constant 0 : index
    %1 = vector.load %arg1[%c0_1, %c0_2] : memref<8x128xf32, #tpu.memory_space<vmem>>, vector<8x128xf32>
    %2 = arith.addf %0, %1 : vector<8x128xf32>
    %c0_3 = arith.constant 0 : index
    %c0_4 = arith.constant 0 : index
    %3 = vector.load %arg3[%c0_3, %c0_4] : memref<8x128xf32, #tpu.memory_space<vmem>>, vector<8x128xf32>
    tpu.vector_store %arg3[%c0_3, %c0_4], %2 {strides = array<i32>} : memref<8x128xf32, #tpu.memory_space<vmem>>, vector<8x128xf32>,
    return
  }
  func.func @transform_0(%arg0: i32) -> (i32, i32) {
    %c0_i32 = arith.constant 0 : i32
    %c0_i32_0 = arith.constant 0 : i32
    %c0_i32_1 = arith.constant 0 : i32
    return %c0_i32, %c0_i32_0 : i32, i32
  }
  func.func @transform_1(%arg0: i32) -> (i32, i32) {
    %c0_i32 = arith.constant 0 : i32
    %c0_i32_0 = arith.constant 0 : i32
    return %arg0, %c0_i32 : i32, i32
  }
  func.func @transform_2(%arg0: i32) -> (i32, i32) {
    %c0_i32 = arith.constant 0 : i32
    %c0_i32_0 = arith.constant 0 : i32
    return %arg0, %c0_i32 : i32, i32
  }
}

module attributes {stable_mosaic.version = 11 : i64} {
  func.func @_lora_attention_kernel(%arg0: i32, %arg1: i32, %arg2: memref<1x512x256xbf16, #tpu.memory_space<vmem>>, %arg3: memref<256x256xbf16, #tpu.memory_space<vmem>>, %arg4: memref<256x256xbf16, #tpu.memory_space<vmem>>, %arg5: memref<256x256xbf16, #tpu.memory_space<vmem>>, %arg6: memref<256x256xbf16, #tpu.memory_space<vmem>>, %arg7: memref<1x256xf32, #tpu.memory_space<vmem>>, %arg8: memref<1x256x256xf32, #tpu.memory_space<vmem>>, %arg9: memref<512x256xbf16, #tpu.memory_space<vmem>>, %arg10: memref<512x256xbf16, #tpu.memory_space<vmem>>, %arg11: memref<256x256xbf16, #tpu.memory_space<vmem>>) attributes {dimension_semantics = [#tpu.dimension_semantics<parallel>, #tpu.dimension_semantics<arbitrary>], iteration_bounds = array<i64: 2, 2>, scalar_prefetch = 0 : i64, scratch_operands = 3 : i64, tpu.core_type = #tpu.core_type<tc>, window_params = [{transform_indices = @transform_0, window_bounds = array<i64: 1, 512, 256>}, {pipeline_mode = #tpu.pipeline_mode<synchronous>, transform_indices = @transform_1, window_bounds = array<i64: 256, 256>}, {pipeline_mode = #tpu.pipeline_mode<synchronous>, transform_indices = @transform_2, window_bounds = array<i64: 256, 256>}, {pipeline_mode = #tpu.pipeline_mode<synchronous>, transform_indices = @transform_3, window_bounds = array<i64: 256, 256>}, {pipeline_mode = #tpu.pipeline_mode<synchronous>, transform_indices = @transform_4, window_bounds = array<i64: 256, 256>}, {pipeline_mode = #tpu.pipeline_mode<synchronous>, transform_indices = @transform_5, window_bounds = array<i64: 1, 256>}, {transform_indices = @transform_6, window_bounds = array<i64: 1, 256, 256>}]} {
    %c0_i32 = arith.constant 0 : i32
    %0 = arith.cmpi eq, %arg1, %c0_i32 : i32
    %1 = arith.extui %0 : i1 to i32
    %c0_i32_0 = arith.constant 0 : i32
    %2 = arith.cmpi ne, %1, %c0_i32_0 : i32
    scf.if %2 {
      %c0_47 = arith.constant 0 : index
      %c0_48 = arith.constant 0 : index
      %c0_49 = arith.constant 0 : index
      %96 = vector.load %arg2[%c0_47, %c0_48, %c0_49] : memref<1x512x256xbf16, #tpu.memory_space<vmem>>, vector<1x512x256xbf16>
      %97 = vector.shape_cast %96 : vector<1x512x256xbf16> to vector<512x256xbf16>
      %c0_50 = arith.constant 0 : index
      %c0_51 = arith.constant 0 : index
      %98 = vector.load %arg4[%c0_50, %c0_51] : memref<256x256xbf16, #tpu.memory_space<vmem>>, vector<256x256xbf16>
      %cst_52 = arith.constant dense<0.000000e+00> : vector<512x256xf32>
      %99 = tpu.matmul %97, %98, %cst_52 {dimension_numbers = #tpu.dot_dimension_numbers<[1], [0], [0], [1], [0, 0, 1, 1], [], []>} : vector<512x256xbf16>, vector<256x256xbf16>, vector<512x256xf32> -> vector<512x256xf32>
      %100 = arith.truncf %99 : vector<512x256xf32> to vector<512x256xbf16>
      %c0_53 = arith.constant 0 : index
      %c0_54 = arith.constant 0 : index
      %101 = vector.load %arg9[%c0_53, %c0_54] : memref<512x256xbf16, #tpu.memory_space<vmem>>, vector<512x256xbf16>
      tpu.vector_store %arg9[%c0_53, %c0_54], %100 {strides = array<i32>} : memref<512x256xbf16, #tpu.memory_space<vmem>>, vector<512x256xbf16>,
      %c0_55 = arith.constant 0 : index
      %c0_56 = arith.constant 0 : index
      %102 = vector.load %arg5[%c0_55, %c0_56] : memref<256x256xbf16, #tpu.memory_space<vmem>>, vector<256x256xbf16>
      %cst_57 = arith.constant dense<0.000000e+00> : vector<512x256xf32>
      %103 = tpu.matmul %97, %102, %cst_57 {dimension_numbers = #tpu.dot_dimension_numbers<[1], [0], [0], [1], [0, 0, 1, 1], [], []>} : vector<512x256xbf16>, vector<256x256xbf16>, vector<512x256xf32> -> vector<512x256xf32>
      %104 = arith.truncf %103 : vector<512x256xf32> to vector<512x256xbf16>
      %c0_58 = arith.constant 0 : index
      %c0_59 = arith.constant 0 : index
      %105 = vector.load %arg10[%c0_58, %c0_59] : memref<512x256xbf16, #tpu.memory_space<vmem>>, vector<512x256xbf16>
      tpu.vector_store %arg10[%c0_58, %c0_59], %104 {strides = array<i32>} : memref<512x256xbf16, #tpu.memory_space<vmem>>, vector<512x256xbf16>,
    } else {
    }
    %c256_i32 = arith.constant 256 : i32
    %3 = arith.muli %arg1, %c256_i32 : i32
    %4 = tpu.assume_multiple %3, 256 : i32
    %c0 = arith.constant 0 : index
    %5 = arith.index_cast %4 : i32 to index
    %c0_1 = arith.constant 0 : index
    %6 = vector.load %arg2[%c0, %5, %c0_1] : memref<1x512x256xbf16, #tpu.memory_space<vmem>>, vector<1x256x256xbf16>
    %7 = vector.shape_cast %6 : vector<1x256x256xbf16> to vector<256x256xbf16>
    %c0_2 = arith.constant 0 : index
    %c0_3 = arith.constant 0 : index
    %8 = vector.load %arg3[%c0_2, %c0_3] : memref<256x256xbf16, #tpu.memory_space<vmem>>, vector<256x256xbf16>
    %cst = arith.constant dense<0.000000e+00> : vector<256x256xf32>
    %9 = tpu.matmul %7, %8, %cst {dimension_numbers = #tpu.dot_dimension_numbers<[1], [0], [0], [1], [0, 0, 1, 1], [], []>} : vector<256x256xbf16>, vector<256x256xbf16>, vector<256x256xf32> -> vector<256x256xf32>
    %10 = arith.truncf %9 : vector<256x256xf32> to vector<256x256xbf16>
    %11 = vector.extract_strided_slice %10 {offsets = [0, 0], sizes = [256, 64], strides = [1, 1]} : vector<256x256xbf16> to vector<256x64xbf16>
    %c0_4 = arith.constant 0 : index
    %c0_5 = arith.constant 0 : index
    %12 = vector.load %arg9[%c0_4, %c0_5] : memref<512x256xbf16, #tpu.memory_space<vmem>>, vector<512x64xbf16>
    %c0_6 = arith.constant 0 : index
    %c0_7 = arith.constant 0 : index
    %13 = vector.load %arg10[%c0_6, %c0_7] : memref<512x256xbf16, #tpu.memory_space<vmem>>, vector<512x64xbf16>
    %cst_8 = arith.constant dense<0.000000e+00> : vector<256x512xf32>
    %14 = tpu.matmul %11, %12, %cst_8 {dimension_numbers = #tpu.dot_dimension_numbers<[1], [1], [0], [0], [0, 0, 1, 0], [], []>} : vector<256x64xbf16>, vector<512x64xbf16>, vector<256x512xf32> -> vector<256x512xf32>
    %cst_9 = arith.constant dense<0xFF800000> : vector<256xf32>
    %15 = vector.multi_reduction <maximumf>, %14, %cst_9 [1] : vector<256x512xf32> to vector<256xf32>
    %16 = vector.shape_cast %15 : vector<256xf32> to vector<256x1xf32>
    %17 = vector.broadcast %16 : vector<256x1xf32> to vector<256x512xf32>
    %18 = arith.subf %14, %17 : vector<256x512xf32>
    %19 = arith.truncf %18 : vector<256x512xf32> to vector<256x512xbf16>
    %20 = math.exp %19 : vector<256x512xbf16>
    %21 = arith.extf %20 : vector<256x512xbf16> to vector<256x512xf32>
    %cst_10 = arith.constant dense<0.000000e+00> : vector<256xf32>
    %22 = vector.multi_reduction <add>, %21, %cst_10 [1] : vector<256x512xf32> to vector<256xf32>
    %23 = vector.shape_cast %22 : vector<256xf32> to vector<256x1xf32>
    %cst_11 = arith.constant dense<0.000000e+00> : vector<256x64xf32>
    %24 = tpu.matmul %20, %13, %cst_11 {dimension_numbers = #tpu.dot_dimension_numbers<[1], [0], [0], [1], [0, 0, 1, 1], [], []>} : vector<256x512xbf16>, vector<512x64xbf16>, vector<256x64xf32> -> vector<256x64xf32>
    %25 = tpu.reciprocal %23 {approx = true} : vector<256x1xf32> -> vector<256x1xf32>
    %26 = vector.broadcast %25 : vector<256x1xf32> to vector<256x64xf32>
    %27 = arith.mulf %24, %26 : vector<256x64xf32>
    %28 = arith.truncf %27 : vector<256x64xf32> to vector<256x64xbf16>
    %29 = vector.extract_strided_slice %10 {offsets = [0, 64], sizes = [256, 64], strides = [1, 1]} : vector<256x256xbf16> to vector<256x64xbf16>
    %c0_12 = arith.constant 0 : index
    %c64 = arith.constant 64 : index
    %30 = vector.load %arg9[%c0_12, %c64] : memref<512x256xbf16, #tpu.memory_space<vmem>>, vector<512x64xbf16>
    %c0_13 = arith.constant 0 : index
    %c64_14 = arith.constant 64 : index
    %31 = vector.load %arg10[%c0_13, %c64_14] : memref<512x256xbf16, #tpu.memory_space<vmem>>, vector<512x64xbf16>
    %cst_15 = arith.constant dense<0.000000e+00> : vector<256x512xf32>
    %32 = tpu.matmul %29, %30, %cst_15 {dimension_numbers = #tpu.dot_dimension_numbers<[1], [1], [0], [0], [0, 0, 1, 0], [], []>} : vector<256x64xbf16>, vector<512x64xbf16>, vector<256x512xf32> -> vector<256x512xf32>
    %cst_16 = arith.constant dense<0xFF800000> : vector<256xf32>
    %33 = vector.multi_reduction <maximumf>, %32, %cst_16 [1] : vector<256x512xf32> to vector<256xf32>
    %34 = vector.shape_cast %33 : vector<256xf32> to vector<256x1xf32>
    %35 = vector.broadcast %34 : vector<256x1xf32> to vector<256x512xf32>
    %36 = arith.subf %32, %35 : vector<256x512xf32>
    %37 = arith.truncf %36 : vector<256x512xf32> to vector<256x512xbf16>
    %38 = math.exp %37 : vector<256x512xbf16>
    %39 = arith.extf %38 : vector<256x512xbf16> to vector<256x512xf32>
    %cst_17 = arith.constant dense<0.000000e+00> : vector<256xf32>
    %40 = vector.multi_reduction <add>, %39, %cst_17 [1] : vector<256x512xf32> to vector<256xf32>
    %41 = vector.shape_cast %40 : vector<256xf32> to vector<256x1xf32>
    %cst_18 = arith.constant dense<0.000000e+00> : vector<256x64xf32>
    %42 = tpu.matmul %38, %31, %cst_18 {dimension_numbers = #tpu.dot_dimension_numbers<[1], [0], [0], [1], [0, 0, 1, 1], [], []>} : vector<256x512xbf16>, vector<512x64xbf16>, vector<256x64xf32> -> vector<256x64xf32>
    %43 = tpu.reciprocal %41 {approx = true} : vector<256x1xf32> -> vector<256x1xf32>
    %44 = vector.broadcast %43 : vector<256x1xf32> to vector<256x64xf32>
    %45 = arith.mulf %42, %44 : vector<256x64xf32>
    %46 = arith.truncf %45 : vector<256x64xf32> to vector<256x64xbf16>
    %47 = tpu.concatenate %28, %46 in 1 : vector<256x64xbf16>, vector<256x64xbf16> -> vector<256x128xbf16>
    %c0_19 = arith.constant 0 : index
    %c0_20 = arith.constant 0 : index
    %48 = vector.load %arg11[%c0_19, %c0_20] : memref<256x256xbf16, #tpu.memory_space<vmem>>, vector<256x128xbf16>
    tpu.vector_store %arg11[%c0_19, %c0_20], %47 {strides = array<i32>} : memref<256x256xbf16, #tpu.memory_space<vmem>>, vector<256x128xbf16>,
    %49 = vector.extract_strided_slice %10 {offsets = [0, 128], sizes = [256, 64], strides = [1, 1]} : vector<256x256xbf16> to vector<256x64xbf16>
    %c0_21 = arith.constant 0 : index
    %c128 = arith.constant 128 : index
    %50 = vector.load %arg9[%c0_21, %c128] : memref<512x256xbf16, #tpu.memory_space<vmem>>, vector<512x64xbf16>
    %c0_22 = arith.constant 0 : index
    %c128_23 = arith.constant 128 : index
    %51 = vector.load %arg10[%c0_22, %c128_23] : memref<512x256xbf16, #tpu.memory_space<vmem>>, vector<512x64xbf16>
    %cst_24 = arith.constant dense<0.000000e+00> : vector<256x512xf32>
    %52 = tpu.matmul %49, %50, %cst_24 {dimension_numbers = #tpu.dot_dimension_numbers<[1], [1], [0], [0], [0, 0, 1, 0], [], []>} : vector<256x64xbf16>, vector<512x64xbf16>, vector<256x512xf32> -> vector<256x512xf32>
    %cst_25 = arith.constant dense<0xFF800000> : vector<256xf32>
    %53 = vector.multi_reduction <maximumf>, %52, %cst_25 [1] : vector<256x512xf32> to vector<256xf32>
    %54 = vector.shape_cast %53 : vector<256xf32> to vector<256x1xf32>
    %55 = vector.broadcast %54 : vector<256x1xf32> to vector<256x512xf32>
    %56 = arith.subf %52, %55 : vector<256x512xf32>
    %57 = arith.truncf %56 : vector<256x512xf32> to vector<256x512xbf16>
    %58 = math.exp %57 : vector<256x512xbf16>
    %59 = arith.extf %58 : vector<256x512xbf16> to vector<256x512xf32>
    %cst_26 = arith.constant dense<0.000000e+00> : vector<256xf32>
    %60 = vector.multi_reduction <add>, %59, %cst_26 [1] : vector<256x512xf32> to vector<256xf32>
    %61 = vector.shape_cast %60 : vector<256xf32> to vector<256x1xf32>
    %cst_27 = arith.constant dense<0.000000e+00> : vector<256x64xf32>
    %62 = tpu.matmul %58, %51, %cst_27 {dimension_numbers = #tpu.dot_dimension_numbers<[1], [0], [0], [1], [0, 0, 1, 1], [], []>} : vector<256x512xbf16>, vector<512x64xbf16>, vector<256x64xf32> -> vector<256x64xf32>
    %63 = tpu.reciprocal %61 {approx = true} : vector<256x1xf32> -> vector<256x1xf32>
    %64 = vector.broadcast %63 : vector<256x1xf32> to vector<256x64xf32>
    %65 = arith.mulf %62, %64 : vector<256x64xf32>
    %66 = arith.truncf %65 : vector<256x64xf32> to vector<256x64xbf16>
    %67 = vector.extract_strided_slice %10 {offsets = [0, 192], sizes = [256, 64], strides = [1, 1]} : vector<256x256xbf16> to vector<256x64xbf16>
    %c0_28 = arith.constant 0 : index
    %c192 = arith.constant 192 : index
    %68 = vector.load %arg9[%c0_28, %c192] : memref<512x256xbf16, #tpu.memory_space<vmem>>, vector<512x64xbf16>
    %c0_29 = arith.constant 0 : index
    %c192_30 = arith.constant 192 : index
    %69 = vector.load %arg10[%c0_29, %c192_30] : memref<512x256xbf16, #tpu.memory_space<vmem>>, vector<512x64xbf16>
    %cst_31 = arith.constant dense<0.000000e+00> : vector<256x512xf32>
    %70 = tpu.matmul %67, %68, %cst_31 {dimension_numbers = #tpu.dot_dimension_numbers<[1], [1], [0], [0], [0, 0, 1, 0], [], []>} : vector<256x64xbf16>, vector<512x64xbf16>, vector<256x512xf32> -> vector<256x512xf32>
    %cst_32 = arith.constant dense<0xFF800000> : vector<256xf32>
    %71 = vector.multi_reduction <maximumf>, %70, %cst_32 [1] : vector<256x512xf32> to vector<256xf32>
    %72 = vector.shape_cast %71 : vector<256xf32> to vector<256x1xf32>
    %73 = vector.broadcast %72 : vector<256x1xf32> to vector<256x512xf32>
    %74 = arith.subf %70, %73 : vector<256x512xf32>
    %75 = arith.truncf %74 : vector<256x512xf32> to vector<256x512xbf16>
    %76 = math.exp %75 : vector<256x512xbf16>
    %77 = arith.extf %76 : vector<256x512xbf16> to vector<256x512xf32>
    %cst_33 = arith.constant dense<0.000000e+00> : vector<256xf32>
    %78 = vector.multi_reduction <add>, %77, %cst_33 [1] : vector<256x512xf32> to vector<256xf32>
    %79 = vector.shape_cast %78 : vector<256xf32> to vector<256x1xf32>
    %cst_34 = arith.constant dense<0.000000e+00> : vector<256x64xf32>
    %80 = tpu.matmul %76, %69, %cst_34 {dimension_numbers = #tpu.dot_dimension_numbers<[1], [0], [0], [1], [0, 0, 1, 1], [], []>} : vector<256x512xbf16>, vector<512x64xbf16>, vector<256x64xf32> -> vector<256x64xf32>
    %81 = tpu.reciprocal %79 {approx = true} : vector<256x1xf32> -> vector<256x1xf32>
    %82 = vector.broadcast %81 : vector<256x1xf32> to vector<256x64xf32>
    %83 = arith.mulf %80, %82 : vector<256x64xf32>
    %84 = arith.truncf %83 : vector<256x64xf32> to vector<256x64xbf16>
    %85 = tpu.concatenate %66, %84 in 1 : vector<256x64xbf16>, vector<256x64xbf16> -> vector<256x128xbf16>
    %c0_35 = arith.constant 0 : index
    %c128_36 = arith.constant 128 : index
    %86 = vector.load %arg11[%c0_35, %c128_36] : memref<256x256xbf16, #tpu.memory_space<vmem>>, vector<256x128xbf16>
    tpu.vector_store %arg11[%c0_35, %c128_36], %85 {strides = array<i32>} : memref<256x256xbf16, #tpu.memory_space<vmem>>, vector<256x128xbf16>,
    %c0_37 = arith.constant 0 : index
    %c0_38 = arith.constant 0 : index
    %87 = vector.load %arg11[%c0_37, %c0_38] : memref<256x256xbf16, #tpu.memory_space<vmem>>, vector<256x256xbf16>
    %c0_39 = arith.constant 0 : index
    %c0_40 = arith.constant 0 : index
    %88 = vector.load %arg6[%c0_39, %c0_40] : memref<256x256xbf16, #tpu.memory_space<vmem>>, vector<256x256xbf16>
    %cst_41 = arith.constant dense<0.000000e+00> : vector<256x256xf32>
    %89 = tpu.matmul %87, %88, %cst_41 {dimension_numbers = #tpu.dot_dimension_numbers<[1], [0], [0], [1], [0, 0, 1, 1], [], []>} : vector<256x256xbf16>, vector<256x256xbf16>, vector<256x256xf32> -> vector<256x256xf32>
    %c0_42 = arith.constant 0 : index
    %c0_43 = arith.constant 0 : index
    %90 = vector.load %arg7[%c0_42, %c0_43] : memref<1x256xf32, #tpu.memory_space<vmem>>, vector<1x256xf32>
    %91 = vector.broadcast %90 : vector<1x256xf32> to vector<256x256xf32>
    %92 = arith.addf %89, %91 : vector<256x256xf32>
    %c0_44 = arith.constant 0 : index
    %c0_45 = arith.constant 0 : index
    %c0_46 = arith.constant 0 : index
    %93 = vector.load %arg8[%c0_44, %c0_45, %c0_46] : memref<1x256x256xf32, #tpu.memory_space<vmem>>, vector<1x256x256xf32>
    %94 = vector.shape_cast %93 : vector<1x256x256xf32> to vector<256x256xf32>
    %95 = vector.shape_cast %92 : vector<256x256xf32> to vector<1x256x256xf32>
    tpu.vector_store %arg8[%c0_44, %c0_45, %c0_46], %95 {strides = array<i32>} : memref<1x256x256xf32, #tpu.memory_space<vmem>>, vector<1x256x256xf32>,
    return
  }
  func.func @transform_0(%arg0: i32, %arg1: i32) -> (i32, i32, i32) {
    %c0_i32 = arith.constant 0 : i32
    %c0_i32_0 = arith.constant 0 : i32
    %c0_i32_1 = arith.constant 0 : i32
    return %arg0, %c0_i32, %c0_i32_0 : i32, i32, i32
  }
  func.func @transform_1(%arg0: i32, %arg1: i32) -> (i32, i32) {
    %c0_i32 = arith.constant 0 : i32
    %c0_i32_0 = arith.constant 0 : i32
    %c0_i32_1 = arith.constant 0 : i32
    return %c0_i32, %c0_i32_0 : i32, i32
  }
  func.func @transform_2(%arg0: i32, %arg1: i32) -> (i32, i32) {
    %c0_i32 = arith.constant 0 : i32
    %c0_i32_0 = arith.constant 0 : i32
    %c0_i32_1 = arith.constant 0 : i32
    return %c0_i32, %c0_i32_0 : i32, i32
  }
  func.func @transform_3(%arg0: i32, %arg1: i32) -> (i32, i32) {
    %c0_i32 = arith.constant 0 : i32
    %c0_i32_0 = arith.constant 0 : i32
    %c0_i32_1 = arith.constant 0 : i32
    return %c0_i32, %c0_i32_0 : i32, i32
  }
  func.func @transform_4(%arg0: i32, %arg1: i32) -> (i32, i32) {
    %c0_i32 = arith.constant 0 : i32
    %c0_i32_0 = arith.constant 0 : i32
    %c0_i32_1 = arith.constant 0 : i32
    return %c0_i32, %c0_i32_0 : i32, i32
  }
  func.func @transform_5(%arg0: i32, %arg1: i32) -> (i32, i32) {
    %c0_i32 = arith.constant 0 : i32
    %c0_i32_0 = arith.constant 0 : i32
    %c0_i32_1 = arith.constant 0 : i32
    return %c0_i32, %c0_i32_0 : i32, i32
  }
  func.func @transform_6(%arg0: i32, %arg1: i32) -> (i32, i32, i32) {
    %c0_i32 = arith.constant 0 : i32
    %c0_i32_0 = arith.constant 0 : i32
    return %arg0, %arg1, %c0_i32 : i32, i32, i32
  }
}

</mosaic_0001>

<llo_original>
// kernel: tpu_custom_call.1
$region0: #{tpu_custom_call.1}
  #allocation0 [shape = 'u32[]', space=smem, size = 0x4, offset = 0x4, fixed_abs, tag = 'smem constant byte address 0x4 - core index']
  #allocation1 [shape = 'u32[144,128]{1,0:T(1,128)}', space=vmem, size = 0x12000, scoped, tag = 'internal scratch']
  %s0 = inlined_call_operand.hbm [shape: f32[8,128], index: 0, kind: input, shape index: {}]
  %s1 = inlined_call_operand.hbm [shape: f32[16,128], index: 1, kind: input, shape index: {}]
  %s2 = inlined_call_operand.hbm [shape: f32[16,128], index: 2, kind: output, shape index: {}]
  %s3 = sld [smem:[#allocation0]]
  $region49: #{tpu_custom_call.1} parent=0
    _
  %s5 = ssub.s32 1, %s3
  %s6 = scalar_select 0, %s5, %s3
  $region1: #{tpu_custom_call.1} parent=0
    #allocation2 [shape = 'u8[4096]{0}', space=vmem, size = 0x1000, scoped, tag = 'input window, operand 0, single buffered']
    #allocation3 [shape = 's32[2]{0}', space=sflag, size = 0x8, scoped, tag = 'scoped memory for tpu_custom_call.1']
    #allocation4 [shape = 's32[2]{0}', space=sflag, size = 0x8, scoped, tag = 'scoped memory for tpu_custom_call.1']
    #allocation5 [shape = 'u8[8192]{0}', space=vmem, size = 0x2000, scoped, tag = 'input window, operand 1']
    #allocation6 [shape = 's32[2]{0}', space=sflag, size = 0x8, scoped, tag = 'scoped memory for tpu_custom_call.1']
    #allocation7 [shape = 'u8[8192]{0}', space=vmem, size = 0x2000, scoped, tag = 'output window, operand 0']
    %7 = vsyncpa [#allocation3], 0
    %8 = vsyncpa [#allocation6], 0
    %s9 = scalar_lea.sflag [#allocation6], 1
    %10 = vsyncpa %s9, 0
    %11 = vsyncpa [#allocation4], 0
    %s12 = scalar_lea.sflag [#allocation4], 1
    %13 = vsyncpa %s12, 0
    loop: start=0, step=1, limit=4
    $region2: #{tpu_custom_call.1} parent=1 // loop_pre_header
      _
    $region3: #{tpu_custom_call.1} parent=1 // loop_header
      %s15 = sphi 0, %s19
      %p16 = scmp.ge.s32.totalorder %s15, 4
      %s23 = sphi 0, %s23
      %s25 = sphi 0, %s23
      %s26 = sphi 0, %s25
      %s40 = sphi 0, %s26
      %s46 = sphi 0, %s48
      %s49 = sphi 0, %s46
      %s50 = sphi 0, %s49
      %s66 = sphi 0, %s50
      %s72 = sphi 0, %s74
      %s75 = sphi 0, %s72
      %s76 = sphi 0, %s75
      %s92 = sphi 0, %s76
    $region4: #{tpu_custom_call.1} parent=1 // loop_header_branch
      %18 = sbr.rel (%p16) target = $region8
    $region5: #{tpu_custom_call.1} parent=1 // loop_body
      %s20 = ssub.s32 %s15, 1
      %s21 = ssub.s32 %s15, 2
      %s22 = sadd.s32 %s15, 1
      %s24 = sadd.s32 %s23, 1
      %p27 = scmp.eq.s32.totalorder %s15, 1
      %p28 = scmp.ne.s32.totalorder %s23, %s25
      %p29 = scmp.eq.s32.totalorder %s15, 0
      %p30 = por %p28, %p29
      %p31 = scmp.ne.s32.totalorder %s23, %s25
      %p32 = scmp.eq.s32.totalorder %s20, 1
      %p33 = por %p31, %p32
      %p34 = scmp.ne.s32.totalorder %s25, %s26
      %p35 = scmp.eq.s32.totalorder %s20, 0
      %p36 = por %p34, %p35
      %p37 = scmp.ne.s32.totalorder %s25, %s26
      %p38 = scmp.eq.s32.totalorder %s21, 1
      %p39 = por %p37, %p38
      %p41 = scmp.ne.s32.totalorder %s26, %s40
      %p42 = scmp.eq.s32.totalorder %s21, 0
      %p43 = por %p41, %p42
      %s44 = ssub.s32 %s15, %s22
      %p45 = scmp.eq.s32.totalorder %s44, 0
      %s47 = sadd.s32 %s46, 1
      %s48 = scalar_select %p45, %s46, %s47
      %p51 = pneg %p45
      %p52 = scmp.eq.s32.totalorder %s15, 1
      %p53 = por %p51, %p52
      %p54 = scmp.ne.s32.totalorder %s46, %s49
      %p55 = scmp.eq.s32.totalorder %s15, 0
      %p56 = por %p54, %p55
      %p57 = scmp.ne.s32.totalorder %s46, %s49
      %p58 = scmp.eq.s32.totalorder %s20, 1
      %p59 = por %p57, %p58
      %p60 = scmp.ne.s32.totalorder %s49, %s50
      %p61 = scmp.eq.s32.totalorder %s20, 0
      %p62 = por %p60, %p61
      %p63 = scmp.ne.s32.totalorder %s49, %s50
      %p64 = scmp.eq.s32.totalorder %s21, 1
      %p65 = por %p63, %p64
      %p67 = scmp.ne.s32.totalorder %s50, %s66
      %p68 = scmp.eq.s32.totalorder %s21, 0
      %p69 = por %p67, %p68
      %s70 = ssub.s32 %s15, %s22
      %p71 = scmp.eq.s32.totalorder %s70, 0
      %s73 = sadd.s32 %s72, 1
      %s74 = scalar_select %p71, %s72, %s73
      %p77 = pneg %p71
      %p78 = scmp.eq.s32.totalorder %s15, 1
      %p79 = por %p77, %p78
      %p80 = scmp.ne.s32.totalorder %s72, %s75
      %p81 = scmp.eq.s32.totalorder %s15, 0
      %p82 = por %p80, %p81
      %p83 = scmp.ne.s32.totalorder %s72, %s75
      %p84 = scmp.eq.s32.totalorder %s20, 1
      %p85 = por %p83, %p84
      %p86 = scmp.ne.s32.totalorder %s75, %s76
      %p87 = scmp.eq.s32.totalorder %s20, 0
      %p88 = por %p86, %p87
      %p89 = scmp.ne.s32.totalorder %s75, %s76
      %p90 = scmp.eq.s32.totalorder %s21, 1
      %p91 = por %p89, %p90
      %p93 = scmp.ne.s32.totalorder %s76, %s92
      %p94 = scmp.eq.s32.totalorder %s21, 0
      %p95 = por %p93, %p94
      %p96 = scmp.le.s32.totalorder 1, %s15
      %p97 = scmp.lt.s32.totalorder %s15, 3
      %p98 = pnand %p96, %p97
      %p99 = pneg %p98
      // Predicated region
      $region9: #{tpu_custom_call.1} parent=5 // pred_check
        _
      $region10: #{tpu_custom_call.1} parent=5 // pred_check_branch
        %101 = sbr.rel (%p98) target = $region12
      $region11: #{tpu_custom_call.1} parent=5 // pred_region
        %s102 = ssub.s32 %s15, 1
        // Predicated region
        $region13: #{tpu_custom_call.1} parent=11 // pred_check
          %p103 = pneg %p36
        $region14: #{tpu_custom_call.1} parent=11 // pred_check_branch
          %105 = sbr.rel (%p103) target = $region16
        $region15: #{tpu_custom_call.1} parent=11 // pred_region
          %s107 = ssub.s32 128, 128
          %108 = vsyncadd [#allocation3], %s107
          %s110 = sshll.u32 [#allocation2], 4
          %s111 = int_to_ptr.vmem [resolvable:$true] %s110
          %113 = dma.hbm_to_vmem [thread:$0]  %s0, 128, %s111, [#allocation3]
        $region16: #{tpu_custom_call.1} parent=11 // pred_fallthru
          _
      $region12: #{tpu_custom_call.1} parent=5 // pred_fallthru
        _
      %p114 = scmp.lt.s32.totalorder %s15, 2
      // Predicated region
      $region17: #{tpu_custom_call.1} parent=5 // pred_check
        %p115 = pneg %p114
      $region18: #{tpu_custom_call.1} parent=5 // pred_check_branch
        %117 = sbr.rel (%p115) target = $region20
      $region19: #{tpu_custom_call.1} parent=5 // pred_region
        // Predicated region
        $region21: #{tpu_custom_call.1} parent=19 // pred_check
          %p118 = pneg %p56
        $region22: #{tpu_custom_call.1} parent=19 // pred_check_branch
          %120 = sbr.rel (%p118) target = $region24
        $region23: #{tpu_custom_call.1} parent=19 // pred_region
          %s121 = sand.u32 %s46, 1
          %s122 = scalar_lea.sflag [#allocation6], %s121
          %s123 = sand.u32 %s46, 1
          %s124 = smul.addr %s123, 8
          %s125 = scalar_lea.vmem [#allocation5], %s124
          %s127 = ssub.s32 128, 128
          %128 = vsyncadd %s122, %s127
          %s129 = smul.addr %s15, 128
          %s130 = scalar_lea.hbm %s1, %s129
          %s132 = sshll.u32 %s125, 4
          %s133 = int_to_ptr.vmem [resolvable:$true] %s132
          %135 = dma.hbm_to_vmem [thread:$0]  %s130, 128, %s133, %s122
        $region24: #{tpu_custom_call.1} parent=19 // pred_fallthru
          _
      $region20: #{tpu_custom_call.1} parent=5 // pred_fallthru
        _
      %p136 = scmp.le.s32.totalorder 1, %s15
      %p137 = scmp.lt.s32.totalorder %s15, 3
      %p138 = pnand %p136, %p137
      %p139 = pneg %p138
      // Predicated region
      $region25: #{tpu_custom_call.1} parent=5 // pred_check
        _
      $region26: #{tpu_custom_call.1} parent=5 // pred_check_branch
        %141 = sbr.rel (%p138) target = $region28
      $region27: #{tpu_custom_call.1} parent=5 // pred_region
        %s142 = ssub.s32 %s15, 1
        // Predicated region
        $region29: #{tpu_custom_call.1} parent=27 // pred_check
          %p143 = pneg %p36
        $region30: #{tpu_custom_call.1} parent=27 // pred_check_branch
          %145 = sbr.rel (%p143) target = $region32
        $region31: #{tpu_custom_call.1} parent=27 // pred_region
          %146 = dma.done [#allocation3], 128
        $region32: #{tpu_custom_call.1} parent=27 // pred_fallthru
          _
        %s147 = sand.u32 %s49, 1
        %s148 = scalar_lea.sflag [#allocation6], %s147
        %s149 = sand.u32 %s49, 1
        %s150 = smul.addr %s149, 8
        %s151 = scalar_lea.vmem [#allocation5], %s150
        // Predicated region
        $region33: #{tpu_custom_call.1} parent=27 // pred_check
          %p152 = pneg %p62
        $region34: #{tpu_custom_call.1} parent=27 // pred_check_branch
          %154 = sbr.rel (%p152) target = $region36
        $region35: #{tpu_custom_call.1} parent=27 // pred_region
          %155 = dma.done %s148, 128
        $region36: #{tpu_custom_call.1} parent=27 // pred_fallthru
          _
        %p156 = pneg %p36
        %p157 = pneg %p33
        %s158 = sand.u32 %s49, 1
        %s159 = scalar_lea.sflag [#allocation6], %s158
        %s160 = sand.u32 %s49, 1
        %s161 = smul.addr %s160, 8
        %s162 = scalar_lea.vmem [#allocation5], %s161
        %p163 = pneg %p62
        %p164 = pneg %p59
        %p165 = pneg %p88
        %p166 = pneg %p85
        %s167 = sand.u32 %s75, 1
        %s168 = scalar_lea.sflag [#allocation4], %s167
        %s169 = sand.u32 %s75, 1
        %s170 = smul.addr %s169, 8
        %s171 = scalar_lea.vmem [#allocation7], %s170
        %v172 = vld [vmem:[%s151] sm:$0xff]
        %v173 = vld [vmem:[#allocation2] sm:$0xff]
        %v174 = vadd.f32 %v172, %v173
        %175 = vst [vmem:[%s171] sm:$0xff] %v174
        %s176 = sand.u32 %s75, 1
        %s177 = scalar_lea.sflag [#allocation4], %s176
        %s178 = sand.u32 %s75, 1
        %s179 = smul.addr %s178, 8
        %s180 = scalar_lea.vmem [#allocation7], %s179
        // Predicated region
        $region37: #{tpu_custom_call.1} parent=27 // pred_check
          %p181 = pneg %p85
        $region38: #{tpu_custom_call.1} parent=27 // pred_check_branch
          %183 = sbr.rel (%p181) target = $region40
        $region39: #{tpu_custom_call.1} parent=27 // pred_region
          %s185 = ssub.s32 128, 128
          %186 = vsyncadd %s177, %s185
          %s187 = smul.addr %s20, 128
          %s188 = scalar_lea.hbm %s2, %s187
          %s190 = sshll.u32 %s180, 4
          %s191 = int_to_ptr.vmem [resolvable:$true] %s190
          %193 = dma.vmem_to_hbm [thread:$0]  %s191, 128, %s188, %s177
        $region40: #{tpu_custom_call.1} parent=27 // pred_fallthru
          _
      $region28: #{tpu_custom_call.1} parent=5 // pred_fallthru
        _
      %p194 = scmp.le.s32.totalorder 2, %s15
      // Predicated region
      $region41: #{tpu_custom_call.1} parent=5 // pred_check
        %p195 = pneg %p194
      $region42: #{tpu_custom_call.1} parent=5 // pred_check_branch
        %197 = sbr.rel (%p195) target = $region44
      $region43: #{tpu_custom_call.1} parent=5 // pred_region
        %s198 = ssub.s32 %s15, 2
        // Predicated region
        $region45: #{tpu_custom_call.1} parent=43 // pred_check
          %p199 = pneg %p91
        $region46: #{tpu_custom_call.1} parent=43 // pred_check_branch
          %201 = sbr.rel (%p199) target = $region48
        $region47: #{tpu_custom_call.1} parent=43 // pred_region
          %s202 = sand.u32 %s76, 1
          %s203 = scalar_lea.sflag [#allocation4], %s202
          %s204 = sand.u32 %s76, 1
          %s205 = smul.addr %s204, 8
          %s206 = scalar_lea.vmem [#allocation7], %s205
          %207 = dma.done %s203, 128
        $region48: #{tpu_custom_call.1} parent=43 // pred_fallthru
          _
      $region44: #{tpu_custom_call.1} parent=5 // pred_fallthru
        _
    $region6: #{tpu_custom_call.1} parent=1 // loop_footer
      %s19 = sadd.s32 1, %s15
    $region7: #{tpu_custom_call.1} parent=1 // loop_footer_branch
      %14 = sbr.rel target = $region3
    $region8: #{tpu_custom_call.1} parent=1 // loop_exit
      _
    %208 = vsyncpa [#allocation3], 1
    %s209 = scalar_lea.sflag [#allocation3], 1
    %210 = vsyncpa %s209, 1
    %211 = vsyncpa [#allocation6], 1
    %s212 = scalar_lea.sflag [#allocation6], 1
    %213 = vsyncpa %s212, 1
    %214 = vsyncpa [#allocation4], 1
    %s215 = scalar_lea.sflag [#allocation4], 1
    %216 = vsyncpa %s215, 1

// kernel: tpu_custom_call.1
$region0: #{tpu_custom_call.1}
  #allocation0 [shape = 'u32[]', space=smem, size = 0x4, offset = 0x4, fixed_abs, tag = 'smem constant byte address 0x4 - core index']
  #allocation1 [shape = 'u32[144,128]{1,0:T(1,128)}', space=vmem, size = 0x12000, scoped, tag = 'internal scratch']
  #allocation2 [shape = 'bf16[512,256]{1,0:T(16,128)(2,1)}', space=vmem, size = 0x40000, scoped, tag = 'scratch operand']
  #allocation3 [shape = 'bf16[512,256]{1,0:T(16,128)(2,1)}', space=vmem, size = 0x40000, scoped, tag = 'scratch operand']
  #allocation4 [shape = 'bf16[256,256]{1,0:T(16,128)(2,1)}', space=vmem, size = 0x20000, scoped, tag = 'scratch operand']
  %s0 = inlined_call_operand.hbm [shape: bf16[2,512,256], index: 0, kind: input, shape index: {}]
  %s1 = inlined_call_operand.hbm [shape: bf16[256,256], index: 1, kind: input, shape index: {}]
  %s2 = inlined_call_operand.hbm [shape: bf16[256,256], index: 2, kind: input, shape index: {}]
  %s3 = inlined_call_operand.hbm [shape: bf16[256,256], index: 3, kind: input, shape index: {}]
  %s4 = inlined_call_operand.hbm [shape: bf16[256,256], index: 4, kind: input, shape index: {}]
  %s5 = inlined_call_operand.vmem [shape: f32[1,256], index: 5, kind: input, shape index: {}]
  %s6 = inlined_call_operand.hbm [shape: f32[2,512,256], index: 6, kind: output, shape index: {}]
  %s7 = sld [smem:[#allocation0]]
  $region81: #{tpu_custom_call.1} parent=0
    _
  %s9 = ssub.s32 1, %s7
  %s10 = scalar_select 0, %s9, %s7
  $region1: #{tpu_custom_call.1} parent=0
    #allocation5 [shape = 'u8[524288]{0}', space=vmem, size = 0x80000, scoped, tag = 'input window, operand 0']
    #allocation6 [shape = 's32[2]{0}', space=sflag, size = 0x8, scoped, tag = 'scoped memory for tpu_custom_call.1']
    #allocation7 [shape = 's32[2]{0}', space=sflag, size = 0x8, scoped, tag = 'scoped memory for tpu_custom_call.1']
    #allocation8 [shape = 'u8[131072]{0}', space=vmem, size = 0x20000, scoped, tag = 'input window, operand 1, single buffered']
    #allocation9 [shape = 's32[1]{0}', space=sflag, size = 0x4, scoped, tag = 'scoped memory for tpu_custom_call.1']
    #allocation10 [shape = 'u8[131072]{0}', space=vmem, size = 0x20000, scoped, tag = 'input window, operand 2, single buffered']
    #allocation11 [shape = 'u8[131072]{0}', space=vmem, size = 0x20000, scoped, tag = 'input window, operand 3, single buffered']
    #allocation12 [shape = 's32[1]{0}', space=sflag, size = 0x4, scoped, tag = 'scoped memory for tpu_custom_call.1']
    #allocation13 [shape = 'u8[131072]{0}', space=vmem, size = 0x20000, scoped, tag = 'input window, operand 4, single buffered']
    #allocation14 [shape = 'u8[524288]{0}', space=vmem, size = 0x80000, scoped, tag = 'output window, operand 0']
    %11 = vsyncpa [#allocation6], 0
    %s12 = scalar_lea.sflag [#allocation6], 1
    %13 = vsyncpa %s12, 0
    %14 = vsyncpa [#allocation9], 0
    %15 = vsyncpa [#allocation12], 0
    %16 = vsyncpa [#allocation7], 0
    %s17 = scalar_lea.sflag [#allocation7], 1
    %18 = vsyncpa %s17, 0
    loop: start=0, step=1, limit=6
    $region2: #{tpu_custom_call.1} parent=1 // loop_pre_header
      _
    $region3: #{tpu_custom_call.1} parent=1 // loop_header
      %s20 = sphi 0, %s24
      %p21 = scmp.ge.s32.totalorder %s20, 6
      %s27 = sphi 0, %s39
      %s28 = sphi 0, %s35
      %s29 = sphi 0, %s27
      %s30 = sphi 0, %s28
      %s31 = sphi 0, %s29
      %s32 = sphi 0, %s30
      %s42 = sphi 0, %s44
      %s45 = sphi 0, %s42
      %s46 = sphi 0, %s45
      %s62 = sphi 0, %s46
      %s66 = sphi 0, %s66
      %s68 = sphi 0, %s66
      %s69 = sphi 0, %s68
      %s83 = sphi 0, %s69
      %s87 = sphi 0, %s87
      %s89 = sphi 0, %s87
      %s90 = sphi 0, %s89
      %s104 = sphi 0, %s90
      %s108 = sphi 0, %s108
      %s110 = sphi 0, %s108
      %s111 = sphi 0, %s110
      %s125 = sphi 0, %s111
      %s129 = sphi 0, %s129
      %s131 = sphi 0, %s129
      %s132 = sphi 0, %s131
      %s146 = sphi 0, %s132
      %s150 = sphi 0, %s150
      %s152 = sphi 0, %s150
      %s153 = sphi 0, %s152
      %s167 = sphi 0, %s153
      %s175 = sphi 0, %s177
      %s178 = sphi 0, %s175
      %s179 = sphi 0, %s178
      %s195 = sphi 0, %s179
    $region4: #{tpu_custom_call.1} parent=1 // loop_header_branch
      %23 = sbr.rel (%p21) target = $region8
    $region5: #{tpu_custom_call.1} parent=1 // loop_body
      %s25 = ssub.s32 %s20, 1
      %s26 = ssub.s32 %s20, 2
      %s33 = sadd.s32 1, %s28
      %p34 = scmp.ge.s32.totalorder %s33, 2
      %s35 = scalar_select %p34, 0, %s33
      %s36 = sadd.s32 1, %s27
      %s37 = scalar_select %p34, %s36, %s27
      %p38 = scmp.ge.s32.totalorder %s37, 2
      %s39 = scalar_select %p38, 0, %s37
      %s40 = ssub.s32 %s27, %s39
      %p41 = scmp.eq.s32.totalorder %s40, 0
      %s43 = sadd.s32 %s42, 1
      %s44 = scalar_select %p41, %s42, %s43
      %p47 = pneg %p41
      %p48 = scmp.eq.s32.totalorder %s20, 3
      %p49 = por %p47, %p48
      %p50 = scmp.ne.s32.totalorder %s42, %s45
      %p51 = scmp.eq.s32.totalorder %s20, 0
      %p52 = por %p50, %p51
      %p53 = scmp.ne.s32.totalorder %s42, %s45
      %p54 = scmp.eq.s32.totalorder %s25, 3
      %p55 = por %p53, %p54
      %p56 = scmp.ne.s32.totalorder %s45, %s46
      %p57 = scmp.eq.s32.totalorder %s25, 0
      %p58 = por %p56, %p57
      %p59 = scmp.ne.s32.totalorder %s45, %s46
      %p60 = scmp.eq.s32.totalorder %s26, 3
      %p61 = por %p59, %p60
      %p63 = scmp.ne.s32.totalorder %s46, %s62
      %p64 = scmp.eq.s32.totalorder %s26, 0
      %p65 = por %p63, %p64
      %s67 = sadd.s32 %s66, 1
      %p70 = scmp.eq.s32.totalorder %s20, 3
      %p71 = scmp.ne.s32.totalorder %s66, %s68
      %p72 = scmp.eq.s32.totalorder %s20, 0
      %p73 = por %p71, %p72
      %p74 = scmp.ne.s32.totalorder %s66, %s68
      %p75 = scmp.eq.s32.totalorder %s25, 3
      %p76 = por %p74, %p75
      %p77 = scmp.ne.s32.totalorder %s68, %s69
      %p78 = scmp.eq.s32.totalorder %s25, 0
      %p79 = por %p77, %p78
      %p80 = scmp.ne.s32.totalorder %s68, %s69
      %p81 = scmp.eq.s32.totalorder %s26, 3
      %p82 = por %p80, %p81
      %p84 = scmp.ne.s32.totalorder %s69, %s83
      %p85 = scmp.eq.s32.totalorder %s26, 0
      %p86 = por %p84, %p85
      %s88 = sadd.s32 %s87, 1
      %p91 = scmp.eq.s32.totalorder %s20, 3
      %p92 = scmp.ne.s32.totalorder %s87, %s89
      %p93 = scmp.eq.s32.totalorder %s20, 0
      %p94 = por %p92, %p93
      %p95 = scmp.ne.s32.totalorder %s87, %s89
      %p96 = scmp.eq.s32.totalorder %s25, 3
      %p97 = por %p95, %p96
      %p98 = scmp.ne.s32.totalorder %s89, %s90
      %p99 = scmp.eq.s32.totalorder %s25, 0
      %p100 = por %p98, %p99
      %p101 = scmp.ne.s32.totalorder %s89, %s90
      %p102 = scmp.eq.s32.totalorder %s26, 3
      %p103 = por %p101, %p102
      %p105 = scmp.ne.s32.totalorder %s90, %s104
      %p106 = scmp.eq.s32.totalorder %s26, 0
      %p107 = por %p105, %p106
      %s109 = sadd.s32 %s108, 1
      %p112 = scmp.eq.s32.totalorder %s20, 3
      %p113 = scmp.ne.s32.totalorder %s108, %s110
      %p114 = scmp.eq.s32.totalorder %s20, 0
      %p115 = por %p113, %p114
      %p116 = scmp.ne.s32.totalorder %s108, %s110
      %p117 = scmp.eq.s32.totalorder %s25, 3
      %p118 = por %p116, %p117
      %p119 = scmp.ne.s32.totalorder %s110, %s111
      %p120 = scmp.eq.s32.totalorder %s25, 0
      %p121 = por %p119, %p120
      %p122 = scmp.ne.s32.totalorder %s110, %s111
      %p123 = scmp.eq.s32.totalorder %s26, 3
      %p124 = por %p122, %p123
      %p126 = scmp.ne.s32.totalorder %s111, %s125
      %p127 = scmp.eq.s32.totalorder %s26, 0
      %p128 = por %p126, %p127
      %s130 = sadd.s32 %s129, 1
      %p133 = scmp.eq.s32.totalorder %s20, 3
      %p134 = scmp.ne.s32.totalorder %s129, %s131
      %p135 = scmp.eq.s32.totalorder %s20, 0
      %p136 = por %p134, %p135
      %p137 = scmp.ne.s32.totalorder %s129, %s131
      %p138 = scmp.eq.s32.totalorder %s25, 3
      %p139 = por %p137, %p138
      %p140 = scmp.ne.s32.totalorder %s131, %s132
      %p141 = scmp.eq.s32.totalorder %s25, 0
      %p142 = por %p140, %p141
      %p143 = scmp.ne.s32.totalorder %s131, %s132
      %p144 = scmp.eq.s32.totalorder %s26, 3
      %p145 = por %p143, %p144
      %p147 = scmp.ne.s32.totalorder %s132, %s146
      %p148 = scmp.eq.s32.totalorder %s26, 0
      %p149 = por %p147, %p148
      %s151 = sadd.s32 %s150, 1
      %p154 = scmp.eq.s32.totalorder %s20, 3
      %p155 = scmp.ne.s32.totalorder %s150, %s152
      %p156 = scmp.eq.s32.totalorder %s20, 0
      %p157 = por %p155, %p156
      %p158 = scmp.ne.s32.totalorder %s150, %s152
      %p159 = scmp.eq.s32.totalorder %s25, 3
      %p160 = por %p158, %p159
      %p161 = scmp.ne.s32.totalorder %s152, %s153
      %p162 = scmp.eq.s32.totalorder %s25, 0
      %p163 = por %p161, %p162
      %p164 = scmp.ne.s32.totalorder %s152, %s153
      %p165 = scmp.eq.s32.totalorder %s26, 3
      %p166 = por %p164, %p165
      %p168 = scmp.ne.s32.totalorder %s153, %s167
      %p169 = scmp.eq.s32.totalorder %s26, 0
      %p170 = por %p168, %p169
      %s171 = ssub.s32 %s27, %s39
      %s172 = ssub.s32 %s28, %s35
      %s173 = sor.u32 %s171, %s172
      %p174 = scmp.eq.s32.totalorder %s173, 0
      %s176 = sadd.s32 %s175, 1
      %s177 = scalar_select %p174, %s175, %s176
      %p180 = pneg %p174
      %p181 = scmp.eq.s32.totalorder %s20, 3
      %p182 = por %p180, %p181
      %p183 = scmp.ne.s32.totalorder %s175, %s178
      %p184 = scmp.eq.s32.totalorder %s20, 0
      %p185 = por %p183, %p184
      %p186 = scmp.ne.s32.totalorder %s175, %s178
      %p187 = scmp.eq.s32.totalorder %s25, 3
      %p188 = por %p186, %p187
      %p189 = scmp.ne.s32.totalorder %s178, %s179
      %p190 = scmp.eq.s32.totalorder %s25, 0
      %p191 = por %p189, %p190
      %p192 = scmp.ne.s32.totalorder %s178, %s179
      %p193 = scmp.eq.s32.totalorder %s26, 3
      %p194 = por %p192, %p193
      %p196 = scmp.ne.s32.totalorder %s179, %s195
      %p197 = scmp.eq.s32.totalorder %s26, 0
      %p198 = por %p196, %p197
      %p199 = scmp.le.s32.totalorder 1, %s20
      %p200 = scmp.lt.s32.totalorder %s20, 5
      %p201 = pnand %p199, %p200
      %p202 = pneg %p201
      // Predicated region
      $region9: #{tpu_custom_call.1} parent=5 // pred_check
        _
      $region10: #{tpu_custom_call.1} parent=5 // pred_check_branch
        %204 = sbr.rel (%p201) target = $region12
      $region11: #{tpu_custom_call.1} parent=5 // pred_region
        %s205 = ssub.s32 %s20, 1
        // Predicated region
        $region13: #{tpu_custom_call.1} parent=11 // pred_check
          %p206 = pneg %p79
        $region14: #{tpu_custom_call.1} parent=11 // pred_check_branch
          %208 = sbr.rel (%p206) target = $region16
        $region15: #{tpu_custom_call.1} parent=11 // pred_region
          %s210 = ssub.s32 4096, 4096
          %211 = vsyncadd [#allocation9], %s210
          %s212 = sshll.u32 [#allocation8], 4
          %s213 = int_to_ptr.vmem [resolvable:$true] %s212
          %218 = dma.hbm_to_vmem [thread:$0]  %s1, 4096, %s213, [#allocation9], 128, 128, 8
        $region16: #{tpu_custom_call.1} parent=11 // pred_fallthru
          _
        // Predicated region
        $region17: #{tpu_custom_call.1} parent=11 // pred_check
          %p219 = pneg %p100
        $region18: #{tpu_custom_call.1} parent=11 // pred_check_branch
          %221 = sbr.rel (%p219) target = $region20
        $region19: #{tpu_custom_call.1} parent=11 // pred_region
          %s223 = ssub.s32 4096, 4096
          %224 = vsyncadd [#allocation9], %s223
          %s225 = sshll.u32 [#allocation10], 4
          %s226 = int_to_ptr.vmem [resolvable:$true] %s225
          %231 = dma.hbm_to_vmem [thread:$0]  %s2, 4096, %s226, [#allocation9], 128, 128, 8
        $region20: #{tpu_custom_call.1} parent=11 // pred_fallthru
          _
        // Predicated region
        $region21: #{tpu_custom_call.1} parent=11 // pred_check
          %p232 = pneg %p121
        $region22: #{tpu_custom_call.1} parent=11 // pred_check_branch
          %234 = sbr.rel (%p232) target = $region24
        $region23: #{tpu_custom_call.1} parent=11 // pred_region
          %s236 = ssub.s32 4096, 4096
          %237 = vsyncadd [#allocation12], %s236
          %s238 = sshll.u32 [#allocation11], 4
          %s239 = int_to_ptr.vmem [resolvable:$true] %s238
          %244 = dma.hbm_to_vmem [thread:$0]  %s3, 4096, %s239, [#allocation12], 128, 128, 8
        $region24: #{tpu_custom_call.1} parent=11 // pred_fallthru
          _
        // Predicated region
        $region25: #{tpu_custom_call.1} parent=11 // pred_check
          %p245 = pneg %p142
        $region26: #{tpu_custom_call.1} parent=11 // pred_check_branch
          %247 = sbr.rel (%p245) target = $region28
        $region27: #{tpu_custom_call.1} parent=11 // pred_region
          %s249 = ssub.s32 4096, 4096
          %250 = vsyncadd [#allocation12], %s249
          %s251 = sshll.u32 [#allocation13], 4
          %s252 = int_to_ptr.vmem [resolvable:$true] %s251
          %257 = dma.hbm_to_vmem [thread:$0]  %s4, 4096, %s252, [#allocation12], 128, 128, 8
        $region28: #{tpu_custom_call.1} parent=11 // pred_fallthru
          _
        // Predicated region
        $region29: #{tpu_custom_call.1} parent=11 // pred_check
          %p258 = pneg %p163
        $region30: #{tpu_custom_call.1} parent=11 // pred_check_branch
          %260 = sbr.rel (%p258) target = $region32
        $region31: #{tpu_custom_call.1} parent=11 // pred_region
          _
        $region32: #{tpu_custom_call.1} parent=11 // pred_fallthru
          _
      $region12: #{tpu_custom_call.1} parent=5 // pred_fallthru
        _
      %p261 = scmp.lt.s32.totalorder %s20, 4
      // Predicated region
      $region33: #{tpu_custom_call.1} parent=5 // pred_check
        %p262 = pneg %p261
      $region34: #{tpu_custom_call.1} parent=5 // pred_check_branch
        %264 = sbr.rel (%p262) target = $region36
      $region35: #{tpu_custom_call.1} parent=5 // pred_region
        // Predicated region
        $region37: #{tpu_custom_call.1} parent=35 // pred_check
          %p265 = pneg %p52
        $region38: #{tpu_custom_call.1} parent=35 // pred_check_branch
          %267 = sbr.rel (%p265) target = $region40
        $region39: #{tpu_custom_call.1} parent=35 // pred_region
          %s268 = sand.u32 %s42, 1
          %s269 = scalar_lea.sflag [#allocation6], %s268
          %s270 = sand.u32 %s42, 1
          %s271 = smul.addr %s270, 512
          %s272 = scalar_lea.vmem [#allocation5], %s271
          %s274 = ssub.s32 8192, 8192
          %275 = vsyncadd %s269, %s274
          %s276 = smul.addr %s27, 128
          %s277 = smul.addr %s276, 64
          %s278 = scalar_lea.hbm %s0, %s277
          %s279 = sshll.u32 %s272, 4
          %s280 = int_to_ptr.vmem [resolvable:$true] %s279
          %285 = dma.hbm_to_vmem [thread:$0]  %s278, 8192, %s280, %s269, 128, 128, 8
        $region40: #{tpu_custom_call.1} parent=35 // pred_fallthru
          _
      $region36: #{tpu_custom_call.1} parent=5 // pred_fallthru
        _
      %p286 = scmp.le.s32.totalorder 1, %s20
      %p287 = scmp.lt.s32.totalorder %s20, 5
      %p288 = pnand %p286, %p287
      %p289 = pneg %p288
      // Predicated region
      $region41: #{tpu_custom_call.1} parent=5 // pred_check
        _
      $region42: #{tpu_custom_call.1} parent=5 // pred_check_branch
        %291 = sbr.rel (%p288) target = $region44
      $region43: #{tpu_custom_call.1} parent=5 // pred_region
        %s292 = ssub.s32 %s20, 1
        %s293 = sand.u32 %s45, 1
        %s294 = scalar_lea.sflag [#allocation6], %s293
        %s295 = sand.u32 %s45, 1
        %s296 = smul.addr %s295, 512
        %s297 = scalar_lea.vmem [#allocation5], %s296
        // Predicated region
        $region45: #{tpu_custom_call.1} parent=43 // pred_check
          %p298 = pneg %p58
        $region46: #{tpu_custom_call.1} parent=43 // pred_check_branch
          %300 = sbr.rel (%p298) target = $region48
        $region47: #{tpu_custom_call.1} parent=43 // pred_region
          %301 = dma.done %s294, 8192
        $region48: #{tpu_custom_call.1} parent=43 // pred_fallthru
          _
        // Predicated region
        $region49: #{tpu_custom_call.1} parent=43 // pred_check
          %p302 = pneg %p79
        $region50: #{tpu_custom_call.1} parent=43 // pred_check_branch
          %304 = sbr.rel (%p302) target = $region52
        $region51: #{tpu_custom_call.1} parent=43 // pred_region
          %305 = dma.done [#allocation9], 4096
        $region52: #{tpu_custom_call.1} parent=43 // pred_fallthru
          _
        // Predicated region
        $region53: #{tpu_custom_call.1} parent=43 // pred_check
          %p306 = pneg %p100
        $region54: #{tpu_custom_call.1} parent=43 // pred_check_branch
          %308 = sbr.rel (%p306) target = $region56
        $region55: #{tpu_custom_call.1} parent=43 // pred_region
          %309 = dma.done [#allocation9], 4096
        $region56: #{tpu_custom_call.1} parent=43 // pred_fallthru
          _
        // Predicated region
        $region57: #{tpu_custom_call.1} parent=43 // pred_check
          %p310 = pneg %p121
        $region58: #{tpu_custom_call.1} parent=43 // pred_check_branch
          %312 = sbr.rel (%p310) target = $region60
        $region59: #{tpu_custom_call.1} parent=43 // pred_region
          %313 = dma.done [#allocation12], 4096
        $region60: #{tpu_custom_call.1} parent=43 // pred_fallthru
          _
        // Predicated region
        $region61: #{tpu_custom_call.1} parent=43 // pred_check
          %p314 = pneg %p142
        $region62: #{tpu_custom_call.1} parent=43 // pred_check_branch
          %316 = sbr.rel (%p314) target = $region64
        $region63: #{tpu_custom_call.1} parent=43 // pred_region
          %317 = dma.done [#allocation12], 4096
        $region64: #{tpu_custom_call.1} parent=43 // pred_fallthru
          _
        %s318 = sand.u32 %s45, 1
        %s319 = scalar_lea.sflag [#allocation6], %s318
        %s320 = sand.u32 %s45, 1
        %s321 = smul.addr %s320, 512
        %s322 = scalar_lea.vmem [#allocation5], %s321
        %p323 = pneg %p58
        %p324 = pneg %p55
        %p325 = pneg %p79
        %p326 = pneg %p76
        %p327 = pneg %p100
        %p328 = pneg %p97
        %p329 = pneg %p121
        %p330 = pneg %p118
        %p331 = pneg %p142
        %p332 = pneg %p139
        %p333 = pneg %p163
        %p334 = pneg %p160
        %p335 = pneg %p191
        %p336 = pneg %p188
        %s337 = sand.u32 %s178, 1
        %s338 = scalar_lea.sflag [#allocation7], %s337
        %s339 = sand.u32 %s178, 1
        %s340 = smul.addr %s339, 512
        %s341 = scalar_lea.vmem [#allocation14], %s340
        %s342 = smul.u32 32, %s30
        %p344 = scmp.eq.s32.totalorder %s30, 0
        // Predicated region
        $region65: #{tpu_custom_call.1} parent=43 // pred_check
          %p345 = pneg %p344
        $region66: #{tpu_custom_call.1} parent=43 // pred_check_branch
          %347 = sbr.rel (%p345) target = $region68
        $region67: #{tpu_custom_call.1} parent=43 // pred_region
          %v348 = vld [vmem:[%s297] sm:$0xff]
          %v349 = vld [vmem:[%s297 + $0x8] sm:$0xff]
          %v350 = vld [vmem:[%s297 + $0x10] sm:$0xff]
          %v351 = vld [vmem:[%s297 + $0x18] sm:$0xff]
          %v352 = vld [vmem:[%s297 + $0x20] sm:$0xff]
          %v353 = vld [vmem:[%s297 + $0x28] sm:$0xff]
          %v354 = vld [vmem:[%s297 + $0x30] sm:$0xff]
          %v355 = vld [vmem:[%s297 + $0x38] sm:$0xff]
          %v356 = vld [vmem:[%s297 + $0x40] sm:$0xff]
          %v357 = vld [vmem:[%s297 + $0x48] sm:$0xff]
          %v358 = vld [vmem:[%s297 + $0x50] sm:$0xff]
          %v359 = vld [vmem:[%s297 + $0x58] sm:$0xff]
          %v360 = vld [vmem:[%s297 + $0x60] sm:$0xff]
          %v361 = vld [vmem:[%s297 + $0x68] sm:$0xff]
          %v362 = vld [vmem:[%s297 + $0x70] sm:$0xff]
          %v363 = vld [vmem:[%s297 + $0x78] sm:$0xff]
          %v364 = vld [vmem:[%s297 + $0x80] sm:$0xff]
          %v365 = vld [vmem:[%s297 + $0x88] sm:$0xff]
          %v366 = vld [vmem:[%s297 + $0x90] sm:$0xff]
          %v367 = vld [vmem:[%s297 + $0x98] sm:$0xff]
          %v368 = vld [vmem:[%s297 + $0xa0] sm:$0xff]
          %v369 = vld [vmem:[%s297 + $0xa8] sm:$0xff]
          %v370 = vld [vmem:[%s297 + $0xb0] sm:$0xff]
          %v371 = vld [vmem:[%s297 + $0xb8] sm:$0xff]
          %v372 = vld [vmem:[%s297 + $0xc0] sm:$0xff]
          %v373 = vld [vmem:[%s297 + $0xc8] sm:$0xff]
          %v374 = vld [vmem:[%s297 + $0xd0] sm:$0xff]
          %v375 = vld [vmem:[%s297 + $0xd8] sm:$0xff]
          %v376 = vld [vmem:[%s297 + $0xe0] sm:$0xff]
          %v377 = vld [vmem:[%s297 + $0xe8] sm:$0xff]
          %v378 = vld [vmem:[%s297 + $0xf0] sm:$0xff]
          %v379 = vld [vmem:[%s297 + $0xf8] sm:$0xff]
          %v380 = vld [vmem:[%s297 + $0x100] sm:$0xff]
          %v381 = vld [vmem:[%s297 + $0x108] sm:$0xff]
          %v382 = vld [vmem:[%s297 + $0x110] sm:$0xff]
          %v383 = vld [vmem:[%s297 + $0x118] sm:$0xff]
          %v384 = vld [vmem:[%s297 + $0x120] sm:$0xff]
          %v385 = vld [vmem:[%s297 + $0x128] sm:$0xff]
          %v386 = vld [vmem:[%s297 + $0x130] sm:$0xff]
          %v387 = vld [vmem:[%s297 + $0x138] sm:$0xff]
          %v388 = vld [vmem:[%s297 + $0x140] sm:$0xff]
          %v389 = vld [vmem:[%s297 + $0x148] sm:$0xff]
          %v390 = vld [vmem:[%s297 + $0x150] sm:$0xff]
          %v391 = vld [vmem:[%s297 + $0x158] sm:$0xff]
          %v392 = vld [vmem:[%s297 + $0x160] sm:$0xff]
          %v393 = vld [vmem:[%s297 + $0x168] sm:$0xff]
          %v394 = vld [vmem:[%s297 + $0x170] sm:$0xff]
          %v395 = vld [vmem:[%s297 + $0x178] sm:$0xff]
          %v396 = vld [vmem:[%s297 + $0x180] sm:$0xff]
          %v397 = vld [vmem:[%s297 + $0x188] sm:$0xff]
          %v398 = vld [vmem:[%s297 + $0x190] sm:$0xff]
          %v399 = vld [vmem:[%s297 + $0x198] sm:$0xff]
          %v400 = vld [vmem:[%s297 + $0x1a0] sm:$0xff]
          %v401 = vld [vmem:[%s297 + $0x1a8] sm:$0xff]
          %v402 = vld [vmem:[%s297 + $0x1b0] sm:$0xff]
          %v403 = vld [vmem:[%s297 + $0x1b8] sm:$0xff]
          %v404 = vld [vmem:[%s297 + $0x1c0] sm:$0xff]
          %v405 = vld [vmem:[%s297 + $0x1c8] sm:$0xff]
          %v406 = vld [vmem:[%s297 + $0x1d0] sm:$0xff]
          %v407 = vld [vmem:[%s297 + $0x1d8] sm:$0xff]
          %v408 = vld [vmem:[%s297 + $0x1e0] sm:$0xff]
          %v409 = vld [vmem:[%s297 + $0x1e8] sm:$0xff]
          %v410 = vld [vmem:[%s297 + $0x1f0] sm:$0xff]
          %v411 = vld [vmem:[%s297 + $0x1f8] sm:$0xff]
          %v412 = vld [vmem:[#allocation10] sm:$0xff]
          %v413 = vld [vmem:[#allocation10 + $0x8] sm:$0xff]
          %v414 = vld [vmem:[#allocation10 + $0x10] sm:$0xff]
          %v415 = vld [vmem:[#allocation10 + $0x18] sm:$0xff]
          %v416 = vld [vmem:[#allocation10 + $0x20] sm:$0xff]
          %v417 = vld [vmem:[#allocation10 + $0x28] sm:$0xff]
          %v418 = vld [vmem:[#allocation10 + $0x30] sm:$0xff]
          %v419 = vld [vmem:[#allocation10 + $0x38] sm:$0xff]
          %v420 = vld [vmem:[#allocation10 + $0x40] sm:$0xff]
          %v421 = vld [vmem:[#allocation10 + $0x48] sm:$0xff]
          %v422 = vld [vmem:[#allocation10 + $0x50] sm:$0xff]
          %v423 = vld [vmem:[#allocation10 + $0x58] sm:$0xff]
          %v424 = vld [vmem:[#allocation10 + $0x60] sm:$0xff]
          %v425 = vld [vmem:[#allocation10 + $0x68] sm:$0xff]
          %v426 = vld [vmem:[#allocation10 + $0x70] sm:$0xff]
          %v427 = vld [vmem:[#allocation10 + $0x78] sm:$0xff]
          %v428 = vld [vmem:[#allocation10 + $0x80] sm:$0xff]
          %v429 = vld [vmem:[#allocation10 + $0x88] sm:$0xff]
          %v430 = vld [vmem:[#allocation10 + $0x90] sm:$0xff]
          %v431 = vld [vmem:[#allocation10 + $0x98] sm:$0xff]
          %v432 = vld [vmem:[#allocation10 + $0xa0] sm:$0xff]
          %v433 = vld [vmem:[#allocation10 + $0xa8] sm:$0xff]
          %v434 = vld [vmem:[#allocation10 + $0xb0] sm:$0xff]
          %v435 = vld [vmem:[#allocation10 + $0xb8] sm:$0xff]
          %v436 = vld [vmem:[#allocation10 + $0xc0] sm:$0xff]
          %v437 = vld [vmem:[#allocation10 + $0xc8] sm:$0xff]
          %v438 = vld [vmem:[#allocation10 + $0xd0] sm:$0xff]
          %v439 = vld [vmem:[#allocation10 + $0xd8] sm:$0xff]
          %v440 = vld [vmem:[#allocation10 + $0xe0] sm:$0xff]
          %v441 = vld [vmem:[#allocation10 + $0xe8] sm:$0xff]
          %v442 = vld [vmem:[#allocation10 + $0xf0] sm:$0xff]
          %v443 = vld [vmem:[#allocation10 + $0xf8] sm:$0xff]
          %v508 = vunpack.c.l.b16 %v348
          %v509 = vunpack.c.h.b16 %v348
          %v510 = vunpack.c.l.b16 %v349
          %v511 = vunpack.c.h.b16 %v349
          %v512 = vunpack.c.l.b16 %v350
          %v513 = vunpack.c.h.b16 %v350
          %v514 = vunpack.c.l.b16 %v351
          %v515 = vunpack.c.h.b16 %v351
          %v516 = vunpack.c.l.b16 %v352
          %v517 = vunpack.c.h.b16 %v352
          %v518 = vunpack.c.l.b16 %v353
          %v519 = vunpack.c.h.b16 %v353
          %v520 = vunpack.c.l.b16 %v354
          %v521 = vunpack.c.h.b16 %v354
          %v522 = vunpack.c.l.b16 %v355
          %v523 = vunpack.c.h.b16 %v355
          %v524 = vunpack.c.l.b16 %v356
          %v525 = vunpack.c.h.b16 %v356
          %v526 = vunpack.c.l.b16 %v357
          %v527 = vunpack.c.h.b16 %v357
          %v528 = vunpack.c.l.b16 %v358
          %v529 = vunpack.c.h.b16 %v358
          %v530 = vunpack.c.l.b16 %v359
          %v531 = vunpack.c.h.b16 %v359
          %v532 = vunpack.c.l.b16 %v360
          %v533 = vunpack.c.h.b16 %v360
          %v534 = vunpack.c.l.b16 %v361
          %v535 = vunpack.c.h.b16 %v361
          %v536 = vunpack.c.l.b16 %v362
          %v537 = vunpack.c.h.b16 %v362
          %v538 = vunpack.c.l.b16 %v363
          %v539 = vunpack.c.h.b16 %v363
          %v540 = vunpack.c.l.b16 %v364
          %v541 = vunpack.c.h.b16 %v364
          %v542 = vunpack.c.l.b16 %v365
          %v543 = vunpack.c.h.b16 %v365
          %v544 = vunpack.c.l.b16 %v366
          %v545 = vunpack.c.h.b16 %v366
          %v546 = vunpack.c.l.b16 %v367
          %v547 = vunpack.c.h.b16 %v367
          %v548 = vunpack.c.l.b16 %v368
          %v549 = vunpack.c.h.b16 %v368
          %v550 = vunpack.c.l.b16 %v369
          %v551 = vunpack.c.h.b16 %v369
          %v552 = vunpack.c.l.b16 %v370
          %v553 = vunpack.c.h.b16 %v370
          %v554 = vunpack.c.l.b16 %v371
          %v555 = vunpack.c.h.b16 %v371
          %v556 = vunpack.c.l.b16 %v372
          %v557 = vunpack.c.h.b16 %v372
          %v558 = vunpack.c.l.b16 %v373
          %v559 = vunpack.c.h.b16 %v373
          %v560 = vunpack.c.l.b16 %v374
          %v561 = vunpack.c.h.b16 %v374
          %v562 = vunpack.c.l.b16 %v375
          %v563 = vunpack.c.h.b16 %v375
          %v564 = vunpack.c.l.b16 %v376
          %v565 = vunpack.c.h.b16 %v376
          %v566 = vunpack.c.l.b16 %v377
          %v567 = vunpack.c.h.b16 %v377
          %v568 = vunpack.c.l.b16 %v378
          %v569 = vunpack.c.h.b16 %v378
          %v570 = vunpack.c.l.b16 %v379
          %v571 = vunpack.c.h.b16 %v379
          %v572 = vunpack.c.l.b16 %v380
          %v573 = vunpack.c.h.b16 %v380
          %v574 = vunpack.c.l.b16 %v381
          %v575 = vunpack.c.h.b16 %v381
          %v576 = vunpack.c.l.b16 %v382
          %v577 = vunpack.c.h.b16 %v382
          %v578 = vunpack.c.l.b16 %v383
          %v579 = vunpack.c.h.b16 %v383
          %v580 = vunpack.c.l.b16 %v384
          %v581 = vunpack.c.h.b16 %v384
          %v582 = vunpack.c.l.b16 %v385
          %v583 = vunpack.c.h.b16 %v385
          %v584 = vunpack.c.l.b16 %v386
          %v585 = vunpack.c.h.b16 %v386
          %v586 = vunpack.c.l.b16 %v387
          %v587 = vunpack.c.h.b16 %v387
          %v588 = vunpack.c.l.b16 %v388
          %v589 = vunpack.c.h.b16 %v388
          %v590 = vunpack.c.l.b16 %v389
          %v591 = vunpack.c.h.b16 %v389
          %v592 = vunpack.c.l.b16 %v390
          %v593 = vunpack.c.h.b16 %v390
          %v594 = vunpack.c.l.b16 %v391
          %v595 = vunpack.c.h.b16 %v391
          %v596 = vunpack.c.l.b16 %v392
          %v597 = vunpack.c.h.b16 %v392
          %v598 = vunpack.c.l.b16 %v393
          %v599 = vunpack.c.h.b16 %v393
          %v600 = vunpack.c.l.b16 %v394
          %v601 = vunpack.c.h.b16 %v394
          %v602 = vunpack.c.l.b16 %v395
          %v603 = vunpack.c.h.b16 %v395
          %v604 = vunpack.c.l.b16 %v396
          %v605 = vunpack.c.h.b16 %v396
          %v606 = vunpack.c.l.b16 %v397
          %v607 = vunpack.c.h.b16 %v397
          %v608 = vunpack.c.l.b16 %v398
          %v609 = vunpack.c.h.b16 %v398
          %v610 = vunpack.c.l.b16 %v399
          %v611 = vunpack.c.h.b16 %v399
          %v612 = vunpack.c.l.b16 %v400
          %v613 = vunpack.c.h.b16 %v400
          %v614 = vunpack.c.l.b16 %v401
          %v615 = vunpack.c.h.b16 %v401
          %v616 = vunpack.c.l.b16 %v402
          %v617 = vunpack.c.h.b16 %v402
          %v618 = vunpack.c.l.b16 %v403
          %v619 = vunpack.c.h.b16 %v403
          %v620 = vunpack.c.l.b16 %v404
          %v621 = vunpack.c.h.b16 %v404
          %v622 = vunpack.c.l.b16 %v405
          %v623 = vunpack.c.h.b16 %v405
          %v624 = vunpack.c.l.b16 %v406
          %v625 = vunpack.c.h.b16 %v406
          %v626 = vunpack.c.l.b16 %v407
          %v627 = vunpack.c.h.b16 %v407
          %v628 = vunpack.c.l.b16 %v408
          %v629 = vunpack.c.h.b16 %v408
          %v630 = vunpack.c.l.b16 %v409
          %v631 = vunpack.c.h.b16 %v409
          %v632 = vunpack.c.l.b16 %v410
          %v633 = vunpack.c.h.b16 %v410
          %v634 = vunpack.c.l.b16 %v411
          %v635 = vunpack.c.h.b16 %v411
          %v636 = vpack.c.b16 %v510, %v508
          %v637 = vpack.c.b16 %v511, %v509
          %v638 = vpack.c.b16 %v514, %v512
          %v639 = vpack.c.b16 %v515, %v513
          %v640 = vpack.c.b16 %v518, %v516
          %v641 = vpack.c.b16 %v519, %v517
          %v642 = vpack.c.b16 %v522, %v520
          %v643 = vpack.c.b16 %v523, %v521
          %v644 = vpack.c.b16 %v526, %v524
          %v645 = vpack.c.b16 %v527, %v525
          %v646 = vpack.c.b16 %v530, %v528
          %v647 = vpack.c.b16 %v531, %v529
          %v648 = vpack.c.b16 %v534, %v532
          %v649 = vpack.c.b16 %v535, %v533
          %v650 = vpack.c.b16 %v538, %v536
          %v651 = vpack.c.b16 %v539, %v537
          %v652 = vpack.c.b16 %v542, %v540
          %v653 = vpack.c.b16 %v543, %v541
          %v654 = vpack.c.b16 %v546, %v544
          %v655 = vpack.c.b16 %v547, %v545
          %v656 = vpack.c.b16 %v550, %v548
          %v657 = vpack.c.b16 %v551, %v549
          %v658 = vpack.c.b16 %v554, %v552
          %v659 = vpack.c.b16 %v555, %v553
          %v660 = vpack.c.b16 %v558, %v556
          %v661 = vpack.c.b16 %v559, %v557
          %v662 = vpack.c.b16 %v562, %v560
          %v663 = vpack.c.b16 %v563, %v561
          %v664 = vpack.c.b16 %v566, %v564
          %v665 = vpack.c.b16 %v567, %v565
          %v666 = vpack.c.b16 %v570, %v568
          %v667 = vpack.c.b16 %v571, %v569
          %v668 = vpack.c.b16 %v574, %v572
          %v669 = vpack.c.b16 %v575, %v573
          %v670 = vpack.c.b16 %v578, %v576
          %v671 = vpack.c.b16 %v579, %v577
          %v672 = vpack.c.b16 %v582, %v580
          %v673 = vpack.c.b16 %v583, %v581
          %v674 = vpack.c.b16 %v586, %v584
          %v675 = vpack.c.b16 %v587, %v585
          %v676 = vpack.c.b16 %v590, %v588
          %v677 = vpack.c.b16 %v591, %v589
          %v678 = vpack.c.b16 %v594, %v592
          %v679 = vpack.c.b16 %v595, %v593
          %v680 = vpack.c.b16 %v598, %v596
          %v681 = vpack.c.b16 %v599, %v597
          %v682 = vpack.c.b16 %v602, %v600
          %v683 = vpack.c.b16 %v603, %v601
          %v684 = vpack.c.b16 %v606, %v604
          %v685 = vpack.c.b16 %v607, %v605
          %v686 = vpack.c.b16 %v610, %v608
          %v687 = vpack.c.b16 %v611, %v609
          %v688 = vpack.c.b16 %v614, %v612
          %v689 = vpack.c.b16 %v615, %v613
          %v690 = vpack.c.b16 %v618, %v616
          %v691 = vpack.c.b16 %v619, %v617
          %v692 = vpack.c.b16 %v622, %v620
          %v693 = vpack.c.b16 %v623, %v621
          %v694 = vpack.c.b16 %v626, %v624
          %v695 = vpack.c.b16 %v627, %v625
          %v696 = vpack.c.b16 %v630, %v628
          %v697 = vpack.c.b16 %v631, %v629
          %v698 = vpack.c.b16 %v634, %v632
          %v699 = vpack.c.b16 %v635, %v633
          %v796 = vunpack.c.l.b16 %v412
          %v797 = vunpack.c.h.b16 %v412
          %v798 = vunpack.c.l.b16 %v413
          %v799 = vunpack.c.h.b16 %v413
          %v800 = vunpack.c.l.b16 %v414
          %v801 = vunpack.c.h.b16 %v414
          %v802 = vunpack.c.l.b16 %v415
          %v803 = vunpack.c.h.b16 %v415
          %v804 = vunpack.c.l.b16 %v416
          %v805 = vunpack.c.h.b16 %v416
          %v806 = vunpack.c.l.b16 %v417
          %v807 = vunpack.c.h.b16 %v417
          %v808 = vunpack.c.l.b16 %v418
          %v809 = vunpack.c.h.b16 %v418
          %v810 = vunpack.c.l.b16 %v419
          %v811 = vunpack.c.h.b16 %v419
          %v812 = vunpack.c.l.b16 %v420
          %v813 = vunpack.c.h.b16 %v420
          %v814 = vunpack.c.l.b16 %v421
          %v815 = vunpack.c.h.b16 %v421
          %v816 = vunpack.c.l.b16 %v422
          %v817 = vunpack.c.h.b16 %v422
          %v818 = vunpack.c.l.b16 %v423
          %v819 = vunpack.c.h.b16 %v423
          %v820 = vunpack.c.l.b16 %v424
          %v821 = vunpack.c.h.b16 %v424
          %v822 = vunpack.c.l.b16 %v425
          %v823 = vunpack.c.h.b16 %v425
          %v824 = vunpack.c.l.b16 %v426
          %v825 = vunpack.c.h.b16 %v426
          %v826 = vunpack.c.l.b16 %v427
          %v827 = vunpack.c.h.b16 %v427
          %v828 = vunpack.c.l.b16 %v428
          %v829 = vunpack.c.h.b16 %v428
          %v830 = vunpack.c.l.b16 %v429
          %v831 = vunpack.c.h.b16 %v429
          %v832 = vunpack.c.l.b16 %v430
          %v833 = vunpack.c.h.b16 %v430
          %v834 = vunpack.c.l.b16 %v431
          %v835 = vunpack.c.h.b16 %v431
          %v836 = vunpack.c.l.b16 %v432
          %v837 = vunpack.c.h.b16 %v432
          %v838 = vunpack.c.l.b16 %v433
          %v839 = vunpack.c.h.b16 %v433
          %v840 = vunpack.c.l.b16 %v434
          %v841 = vunpack.c.h.b16 %v434
          %v842 = vunpack.c.l.b16 %v435
          %v843 = vunpack.c.h.b16 %v435
          %v844 = vunpack.c.l.b16 %v436
          %v845 = vunpack.c.h.b16 %v436
          %v846 = vunpack.c.l.b16 %v437
          %v847 = vunpack.c.h.b16 %v437
          %v848 = vunpack.c.l.b16 %v438
          %v849 = vunpack.c.h.b16 %v438
          %v850 = vunpack.c.l.b16 %v439
          %v851 = vunpack.c.h.b16 %v439
          %v852 = vunpack.c.l.b16 %v440
          %v853 = vunpack.c.h.b16 %v440
          %v854 = vunpack.c.l.b16 %v441
          %v855 = vunpack.c.h.b16 %v441
          %v856 = vunpack.c.l.b16 %v442
          %v857 = vunpack.c.h.b16 %v442
          %v858 = vunpack.c.l.b16 %v443
          %v859 = vunpack.c.h.b16 %v443
          %v860 = vpack.c.b16 %v798, %v796
          %v861 = vpack.c.b16 %v799, %v797
          %v862 = vpack.c.b16 %v802, %v800
          %v863 = vpack.c.b16 %v803, %v801
          %v864 = vpack.c.b16 %v806, %v804
          %v865 = vpack.c.b16 %v807, %v805
          %v866 = vpack.c.b16 %v810, %v808
          %v867 = vpack.c.b16 %v811, %v809
          %v868 = vpack.c.b16 %v814, %v812
          %v869 = vpack.c.b16 %v815, %v813
          %v870 = vpack.c.b16 %v818, %v816
          %v871 = vpack.c.b16 %v819, %v817
          %v872 = vpack.c.b16 %v822, %v820
          %v873 = vpack.c.b16 %v823, %v821
          %v874 = vpack.c.b16 %v826, %v824
          %v875 = vpack.c.b16 %v827, %v825
          %v876 = vpack.c.b16 %v830, %v828
          %v877 = vpack.c.b16 %v831, %v829
          %v878 = vpack.c.b16 %v834, %v832
          %v879 = vpack.c.b16 %v835, %v833
          %v880 = vpack.c.b16 %v838, %v836
          %v881 = vpack.c.b16 %v839, %v837
          %v882 = vpack.c.b16 %v842, %v840
          %v883 = vpack.c.b16 %v843, %v841
          %v884 = vpack.c.b16 %v846, %v844
          %v885 = vpack.c.b16 %v847, %v845
          %v886 = vpack.c.b16 %v850, %v848
          %v887 = vpack.c.b16 %v851, %v849
          %v888 = vpack.c.b16 %v854, %v852
          %v889 = vpack.c.b16 %v855, %v853
          %v890 = vpack.c.b16 %v858, %v856
          %v891 = vpack.c.b16 %v859, %v857
          %924 = vmatprep.subr.bf16.mxu0 %v861
          %925 = vmatpush1.bf16.msra.mxu0 %v860
          %926 = vmatprep.subr.bf16.mxu0 %v863
          %927 = vmatpush1.bf16.msra.mxu0 %v862
          %928 = vmatprep.subr.bf16.mxu0 %v865
          %929 = vmatpush1.bf16.msra.mxu0 %v864
          %930 = vmatprep.subr.bf16.mxu0 %v867
          %931 = vmatpush1.bf16.msra.mxu0 %v866
          %932 = vmatprep.subr.bf16.mxu0 %v869
          %933 = vmatpush1.bf16.msra.mxu0 %v868
          %934 = vmatprep.subr.bf16.mxu0 %v871
          %935 = vmatpush1.bf16.msra.mxu0 %v870
          %936 = vmatprep.subr.bf16.mxu0 %v873
          %937 = vmatpush1.bf16.msra.mxu0 %v872
          %938 = vmatprep.subr.bf16.mxu0 %v875
          %939 = vmatpush1.bf16.msra.mxu0 %v874
          %940 = vmatprep.subr.bf16.mxu0 %v877
          %941 = vmatpush1.bf16.msra.mxu0 %v876
          %942 = vmatprep.subr.bf16.mxu0 %v879
          %943 = vmatpush1.bf16.msra.mxu0 %v878
          %944 = vmatprep.subr.bf16.mxu0 %v881
          %945 = vmatpush1.bf16.msra.mxu0 %v880
          %946 = vmatprep.subr.bf16.mxu0 %v883
          %947 = vmatpush1.bf16.msra.mxu0 %v882
          %948 = vmatprep.subr.bf16.mxu0 %v885
          %949 = vmatpush1.bf16.msra.mxu0 %v884
          %950 = vmatprep.subr.bf16.mxu0 %v887
          %951 = vmatpush1.bf16.msra.mxu0 %v886
          %952 = vmatprep.subr.bf16.mxu0 %v889
          %953 = vmatpush1.bf16.msra.mxu0 %v888
          %954 = vmatprep.subr.bf16.mxu0 %v891
          %955 = vmatpush1.bf16.msra.mxu0 %v890
          %956 = vmatprep.mubr.bf16.mxu0 %v637
          %957 = vmatmul.mubr.bf16.gmra.mrb[0].mxu0 %v636
          %v958 = vpop.f32.mrb[0].mxu0
          %v959 = vadd.f32 0.0, %v958
          %v960 = vpop.f32.mrb[0].mxu0
          %v961 = vadd.f32 0.0, %v960
          %v962 = vpop.f32.mrb[0].mxu0
          %v963 = vadd.f32 0.0, %v962
          %v964 = vpop.f32.mrb[0].mxu0
          %v965 = vadd.f32 0.0, %v964
          %966 = vmatprep.mubr.bf16.mxu0 %v639
          %967 = vmatmul.mubr.bf16.gmra.mrb[0].mxu0 %v638
          %v968 = vpop.f32.mrb[0].mxu0
          %v969 = vadd.f32 0.0, %v968
          %v970 = vpop.f32.mrb[0].mxu0
          %v971 = vadd.f32 0.0, %v970
          %v972 = vpop.f32.mrb[0].mxu0
          %v973 = vadd.f32 0.0, %v972
          %v974 = vpop.f32.mrb[0].mxu0
          %v975 = vadd.f32 0.0, %v974
          %976 = vmatprep.mubr.bf16.mxu0 %v641
          %977 = vmatmul.mubr.bf16.gmra.mrb[0].mxu0 %v640
          %v978 = vpop.f32.mrb[0].mxu0
          %v979 = vadd.f32 0.0, %v978
          %v980 = vpop.f32.mrb[0].mxu0
          %v981 = vadd.f32 0.0, %v980
          %v982 = vpop.f32.mrb[0].mxu0
          %v983 = vadd.f32 0.0, %v982
          %v984 = vpop.f32.mrb[0].mxu0
          %v985 = vadd.f32 0.0, %v984
          %986 = vmatprep.mubr.bf16.mxu0 %v643
          %987 = vmatmul.mubr.bf16.gmra.mrb[0].mxu0 %v642
          %v988 = vpop.f32.mrb[0].mxu0
          %v989 = vadd.f32 0.0, %v988
          %v990 = vpop.f32.mrb[0].mxu0
          %v991 = vadd.f32 0.0, %v990
          %v992 = vpop.f32.mrb[0].mxu0
          %v993 = vadd.f32 0.0, %v992
          %v994 = vpop.f32.mrb[0].mxu0
          %v995 = vadd.f32 0.0, %v994
          %996 = vmatprep.mubr.bf16.mxu0 %v645
          %997 = vmatmul.mubr.bf16.gmra.mrb[0].mxu0 %v644
          %v998 = vpop.f32.mrb[0].mxu0
          %v999 = vadd.f32 0.0, %v998
          %v1000 = vpop.f32.mrb[0].mxu0
          %v1001 = vadd.f32 0.0, %v1000
          %v1002 = vpop.f32.mrb[0].mxu0
          %v1003 = vadd.f32 0.0, %v1002
          %v1004 = vpop.f32.mrb[0].mxu0
          %v1005 = vadd.f32 0.0, %v1004
          %1006 = vmatprep.mubr.bf16.mxu0 %v647
          %1007 = vmatmul.mubr.bf16.gmra.mrb[0].mxu0 %v646
          %v1008 = vpop.f32.mrb[0].mxu0
          %v1009 = vadd.f32 0.0, %v1008
          %v1010 = vpop.f32.mrb[0].mxu0
          %v1011 = vadd.f32 0.0, %v1010
          %v1012 = vpop.f32.mrb[0].mxu0
          %v1013 = vadd.f32 0.0, %v1012
          %v1014 = vpop.f32.mrb[0].mxu0
          %v1015 = vadd.f32 0.0, %v1014
          %1016 = vmatprep.mubr.bf16.mxu0 %v649
          %1017 = vmatmul.mubr.bf16.gmra.mrb[0].mxu0 %v648
          %v1018 = vpop.f32.mrb[0].mxu0
          %v1019 = vadd.f32 0.0, %v1018
          %v1020 = vpop.f32.mrb[0].mxu0
          %v1021 = vadd.f32 0.0, %v1020
          %v1022 = vpop.f32.mrb[0].mxu0
          %v1023 = vadd.f32 0.0, %v1022
          %v1024 = vpop.f32.mrb[0].mxu0
          %v1025 = vadd.f32 0.0, %v1024
          %1026 = vmatprep.mubr.bf16.mxu0 %v651
          %1027 = vmatmul.mubr.bf16.gmra.mrb[0].mxu0 %v650
          %v1028 = vpop.f32.mrb[0].mxu0
          %v1029 = vadd.f32 0.0, %v1028
          %v1030 = vpop.f32.mrb[0].mxu0
          %v1031 = vadd.f32 0.0, %v1030
          %v1032 = vpop.f32.mrb[0].mxu0
          %v1033 = vadd.f32 0.0, %v1032
          %v1034 = vpop.f32.mrb[0].mxu0
          %v1035 = vadd.f32 0.0, %v1034
          %1036 = vmatprep.mubr.bf16.mxu0 %v653
          %1037 = vmatmul.mubr.bf16.gmra.mrb[0].mxu0 %v652
          %v1038 = vpop.f32.mrb[0].mxu0
          %v1039 = vadd.f32 0.0, %v1038
          %v1040 = vpop.f32.mrb[0].mxu0
          %v1041 = vadd.f32 0.0, %v1040
          %v1042 = vpop.f32.mrb[0].mxu0
          %v1043 = vadd.f32 0.0, %v1042
          %v1044 = vpop.f32.mrb[0].mxu0
          %v1045 = vadd.f32 0.0, %v1044
          %1046 = vmatprep.mubr.bf16.mxu0 %v655
          %1047 = vmatmul.mubr.bf16.gmra.mrb[0].mxu0 %v654
          %v1048 = vpop.f32.mrb[0].mxu0
          %v1049 = vadd.f32 0.0, %v1048
          %v1050 = vpop.f32.mrb[0].mxu0
          %v1051 = vadd.f32 0.0, %v1050
          %v1052 = vpop.f32.mrb[0].mxu0
          %v1053 = vadd.f32 0.0, %v1052
          %v1054 = vpop.f32.mrb[0].mxu0
          %v1055 = vadd.f32 0.0, %v1054
          %1056 = vmatprep.mubr.bf16.mxu0 %v657
          %1057 = vmatmul.mubr.bf16.gmra.mrb[0].mxu0 %v656
          %v1058 = vpop.f32.mrb[0].mxu0
          %v1059 = vadd.f32 0.0, %v1058
          %v1060 = vpop.f32.mrb[0].mxu0
          %v1061 = vadd.f32 0.0, %v1060
          %v1062 = vpop.f32.mrb[0].mxu0
          %v1063 = vadd.f32 0.0, %v1062
          %v1064 = vpop.f32.mrb[0].mxu0
          %v1065 = vadd.f32 0.0, %v1064
          %1066 = vmatprep.mubr.bf16.mxu0 %v659
          %1067 = vmatmul.mubr.bf16.gmra.mrb[0].mxu0 %v658
          %v1068 = vpop.f32.mrb[0].mxu0
          %v1069 = vadd.f32 0.0, %v1068
          %v1070 = vpop.f32.mrb[0].mxu0
          %v1071 = vadd.f32 0.0, %v1070
          %v1072 = vpop.f32.mrb[0].mxu0
          %v1073 = vadd.f32 0.0, %v1072
          %v1074 = vpop.f32.mrb[0].mxu0
          %v1075 = vadd.f32 0.0, %v1074
          %1076 = vmatprep.mubr.bf16.mxu0 %v661
          %1077 = vmatmul.mubr.bf16.gmra.mrb[0].mxu0 %v660
          %v1078 = vpop.f32.mrb[0].mxu0
          %v1079 = vadd.f32 0.0, %v1078
          %v1080 = vpop.f32.mrb[0].mxu0
          %v1081 = vadd.f32 0.0, %v1080
          %v1082 = vpop.f32.mrb[0].mxu0
          %v1083 = vadd.f32 0.0, %v1082
          %v1084 = vpop.f32.mrb[0].mxu0
          %v1085 = vadd.f32 0.0, %v1084
          %1086 = vmatprep.mubr.bf16.mxu0 %v663
          %1087 = vmatmul.mubr.bf16.gmra.mrb[0].mxu0 %v662
          %v1088 = vpop.f32.mrb[0].mxu0
          %v1089 = vadd.f32 0.0, %v1088
          %v1090 = vpop.f32.mrb[0].mxu0
          %v1091 = vadd.f32 0.0, %v1090
          %v1092 = vpop.f32.mrb[0].mxu0
          %v1093 = vadd.f32 0.0, %v1092
          %v1094 = vpop.f32.mrb[0].mxu0
          %v1095 = vadd.f32 0.0, %v1094
          %1096 = vmatprep.mubr.bf16.mxu0 %v665
          %1097 = vmatmul.mubr.bf16.gmra.mrb[0].mxu0 %v664
          %v1098 = vpop.f32.mrb[0].mxu0
          %v1099 = vadd.f32 0.0, %v1098
          %v1100 = vpop.f32.mrb[0].mxu0
          %v1101 = vadd.f32 0.0, %v1100
          %v1102 = vpop.f32.mrb[0].mxu0
          %v1103 = vadd.f32 0.0, %v1102
          %v1104 = vpop.f32.mrb[0].mxu0
          %v1105 = vadd.f32 0.0, %v1104
          %1106 = vmatprep.mubr.bf16.mxu0 %v667
          %1107 = vmatmul.mubr.bf16.gmra.mrb[0].mxu0 %v666
          %v1108 = vpop.f32.mrb[0].mxu0
          %v1109 = vadd.f32 0.0, %v1108
          %v1110 = vpop.f32.mrb[0].mxu0
          %v1111 = vadd.f32 0.0, %v1110
          %v1112 = vpop.f32.mrb[0].mxu0
          %v1113 = vadd.f32 0.0, %v1112
          %v1114 = vpop.f32.mrb[0].mxu0
          %v1115 = vadd.f32 0.0, %v1114
          %1116 = vmatprep.mubr.bf16.mxu0 %v669
          %1117 = vmatmul.mubr.bf16.gmra.mrb[0].mxu0 %v668
          %v1118 = vpop.f32.mrb[0].mxu0
          %v1119 = vadd.f32 0.0, %v1118
          %v1120 = vpop.f32.mrb[0].mxu0
          %v1121 = vadd.f32 0.0, %v1120
          %v1122 = vpop.f32.mrb[0].mxu0
          %v1123 = vadd.f32 0.0, %v1122
          %v1124 = vpop.f32.mrb[0].mxu0
          %v1125 = vadd.f32 0.0, %v1124
          %1126 = vmatprep.mubr.bf16.mxu0 %v671
          %1127 = vmatmul.mubr.bf16.gmra.mrb[0].mxu0 %v670
          %v1128 = vpop.f32.mrb[0].mxu0
          %v1129 = vadd.f32 0.0, %v1128
          %v1130 = vpop.f32.mrb[0].mxu0
          %v1131 = vadd.f32 0.0, %v1130
          %v1132 = vpop.f32.mrb[0].mxu0
          %v1133 = vadd.f32 0.0, %v1132
          %v1134 = vpop.f32.mrb[0].mxu0
          %v1135 = vadd.f32 0.0, %v1134
          %1136 = vmatprep.mubr.bf16.mxu0 %v673
          %1137 = vmatmul.mubr.bf16.gmra.mrb[0].mxu0 %v672
          %v1138 = vpop.f32.mrb[0].mxu0
          %v1139 = vadd.f32 0.0, %v1138
          %v1140 = vpop.f32.mrb[0].mxu0
          %v1141 = vadd.f32 0.0, %v1140
          %v1142 = vpop.f32.mrb[0].mxu0
          %v1143 = vadd.f32 0.0, %v1142
          %v1144 = vpop.f32.mrb[0].mxu0
          %v1145 = vadd.f32 0.0, %v1144
          %1146 = vmatprep.mubr.bf16.mxu0 %v675
          %1147 = vmatmul.mubr.bf16.gmra.mrb[0].mxu0 %v674
          %v1148 = vpop.f32.mrb[0].mxu0
          %v1149 = vadd.f32 0.0, %v1148
          %v1150 = vpop.f32.mrb[0].mxu0
          %v1151 = vadd.f32 0.0, %v1150
          %v1152 = vpop.f32.mrb[0].mxu0
          %v1153 = vadd.f32 0.0, %v1152
          %v1154 = vpop.f32.mrb[0].mxu0
          %v1155 = vadd.f32 0.0, %v1154
          %1156 = vmatprep.mubr.bf16.mxu0 %v677
          %1157 = vmatmul.mubr.bf16.gmra.mrb[0].mxu0 %v676
          %v1158 = vpop.f32.mrb[0].mxu0
          %v1159 = vadd.f32 0.0, %v1158
          %v1160 = vpop.f32.mrb[0].mxu0
          %v1161 = vadd.f32 0.0, %v1160
          %v1162 = vpop.f32.mrb[0].mxu0
          %v1163 = vadd.f32 0.0, %v1162
          %v1164 = vpop.f32.mrb[0].mxu0
          %v1165 = vadd.f32 0.0, %v1164
          %1166 = vmatprep.mubr.bf16.mxu0 %v679
          %1167 = vmatmul.mubr.bf16.gmra.mrb[0].mxu0 %v678
          %v1168 = vpop.f32.mrb[0].mxu0
          %v1169 = vadd.f32 0.0, %v1168
          %v1170 = vpop.f32.mrb[0].mxu0
          %v1171 = vadd.f32 0.0, %v1170
          %v1172 = vpop.f32.mrb[0].mxu0
          %v1173 = vadd.f32 0.0, %v1172
          %v1174 = vpop.f32.mrb[0].mxu0
          %v1175 = vadd.f32 0.0, %v1174
          %1176 = vmatprep.mubr.bf16.mxu0 %v681
          %1177 = vmatmul.mubr.bf16.gmra.mrb[0].mxu0 %v680
          %v1178 = vpop.f32.mrb[0].mxu0
          %v1179 = vadd.f32 0.0, %v1178
          %v1180 = vpop.f32.mrb[0].mxu0
          %v1181 = vadd.f32 0.0, %v1180
          %v1182 = vpop.f32.mrb[0].mxu0
          %v1183 = vadd.f32 0.0, %v1182
          %v1184 = vpop.f32.mrb[0].mxu0
          %v1185 = vadd.f32 0.0, %v1184
          %1186 = vmatprep.mubr.bf16.mxu0 %v683
          %1187 = vmatmul.mubr.bf16.gmra.mrb[0].mxu0 %v682
          %v1188 = vpop.f32.mrb[0].mxu0
          %v1189 = vadd.f32 0.0, %v1188
          %v1190 = vpop.f32.mrb[0].mxu0
          %v1191 = vadd.f32 0.0, %v1190
          %v1192 = vpop.f32.mrb[0].mxu0
          %v1193 = vadd.f32 0.0, %v1192
          %v1194 = vpop.f32.mrb[0].mxu0
          %v1195 = vadd.f32 0.0, %v1194
          %1196 = vmatprep.mubr.bf16.mxu0 %v685
          %1197 = vmatmul.mubr.bf16.gmra.mrb[0].mxu0 %v684
          %v1198 = vpop.f32.mrb[0].mxu0
          %v1199 = vadd.f32 0.0, %v1198
          %v1200 = vpop.f32.mrb[0].mxu0
          %v1201 = vadd.f32 0.0, %v1200
          %v1202 = vpop.f32.mrb[0].mxu0
          %v1203 = vadd.f32 0.0, %v1202
          %v1204 = vpop.f32.mrb[0].mxu0
          %v1205 = vadd.f32 0.0, %v1204
          %1206 = vmatprep.mubr.bf16.mxu0 %v687
          %1207 = vmatmul.mubr.bf16.gmra.mrb[0].mxu0 %v686
          %v1208 = vpop.f32.mrb[0].mxu0
          %v1209 = vadd.f32 0.0, %v1208
          %v1210 = vpop.f32.mrb[0].mxu0
          %v1211 = vadd.f32 0.0, %v1210
          %v1212 = vpop.f32.mrb[0].mxu0
          %v1213 = vadd.f32 0.0, %v1212
          %v1214 = vpop.f32.mrb[0].mxu0
          %v1215 = vadd.f32 0.0, %v1214
          %1216 = vmatprep.mubr.bf16.mxu0 %v689
          %1217 = vmatmul.mubr.bf16.gmra.mrb[0].mxu0 %v688
          %v1218 = vpop.f32.mrb[0].mxu0
          %v1219 = vadd.f32 0.0, %v1218
          %v1220 = vpop.f32.mrb[0].mxu0
          %v1221 = vadd.f32 0.0, %v1220
          %v1222 = vpop.f32.mrb[0].mxu0
          %v1223 = vadd.f32 0.0, %v1222
          %v1224 = vpop.f32.mrb[0].mxu0
          %v1225 = vadd.f32 0.0, %v1224
          %1226 = vmatprep.mubr.bf16.mxu0 %v691
          %1227 = vmatmul.mubr.bf16.gmra.mrb[0].mxu0 %v690
          %v1228 = vpop.f32.mrb[0].mxu0
          %v1229 = vadd.f32 0.0, %v1228
          %v1230 = vpop.f32.mrb[0].mxu0
          %v1231 = vadd.f32 0.0, %v1230
          %v1232 = vpop.f32.mrb[0].mxu0
          %v1233 = vadd.f32 0.0, %v1232
          %v1234 = vpop.f32.mrb[0].mxu0
          %v1235 = vadd.f32 0.0, %v1234
          %1236 = vmatprep.mubr.bf16.mxu0 %v693
          %1237 = vmatmul.mubr.bf16.gmra.mrb[0].mxu0 %v692
          %v1238 = vpop.f32.mrb[0].mxu0
          %v1239 = vadd.f32 0.0, %v1238
          %v1240 = vpop.f32.mrb[0].mxu0
          %v1241 = vadd.f32 0.0, %v1240
          %v1242 = vpop.f32.mrb[0].mxu0
          %v1243 = vadd.f32 0.0, %v1242
          %v1244 = vpop.f32.mrb[0].mxu0
          %v1245 = vadd.f32 0.0, %v1244
          %1246 = vmatprep.mubr.bf16.mxu0 %v695
          %1247 = vmatmul.mubr.bf16.gmra.mrb[0].mxu0 %v694
          %v1248 = vpop.f32.mrb[0].mxu0
          %v1249 = vadd.f32 0.0, %v1248
          %v1250 = vpop.f32.mrb[0].mxu0
          %v1251 = vadd.f32 0.0, %v1250
          %v1252 = vpop.f32.mrb[0].mxu0
          %v1253 = vadd.f32 0.0, %v1252
          %v1254 = vpop.f32.mrb[0].mxu0
          %v1255 = vadd.f32 0.0, %v1254
          %1256 = vmatprep.mubr.bf16.mxu0 %v697
          %1257 = vmatmul.mubr.bf16.gmra.mrb[0].mxu0 %v696
          %v1258 = vpop.f32.mrb[0].mxu0
          %v1259 = vadd.f32 0.0, %v1258
          %v1260 = vpop.f32.mrb[0].mxu0
          %v1261 = vadd.f32 0.0, %v1260
          %v1262 = vpop.f32.mrb[0].mxu0
          %v1263 = vadd.f32 0.0, %v1262
          %v1264 = vpop.f32.mrb[0].mxu0
          %v1265 = vadd.f32 0.0, %v1264
          %1266 = vmatprep.mubr.bf16.mxu0 %v699
          %1267 = vmatmul.mubr.bf16.gmra.mrb[0].mxu0 %v698
          %v1268 = vpop.f32.mrb[0].mxu0
          %v1269 = vadd.f32 0.0, %v1268
          %v1270 = vpop.f32.mrb[0].mxu0
          %v1271 = vadd.f32 0.0, %v1270
          %v1272 = vpop.f32.mrb[0].mxu0
          %v1273 = vadd.f32 0.0, %v1272
          %v1274 = vpop.f32.mrb[0].mxu0
          %v1275 = vadd.f32 0.0, %v1274
          %1276 = vdwg.mxu0
          %v1277 = vpack.c.bf16 %v963, %v959
          %v1278 = vpack.c.bf16 %v965, %v961
          %v1279 = vpack.c.bf16 %v973, %v969
          %v1280 = vpack.c.bf16 %v975, %v971
          %v1281 = vpack.c.bf16 %v983, %v979
          %v1282 = vpack.c.bf16 %v985, %v981
          %v1283 = vpack.c.bf16 %v993, %v989
          %v1284 = vpack.c.bf16 %v995, %v991
          %v1285 = vpack.c.bf16 %v1003, %v999
          %v1286 = vpack.c.bf16 %v1005, %v1001
          %v1287 = vpack.c.bf16 %v1013, %v1009
          %v1288 = vpack.c.bf16 %v1015, %v1011
          %v1289 = vpack.c.bf16 %v1023, %v1019
          %v1290 = vpack.c.bf16 %v1025, %v1021
          %v1291 = vpack.c.bf16 %v1033, %v1029
          %v1292 = vpack.c.bf16 %v1035, %v1031
          %v1293 = vpack.c.bf16 %v1043, %v1039
          %v1294 = vpack.c.bf16 %v1045, %v1041
          %v1295 = vpack.c.bf16 %v1053, %v1049
          %v1296 = vpack.c.bf16 %v1055, %v1051
          %v1297 = vpack.c.bf16 %v1063, %v1059
          %v1298 = vpack.c.bf16 %v1065, %v1061
          %v1299 = vpack.c.bf16 %v1073, %v1069
          %v1300 = vpack.c.bf16 %v1075, %v1071
          %v1301 = vpack.c.bf16 %v1083, %v1079
          %v1302 = vpack.c.bf16 %v1085, %v1081
          %v1303 = vpack.c.bf16 %v1093, %v1089
          %v1304 = vpack.c.bf16 %v1095, %v1091
          %v1305 = vpack.c.bf16 %v1103, %v1099
          %v1306 = vpack.c.bf16 %v1105, %v1101
          %v1307 = vpack.c.bf16 %v1113, %v1109
          %v1308 = vpack.c.bf16 %v1115, %v1111
          %v1309 = vpack.c.bf16 %v1123, %v1119
          %v1310 = vpack.c.bf16 %v1125, %v1121
          %v1311 = vpack.c.bf16 %v1133, %v1129
          %v1312 = vpack.c.bf16 %v1135, %v1131
          %v1313 = vpack.c.bf16 %v1143, %v1139
          %v1314 = vpack.c.bf16 %v1145, %v1141
          %v1315 = vpack.c.bf16 %v1153, %v1149
          %v1316 = vpack.c.bf16 %v1155, %v1151
          %v1317 = vpack.c.bf16 %v1163, %v1159
          %v1318 = vpack.c.bf16 %v1165, %v1161
          %v1319 = vpack.c.bf16 %v1173, %v1169
          %v1320 = vpack.c.bf16 %v1175, %v1171
          %v1321 = vpack.c.bf16 %v1183, %v1179
          %v1322 = vpack.c.bf16 %v1185, %v1181
          %v1323 = vpack.c.bf16 %v1193, %v1189
          %v1324 = vpack.c.bf16 %v1195, %v1191
          %v1325 = vpack.c.bf16 %v1203, %v1199
          %v1326 = vpack.c.bf16 %v1205, %v1201
          %v1327 = vpack.c.bf16 %v1213, %v1209
          %v1328 = vpack.c.bf16 %v1215, %v1211
          %v1329 = vpack.c.bf16 %v1223, %v1219
          %v1330 = vpack.c.bf16 %v1225, %v1221
          %v1331 = vpack.c.bf16 %v1233, %v1229
          %v1332 = vpack.c.bf16 %v1235, %v1231
          %v1333 = vpack.c.bf16 %v1243, %v1239
          %v1334 = vpack.c.bf16 %v1245, %v1241
          %v1335 = vpack.c.bf16 %v1253, %v1249
          %v1336 = vpack.c.bf16 %v1255, %v1251
          %v1337 = vpack.c.bf16 %v1263, %v1259
          %v1338 = vpack.c.bf16 %v1265, %v1261
          %v1339 = vpack.c.bf16 %v1273, %v1269
          %v1340 = vpack.c.bf16 %v1275, %v1271
          %1341 = vst [vmem:[#allocation2] sm:$0xff] %v1277
          %1342 = vst [vmem:[#allocation2 + $0x8] sm:$0xff] %v1278
          %1343 = vst [vmem:[#allocation2 + $0x10] sm:$0xff] %v1279
          %1344 = vst [vmem:[#allocation2 + $0x18] sm:$0xff] %v1280
          %1345 = vst [vmem:[#allocation2 + $0x20] sm:$0xff] %v1281
          %1346 = vst [vmem:[#allocation2 + $0x28] sm:$0xff] %v1282
          %1347 = vst [vmem:[#allocation2 + $0x30] sm:$0xff] %v1283
          %1348 = vst [vmem:[#allocation2 + $0x38] sm:$0xff] %v1284
          %1349 = vst [vmem:[#allocation2 + $0x40] sm:$0xff] %v1285
          %1350 = vst [vmem:[#allocation2 + $0x48] sm:$0xff] %v1286
          %1351 = vst [vmem:[#allocation2 + $0x50] sm:$0xff] %v1287
          %1352 = vst [vmem:[#allocation2 + $0x58] sm:$0xff] %v1288
          %1353 = vst [vmem:[#allocation2 + $0x60] sm:$0xff] %v1289
          %1354 = vst [vmem:[#allocation2 + $0x68] sm:$0xff] %v1290
          %1355 = vst [vmem:[#allocation2 + $0x70] sm:$0xff] %v1291
          %1356 = vst [vmem:[#allocation2 + $0x78] sm:$0xff] %v1292
          %1357 = vst [vmem:[#allocation2 + $0x80] sm:$0xff] %v1293
          %1358 = vst [vmem:[#allocation2 + $0x88] sm:$0xff] %v1294
          %1359 = vst [vmem:[#allocation2 + $0x90] sm:$0xff] %v1295
          %1360 = vst [vmem:[#allocation2 + $0x98] sm:$0xff] %v1296
          %1361 = vst [vmem:[#allocation2 + $0xa0] sm:$0xff] %v1297
          %1362 = vst [vmem:[#allocation2 + $0xa8] sm:$0xff] %v1298
          %1363 = vst [vmem:[#allocation2 + $0xb0] sm:$0xff] %v1299
          %1364 = vst [vmem:[#allocation2 + $0xb8] sm:$0xff] %v1300
          %1365 = vst [vmem:[#allocation2 + $0xc0] sm:$0xff] %v1301
          %1366 = vst [vmem:[#allocation2 + $0xc8] sm:$0xff] %v1302
          %1367 = vst [vmem:[#allocation2 + $0xd0] sm:$0xff] %v1303
          %1368 = vst [vmem:[#allocation2 + $0xd8] sm:$0xff] %v1304
          %1369 = vst [vmem:[#allocation2 + $0xe0] sm:$0xff] %v1305
          %1370 = vst [vmem:[#allocation2 + $0xe8] sm:$0xff] %v1306
          %1371 = vst [vmem:[#allocation2 + $0xf0] sm:$0xff] %v1307
          %1372 = vst [vmem:[#allocation2 + $0xf8] sm:$0xff] %v1308
          %1373 = vst [vmem:[#allocation2 + $0x100] sm:$0xff] %v1309
          %1374 = vst [vmem:[#allocation2 + $0x108] sm:$0xff] %v1310
          %1375 = vst [vmem:[#allocation2 + $0x110] sm:$0xff] %v1311
          %1376 = vst [vmem:[#allocation2 + $0x118] sm:$0xff] %v1312
          %1377 = vst [vmem:[#allocation2 + $0x120] sm:$0xff] %v1313
          %1378 = vst [vmem:[#allocation2 + $0x128] sm:$0xff] %v1314
          %1379 = vst [vmem:[#allocation2 + $0x130] sm:$0xff] %v1315
          %1380 = vst [vmem:[#allocation2 + $0x138] sm:$0xff] %v1316
          %1381 = vst [vmem:[#allocation2 + $0x140] sm:$0xff] %v1317
          %1382 = vst [vmem:[#allocation2 + $0x148] sm:$0xff] %v1318
          %1383 = vst [vmem:[#allocation2 + $0x150] sm:$0xff] %v1319
          %1384 = vst [vmem:[#allocation2 + $0x158] sm:$0xff] %v1320
          %1385 = vst [vmem:[#allocation2 + $0x160] sm:$0xff] %v1321
          %1386 = vst [vmem:[#allocation2 + $0x168] sm:$0xff] %v1322
          %1387 = vst [vmem:[#allocation2 + $0x170] sm:$0xff] %v1323
          %1388 = vst [vmem:[#allocation2 + $0x178] sm:$0xff] %v1324
          %1389 = vst [vmem:[#allocation2 + $0x180] sm:$0xff] %v1325
          %1390 = vst [vmem:[#allocation2 + $0x188] sm:$0xff] %v1326
          %1391 = vst [vmem:[#allocation2 + $0x190] sm:$0xff] %v1327
          %1392 = vst [vmem:[#allocation2 + $0x198] sm:$0xff] %v1328
          %1393 = vst [vmem:[#allocation2 + $0x1a0] sm:$0xff] %v1329
          %1394 = vst [vmem:[#allocation2 + $0x1a8] sm:$0xff] %v1330
          %1395 = vst [vmem:[#allocation2 + $0x1b0] sm:$0xff] %v1331
          %1396 = vst [vmem:[#allocation2 + $0x1b8] sm:$0xff] %v1332
          %1397 = vst [vmem:[#allocation2 + $0x1c0] sm:$0xff] %v1333
          %1398 = vst [vmem:[#allocation2 + $0x1c8] sm:$0xff] %v1334
          %1399 = vst [vmem:[#allocation2 + $0x1d0] sm:$0xff] %v1335
          %1400 = vst [vmem:[#allocation2 + $0x1d8] sm:$0xff] %v1336
          %1401 = vst [vmem:[#allocation2 + $0x1e0] sm:$0xff] %v1337
          %1402 = vst [vmem:[#allocation2 + $0x1e8] sm:$0xff] %v1338
          %1403 = vst [vmem:[#allocation2 + $0x1f0] sm:$0xff] %v1339
          %1404 = vst [vmem:[#allocation2 + $0x1f8] sm:$0xff] %v1340
          %v1405 = vld [vmem:[#allocation11] sm:$0xff]
          %v1406 = vld [vmem:[#allocation11 + $0x8] sm:$0xff]
          %v1407 = vld [vmem:[#allocation11 + $0x10] sm:$0xff]
          %v1408 = vld [vmem:[#allocation11 + $0x18] sm:$0xff]
          %v1409 = vld [vmem:[#allocation11 + $0x20] sm:$0xff]
          %v1410 = vld [vmem:[#allocation11 + $0x28] sm:$0xff]
          %v1411 = vld [vmem:[#allocation11 + $0x30] sm:$0xff]
          %v1412 = vld [vmem:[#allocation11 + $0x38] sm:$0xff]
          %v1413 = vld [vmem:[#allocation11 + $0x40] sm:$0xff]
          %v1414 = vld [vmem:[#allocation11 + $0x48] sm:$0xff]
          %v1415 = vld [vmem:[#allocation11 + $0x50] sm:$0xff]
          %v1416 = vld [vmem:[#allocation11 + $0x58] sm:$0xff]
          %v1417 = vld [vmem:[#allocation11 + $0x60] sm:$0xff]
          %v1418 = vld [vmem:[#allocation11 + $0x68] sm:$0xff]
          %v1419 = vld [vmem:[#allocation11 + $0x70] sm:$0xff]
          %v1420 = vld [vmem:[#allocation11 + $0x78] sm:$0xff]
          %v1421 = vld [vmem:[#allocation11 + $0x80] sm:$0xff]
          %v1422 = vld [vmem:[#allocation11 + $0x88] sm:$0xff]
          %v1423 = vld [vmem:[#allocation11 + $0x90] sm:$0xff]
          %v1424 = vld [vmem:[#allocation11 + $0x98] sm:$0xff]
          %v1425 = vld [vmem:[#allocation11 + $0xa0] sm:$0xff]
          %v1426 = vld [vmem:[#allocation11 + $0xa8] sm:$0xff]
          %v1427 = vld [vmem:[#allocation11 + $0xb0] sm:$0xff]
          %v1428 = vld [vmem:[#allocation11 + $0xb8] sm:$0xff]
          %v1429 = vld [vmem:[#allocation11 + $0xc0] sm:$0xff]
          %v1430 = vld [vmem:[#allocation11 + $0xc8] sm:$0xff]
          %v1431 = vld [vmem:[#allocation11 + $0xd0] sm:$0xff]
          %v1432 = vld [vmem:[#allocation11 + $0xd8] sm:$0xff]
          %v1433 = vld [vmem:[#allocation11 + $0xe0] sm:$0xff]
          %v1434 = vld [vmem:[#allocation11 + $0xe8] sm:$0xff]
          %v1435 = vld [vmem:[#allocation11 + $0xf0] sm:$0xff]
          %v1436 = vld [vmem:[#allocation11 + $0xf8] sm:$0xff]
          %v1469 = vunpack.c.l.b16 %v1405
          %v1470 = vunpack.c.h.b16 %v1405
          %v1471 = vunpack.c.l.b16 %v1406
          %v1472 = vunpack.c.h.b16 %v1406
          %v1473 = vunpack.c.l.b16 %v1407
          %v1474 = vunpack.c.h.b16 %v1407
          %v1475 = vunpack.c.l.b16 %v1408
          %v1476 = vunpack.c.h.b16 %v1408
          %v1477 = vunpack.c.l.b16 %v1409
          %v1478 = vunpack.c.h.b16 %v1409
          %v1479 = vunpack.c.l.b16 %v1410
          %v1480 = vunpack.c.h.b16 %v1410
          %v1481 = vunpack.c.l.b16 %v1411
          %v1482 = vunpack.c.h.b16 %v1411
          %v1483 = vunpack.c.l.b16 %v1412
          %v1484 = vunpack.c.h.b16 %v1412
          %v1485 = vunpack.c.l.b16 %v1413
          %v1486 = vunpack.c.h.b16 %v1413
          %v1487 = vunpack.c.l.b16 %v1414
          %v1488 = vunpack.c.h.b16 %v1414
          %v1489 = vunpack.c.l.b16 %v1415
          %v1490 = vunpack.c.h.b16 %v1415
          %v1491 = vunpack.c.l.b16 %v1416
          %v1492 = vunpack.c.h.b16 %v1416
          %v1493 = vunpack.c.l.b16 %v1417
          %v1494 = vunpack.c.h.b16 %v1417
          %v1495 = vunpack.c.l.b16 %v1418
          %v1496 = vunpack.c.h.b16 %v1418
          %v1497 = vunpack.c.l.b16 %v1419
          %v1498 = vunpack.c.h.b16 %v1419
          %v1499 = vunpack.c.l.b16 %v1420
          %v1500 = vunpack.c.h.b16 %v1420
          %v1501 = vunpack.c.l.b16 %v1421
          %v1502 = vunpack.c.h.b16 %v1421
          %v1503 = vunpack.c.l.b16 %v1422
          %v1504 = vunpack.c.h.b16 %v1422
          %v1505 = vunpack.c.l.b16 %v1423
          %v1506 = vunpack.c.h.b16 %v1423
          %v1507 = vunpack.c.l.b16 %v1424
          %v1508 = vunpack.c.h.b16 %v1424
          %v1509 = vunpack.c.l.b16 %v1425
          %v1510 = vunpack.c.h.b16 %v1425
          %v1511 = vunpack.c.l.b16 %v1426
          %v1512 = vunpack.c.h.b16 %v1426
          %v1513 = vunpack.c.l.b16 %v1427
          %v1514 = vunpack.c.h.b16 %v1427
          %v1515 = vunpack.c.l.b16 %v1428
          %v1516 = vunpack.c.h.b16 %v1428
          %v1517 = vunpack.c.l.b16 %v1429
          %v1518 = vunpack.c.h.b16 %v1429
          %v1519 = vunpack.c.l.b16 %v1430
          %v1520 = vunpack.c.h.b16 %v1430
          %v1521 = vunpack.c.l.b16 %v1431
          %v1522 = vunpack.c.h.b16 %v1431
          %v1523 = vunpack.c.l.b16 %v1432
          %v1524 = vunpack.c.h.b16 %v1432
          %v1525 = vunpack.c.l.b16 %v1433
          %v1526 = vunpack.c.h.b16 %v1433
          %v1527 = vunpack.c.l.b16 %v1434
          %v1528 = vunpack.c.h.b16 %v1434
          %v1529 = vunpack.c.l.b16 %v1435
          %v1530 = vunpack.c.h.b16 %v1435
          %v1531 = vunpack.c.l.b16 %v1436
          %v1532 = vunpack.c.h.b16 %v1436
          %v1533 = vpack.c.b16 %v1471, %v1469
          %v1534 = vpack.c.b16 %v1472, %v1470
          %v1535 = vpack.c.b16 %v1475, %v1473
          %v1536 = vpack.c.b16 %v1476, %v1474
          %v1537 = vpack.c.b16 %v1479, %v1477
          %v1538 = vpack.c.b16 %v1480, %v1478
          %v1539 = vpack.c.b16 %v1483, %v1481
          %v1540 = vpack.c.b16 %v1484, %v1482
          %v1541 = vpack.c.b16 %v1487, %v1485
          %v1542 = vpack.c.b16 %v1488, %v1486
          %v1543 = vpack.c.b16 %v1491, %v1489
          %v1544 = vpack.c.b16 %v1492, %v1490
          %v1545 = vpack.c.b16 %v1495, %v1493
          %v1546 = vpack.c.b16 %v1496, %v1494
          %v1547 = vpack.c.b16 %v1499, %v1497
          %v1548 = vpack.c.b16 %v1500, %v1498
          %v1549 = vpack.c.b16 %v1503, %v1501
          %v1550 = vpack.c.b16 %v1504, %v1502
          %v1551 = vpack.c.b16 %v1507, %v1505
          %v1552 = vpack.c.b16 %v1508, %v1506
          %v1553 = vpack.c.b16 %v1511, %v1509
          %v1554 = vpack.c.b16 %v1512, %v1510
          %v1555 = vpack.c.b16 %v1515, %v1513
          %v1556 = vpack.c.b16 %v1516, %v1514
          %v1557 = vpack.c.b16 %v1519, %v1517
          %v1558 = vpack.c.b16 %v1520, %v1518
          %v1559 = vpack.c.b16 %v1523, %v1521
          %v1560 = vpack.c.b16 %v1524, %v1522
          %v1561 = vpack.c.b16 %v1527, %v1525
          %v1562 = vpack.c.b16 %v1528, %v1526
          %v1563 = vpack.c.b16 %v1531, %v1529
          %v1564 = vpack.c.b16 %v1532, %v1530
          %1597 = vmatprep.subr.bf16.mxu0 %v1534
          %1598 = vmatpush1.bf16.msra.mxu0 %v1533
          %1599 = vmatprep.subr.bf16.mxu0 %v1536
          %1600 = vmatpush1.bf16.msra.mxu0 %v1535
          %1601 = vmatprep.subr.bf16.mxu0 %v1538
          %1602 = vmatpush1.bf16.msra.mxu0 %v1537
          %1603 = vmatprep.subr.bf16.mxu0 %v1540
          %1604 = vmatpush1.bf16.msra.mxu0 %v1539
          %1605 = vmatprep.subr.bf16.mxu0 %v1542
          %1606 = vmatpush1.bf16.msra.mxu0 %v1541
          %1607 = vmatprep.subr.bf16.mxu0 %v1544
          %1608 = vmatpush1.bf16.msra.mxu0 %v1543
          %1609 = vmatprep.subr.bf16.mxu0 %v1546
          %1610 = vmatpush1.bf16.msra.mxu0 %v1545
          %1611 = vmatprep.subr.bf16.mxu0 %v1548
          %1612 = vmatpush1.bf16.msra.mxu0 %v1547
          %1613 = vmatprep.subr.bf16.mxu0 %v1550
          %1614 = vmatpush1.bf16.msra.mxu0 %v1549
          %1615 = vmatprep.subr.bf16.mxu0 %v1552
          %1616 = vmatpush1.bf16.msra.mxu0 %v1551
          %1617 = vmatprep.subr.bf16.mxu0 %v1554
          %1618 = vmatpush1.bf16.msra.mxu0 %v1553
          %1619 = vmatprep.subr.bf16.mxu0 %v1556
          %1620 = vmatpush1.bf16.msra.mxu0 %v1555
          %1621 = vmatprep.subr.bf16.mxu0 %v1558
          %1622 = vmatpush1.bf16.msra.mxu0 %v1557
          %1623 = vmatprep.subr.bf16.mxu0 %v1560
          %1624 = vmatpush1.bf16.msra.mxu0 %v1559
          %1625 = vmatprep.subr.bf16.mxu0 %v1562
          %1626 = vmatpush1.bf16.msra.mxu0 %v1561
          %1627 = vmatprep.subr.bf16.mxu0 %v1564
          %1628 = vmatpush1.bf16.msra.mxu0 %v1563
          %1629 = vmatprep.mubr.bf16.mxu0 %v637
          %1630 = vmatmul.mubr.bf16.gmra.mrb[0].mxu0 %v636
          %v1631 = vpop.f32.mrb[0].mxu0
          %v1632 = vadd.f32 0.0, %v1631
          %v1633 = vpop.f32.mrb[0].mxu0
          %v1634 = vadd.f32 0.0, %v1633
          %v1635 = vpop.f32.mrb[0].mxu0
          %v1636 = vadd.f32 0.0, %v1635
          %v1637 = vpop.f32.mrb[0].mxu0
          %v1638 = vadd.f32 0.0, %v1637
          %1639 = vmatprep.mubr.bf16.mxu0 %v639
          %1640 = vmatmul.mubr.bf16.gmra.mrb[0].mxu0 %v638
          %v1641 = vpop.f32.mrb[0].mxu0
          %v1642 = vadd.f32 0.0, %v1641
          %v1643 = vpop.f32.mrb[0].mxu0
          %v1644 = vadd.f32 0.0, %v1643
          %v1645 = vpop.f32.mrb[0].mxu0
          %v1646 = vadd.f32 0.0, %v1645
          %v1647 = vpop.f32.mrb[0].mxu0
          %v1648 = vadd.f32 0.0, %v1647
          %1649 = vmatprep.mubr.bf16.mxu0 %v641
          %1650 = vmatmul.mubr.bf16.gmra.mrb[0].mxu0 %v640
          %v1651 = vpop.f32.mrb[0].mxu0
          %v1652 = vadd.f32 0.0, %v1651
          %v1653 = vpop.f32.mrb[0].mxu0
          %v1654 = vadd.f32 0.0, %v1653
          %v1655 = vpop.f32.mrb[0].mxu0
          %v1656 = vadd.f32 0.0, %v1655
          %v1657 = vpop.f32.mrb[0].mxu0
          %v1658 = vadd.f32 0.0, %v1657
          %1659 = vmatprep.mubr.bf16.mxu0 %v643
          %1660 = vmatmul.mubr.bf16.gmra.mrb[0].mxu0 %v642
          %v1661 = vpop.f32.mrb[0].mxu0
          %v1662 = vadd.f32 0.0, %v1661
          %v1663 = vpop.f32.mrb[0].mxu0
          %v1664 = vadd.f32 0.0, %v1663
          %v1665 = vpop.f32.mrb[0].mxu0
          %v1666 = vadd.f32 0.0, %v1665
          %v1667 = vpop.f32.mrb[0].mxu0
          %v1668 = vadd.f32 0.0, %v1667
          %1669 = vmatprep.mubr.bf16.mxu0 %v645
          %1670 = vmatmul.mubr.bf16.gmra.mrb[0].mxu0 %v644
          %v1671 = vpop.f32.mrb[0].mxu0
          %v1672 = vadd.f32 0.0, %v1671
          %v1673 = vpop.f32.mrb[0].mxu0
          %v1674 = vadd.f32 0.0, %v1673
          %v1675 = vpop.f32.mrb[0].mxu0
          %v1676 = vadd.f32 0.0, %v1675
          %v1677 = vpop.f32.mrb[0].mxu0
          %v1678 = vadd.f32 0.0, %v1677
          %1679 = vmatprep.mubr.bf16.mxu0 %v647
          %1680 = vmatmul.mubr.bf16.gmra.mrb[0].mxu0 %v646
          %v1681 = vpop.f32.mrb[0].mxu0
          %v1682 = vadd.f32 0.0, %v1681
          %v1683 = vpop.f32.mrb[0].mxu0
          %v1684 = vadd.f32 0.0, %v1683
          %v1685 = vpop.f32.mrb[0].mxu0
          %v1686 = vadd.f32 0.0, %v1685
          %v1687 = vpop.f32.mrb[0].mxu0
          %v1688 = vadd.f32 0.0, %v1687
          %1689 = vmatprep.mubr.bf16.mxu0 %v649
          %1690 = vmatmul.mubr.bf16.gmra.mrb[0].mxu0 %v648
          %v1691 = vpop.f32.mrb[0].mxu0
          %v1692 = vadd.f32 0.0, %v1691
          %v1693 = vpop.f32.mrb[0].mxu0
          %v1694 = vadd.f32 0.0, %v1693
          %v1695 = vpop.f32.mrb[0].mxu0
          %v1696 = vadd.f32 0.0, %v1695
          %v1697 = vpop.f32.mrb[0].mxu0
          %v1698 = vadd.f32 0.0, %v1697
          %1699 = vmatprep.mubr.bf16.mxu0 %v651
          %1700 = vmatmul.mubr.bf16.gmra.mrb[0].mxu0 %v650
          %v1701 = vpop.f32.mrb[0].mxu0
          %v1702 = vadd.f32 0.0, %v1701
          %v1703 = vpop.f32.mrb[0].mxu0
          %v1704 = vadd.f32 0.0, %v1703
          %v1705 = vpop.f32.mrb[0].mxu0
          %v1706 = vadd.f32 0.0, %v1705
          %v1707 = vpop.f32.mrb[0].mxu0
          %v1708 = vadd.f32 0.0, %v1707
          %1709 = vmatprep.mubr.bf16.mxu0 %v653
          %1710 = vmatmul.mubr.bf16.gmra.mrb[0].mxu0 %v652
          %v1711 = vpop.f32.mrb[0].mxu0
          %v1712 = vadd.f32 0.0, %v1711
          %v1713 = vpop.f32.mrb[0].mxu0
          %v1714 = vadd.f32 0.0, %v1713
          %v1715 = vpop.f32.mrb[0].mxu0
          %v1716 = vadd.f32 0.0, %v1715
          %v1717 = vpop.f32.mrb[0].mxu0
          %v1718 = vadd.f32 0.0, %v1717
          %1719 = vmatprep.mubr.bf16.mxu0 %v655
          %1720 = vmatmul.mubr.bf16.gmra.mrb[0].mxu0 %v654
          %v1721 = vpop.f32.mrb[0].mxu0
          %v1722 = vadd.f32 0.0, %v1721
          %v1723 = vpop.f32.mrb[0].mxu0
          %v1724 = vadd.f32 0.0, %v1723
          %v1725 = vpop.f32.mrb[0].mxu0
          %v1726 = vadd.f32 0.0, %v1725
          %v1727 = vpop.f32.mrb[0].mxu0
          %v1728 = vadd.f32 0.0, %v1727
          %1729 = vmatprep.mubr.bf16.mxu0 %v657
          %1730 = vmatmul.mubr.bf16.gmra.mrb[0].mxu0 %v656
          %v1731 = vpop.f32.mrb[0].mxu0
          %v1732 = vadd.f32 0.0, %v1731
          %v1733 = vpop.f32.mrb[0].mxu0
          %v1734 = vadd.f32 0.0, %v1733
          %v1735 = vpop.f32.mrb[0].mxu0
          %v1736 = vadd.f32 0.0, %v1735
          %v1737 = vpop.f32.mrb[0].mxu0
          %v1738 = vadd.f32 0.0, %v1737
          %1739 = vmatprep.mubr.bf16.mxu0 %v659
          %1740 = vmatmul.mubr.bf16.gmra.mrb[0].mxu0 %v658
          %v1741 = vpop.f32.mrb[0].mxu0
          %v1742 = vadd.f32 0.0, %v1741
          %v1743 = vpop.f32.mrb[0].mxu0
          %v1744 = vadd.f32 0.0, %v1743
          %v1745 = vpop.f32.mrb[0].mxu0
          %v1746 = vadd.f32 0.0, %v1745
          %v1747 = vpop.f32.mrb[0].mxu0
          %v1748 = vadd.f32 0.0, %v1747
          %1749 = vmatprep.mubr.bf16.mxu0 %v661
          %1750 = vmatmul.mubr.bf16.gmra.mrb[0].mxu0 %v660
          %v1751 = vpop.f32.mrb[0].mxu0
          %v1752 = vadd.f32 0.0, %v1751
          %v1753 = vpop.f32.mrb[0].mxu0
          %v1754 = vadd.f32 0.0, %v1753
          %v1755 = vpop.f32.mrb[0].mxu0
          %v1756 = vadd.f32 0.0, %v1755
          %v1757 = vpop.f32.mrb[0].mxu0
          %v1758 = vadd.f32 0.0, %v1757
          %1759 = vmatprep.mubr.bf16.mxu0 %v663
          %1760 = vmatmul.mubr.bf16.gmra.mrb[0].mxu0 %v662
          %v1761 = vpop.f32.mrb[0].mxu0
          %v1762 = vadd.f32 0.0, %v1761
          %v1763 = vpop.f32.mrb[0].mxu0
          %v1764 = vadd.f32 0.0, %v1763
          %v1765 = vpop.f32.mrb[0].mxu0
          %v1766 = vadd.f32 0.0, %v1765
          %v1767 = vpop.f32.mrb[0].mxu0
          %v1768 = vadd.f32 0.0, %v1767
          %1769 = vmatprep.mubr.bf16.mxu0 %v665
          %1770 = vmatmul.mubr.bf16.gmra.mrb[0].mxu0 %v664
          %v1771 = vpop.f32.mrb[0].mxu0
          %v1772 = vadd.f32 0.0, %v1771
          %v1773 = vpop.f32.mrb[0].mxu0
          %v1774 = vadd.f32 0.0, %v1773
          %v1775 = vpop.f32.mrb[0].mxu0
          %v1776 = vadd.f32 0.0, %v1775
          %v1777 = vpop.f32.mrb[0].mxu0
          %v1778 = vadd.f32 0.0, %v1777
          %1779 = vmatprep.mubr.bf16.mxu0 %v667
          %1780 = vmatmul.mubr.bf16.gmra.mrb[0].mxu0 %v666
          %v1781 = vpop.f32.mrb[0].mxu0
          %v1782 = vadd.f32 0.0, %v1781
          %v1783 = vpop.f32.mrb[0].mxu0
          %v1784 = vadd.f32 0.0, %v1783
          %v1785 = vpop.f32.mrb[0].mxu0
          %v1786 = vadd.f32 0.0, %v1785
          %v1787 = vpop.f32.mrb[0].mxu0
          %v1788 = vadd.f32 0.0, %v1787
          %1789 = vmatprep.mubr.bf16.mxu0 %v669
          %1790 = vmatmul.mubr.bf16.gmra.mrb[0].mxu0 %v668
          %v1791 = vpop.f32.mrb[0].mxu0
          %v1792 = vadd.f32 0.0, %v1791
          %v1793 = vpop.f32.mrb[0].mxu0
          %v1794 = vadd.f32 0.0, %v1793
          %v1795 = vpop.f32.mrb[0].mxu0
          %v1796 = vadd.f32 0.0, %v1795
          %v1797 = vpop.f32.mrb[0].mxu0
          %v1798 = vadd.f32 0.0, %v1797
          %1799 = vmatprep.mubr.bf16.mxu0 %v671
          %1800 = vmatmul.mubr.bf16.gmra.mrb[0].mxu0 %v670
          %v1801 = vpop.f32.mrb[0].mxu0
          %v1802 = vadd.f32 0.0, %v1801
          %v1803 = vpop.f32.mrb[0].mxu0
          %v1804 = vadd.f32 0.0, %v1803
          %v1805 = vpop.f32.mrb[0].mxu0
          %v1806 = vadd.f32 0.0, %v1805
          %v1807 = vpop.f32.mrb[0].mxu0
          %v1808 = vadd.f32 0.0, %v1807
          %1809 = vmatprep.mubr.bf16.mxu0 %v673
          %1810 = vmatmul.mubr.bf16.gmra.mrb[0].mxu0 %v672
          %v1811 = vpop.f32.mrb[0].mxu0
          %v1812 = vadd.f32 0.0, %v1811
          %v1813 = vpop.f32.mrb[0].mxu0
          %v1814 = vadd.f32 0.0, %v1813
          %v1815 = vpop.f32.mrb[0].mxu0
          %v1816 = vadd.f32 0.0, %v1815
          %v1817 = vpop.f32.mrb[0].mxu0
          %v1818 = vadd.f32 0.0, %v1817
          %1819 = vmatprep.mubr.bf16.mxu0 %v675
          %1820 = vmatmul.mubr.bf16.gmra.mrb[0].mxu0 %v674
          %v1821 = vpop.f32.mrb[0].mxu0
          %v1822 = vadd.f32 0.0, %v1821
          %v1823 = vpop.f32.mrb[0].mxu0
          %v1824 = vadd.f32 0.0, %v1823
          %v1825 = vpop.f32.mrb[0].mxu0
          %v1826 = vadd.f32 0.0, %v1825
          %v1827 = vpop.f32.mrb[0].mxu0
          %v1828 = vadd.f32 0.0, %v1827
          %1829 = vmatprep.mubr.bf16.mxu0 %v677
          %1830 = vmatmul.mubr.bf16.gmra.mrb[0].mxu0 %v676
          %v1831 = vpop.f32.mrb[0].mxu0
          %v1832 = vadd.f32 0.0, %v1831
          %v1833 = vpop.f32.mrb[0].mxu0
          %v1834 = vadd.f32 0.0, %v1833
          %v1835 = vpop.f32.mrb[0].mxu0
          %v1836 = vadd.f32 0.0, %v1835
          %v1837 = vpop.f32.mrb[0].mxu0
          %v1838 = vadd.f32 0.0, %v1837
          %1839 = vmatprep.mubr.bf16.mxu0 %v679
          %1840 = vmatmul.mubr.bf16.gmra.mrb[0].mxu0 %v678
          %v1841 = vpop.f32.mrb[0].mxu0
          %v1842 = vadd.f32 0.0, %v1841
          %v1843 = vpop.f32.mrb[0].mxu0
          %v1844 = vadd.f32 0.0, %v1843
          %v1845 = vpop.f32.mrb[0].mxu0
          %v1846 = vadd.f32 0.0, %v1845
          %v1847 = vpop.f32.mrb[0].mxu0
          %v1848 = vadd.f32 0.0, %v1847
          %1849 = vmatprep.mubr.bf16.mxu0 %v681
          %1850 = vmatmul.mubr.bf16.gmra.mrb[0].mxu0 %v680
          %v1851 = vpop.f32.mrb[0].mxu0
          %v1852 = vadd.f32 0.0, %v1851
          %v1853 = vpop.f32.mrb[0].mxu0
          %v1854 = vadd.f32 0.0, %v1853
          %v1855 = vpop.f32.mrb[0].mxu0
          %v1856 = vadd.f32 0.0, %v1855
          %v1857 = vpop.f32.mrb[0].mxu0
          %v1858 = vadd.f32 0.0, %v1857
          %1859 = vmatprep.mubr.bf16.mxu0 %v683
          %1860 = vmatmul.mubr.bf16.gmra.mrb[0].mxu0 %v682
          %v1861 = vpop.f32.mrb[0].mxu0
          %v1862 = vadd.f32 0.0, %v1861
          %v1863 = vpop.f32.mrb[0].mxu0
          %v1864 = vadd.f32 0.0, %v1863
          %v1865 = vpop.f32.mrb[0].mxu0
          %v1866 = vadd.f32 0.0, %v1865
          %v1867 = vpop.f32.mrb[0].mxu0
          %v1868 = vadd.f32 0.0, %v1867
          %1869 = vmatprep.mubr.bf16.mxu0 %v685
          %1870 = vmatmul.mubr.bf16.gmra.mrb[0].mxu0 %v684
          %v1871 = vpop.f32.mrb[0].mxu0
          %v1872 = vadd.f32 0.0, %v1871
          %v1873 = vpop.f32.mrb[0].mxu0
          %v1874 = vadd.f32 0.0, %v1873
          %v1875 = vpop.f32.mrb[0].mxu0
          %v1876 = vadd.f32 0.0, %v1875
          %v1877 = vpop.f32.mrb[0].mxu0
          %v1878 = vadd.f32 0.0, %v1877
          %1879 = vmatprep.mubr.bf16.mxu0 %v687
          %1880 = vmatmul.mubr.bf16.gmra.mrb[0].mxu0 %v686
          %v1881 = vpop.f32.mrb[0].mxu0
          %v1882 = vadd.f32 0.0, %v1881
          %v1883 = vpop.f32.mrb[0].mxu0
          %v1884 = vadd.f32 0.0, %v1883
          %v1885 = vpop.f32.mrb[0].mxu0
          %v1886 = vadd.f32 0.0, %v1885
          %v1887 = vpop.f32.mrb[0].mxu0
          %v1888 = vadd.f32 0.0, %v1887
          %1889 = vmatprep.mubr.bf16.mxu0 %v689
          %1890 = vmatmul.mubr.bf16.gmra.mrb[0].mxu0 %v688
          %v1891 = vpop.f32.mrb[0].mxu0
          %v1892 = vadd.f32 0.0, %v1891
          %v1893 = vpop.f32.mrb[0].mxu0
          %v1894 = vadd.f32 0.0, %v1893
          %v1895 = vpop.f32.mrb[0].mxu0
          %v1896 = vadd.f32 0.0, %v1895
          %v1897 = vpop.f32.mrb[0].mxu0
          %v1898 = vadd.f32 0.0, %v1897
          %1899 = vmatprep.mubr.bf16.mxu0 %v691
          %1900 = vmatmul.mubr.bf16.gmra.mrb[0].mxu0 %v690
          %v1901 = vpop.f32.mrb[0].mxu0
          %v1902 = vadd.f32 0.0, %v1901
          %v1903 = vpop.f32.mrb[0].mxu0
          %v1904 = vadd.f32 0.0, %v1903
          %v1905 = vpop.f32.mrb[0].mxu0
          %v1906 = vadd.f32 0.0, %v1905
          %v1907 = vpop.f32.mrb[0].mxu0
          %v1908 = vadd.f32 0.0, %v1907
          %1909 = vmatprep.mubr.bf16.mxu0 %v693
          %1910 = vmatmul.mubr.bf16.gmra.mrb[0].mxu0 %v692
          %v1911 = vpop.f32.mrb[0].mxu0
          %v1912 = vadd.f32 0.0, %v1911
          %v1913 = vpop.f32.mrb[0].mxu0
          %v1914 = vadd.f32 0.0, %v1913
          %v1915 = vpop.f32.mrb[0].mxu0
          %v1916 = vadd.f32 0.0, %v1915
          %v1917 = vpop.f32.mrb[0].mxu0
          %v1918 = vadd.f32 0.0, %v1917
          %1919 = vmatprep.mubr.bf16.mxu0 %v695
          %1920 = vmatmul.mubr.bf16.gmra.mrb[0].mxu0 %v694
          %v1921 = vpop.f32.mrb[0].mxu0
          %v1922 = vadd.f32 0.0, %v1921
          %v1923 = vpop.f32.mrb[0].mxu0
          %v1924 = vadd.f32 0.0, %v1923
          %v1925 = vpop.f32.mrb[0].mxu0
          %v1926 = vadd.f32 0.0, %v1925
          %v1927 = vpop.f32.mrb[0].mxu0
          %v1928 = vadd.f32 0.0, %v1927
          %1929 = vmatprep.mubr.bf16.mxu0 %v697
          %1930 = vmatmul.mubr.bf16.gmra.mrb[0].mxu0 %v696
          %v1931 = vpop.f32.mrb[0].mxu0
          %v1932 = vadd.f32 0.0, %v1931
          %v1933 = vpop.f32.mrb[0].mxu0
          %v1934 = vadd.f32 0.0, %v1933
          %v1935 = vpop.f32.mrb[0].mxu0
          %v1936 = vadd.f32 0.0, %v1935
          %v1937 = vpop.f32.mrb[0].mxu0
          %v1938 = vadd.f32 0.0, %v1937
          %1939 = vmatprep.mubr.bf16.mxu0 %v699
          %1940 = vmatmul.mubr.bf16.gmra.mrb[0].mxu0 %v698
          %v1941 = vpop.f32.mrb[0].mxu0
          %v1942 = vadd.f32 0.0, %v1941
          %v1943 = vpop.f32.mrb[0].mxu0
          %v1944 = vadd.f32 0.0, %v1943
          %v1945 = vpop.f32.mrb[0].mxu0
          %v1946 = vadd.f32 0.0, %v1945
          %v1947 = vpop.f32.mrb[0].mxu0
          %v1948 = vadd.f32 0.0, %v1947
          %1949 = vdwg.mxu0
          %v1950 = vpack.c.bf16 %v1636, %v1632
          %v1951 = vpack.c.bf16 %v1638, %v1634
          %v1952 = vpack.c.bf16 %v1646, %v1642
          %v1953 = vpack.c.bf16 %v1648, %v1644
          %v1954 = vpack.c.bf16 %v1656, %v1652
          %v1955 = vpack.c.bf16 %v1658, %v1654
          %v1956 = vpack.c.bf16 %v1666, %v1662
          %v1957 = vpack.c.bf16 %v1668, %v1664
          %v1958 = vpack.c.bf16 %v1676, %v1672
          %v1959 = vpack.c.bf16 %v1678, %v1674
          %v1960 = vpack.c.bf16 %v1686, %v1682
          %v1961 = vpack.c.bf16 %v1688, %v1684
          %v1962 = vpack.c.bf16 %v1696, %v1692
          %v1963 = vpack.c.bf16 %v1698, %v1694
          %v1964 = vpack.c.bf16 %v1706, %v1702
          %v1965 = vpack.c.bf16 %v1708, %v1704
          %v1966 = vpack.c.bf16 %v1716, %v1712
          %v1967 = vpack.c.bf16 %v1718, %v1714
          %v1968 = vpack.c.bf16 %v1726, %v1722
          %v1969 = vpack.c.bf16 %v1728, %v1724
          %v1970 = vpack.c.bf16 %v1736, %v1732
          %v1971 = vpack.c.bf16 %v1738, %v1734
          %v1972 = vpack.c.bf16 %v1746, %v1742
          %v1973 = vpack.c.bf16 %v1748, %v1744
          %v1974 = vpack.c.bf16 %v1756, %v1752
          %v1975 = vpack.c.bf16 %v1758, %v1754
          %v1976 = vpack.c.bf16 %v1766, %v1762
          %v1977 = vpack.c.bf16 %v1768, %v1764
          %v1978 = vpack.c.bf16 %v1776, %v1772
          %v1979 = vpack.c.bf16 %v1778, %v1774
          %v1980 = vpack.c.bf16 %v1786, %v1782
          %v1981 = vpack.c.bf16 %v1788, %v1784
          %v1982 = vpack.c.bf16 %v1796, %v1792
          %v1983 = vpack.c.bf16 %v1798, %v1794
          %v1984 = vpack.c.bf16 %v1806, %v1802
          %v1985 = vpack.c.bf16 %v1808, %v1804
          %v1986 = vpack.c.bf16 %v1816, %v1812
          %v1987 = vpack.c.bf16 %v1818, %v1814
          %v1988 = vpack.c.bf16 %v1826, %v1822
          %v1989 = vpack.c.bf16 %v1828, %v1824
          %v1990 = vpack.c.bf16 %v1836, %v1832
          %v1991 = vpack.c.bf16 %v1838, %v1834
          %v1992 = vpack.c.bf16 %v1846, %v1842
          %v1993 = vpack.c.bf16 %v1848, %v1844
          %v1994 = vpack.c.bf16 %v1856, %v1852
          %v1995 = vpack.c.bf16 %v1858, %v1854
          %v1996 = vpack.c.bf16 %v1866, %v1862
          %v1997 = vpack.c.bf16 %v1868, %v1864
          %v1998 = vpack.c.bf16 %v1876, %v1872
          %v1999 = vpack.c.bf16 %v1878, %v1874
          %v2000 = vpack.c.bf16 %v1886, %v1882
          %v2001 = vpack.c.bf16 %v1888, %v1884
          %v2002 = vpack.c.bf16 %v1896, %v1892
          %v2003 = vpack.c.bf16 %v1898, %v1894
          %v2004 = vpack.c.bf16 %v1906, %v1902
          %v2005 = vpack.c.bf16 %v1908, %v1904
          %v2006 = vpack.c.bf16 %v1916, %v1912
          %v2007 = vpack.c.bf16 %v1918, %v1914
          %v2008 = vpack.c.bf16 %v1926, %v1922
          %v2009 = vpack.c.bf16 %v1928, %v1924
          %v2010 = vpack.c.bf16 %v1936, %v1932
          %v2011 = vpack.c.bf16 %v1938, %v1934
          %v2012 = vpack.c.bf16 %v1946, %v1942
          %v2013 = vpack.c.bf16 %v1948, %v1944
          %2014 = vst [vmem:[#allocation3] sm:$0xff] %v1950
          %2015 = vst [vmem:[#allocation3 + $0x8] sm:$0xff] %v1951
          %2016 = vst [vmem:[#allocation3 + $0x10] sm:$0xff] %v1952
          %2017 = vst [vmem:[#allocation3 + $0x18] sm:$0xff] %v1953
          %2018 = vst [vmem:[#allocation3 + $0x20] sm:$0xff] %v1954
          %2019 = vst [vmem:[#allocation3 + $0x28] sm:$0xff] %v1955
          %2020 = vst [vmem:[#allocation3 + $0x30] sm:$0xff] %v1956
          %2021 = vst [vmem:[#allocation3 + $0x38] sm:$0xff] %v1957
          %2022 = vst [vmem:[#allocation3 + $0x40] sm:$0xff] %v1958
          %2023 = vst [vmem:[#allocation3 + $0x48] sm:$0xff] %v1959
          %2024 = vst [vmem:[#allocation3 + $0x50] sm:$0xff] %v1960
          %2025 = vst [vmem:[#allocation3 + $0x58] sm:$0xff] %v1961
          %2026 = vst [vmem:[#allocation3 + $0x60] sm:$0xff] %v1962
          %2027 = vst [vmem:[#allocation3 + $0x68] sm:$0xff] %v1963
          %2028 = vst [vmem:[#allocation3 + $0x70] sm:$0xff] %v1964
          %2029 = vst [vmem:[#allocation3 + $0x78] sm:$0xff] %v1965
          %2030 = vst [vmem:[#allocation3 + $0x80] sm:$0xff] %v1966
          %2031 = vst [vmem:[#allocation3 + $0x88] sm:$0xff] %v1967
          %2032 = vst [vmem:[#allocation3 + $0x90] sm:$0xff] %v1968
          %2033 = vst [vmem:[#allocation3 + $0x98] sm:$0xff] %v1969
          %2034 = vst [vmem:[#allocation3 + $0xa0] sm:$0xff] %v1970
          %2035 = vst [vmem:[#allocation3 + $0xa8] sm:$0xff] %v1971
          %2036 = vst [vmem:[#allocation3 + $0xb0] sm:$0xff] %v1972
          %2037 = vst [vmem:[#allocation3 + $0xb8] sm:$0xff] %v1973
          %2038 = vst [vmem:[#allocation3 + $0xc0] sm:$0xff] %v1974
          %2039 = vst [vmem:[#allocation3 + $0xc8] sm:$0xff] %v1975
          %2040 = vst [vmem:[#allocation3 + $0xd0] sm:$0xff] %v1976
          %2041 = vst [vmem:[#allocation3 + $0xd8] sm:$0xff] %v1977
          %2042 = vst [vmem:[#allocation3 + $0xe0] sm:$0xff] %v1978
          %2043 = vst [vmem:[#allocation3 + $0xe8] sm:$0xff] %v1979
          %2044 = vst [vmem:[#allocation3 + $0xf0] sm:$0xff] %v1980
          %2045 = vst [vmem:[#allocation3 + $0xf8] sm:$0xff] %v1981
          %2046 = vst [vmem:[#allocation3 + $0x100] sm:$0xff] %v1982
          %2047 = vst [vmem:[#allocation3 + $0x108] sm:$0xff] %v1983
          %2048 = vst [vmem:[#allocation3 + $0x110] sm:$0xff] %v1984
          %2049 = vst [vmem:[#allocation3 + $0x118] sm:$0xff] %v1985
          %2050 = vst [vmem:[#allocation3 + $0x120] sm:$0xff] %v1986
          %2051 = vst [vmem:[#allocation3 + $0x128] sm:$0xff] %v1987
          %2052 = vst [vmem:[#allocation3 + $0x130] sm:$0xff] %v1988
          %2053 = vst [vmem:[#allocation3 + $0x138] sm:$0xff] %v1989
          %2054 = vst [vmem:[#allocation3 + $0x140] sm:$0xff] %v1990
          %2055 = vst [vmem:[#allocation3 + $0x148] sm:$0xff] %v1991
          %2056 = vst [vmem:[#allocation3 + $0x150] sm:$0xff] %v1992
          %2057 = vst [vmem:[#allocation3 + $0x158] sm:$0xff] %v1993
          %2058 = vst [vmem:[#allocation3 + $0x160] sm:$0xff] %v1994
          %2059 = vst [vmem:[#allocation3 + $0x168] sm:$0xff] %v1995
          %2060 = vst [vmem:[#allocation3 + $0x170] sm:$0xff] %v1996
          %2061 = vst [vmem:[#allocation3 + $0x178] sm:$0xff] %v1997
          %2062 = vst [vmem:[#allocation3 + $0x180] sm:$0xff] %v1998
          %2063 = vst [vmem:[#allocation3 + $0x188] sm:$0xff] %v1999
          %2064 = vst [vmem:[#allocation3 + $0x190] sm:$0xff] %v2000
          %2065 = vst [vmem:[#allocation3 + $0x198] sm:$0xff] %v2001
          %2066 = vst [vmem:[#allocation3 + $0x1a0] sm:$0xff] %v2002
          %2067 = vst [vmem:[#allocation3 + $0x1a8] sm:$0xff] %v2003
          %2068 = vst [vmem:[#allocation3 + $0x1b0] sm:$0xff] %v2004
          %2069 = vst [vmem:[#allocation3 + $0x1b8] sm:$0xff] %v2005
          %2070 = vst [vmem:[#allocation3 + $0x1c0] sm:$0xff] %v2006
          %2071 = vst [vmem:[#allocation3 + $0x1c8] sm:$0xff] %v2007
          %2072 = vst [vmem:[#allocation3 + $0x1d0] sm:$0xff] %v2008
          %2073 = vst [vmem:[#allocation3 + $0x1d8] sm:$0xff] %v2009
          %2074 = vst [vmem:[#allocation3 + $0x1e0] sm:$0xff] %v2010
          %2075 = vst [vmem:[#allocation3 + $0x1e8] sm:$0xff] %v2011
          %2076 = vst [vmem:[#allocation3 + $0x1f0] sm:$0xff] %v2012
          %2077 = vst [vmem:[#allocation3 + $0x1f8] sm:$0xff] %v2013
        $region68: #{tpu_custom_call.1} parent=43 // pred_fallthru
          _
        %s2078 = smul.u32 %s30, 256
        %s2079 = sshra.s32 %s2078, 3
        %s2080 = sand.u32 %s2078, 7
        %s2081 = smul.u32 %s2079, 2
        %s2082 = smul.addr %s2081, 4
        %s2083 = scalar_lea.vmem %s297, %s2082 [#allocation5]
        %v2084 = vld [vmem:[%s2083] sm:$0xff]
        %v2085 = vld [vmem:[%s2083 + $0x8] sm:$0xff]
        %v2086 = vld [vmem:[%s2083 + $0x10] sm:$0xff]
        %v2087 = vld [vmem:[%s2083 + $0x18] sm:$0xff]
        %v2088 = vld [vmem:[%s2083 + $0x20] sm:$0xff]
        %v2089 = vld [vmem:[%s2083 + $0x28] sm:$0xff]
        %v2090 = vld [vmem:[%s2083 + $0x30] sm:$0xff]
        %v2091 = vld [vmem:[%s2083 + $0x38] sm:$0xff]
        %v2092 = vld [vmem:[%s2083 + $0x40] sm:$0xff]
        %v2093 = vld [vmem:[%s2083 + $0x48] sm:$0xff]
        %v2094 = vld [vmem:[%s2083 + $0x50] sm:$0xff]
        %v2095 = vld [vmem:[%s2083 + $0x58] sm:$0xff]
        %v2096 = vld [vmem:[%s2083 + $0x60] sm:$0xff]
        %v2097 = vld [vmem:[%s2083 + $0x68] sm:$0xff]
        %v2098 = vld [vmem:[%s2083 + $0x70] sm:$0xff]
        %v2099 = vld [vmem:[%s2083 + $0x78] sm:$0xff]
        %v2100 = vld [vmem:[%s2083 + $0x80] sm:$0xff]
        %v2101 = vld [vmem:[%s2083 + $0x88] sm:$0xff]
        %v2102 = vld [vmem:[%s2083 + $0x90] sm:$0xff]
        %v2103 = vld [vmem:[%s2083 + $0x98] sm:$0xff]
        %v2104 = vld [vmem:[%s2083 + $0xa0] sm:$0xff]
        %v2105 = vld [vmem:[%s2083 + $0xa8] sm:$0xff]
        %v2106 = vld [vmem:[%s2083 + $0xb0] sm:$0xff]
        %v2107 = vld [vmem:[%s2083 + $0xb8] sm:$0xff]
        %v2108 = vld [vmem:[%s2083 + $0xc0] sm:$0xff]
        %v2109 = vld [vmem:[%s2083 + $0xc8] sm:$0xff]
        %v2110 = vld [vmem:[%s2083 + $0xd0] sm:$0xff]
        %v2111 = vld [vmem:[%s2083 + $0xd8] sm:$0xff]
        %v2112 = vld [vmem:[%s2083 + $0xe0] sm:$0xff]
        %v2113 = vld [vmem:[%s2083 + $0xe8] sm:$0xff]
        %v2114 = vld [vmem:[%s2083 + $0xf0] sm:$0xff]
        %v2115 = vld [vmem:[%s2083 + $0xf8] sm:$0xff]
        %v2116 = vld [vmem:[#allocation8] sm:$0xff]
        %v2117 = vld [vmem:[#allocation8 + $0x8] sm:$0xff]
        %v2118 = vld [vmem:[#allocation8 + $0x10] sm:$0xff]
        %v2119 = vld [vmem:[#allocation8 + $0x18] sm:$0xff]
        %v2120 = vld [vmem:[#allocation8 + $0x20] sm:$0xff]
        %v2121 = vld [vmem:[#allocation8 + $0x28] sm:$0xff]
        %v2122 = vld [vmem:[#allocation8 + $0x30] sm:$0xff]
        %v2123 = vld [vmem:[#allocation8 + $0x38] sm:$0xff]
        %v2124 = vld [vmem:[#allocation8 + $0x40] sm:$0xff]
        %v2125 = vld [vmem:[#allocation8 + $0x48] sm:$0xff]
        %v2126 = vld [vmem:[#allocation8 + $0x50] sm:$0xff]
        %v2127 = vld [vmem:[#allocation8 + $0x58] sm:$0xff]
        %v2128 = vld [vmem:[#allocation8 + $0x60] sm:$0xff]
        %v2129 = vld [vmem:[#allocation8 + $0x68] sm:$0xff]
        %v2130 = vld [vmem:[#allocation8 + $0x70] sm:$0xff]
        %v2131 = vld [vmem:[#allocation8 + $0x78] sm:$0xff]
        %v2132 = vld [vmem:[#allocation8 + $0x80] sm:$0xff]
        %v2133 = vld [vmem:[#allocation8 + $0x88] sm:$0xff]
        %v2134 = vld [vmem:[#allocation8 + $0x90] sm:$0xff]
        %v2135 = vld [vmem:[#allocation8 + $0x98] sm:$0xff]
        %v2136 = vld [vmem:[#allocation8 + $0xa0] sm:$0xff]
        %v2137 = vld [vmem:[#allocation8 + $0xa8] sm:$0xff]
        %v2138 = vld [vmem:[#allocation8 + $0xb0] sm:$0xff]
        %v2139 = vld [vmem:[#allocation8 + $0xb8] sm:$0xff]
        %v2140 = vld [vmem:[#allocation8 + $0xc0] sm:$0xff]
        %v2141 = vld [vmem:[#allocation8 + $0xc8] sm:$0xff]
        %v2142 = vld [vmem:[#allocation8 + $0xd0] sm:$0xff]
        %v2143 = vld [vmem:[#allocation8 + $0xd8] sm:$0xff]
        %v2144 = vld [vmem:[#allocation8 + $0xe0] sm:$0xff]
        %v2145 = vld [vmem:[#allocation8 + $0xe8] sm:$0xff]
        %v2146 = vld [vmem:[#allocation8 + $0xf0] sm:$0xff]
        %v2147 = vld [vmem:[#allocation8 + $0xf8] sm:$0xff]
        %v2180 = vunpack.c.l.b16 %v2084
        %v2181 = vunpack.c.h.b16 %v2084
        %v2182 = vunpack.c.l.b16 %v2085
        %v2183 = vunpack.c.h.b16 %v2085
        %v2184 = vunpack.c.l.b16 %v2086
        %v2185 = vunpack.c.h.b16 %v2086
        %v2186 = vunpack.c.l.b16 %v2087
        %v2187 = vunpack.c.h.b16 %v2087
        %v2188 = vunpack.c.l.b16 %v2088
        %v2189 = vunpack.c.h.b16 %v2088
        %v2190 = vunpack.c.l.b16 %v2089
        %v2191 = vunpack.c.h.b16 %v2089
        %v2192 = vunpack.c.l.b16 %v2090
        %v2193 = vunpack.c.h.b16 %v2090
        %v2194 = vunpack.c.l.b16 %v2091
        %v2195 = vunpack.c.h.b16 %v2091
        %v2196 = vunpack.c.l.b16 %v2092
        %v2197 = vunpack.c.h.b16 %v2092
        %v2198 = vunpack.c.l.b16 %v2093
        %v2199 = vunpack.c.h.b16 %v2093
        %v2200 = vunpack.c.l.b16 %v2094
        %v2201 = vunpack.c.h.b16 %v2094
        %v2202 = vunpack.c.l.b16 %v2095
        %v2203 = vunpack.c.h.b16 %v2095
        %v2204 = vunpack.c.l.b16 %v2096
        %v2205 = vunpack.c.h.b16 %v2096
        %v2206 = vunpack.c.l.b16 %v2097
        %v2207 = vunpack.c.h.b16 %v2097
        %v2208 = vunpack.c.l.b16 %v2098
        %v2209 = vunpack.c.h.b16 %v2098
        %v2210 = vunpack.c.l.b16 %v2099
        %v2211 = vunpack.c.h.b16 %v2099
        %v2212 = vunpack.c.l.b16 %v2100
        %v2213 = vunpack.c.h.b16 %v2100
        %v2214 = vunpack.c.l.b16 %v2101
        %v2215 = vunpack.c.h.b16 %v2101
        %v2216 = vunpack.c.l.b16 %v2102
        %v2217 = vunpack.c.h.b16 %v2102
        %v2218 = vunpack.c.l.b16 %v2103
        %v2219 = vunpack.c.h.b16 %v2103
        %v2220 = vunpack.c.l.b16 %v2104
        %v2221 = vunpack.c.h.b16 %v2104
        %v2222 = vunpack.c.l.b16 %v2105
        %v2223 = vunpack.c.h.b16 %v2105
        %v2224 = vunpack.c.l.b16 %v2106
        %v2225 = vunpack.c.h.b16 %v2106
        %v2226 = vunpack.c.l.b16 %v2107
        %v2227 = vunpack.c.h.b16 %v2107
        %v2228 = vunpack.c.l.b16 %v2108
        %v2229 = vunpack.c.h.b16 %v2108
        %v2230 = vunpack.c.l.b16 %v2109
        %v2231 = vunpack.c.h.b16 %v2109
        %v2232 = vunpack.c.l.b16 %v2110
        %v2233 = vunpack.c.h.b16 %v2110
        %v2234 = vunpack.c.l.b16 %v2111
        %v2235 = vunpack.c.h.b16 %v2111
        %v2236 = vunpack.c.l.b16 %v2112
        %v2237 = vunpack.c.h.b16 %v2112
        %v2238 = vunpack.c.l.b16 %v2113
        %v2239 = vunpack.c.h.b16 %v2113
        %v2240 = vunpack.c.l.b16 %v2114
        %v2241 = vunpack.c.h.b16 %v2114
        %v2242 = vunpack.c.l.b16 %v2115
        %v2243 = vunpack.c.h.b16 %v2115
        %v2244 = vpack.c.b16 %v2182, %v2180
        %v2245 = vpack.c.b16 %v2183, %v2181
        %v2246 = vpack.c.b16 %v2186, %v2184
        %v2247 = vpack.c.b16 %v2187, %v2185
        %v2248 = vpack.c.b16 %v2190, %v2188
        %v2249 = vpack.c.b16 %v2191, %v2189
        %v2250 = vpack.c.b16 %v2194, %v2192
        %v2251 = vpack.c.b16 %v2195, %v2193
        %v2252 = vpack.c.b16 %v2198, %v2196
        %v2253 = vpack.c.b16 %v2199, %v2197
        %v2254 = vpack.c.b16 %v2202, %v2200
        %v2255 = vpack.c.b16 %v2203, %v2201
        %v2256 = vpack.c.b16 %v2206, %v2204
        %v2257 = vpack.c.b16 %v2207, %v2205
        %v2258 = vpack.c.b16 %v2210, %v2208
        %v2259 = vpack.c.b16 %v2211, %v2209
        %v2260 = vpack.c.b16 %v2214, %v2212
        %v2261 = vpack.c.b16 %v2215, %v2213
        %v2262 = vpack.c.b16 %v2218, %v2216
        %v2263 = vpack.c.b16 %v2219, %v2217
        %v2264 = vpack.c.b16 %v2222, %v2220
        %v2265 = vpack.c.b16 %v2223, %v2221
        %v2266 = vpack.c.b16 %v2226, %v2224
        %v2267 = vpack.c.b16 %v2227, %v2225
        %v2268 = vpack.c.b16 %v2230, %v2228
        %v2269 = vpack.c.b16 %v2231, %v2229
        %v2270 = vpack.c.b16 %v2234, %v2232
        %v2271 = vpack.c.b16 %v2235, %v2233
        %v2272 = vpack.c.b16 %v2238, %v2236
        %v2273 = vpack.c.b16 %v2239, %v2237
        %v2274 = vpack.c.b16 %v2242, %v2240
        %v2275 = vpack.c.b16 %v2243, %v2241
        %v2340 = vunpack.c.l.b16 %v2116
        %v2341 = vunpack.c.h.b16 %v2116
        %v2342 = vunpack.c.l.b16 %v2117
        %v2343 = vunpack.c.h.b16 %v2117
        %v2344 = vunpack.c.l.b16 %v2118
        %v2345 = vunpack.c.h.b16 %v2118
        %v2346 = vunpack.c.l.b16 %v2119
        %v2347 = vunpack.c.h.b16 %v2119
        %v2348 = vunpack.c.l.b16 %v2120
        %v2349 = vunpack.c.h.b16 %v2120
        %v2350 = vunpack.c.l.b16 %v2121
        %v2351 = vunpack.c.h.b16 %v2121
        %v2352 = vunpack.c.l.b16 %v2122
        %v2353 = vunpack.c.h.b16 %v2122
        %v2354 = vunpack.c.l.b16 %v2123
        %v2355 = vunpack.c.h.b16 %v2123
        %v2356 = vunpack.c.l.b16 %v2124
        %v2357 = vunpack.c.h.b16 %v2124
        %v2358 = vunpack.c.l.b16 %v2125
        %v2359 = vunpack.c.h.b16 %v2125
        %v2360 = vunpack.c.l.b16 %v2126
        %v2361 = vunpack.c.h.b16 %v2126
        %v2362 = vunpack.c.l.b16 %v2127
        %v2363 = vunpack.c.h.b16 %v2127
        %v2364 = vunpack.c.l.b16 %v2128
        %v2365 = vunpack.c.h.b16 %v2128
        %v2366 = vunpack.c.l.b16 %v2129
        %v2367 = vunpack.c.h.b16 %v2129
        %v2368 = vunpack.c.l.b16 %v2130
        %v2369 = vunpack.c.h.b16 %v2130
        %v2370 = vunpack.c.l.b16 %v2131
        %v2371 = vunpack.c.h.b16 %v2131
        %v2372 = vunpack.c.l.b16 %v2132
        %v2373 = vunpack.c.h.b16 %v2132
        %v2374 = vunpack.c.l.b16 %v2133
        %v2375 = vunpack.c.h.b16 %v2133
        %v2376 = vunpack.c.l.b16 %v2134
        %v2377 = vunpack.c.h.b16 %v2134
        %v2378 = vunpack.c.l.b16 %v2135
        %v2379 = vunpack.c.h.b16 %v2135
        %v2380 = vunpack.c.l.b16 %v2136
        %v2381 = vunpack.c.h.b16 %v2136
        %v2382 = vunpack.c.l.b16 %v2137
        %v2383 = vunpack.c.h.b16 %v2137
        %v2384 = vunpack.c.l.b16 %v2138
        %v2385 = vunpack.c.h.b16 %v2138
        %v2386 = vunpack.c.l.b16 %v2139
        %v2387 = vunpack.c.h.b16 %v2139
        %v2388 = vunpack.c.l.b16 %v2140
        %v2389 = vunpack.c.h.b16 %v2140
        %v2390 = vunpack.c.l.b16 %v2141
        %v2391 = vunpack.c.h.b16 %v2141
        %v2392 = vunpack.c.l.b16 %v2142
        %v2393 = vunpack.c.h.b16 %v2142
        %v2394 = vunpack.c.l.b16 %v2143
        %v2395 = vunpack.c.h.b16 %v2143
        %v2396 = vunpack.c.l.b16 %v2144
        %v2397 = vunpack.c.h.b16 %v2144
        %v2398 = vunpack.c.l.b16 %v2145
        %v2399 = vunpack.c.h.b16 %v2145
        %v2400 = vunpack.c.l.b16 %v2146
        %v2401 = vunpack.c.h.b16 %v2146
        %v2402 = vunpack.c.l.b16 %v2147
        %v2403 = vunpack.c.h.b16 %v2147
        %v2404 = vpack.c.b16 %v2342, %v2340
        %v2405 = vpack.c.b16 %v2343, %v2341
        %v2406 = vpack.c.b16 %v2346, %v2344
        %v2407 = vpack.c.b16 %v2347, %v2345
        %v2408 = vpack.c.b16 %v2350, %v2348
        %v2409 = vpack.c.b16 %v2351, %v2349
        %v2410 = vpack.c.b16 %v2354, %v2352
        %v2411 = vpack.c.b16 %v2355, %v2353
        %v2412 = vpack.c.b16 %v2358, %v2356
        %v2413 = vpack.c.b16 %v2359, %v2357
        %v2414 = vpack.c.b16 %v2362, %v2360
        %v2415 = vpack.c.b16 %v2363, %v2361
        %v2416 = vpack.c.b16 %v2366, %v2364
        %v2417 = vpack.c.b16 %v2367, %v2365
        %v2418 = vpack.c.b16 %v2370, %v2368
        %v2419 = vpack.c.b16 %v2371, %v2369
        %v2420 = vpack.c.b16 %v2374, %v2372
        %v2421 = vpack.c.b16 %v2375, %v2373
        %v2422 = vpack.c.b16 %v2378, %v2376
        %v2423 = vpack.c.b16 %v2379, %v2377
        %v2424 = vpack.c.b16 %v2382, %v2380
        %v2425 = vpack.c.b16 %v2383, %v2381
        %v2426 = vpack.c.b16 %v2386, %v2384
        %v2427 = vpack.c.b16 %v2387, %v2385
        %v2428 = vpack.c.b16 %v2390, %v2388
        %v2429 = vpack.c.b16 %v2391, %v2389
        %v2430 = vpack.c.b16 %v2394, %v2392
        %v2431 = vpack.c.b16 %v2395, %v2393
        %v2432 = vpack.c.b16 %v2398, %v2396
        %v2433 = vpack.c.b16 %v2399, %v2397
        %v2434 = vpack.c.b16 %v2402, %v2400
        %v2435 = vpack.c.b16 %v2403, %v2401
        %2468 = vmatprep.subr.bf16.mxu0 %v2405
        %2469 = vmatpush1.bf16.msra.mxu0 %v2404
        %2470 = vmatprep.subr.bf16.mxu0 %v2407
        %2471 = vmatpush1.bf16.msra.mxu0 %v2406
        %2472 = vmatprep.subr.bf16.mxu0 %v2409
        %2473 = vmatpush1.bf16.msra.mxu0 %v2408
        %2474 = vmatprep.subr.bf16.mxu0 %v2411
        %2475 = vmatpush1.bf16.msra.mxu0 %v2410
        %2476 = vmatprep.subr.bf16.mxu0 %v2413
        %2477 = vmatpush1.bf16.msra.mxu0 %v2412
        %2478 = vmatprep.subr.bf16.mxu0 %v2415
        %2479 = vmatpush1.bf16.msra.mxu0 %v2414
        %2480 = vmatprep.subr.bf16.mxu0 %v2417
        %2481 = vmatpush1.bf16.msra.mxu0 %v2416
        %2482 = vmatprep.subr.bf16.mxu0 %v2419
        %2483 = vmatpush1.bf16.msra.mxu0 %v2418
        %2484 = vmatprep.subr.bf16.mxu0 %v2421
        %2485 = vmatpush1.bf16.msra.mxu0 %v2420
        %2486 = vmatprep.subr.bf16.mxu0 %v2423
        %2487 = vmatpush1.bf16.msra.mxu0 %v2422
        %2488 = vmatprep.subr.bf16.mxu0 %v2425
        %2489 = vmatpush1.bf16.msra.mxu0 %v2424
        %2490 = vmatprep.subr.bf16.mxu0 %v2427
        %2491 = vmatpush1.bf16.msra.mxu0 %v2426
        %2492 = vmatprep.subr.bf16.mxu0 %v2429
        %2493 = vmatpush1.bf16.msra.mxu0 %v2428
        %2494 = vmatprep.subr.bf16.mxu0 %v2431
        %2495 = vmatpush1.bf16.msra.mxu0 %v2430
        %2496 = vmatprep.subr.bf16.mxu0 %v2433
        %2497 = vmatpush1.bf16.msra.mxu0 %v2432
        %2498 = vmatprep.subr.bf16.mxu0 %v2435
        %2499 = vmatpush1.bf16.msra.mxu0 %v2434
        %2500 = vmatprep.mubr.bf16.mxu0 %v2245
        %2501 = vmatmul.mubr.bf16.gmra.mrb[0].mxu0 %v2244
        %v2502 = vpop.f32.mrb[0].mxu0
        %v2503 = vadd.f32 0.0, %v2502
        %v2504 = vpop.f32.mrb[0].mxu0
        %v2505 = vadd.f32 0.0, %v2504
        %v2506 = vpop.f32.mrb[0].mxu0
        %v2507 = vadd.f32 0.0, %v2506
        %v2508 = vpop.f32.mrb[0].mxu0
        %v2509 = vadd.f32 0.0, %v2508
        %2510 = vmatprep.mubr.bf16.mxu0 %v2247
        %2511 = vmatmul.mubr.bf16.gmra.mrb[0].mxu0 %v2246
        %v2512 = vpop.f32.mrb[0].mxu0
        %v2513 = vadd.f32 0.0, %v2512
        %v2514 = vpop.f32.mrb[0].mxu0
        %v2515 = vadd.f32 0.0, %v2514
        %v2516 = vpop.f32.mrb[0].mxu0
        %v2517 = vadd.f32 0.0, %v2516
        %v2518 = vpop.f32.mrb[0].mxu0
        %v2519 = vadd.f32 0.0, %v2518
        %2520 = vmatprep.mubr.bf16.mxu0 %v2249
        %2521 = vmatmul.mubr.bf16.gmra.mrb[0].mxu0 %v2248
        %v2522 = vpop.f32.mrb[0].mxu0
        %v2523 = vadd.f32 0.0, %v2522
        %v2524 = vpop.f32.mrb[0].mxu0
        %v2525 = vadd.f32 0.0, %v2524
        %v2526 = vpop.f32.mrb[0].mxu0
        %v2527 = vadd.f32 0.0, %v2526
        %v2528 = vpop.f32.mrb[0].mxu0
        %v2529 = vadd.f32 0.0, %v2528
        %2530 = vmatprep.mubr.bf16.mxu0 %v2251
        %2531 = vmatmul.mubr.bf16.gmra.mrb[0].mxu0 %v2250
        %v2532 = vpop.f32.mrb[0].mxu0
        %v2533 = vadd.f32 0.0, %v2532
        %v2534 = vpop.f32.mrb[0].mxu0
        %v2535 = vadd.f32 0.0, %v2534
        %v2536 = vpop.f32.mrb[0].mxu0
        %v2537 = vadd.f32 0.0, %v2536
        %v2538 = vpop.f32.mrb[0].mxu0
        %v2539 = vadd.f32 0.0, %v2538
        %2540 = vmatprep.mubr.bf16.mxu0 %v2253
        %2541 = vmatmul.mubr.bf16.gmra.mrb[0].mxu0 %v2252
        %v2542 = vpop.f32.mrb[0].mxu0
        %v2543 = vadd.f32 0.0, %v2542
        %v2544 = vpop.f32.mrb[0].mxu0
        %v2545 = vadd.f32 0.0, %v2544
        %v2546 = vpop.f32.mrb[0].mxu0
        %v2547 = vadd.f32 0.0, %v2546
        %v2548 = vpop.f32.mrb[0].mxu0
        %v2549 = vadd.f32 0.0, %v2548
        %2550 = vmatprep.mubr.bf16.mxu0 %v2255
        %2551 = vmatmul.mubr.bf16.gmra.mrb[0].mxu0 %v2254
        %v2552 = vpop.f32.mrb[0].mxu0
        %v2553 = vadd.f32 0.0, %v2552
        %v2554 = vpop.f32.mrb[0].mxu0
        %v2555 = vadd.f32 0.0, %v2554
        %v2556 = vpop.f32.mrb[0].mxu0
        %v2557 = vadd.f32 0.0, %v2556
        %v2558 = vpop.f32.mrb[0].mxu0
        %v2559 = vadd.f32 0.0, %v2558
        %2560 = vmatprep.mubr.bf16.mxu0 %v2257
        %2561 = vmatmul.mubr.bf16.gmra.mrb[0].mxu0 %v2256
        %v2562 = vpop.f32.mrb[0].mxu0
        %v2563 = vadd.f32 0.0, %v2562
        %v2564 = vpop.f32.mrb[0].mxu0
        %v2565 = vadd.f32 0.0, %v2564
        %v2566 = vpop.f32.mrb[0].mxu0
        %v2567 = vadd.f32 0.0, %v2566
        %v2568 = vpop.f32.mrb[0].mxu0
        %v2569 = vadd.f32 0.0, %v2568
        %2570 = vmatprep.mubr.bf16.mxu0 %v2259
        %2571 = vmatmul.mubr.bf16.gmra.mrb[0].mxu0 %v2258
        %v2572 = vpop.f32.mrb[0].mxu0
        %v2573 = vadd.f32 0.0, %v2572
        %v2574 = vpop.f32.mrb[0].mxu0
        %v2575 = vadd.f32 0.0, %v2574
        %v2576 = vpop.f32.mrb[0].mxu0
        %v2577 = vadd.f32 0.0, %v2576
        %v2578 = vpop.f32.mrb[0].mxu0
        %v2579 = vadd.f32 0.0, %v2578
        %2580 = vmatprep.mubr.bf16.mxu0 %v2261
        %2581 = vmatmul.mubr.bf16.gmra.mrb[0].mxu0 %v2260
        %v2582 = vpop.f32.mrb[0].mxu0
        %v2583 = vadd.f32 0.0, %v2582
        %v2584 = vpop.f32.mrb[0].mxu0
        %v2585 = vadd.f32 0.0, %v2584
        %v2586 = vpop.f32.mrb[0].mxu0
        %v2587 = vadd.f32 0.0, %v2586
        %v2588 = vpop.f32.mrb[0].mxu0
        %v2589 = vadd.f32 0.0, %v2588
        %2590 = vmatprep.mubr.bf16.mxu0 %v2263
        %2591 = vmatmul.mubr.bf16.gmra.mrb[0].mxu0 %v2262
        %v2592 = vpop.f32.mrb[0].mxu0
        %v2593 = vadd.f32 0.0, %v2592
        %v2594 = vpop.f32.mrb[0].mxu0
        %v2595 = vadd.f32 0.0, %v2594
        %v2596 = vpop.f32.mrb[0].mxu0
        %v2597 = vadd.f32 0.0, %v2596
        %v2598 = vpop.f32.mrb[0].mxu0
        %v2599 = vadd.f32 0.0, %v2598
        %2600 = vmatprep.mubr.bf16.mxu0 %v2265
        %2601 = vmatmul.mubr.bf16.gmra.mrb[0].mxu0 %v2264
        %v2602 = vpop.f32.mrb[0].mxu0
        %v2603 = vadd.f32 0.0, %v2602
        %v2604 = vpop.f32.mrb[0].mxu0
        %v2605 = vadd.f32 0.0, %v2604
        %v2606 = vpop.f32.mrb[0].mxu0
        %v2607 = vadd.f32 0.0, %v2606
        %v2608 = vpop.f32.mrb[0].mxu0
        %v2609 = vadd.f32 0.0, %v2608
        %2610 = vmatprep.mubr.bf16.mxu0 %v2267
        %2611 = vmatmul.mubr.bf16.gmra.mrb[0].mxu0 %v2266
        %v2612 = vpop.f32.mrb[0].mxu0
        %v2613 = vadd.f32 0.0, %v2612
        %v2614 = vpop.f32.mrb[0].mxu0
        %v2615 = vadd.f32 0.0, %v2614
        %v2616 = vpop.f32.mrb[0].mxu0
        %v2617 = vadd.f32 0.0, %v2616
        %v2618 = vpop.f32.mrb[0].mxu0
        %v2619 = vadd.f32 0.0, %v2618
        %2620 = vmatprep.mubr.bf16.mxu0 %v2269
        %2621 = vmatmul.mubr.bf16.gmra.mrb[0].mxu0 %v2268
        %v2622 = vpop.f32.mrb[0].mxu0
        %v2623 = vadd.f32 0.0, %v2622
        %v2624 = vpop.f32.mrb[0].mxu0
        %v2625 = vadd.f32 0.0, %v2624
        %v2626 = vpop.f32.mrb[0].mxu0
        %v2627 = vadd.f32 0.0, %v2626
        %v2628 = vpop.f32.mrb[0].mxu0
        %v2629 = vadd.f32 0.0, %v2628
        %2630 = vmatprep.mubr.bf16.mxu0 %v2271
        %2631 = vmatmul.mubr.bf16.gmra.mrb[0].mxu0 %v2270
        %v2632 = vpop.f32.mrb[0].mxu0
        %v2633 = vadd.f32 0.0, %v2632
        %v2634 = vpop.f32.mrb[0].mxu0
        %v2635 = vadd.f32 0.0, %v2634
        %v2636 = vpop.f32.mrb[0].mxu0
        %v2637 = vadd.f32 0.0, %v2636
        %v2638 = vpop.f32.mrb[0].mxu0
        %v2639 = vadd.f32 0.0, %v2638
        %2640 = vmatprep.mubr.bf16.mxu0 %v2273
        %2641 = vmatmul.mubr.bf16.gmra.mrb[0].mxu0 %v2272
        %v2642 = vpop.f32.mrb[0].mxu0
        %v2643 = vadd.f32 0.0, %v2642
        %v2644 = vpop.f32.mrb[0].mxu0
        %v2645 = vadd.f32 0.0, %v2644
        %v2646 = vpop.f32.mrb[0].mxu0
        %v2647 = vadd.f32 0.0, %v2646
        %v2648 = vpop.f32.mrb[0].mxu0
        %v2649 = vadd.f32 0.0, %v2648
        %2650 = vmatprep.mubr.bf16.mxu0 %v2275
        %2651 = vmatmul.mubr.bf16.gmra.mrb[0].mxu0 %v2274
        %v2652 = vpop.f32.mrb[0].mxu0
        %v2653 = vadd.f32 0.0, %v2652
        %v2654 = vpop.f32.mrb[0].mxu0
        %v2655 = vadd.f32 0.0, %v2654
        %v2656 = vpop.f32.mrb[0].mxu0
        %v2657 = vadd.f32 0.0, %v2656
        %v2658 = vpop.f32.mrb[0].mxu0
        %v2659 = vadd.f32 0.0, %v2658
        %2660 = vdwg.mxu0
        %v2661 = vpack.c.bf16 %v2507, %v2503
        %v2662 = vpack.c.bf16 %v2509, %v2505
        %v2663 = vpack.c.bf16 %v2517, %v2513
        %v2664 = vpack.c.bf16 %v2519, %v2515
        %v2665 = vpack.c.bf16 %v2527, %v2523
        %v2666 = vpack.c.bf16 %v2529, %v2525
        %v2667 = vpack.c.bf16 %v2537, %v2533
        %v2668 = vpack.c.bf16 %v2539, %v2535
        %v2669 = vpack.c.bf16 %v2547, %v2543
        %v2670 = vpack.c.bf16 %v2549, %v2545
        %v2671 = vpack.c.bf16 %v2557, %v2553
        %v2672 = vpack.c.bf16 %v2559, %v2555
        %v2673 = vpack.c.bf16 %v2567, %v2563
        %v2674 = vpack.c.bf16 %v2569, %v2565
        %v2675 = vpack.c.bf16 %v2577, %v2573
        %v2676 = vpack.c.bf16 %v2579, %v2575
        %v2677 = vpack.c.bf16 %v2587, %v2583
        %v2678 = vpack.c.bf16 %v2589, %v2585
        %v2679 = vpack.c.bf16 %v2597, %v2593
        %v2680 = vpack.c.bf16 %v2599, %v2595
        %v2681 = vpack.c.bf16 %v2607, %v2603
        %v2682 = vpack.c.bf16 %v2609, %v2605
        %v2683 = vpack.c.bf16 %v2617, %v2613
        %v2684 = vpack.c.bf16 %v2619, %v2615
        %v2685 = vpack.c.bf16 %v2627, %v2623
        %v2686 = vpack.c.bf16 %v2629, %v2625
        %v2687 = vpack.c.bf16 %v2637, %v2633
        %v2688 = vpack.c.bf16 %v2639, %v2635
        %v2689 = vpack.c.bf16 %v2647, %v2643
        %v2690 = vpack.c.bf16 %v2649, %v2645
        %v2691 = vpack.c.bf16 %v2657, %v2653
        %v2692 = vpack.c.bf16 %v2659, %v2655
        %v2693 = vld [vmem:[#allocation2] sm:$0xff]
        %v2694 = vld [vmem:[#allocation2 + $0x10] sm:$0xff]
        %v2695 = vld [vmem:[#allocation2 + $0x20] sm:$0xff]
        %v2696 = vld [vmem:[#allocation2 + $0x30] sm:$0xff]
        %v2697 = vld [vmem:[#allocation2 + $0x40] sm:$0xff]
        %v2698 = vld [vmem:[#allocation2 + $0x50] sm:$0xff]
        %v2699 = vld [vmem:[#allocation2 + $0x60] sm:$0xff]
        %v2700 = vld [vmem:[#allocation2 + $0x70] sm:$0xff]
        %v2701 = vld [vmem:[#allocation2 + $0x80] sm:$0xff]
        %v2702 = vld [vmem:[#allocation2 + $0x90] sm:$0xff]
        %v2703 = vld [vmem:[#allocation2 + $0xa0] sm:$0xff]
        %v2704 = vld [vmem:[#allocation2 + $0xb0] sm:$0xff]
        %v2705 = vld [vmem:[#allocation2 + $0xc0] sm:$0xff]
        %v2706 = vld [vmem:[#allocation2 + $0xd0] sm:$0xff]
        %v2707 = vld [vmem:[#allocation2 + $0xe0] sm:$0xff]
        %v2708 = vld [vmem:[#allocation2 + $0xf0] sm:$0xff]
        %v2709 = vld [vmem:[#allocation2 + $0x100] sm:$0xff]
        %v2710 = vld [vmem:[#allocation2 + $0x110] sm:$0xff]
        %v2711 = vld [vmem:[#allocation2 + $0x120] sm:$0xff]
        %v2712 = vld [vmem:[#allocation2 + $0x130] sm:$0xff]
        %v2713 = vld [vmem:[#allocation2 + $0x140] sm:$0xff]
        %v2714 = vld [vmem:[#allocation2 + $0x150] sm:$0xff]
        %v2715 = vld [vmem:[#allocation2 + $0x160] sm:$0xff]
        %v2716 = vld [vmem:[#allocation2 + $0x170] sm:$0xff]
        %v2717 = vld [vmem:[#allocation2 + $0x180] sm:$0xff]
        %v2718 = vld [vmem:[#allocation2 + $0x190] sm:$0xff]
        %v2719 = vld [vmem:[#allocation2 + $0x1a0] sm:$0xff]
        %v2720 = vld [vmem:[#allocation2 + $0x1b0] sm:$0xff]
        %v2721 = vld [vmem:[#allocation2 + $0x1c0] sm:$0xff]
        %v2722 = vld [vmem:[#allocation2 + $0x1d0] sm:$0xff]
        %v2723 = vld [vmem:[#allocation2 + $0x1e0] sm:$0xff]
        %v2724 = vld [vmem:[#allocation2 + $0x1f0] sm:$0xff]
        %v2725 = vld [vmem:[#allocation3] sm:$0xff]
        %v2726 = vld [vmem:[#allocation3 + $0x10] sm:$0xff]
        %v2727 = vld [vmem:[#allocation3 + $0x20] sm:$0xff]
        %v2728 = vld [vmem:[#allocation3 + $0x30] sm:$0xff]
        %v2729 = vld [vmem:[#allocation3 + $0x40] sm:$0xff]
        %v2730 = vld [vmem:[#allocation3 + $0x50] sm:$0xff]
        %v2731 = vld [vmem:[#allocation3 + $0x60] sm:$0xff]
        %v2732 = vld [vmem:[#allocation3 + $0x70] sm:$0xff]
        %v2733 = vld [vmem:[#allocation3 + $0x80] sm:$0xff]
        %v2734 = vld [vmem:[#allocation3 + $0x90] sm:$0xff]
        %v2735 = vld [vmem:[#allocation3 + $0xa0] sm:$0xff]
        %v2736 = vld [vmem:[#allocation3 + $0xb0] sm:$0xff]
        %v2737 = vld [vmem:[#allocation3 + $0xc0] sm:$0xff]
        %v2738 = vld [vmem:[#allocation3 + $0xd0] sm:$0xff]
        %v2739 = vld [vmem:[#allocation3 + $0xe0] sm:$0xff]
        %v2740 = vld [vmem:[#allocation3 + $0xf0] sm:$0xff]
        %v2741 = vld [vmem:[#allocation3 + $0x100] sm:$0xff]
        %v2742 = vld [vmem:[#allocation3 + $0x110] sm:$0xff]
        %v2743 = vld [vmem:[#allocation3 + $0x120] sm:$0xff]
        %v2744 = vld [vmem:[#allocation3 + $0x130] sm:$0xff]
        %v2745 = vld [vmem:[#allocation3 + $0x140] sm:$0xff]
        %v2746 = vld [vmem:[#allocation3 + $0x150] sm:$0xff]
        %v2747 = vld [vmem:[#allocation3 + $0x160] sm:$0xff]
        %v2748 = vld [vmem:[#allocation3 + $0x170] sm:$0xff]
        %v2749 = vld [vmem:[#allocation3 + $0x180] sm:$0xff]
        %v2750 = vld [vmem:[#allocation3 + $0x190] sm:$0xff]
        %v2751 = vld [vmem:[#allocation3 + $0x1a0] sm:$0xff]
        %v2752 = vld [vmem:[#allocation3 + $0x1b0] sm:$0xff]
        %v2753 = vld [vmem:[#allocation3 + $0x1c0] sm:$0xff]
        %v2754 = vld [vmem:[#allocation3 + $0x1d0] sm:$0xff]
        %v2755 = vld [vmem:[#allocation3 + $0x1e0] sm:$0xff]
        %v2756 = vld [vmem:[#allocation3 + $0x1f0] sm:$0xff]
        %vm2757 = vcmask 523264
        %v2759 = vsel %vm2757, %v2661, 0
        %v2762 = vsel %vm2757, %v2663, 0
        %v2765 = vsel %vm2757, %v2665, 0
        %v2768 = vsel %vm2757, %v2667, 0
        %v2771 = vsel %vm2757, %v2669, 0
        %v2774 = vsel %vm2757, %v2671, 0
        %v2777 = vsel %vm2757, %v2673, 0
        %v2780 = vsel %vm2757, %v2675, 0
        %v2783 = vsel %vm2757, %v2677, 0
        %v2786 = vsel %vm2757, %v2679, 0
        %v2789 = vsel %vm2757, %v2681, 0
        %v2792 = vsel %vm2757, %v2683, 0
        %v2795 = vsel %vm2757, %v2685, 0
        %v2798 = vsel %vm2757, %v2687, 0
        %v2801 = vsel %vm2757, %v2689, 0
        %v2804 = vsel %vm2757, %v2691, 0
        %v2807 = vsel %vm2757, %v2693, 0
        %v2810 = vsel %vm2757, %v2694, 0
        %v2813 = vsel %vm2757, %v2695, 0
        %v2816 = vsel %vm2757, %v2696, 0
        %v2819 = vsel %vm2757, %v2697, 0
        %v2822 = vsel %vm2757, %v2698, 0
        %v2825 = vsel %vm2757, %v2699, 0
        %v2828 = vsel %vm2757, %v2700, 0
        %v2831 = vsel %vm2757, %v2701, 0
        %v2834 = vsel %vm2757, %v2702, 0
        %v2837 = vsel %vm2757, %v2703, 0
        %v2840 = vsel %vm2757, %v2704, 0
        %v2843 = vsel %vm2757, %v2705, 0
        %v2846 = vsel %vm2757, %v2706, 0
        %v2849 = vsel %vm2757, %v2707, 0
        %v2852 = vsel %vm2757, %v2708, 0
        %v2855 = vsel %vm2757, %v2709, 0
        %v2858 = vsel %vm2757, %v2710, 0
        %v2861 = vsel %vm2757, %v2711, 0
        %v2864 = vsel %vm2757, %v2712, 0
        %v2867 = vsel %vm2757, %v2713, 0
        %v2870 = vsel %vm2757, %v2714, 0
        %v2873 = vsel %vm2757, %v2715, 0
        %v2876 = vsel %vm2757, %v2716, 0
        %v2879 = vsel %vm2757, %v2717, 0
        %v2882 = vsel %vm2757, %v2718, 0
        %v2885 = vsel %vm2757, %v2719, 0
        %v2888 = vsel %vm2757, %v2720, 0
        %v2891 = vsel %vm2757, %v2721, 0
        %v2894 = vsel %vm2757, %v2722, 0
        %v2897 = vsel %vm2757, %v2723, 0
        %v2900 = vsel %vm2757, %v2724, 0
        %2902 = vmatprep.subr.bf16.mxu0 0
        %2903 = vmatpush1.bf16.xpose.msra.mxu0 %v2807
        %2904 = vmatprep.subr.bf16.mxu0 0
        %2905 = vmatpush1.bf16.xpose.msra.mxu0 %v2810
        %2906 = vmatprep.subr.bf16.mxu0 0
        %2907 = vmatpush1.bf16.xpose.msra.mxu0 %v2813
        %2908 = vmatprep.subr.bf16.mxu0 0
        %2909 = vmatpush1.bf16.xpose.msra.mxu0 %v2816
        %2910 = vmatprep.subr.bf16.mxu0 0
        %2911 = vmatpush1.bf16.xpose.msra.mxu0 %v2819
        %2912 = vmatprep.subr.bf16.mxu0 0
        %2913 = vmatpush1.bf16.xpose.msra.mxu0 %v2822
        %2914 = vmatprep.subr.bf16.mxu0 0
        %2915 = vmatpush1.bf16.xpose.msra.mxu0 %v2825
        %2916 = vmatprep.subr.bf16.mxu0 0
        %2917 = vmatpush1.bf16.xpose.msra.mxu0 %v2828
        %2918 = vmatprep.subr.bf16.mxu0 0
        %2919 = vmatpush1.bf16.xpose.msra.mxu0 %v2831
        %2920 = vmatprep.subr.bf16.mxu0 0
        %2921 = vmatpush1.bf16.xpose.msra.mxu0 %v2834
        %2922 = vmatprep.subr.bf16.mxu0 0
        %2923 = vmatpush1.bf16.xpose.msra.mxu0 %v2837
        %2924 = vmatprep.subr.bf16.mxu0 0
        %2925 = vmatpush1.bf16.xpose.msra.mxu0 %v2840
        %2926 = vmatprep.subr.bf16.mxu0 0
        %2927 = vmatpush1.bf16.xpose.msra.mxu0 %v2843
        %2928 = vmatprep.subr.bf16.mxu0 0
        %2929 = vmatpush1.bf16.xpose.msra.mxu0 %v2846
        %2930 = vmatprep.subr.bf16.mxu0 0
        %2931 = vmatpush1.bf16.xpose.msra.mxu0 %v2849
        %2932 = vmatprep.subr.bf16.mxu0 0
        %2933 = vmatpush1.bf16.xpose.msra.mxu0 %v2852
        %2934 = vmatprep.mubr.bf16.mxu0 0
        %2935 = vmatmul.mubr.bf16.gmra.mrb[0].mxu0 %v2759
        %v2936 = vpop.f32.mrb[0].mxu0
        %v2937 = vadd.f32 0.0, %v2936
        %v2938 = vpop.f32.mrb[0].mxu0
        %v2939 = vadd.f32 0.0, %v2938
        %v2940 = vpop.f32.mrb[0].mxu0
        %v2941 = vadd.f32 0.0, %v2940
        %v2942 = vpop.f32.mrb[0].mxu0
        %v2943 = vadd.f32 0.0, %v2942
        %2944 = vmatprep.mubr.bf16.mxu0 0
        %2945 = vmatmul.mubr.bf16.gmra.mrb[0].mxu0 %v2762
        %v2946 = vpop.f32.mrb[0].mxu0
        %v2947 = vadd.f32 0.0, %v2946
        %v2948 = vpop.f32.mrb[0].mxu0
        %v2949 = vadd.f32 0.0, %v2948
        %v2950 = vpop.f32.mrb[0].mxu0
        %v2951 = vadd.f32 0.0, %v2950
        %v2952 = vpop.f32.mrb[0].mxu0
        %v2953 = vadd.f32 0.0, %v2952
        %2954 = vmatprep.mubr.bf16.mxu0 0
        %2955 = vmatmul.mubr.bf16.gmra.mrb[0].mxu0 %v2765
        %v2956 = vpop.f32.mrb[0].mxu0
        %v2957 = vadd.f32 0.0, %v2956
        %v2958 = vpop.f32.mrb[0].mxu0
        %v2959 = vadd.f32 0.0, %v2958
        %v2960 = vpop.f32.mrb[0].mxu0
        %v2961 = vadd.f32 0.0, %v2960
        %v2962 = vpop.f32.mrb[0].mxu0
        %v2963 = vadd.f32 0.0, %v2962
        %2964 = vmatprep.mubr.bf16.mxu0 0
        %2965 = vmatmul.mubr.bf16.gmra.mrb[0].mxu0 %v2768
        %v2966 = vpop.f32.mrb[0].mxu0
        %v2967 = vadd.f32 0.0, %v2966
        %v2968 = vpop.f32.mrb[0].mxu0
        %v2969 = vadd.f32 0.0, %v2968
        %v2970 = vpop.f32.mrb[0].mxu0
        %v2971 = vadd.f32 0.0, %v2970
        %v2972 = vpop.f32.mrb[0].mxu0
        %v2973 = vadd.f32 0.0, %v2972
        %2974 = vmatprep.mubr.bf16.mxu0 0
        %2975 = vmatmul.mubr.bf16.gmra.mrb[0].mxu0 %v2771
        %v2976 = vpop.f32.mrb[0].mxu0
        %v2977 = vadd.f32 0.0, %v2976
        %v2978 = vpop.f32.mrb[0].mxu0
        %v2979 = vadd.f32 0.0, %v2978
        %v2980 = vpop.f32.mrb[0].mxu0
        %v2981 = vadd.f32 0.0, %v2980
        %v2982 = vpop.f32.mrb[0].mxu0
        %v2983 = vadd.f32 0.0, %v2982
        %2984 = vmatprep.mubr.bf16.mxu0 0
        %2985 = vmatmul.mubr.bf16.gmra.mrb[0].mxu0 %v2774
        %v2986 = vpop.f32.mrb[0].mxu0
        %v2987 = vadd.f32 0.0, %v2986
        %v2988 = vpop.f32.mrb[0].mxu0
        %v2989 = vadd.f32 0.0, %v2988
        %v2990 = vpop.f32.mrb[0].mxu0
        %v2991 = vadd.f32 0.0, %v2990
        %v2992 = vpop.f32.mrb[0].mxu0
        %v2993 = vadd.f32 0.0, %v2992
        %2994 = vmatprep.mubr.bf16.mxu0 0
        %2995 = vmatmul.mubr.bf16.gmra.mrb[0].mxu0 %v2777
        %v2996 = vpop.f32.mrb[0].mxu0
        %v2997 = vadd.f32 0.0, %v2996
        %v2998 = vpop.f32.mrb[0].mxu0
        %v2999 = vadd.f32 0.0, %v2998
        %v3000 = vpop.f32.mrb[0].mxu0
        %v3001 = vadd.f32 0.0, %v3000
        %v3002 = vpop.f32.mrb[0].mxu0
        %v3003 = vadd.f32 0.0, %v3002
        %3004 = vmatprep.mubr.bf16.mxu0 0
        %3005 = vmatmul.mubr.bf16.gmra.mrb[0].mxu0 %v2780
        %v3006 = vpop.f32.mrb[0].mxu0
        %v3007 = vadd.f32 0.0, %v3006
        %v3008 = vpop.f32.mrb[0].mxu0
        %v3009 = vadd.f32 0.0, %v3008
        %v3010 = vpop.f32.mrb[0].mxu0
        %v3011 = vadd.f32 0.0, %v3010
        %v3012 = vpop.f32.mrb[0].mxu0
        %v3013 = vadd.f32 0.0, %v3012
        %3014 = vmatprep.mubr.bf16.mxu0 0
        %3015 = vmatmul.mubr.bf16.gmra.mrb[0].mxu0 %v2783
        %v3016 = vpop.f32.mrb[0].mxu0
        %v3017 = vadd.f32 0.0, %v3016
        %v3018 = vpop.f32.mrb[0].mxu0
        %v3019 = vadd.f32 0.0, %v3018
        %v3020 = vpop.f32.mrb[0].mxu0
        %v3021 = vadd.f32 0.0, %v3020
        %v3022 = vpop.f32.mrb[0].mxu0
        %v3023 = vadd.f32 0.0, %v3022
        %3024 = vmatprep.mubr.bf16.mxu0 0
        %3025 = vmatmul.mubr.bf16.gmra.mrb[0].mxu0 %v2786
        %v3026 = vpop.f32.mrb[0].mxu0
        %v3027 = vadd.f32 0.0, %v3026
        %v3028 = vpop.f32.mrb[0].mxu0
        %v3029 = vadd.f32 0.0, %v3028
        %v3030 = vpop.f32.mrb[0].mxu0
        %v3031 = vadd.f32 0.0, %v3030
        %v3032 = vpop.f32.mrb[0].mxu0
        %v3033 = vadd.f32 0.0, %v3032
        %3034 = vmatprep.mubr.bf16.mxu0 0
        %3035 = vmatmul.mubr.bf16.gmra.mrb[0].mxu0 %v2789
        %v3036 = vpop.f32.mrb[0].mxu0
        %v3037 = vadd.f32 0.0, %v3036
        %v3038 = vpop.f32.mrb[0].mxu0
        %v3039 = vadd.f32 0.0, %v3038
        %v3040 = vpop.f32.mrb[0].mxu0
        %v3041 = vadd.f32 0.0, %v3040
        %v3042 = vpop.f32.mrb[0].mxu0
        %v3043 = vadd.f32 0.0, %v3042
        %3044 = vmatprep.mubr.bf16.mxu0 0
        %3045 = vmatmul.mubr.bf16.gmra.mrb[0].mxu0 %v2792
        %v3046 = vpop.f32.mrb[0].mxu0
        %v3047 = vadd.f32 0.0, %v3046
        %v3048 = vpop.f32.mrb[0].mxu0
        %v3049 = vadd.f32 0.0, %v3048
        %v3050 = vpop.f32.mrb[0].mxu0
        %v3051 = vadd.f32 0.0, %v3050
        %v3052 = vpop.f32.mrb[0].mxu0
        %v3053 = vadd.f32 0.0, %v3052
        %3054 = vmatprep.mubr.bf16.mxu0 0
        %3055 = vmatmul.mubr.bf16.gmra.mrb[0].mxu0 %v2795
        %v3056 = vpop.f32.mrb[0].mxu0
        %v3057 = vadd.f32 0.0, %v3056
        %v3058 = vpop.f32.mrb[0].mxu0
        %v3059 = vadd.f32 0.0, %v3058
        %v3060 = vpop.f32.mrb[0].mxu0
        %v3061 = vadd.f32 0.0, %v3060
        %v3062 = vpop.f32.mrb[0].mxu0
        %v3063 = vadd.f32 0.0, %v3062
        %3064 = vmatprep.mubr.bf16.mxu0 0
        %3065 = vmatmul.mubr.bf16.gmra.mrb[0].mxu0 %v2798
        %v3066 = vpop.f32.mrb[0].mxu0
        %v3067 = vadd.f32 0.0, %v3066
        %v3068 = vpop.f32.mrb[0].mxu0
        %v3069 = vadd.f32 0.0, %v3068
        %v3070 = vpop.f32.mrb[0].mxu0
        %v3071 = vadd.f32 0.0, %v3070
        %v3072 = vpop.f32.mrb[0].mxu0
        %v3073 = vadd.f32 0.0, %v3072
        %3074 = vmatprep.mubr.bf16.mxu0 0
        %3075 = vmatmul.mubr.bf16.gmra.mrb[0].mxu0 %v2801
        %v3076 = vpop.f32.mrb[0].mxu0
        %v3077 = vadd.f32 0.0, %v3076
        %v3078 = vpop.f32.mrb[0].mxu0
        %v3079 = vadd.f32 0.0, %v3078
        %v3080 = vpop.f32.mrb[0].mxu0
        %v3081 = vadd.f32 0.0, %v3080
        %v3082 = vpop.f32.mrb[0].mxu0
        %v3083 = vadd.f32 0.0, %v3082
        %3084 = vmatprep.mubr.bf16.mxu0 0
        %3085 = vmatmul.mubr.bf16.gmra.mrb[0].mxu0 %v2804
        %v3086 = vpop.f32.mrb[0].mxu0
        %v3087 = vadd.f32 0.0, %v3086
        %v3088 = vpop.f32.mrb[0].mxu0
        %v3089 = vadd.f32 0.0, %v3088
        %v3090 = vpop.f32.mrb[0].mxu0
        %v3091 = vadd.f32 0.0, %v3090
        %v3092 = vpop.f32.mrb[0].mxu0
        %v3093 = vadd.f32 0.0, %v3092
        %3094 = vdwg.mxu0
        %3095 = vmatprep.subr.bf16.mxu0 0
        %3096 = vmatpush1.bf16.xpose.msra.mxu0 %v2855
        %3097 = vmatprep.subr.bf16.mxu0 0
        %3098 = vmatpush1.bf16.xpose.msra.mxu0 %v2858
        %3099 = vmatprep.subr.bf16.mxu0 0
        %3100 = vmatpush1.bf16.xpose.msra.mxu0 %v2861
        %3101 = vmatprep.subr.bf16.mxu0 0
        %3102 = vmatpush1.bf16.xpose.msra.mxu0 %v2864
        %3103 = vmatprep.subr.bf16.mxu0 0
        %3104 = vmatpush1.bf16.xpose.msra.mxu0 %v2867
        %3105 = vmatprep.subr.bf16.mxu0 0
        %3106 = vmatpush1.bf16.xpose.msra.mxu0 %v2870
        %3107 = vmatprep.subr.bf16.mxu0 0
        %3108 = vmatpush1.bf16.xpose.msra.mxu0 %v2873
        %3109 = vmatprep.subr.bf16.mxu0 0
        %3110 = vmatpush1.bf16.xpose.msra.mxu0 %v2876
        %3111 = vmatprep.subr.bf16.mxu0 0
        %3112 = vmatpush1.bf16.xpose.msra.mxu0 %v2879
        %3113 = vmatprep.subr.bf16.mxu0 0
        %3114 = vmatpush1.bf16.xpose.msra.mxu0 %v2882
        %3115 = vmatprep.subr.bf16.mxu0 0
        %3116 = vmatpush1.bf16.xpose.msra.mxu0 %v2885
        %3117 = vmatprep.subr.bf16.mxu0 0
        %3118 = vmatpush1.bf16.xpose.msra.mxu0 %v2888
        %3119 = vmatprep.subr.bf16.mxu0 0
        %3120 = vmatpush1.bf16.xpose.msra.mxu0 %v2891
        %3121 = vmatprep.subr.bf16.mxu0 0
        %3122 = vmatpush1.bf16.xpose.msra.mxu0 %v2894
        %3123 = vmatprep.subr.bf16.mxu0 0
        %3124 = vmatpush1.bf16.xpose.msra.mxu0 %v2897
        %3125 = vmatprep.subr.bf16.mxu0 0
        %3126 = vmatpush1.bf16.xpose.msra.mxu0 %v2900
        %3127 = vmatprep.mubr.bf16.mxu0 0
        %3128 = vmatmul.mubr.bf16.gmra.mrb[0].mxu0 %v2759
        %v3129 = vpop.f32.mrb[0].mxu0
        %v3130 = vadd.f32 0.0, %v3129
        %v3131 = vpop.f32.mrb[0].mxu0
        %v3132 = vadd.f32 0.0, %v3131
        %v3133 = vpop.f32.mrb[0].mxu0
        %v3134 = vadd.f32 0.0, %v3133
        %v3135 = vpop.f32.mrb[0].mxu0
        %v3136 = vadd.f32 0.0, %v3135
        %3137 = vmatprep.mubr.bf16.mxu0 0
        %3138 = vmatmul.mubr.bf16.gmra.mrb[0].mxu0 %v2762
        %v3139 = vpop.f32.mrb[0].mxu0
        %v3140 = vadd.f32 0.0, %v3139
        %v3141 = vpop.f32.mrb[0].mxu0
        %v3142 = vadd.f32 0.0, %v3141
        %v3143 = vpop.f32.mrb[0].mxu0
        %v3144 = vadd.f32 0.0, %v3143
        %v3145 = vpop.f32.mrb[0].mxu0
        %v3146 = vadd.f32 0.0, %v3145
        %3147 = vmatprep.mubr.bf16.mxu0 0
        %3148 = vmatmul.mubr.bf16.gmra.mrb[0].mxu0 %v2765
        %v3149 = vpop.f32.mrb[0].mxu0
        %v3150 = vadd.f32 0.0, %v3149
        %v3151 = vpop.f32.mrb[0].mxu0
        %v3152 = vadd.f32 0.0, %v3151
        %v3153 = vpop.f32.mrb[0].mxu0
        %v3154 = vadd.f32 0.0, %v3153
        %v3155 = vpop.f32.mrb[0].mxu0
        %v3156 = vadd.f32 0.0, %v3155
        %3157 = vmatprep.mubr.bf16.mxu0 0
        %3158 = vmatmul.mubr.bf16.gmra.mrb[0].mxu0 %v2768
        %v3159 = vpop.f32.mrb[0].mxu0
        %v3160 = vadd.f32 0.0, %v3159
        %v3161 = vpop.f32.mrb[0].mxu0
        %v3162 = vadd.f32 0.0, %v3161
        %v3163 = vpop.f32.mrb[0].mxu0
        %v3164 = vadd.f32 0.0, %v3163
        %v3165 = vpop.f32.mrb[0].mxu0
        %v3166 = vadd.f32 0.0, %v3165
        %3167 = vmatprep.mubr.bf16.mxu0 0
        %3168 = vmatmul.mubr.bf16.gmra.mrb[0].mxu0 %v2771
        %v3169 = vpop.f32.mrb[0].mxu0
        %v3170 = vadd.f32 0.0, %v3169
        %v3171 = vpop.f32.mrb[0].mxu0
        %v3172 = vadd.f32 0.0, %v3171
        %v3173 = vpop.f32.mrb[0].mxu0
        %v3174 = vadd.f32 0.0, %v3173
        %v3175 = vpop.f32.mrb[0].mxu0
        %v3176 = vadd.f32 0.0, %v3175
        %3177 = vmatprep.mubr.bf16.mxu0 0
        %3178 = vmatmul.mubr.bf16.gmra.mrb[0].mxu0 %v2774
        %v3179 = vpop.f32.mrb[0].mxu0
        %v3180 = vadd.f32 0.0, %v3179
        %v3181 = vpop.f32.mrb[0].mxu0
        %v3182 = vadd.f32 0.0, %v3181
        %v3183 = vpop.f32.mrb[0].mxu0
        %v3184 = vadd.f32 0.0, %v3183
        %v3185 = vpop.f32.mrb[0].mxu0
        %v3186 = vadd.f32 0.0, %v3185
        %3187 = vmatprep.mubr.bf16.mxu0 0
        %3188 = vmatmul.mubr.bf16.gmra.mrb[0].mxu0 %v2777
        %v3189 = vpop.f32.mrb[0].mxu0
        %v3190 = vadd.f32 0.0, %v3189
        %v3191 = vpop.f32.mrb[0].mxu0
        %v3192 = vadd.f32 0.0, %v3191
        %v3193 = vpop.f32.mrb[0].mxu0
        %v3194 = vadd.f32 0.0, %v3193
        %v3195 = vpop.f32.mrb[0].mxu0
        %v3196 = vadd.f32 0.0, %v3195
        %3197 = vmatprep.mubr.bf16.mxu0 0
        %3198 = vmatmul.mubr.bf16.gmra.mrb[0].mxu0 %v2780
        %v3199 = vpop.f32.mrb[0].mxu0
        %v3200 = vadd.f32 0.0, %v3199
        %v3201 = vpop.f32.mrb[0].mxu0
        %v3202 = vadd.f32 0.0, %v3201
        %v3203 = vpop.f32.mrb[0].mxu0
        %v3204 = vadd.f32 0.0, %v3203
        %v3205 = vpop.f32.mrb[0].mxu0
        %v3206 = vadd.f32 0.0, %v3205
        %3207 = vmatprep.mubr.bf16.mxu0 0
        %3208 = vmatmul.mubr.bf16.gmra.mrb[0].mxu0 %v2783
        %v3209 = vpop.f32.mrb[0].mxu0
        %v3210 = vadd.f32 0.0, %v3209
        %v3211 = vpop.f32.mrb[0].mxu0
        %v3212 = vadd.f32 0.0, %v3211
        %v3213 = vpop.f32.mrb[0].mxu0
        %v3214 = vadd.f32 0.0, %v3213
        %v3215 = vpop.f32.mrb[0].mxu0
        %v3216 = vadd.f32 0.0, %v3215
        %3217 = vmatprep.mubr.bf16.mxu0 0
        %3218 = vmatmul.mubr.bf16.gmra.mrb[0].mxu0 %v2786
        %v3219 = vpop.f32.mrb[0].mxu0
        %v3220 = vadd.f32 0.0, %v3219
        %v3221 = vpop.f32.mrb[0].mxu0
        %v3222 = vadd.f32 0.0, %v3221
        %v3223 = vpop.f32.mrb[0].mxu0
        %v3224 = vadd.f32 0.0, %v3223
        %v3225 = vpop.f32.mrb[0].mxu0
        %v3226 = vadd.f32 0.0, %v3225
        %3227 = vmatprep.mubr.bf16.mxu0 0
        %3228 = vmatmul.mubr.bf16.gmra.mrb[0].mxu0 %v2789
        %v3229 = vpop.f32.mrb[0].mxu0
        %v3230 = vadd.f32 0.0, %v3229
        %v3231 = vpop.f32.mrb[0].mxu0
        %v3232 = vadd.f32 0.0, %v3231
        %v3233 = vpop.f32.mrb[0].mxu0
        %v3234 = vadd.f32 0.0, %v3233
        %v3235 = vpop.f32.mrb[0].mxu0
        %v3236 = vadd.f32 0.0, %v3235
        %3237 = vmatprep.mubr.bf16.mxu0 0
        %3238 = vmatmul.mubr.bf16.gmra.mrb[0].mxu0 %v2792
        %v3239 = vpop.f32.mrb[0].mxu0
        %v3240 = vadd.f32 0.0, %v3239
        %v3241 = vpop.f32.mrb[0].mxu0
        %v3242 = vadd.f32 0.0, %v3241
        %v3243 = vpop.f32.mrb[0].mxu0
        %v3244 = vadd.f32 0.0, %v3243
        %v3245 = vpop.f32.mrb[0].mxu0
        %v3246 = vadd.f32 0.0, %v3245
        %3247 = vmatprep.mubr.bf16.mxu0 0
        %3248 = vmatmul.mubr.bf16.gmra.mrb[0].mxu0 %v2795
        %v3249 = vpop.f32.mrb[0].mxu0
        %v3250 = vadd.f32 0.0, %v3249
        %v3251 = vpop.f32.mrb[0].mxu0
        %v3252 = vadd.f32 0.0, %v3251
        %v3253 = vpop.f32.mrb[0].mxu0
        %v3254 = vadd.f32 0.0, %v3253
        %v3255 = vpop.f32.mrb[0].mxu0
        %v3256 = vadd.f32 0.0, %v3255
        %3257 = vmatprep.mubr.bf16.mxu0 0
        %3258 = vmatmul.mubr.bf16.gmra.mrb[0].mxu0 %v2798
        %v3259 = vpop.f32.mrb[0].mxu0
        %v3260 = vadd.f32 0.0, %v3259
        %v3261 = vpop.f32.mrb[0].mxu0
        %v3262 = vadd.f32 0.0, %v3261
        %v3263 = vpop.f32.mrb[0].mxu0
        %v3264 = vadd.f32 0.0, %v3263
        %v3265 = vpop.f32.mrb[0].mxu0
        %v3266 = vadd.f32 0.0, %v3265
        %3267 = vmatprep.mubr.bf16.mxu0 0
        %3268 = vmatmul.mubr.bf16.gmra.mrb[0].mxu0 %v2801
        %v3269 = vpop.f32.mrb[0].mxu0
        %v3270 = vadd.f32 0.0, %v3269
        %v3271 = vpop.f32.mrb[0].mxu0
        %v3272 = vadd.f32 0.0, %v3271
        %v3273 = vpop.f32.mrb[0].mxu0
        %v3274 = vadd.f32 0.0, %v3273
        %v3275 = vpop.f32.mrb[0].mxu0
        %v3276 = vadd.f32 0.0, %v3275
        %3277 = vmatprep.mubr.bf16.mxu0 0
        %3278 = vmatmul.mubr.bf16.gmra.mrb[0].mxu0 %v2804
        %v3279 = vpop.f32.mrb[0].mxu0
        %v3280 = vadd.f32 0.0, %v3279
        %v3281 = vpop.f32.mrb[0].mxu0
        %v3282 = vadd.f32 0.0, %v3281
        %v3283 = vpop.f32.mrb[0].mxu0
        %v3284 = vadd.f32 0.0, %v3283
        %v3285 = vpop.f32.mrb[0].mxu0
        %v3286 = vadd.f32 0.0, %v3285
        %3287 = vdwg.mxu0
        %v3288 = vmax.f32 %v2937, %v2939
        %v3289 = vmax.f32 %v3288, %v3130
        %v3290 = vmax.f32 %v3289, %v3132
        %3291 = vmax.xlane.f32.xlu0 %v3290
        %v3292 = vpop.xlane.xlu0 %3291
        %v3293 = vmax.f32 %v2941, %v2943
        %v3294 = vmax.f32 %v3293, %v3134
        %v3295 = vmax.f32 %v3294, %v3136
        %3296 = vmax.xlane.f32.xlu0 %v3295
        %v3297 = vpop.xlane.xlu0 %3296
        %v3298 = vmax.f32 %v2947, %v2949
        %v3299 = vmax.f32 %v3298, %v3140
        %v3300 = vmax.f32 %v3299, %v3142
        %3301 = vmax.xlane.f32.xlu0 %v3300
        %v3302 = vpop.xlane.xlu0 %3301
        %v3303 = vmax.f32 %v2951, %v2953
        %v3304 = vmax.f32 %v3303, %v3144
        %v3305 = vmax.f32 %v3304, %v3146
        %3306 = vmax.xlane.f32.xlu0 %v3305
        %v3307 = vpop.xlane.xlu0 %3306
        %v3308 = vmax.f32 %v2957, %v2959
        %v3309 = vmax.f32 %v3308, %v3150
        %v3310 = vmax.f32 %v3309, %v3152
        %3311 = vmax.xlane.f32.xlu0 %v3310
        %v3312 = vpop.xlane.xlu0 %3311
        %v3313 = vmax.f32 %v2961, %v2963
        %v3314 = vmax.f32 %v3313, %v3154
        %v3315 = vmax.f32 %v3314, %v3156
        %3316 = vmax.xlane.f32.xlu0 %v3315
        %v3317 = vpop.xlane.xlu0 %3316
        %v3318 = vmax.f32 %v2967, %v2969
        %v3319 = vmax.f32 %v3318, %v3160
        %v3320 = vmax.f32 %v3319, %v3162
        %3321 = vmax.xlane.f32.xlu0 %v3320
        %v3322 = vpop.xlane.xlu0 %3321
        %v3323 = vmax.f32 %v2971, %v2973
        %v3324 = vmax.f32 %v3323, %v3164
        %v3325 = vmax.f32 %v3324, %v3166
        %3326 = vmax.xlane.f32.xlu0 %v3325
        %v3327 = vpop.xlane.xlu0 %3326
        %v3328 = vmax.f32 %v2977, %v2979
        %v3329 = vmax.f32 %v3328, %v3170
        %v3330 = vmax.f32 %v3329, %v3172
        %3331 = vmax.xlane.f32.xlu0 %v3330
        %v3332 = vpop.xlane.xlu0 %3331
        %v3333 = vmax.f32 %v2981, %v2983
        %v3334 = vmax.f32 %v3333, %v3174
        %v3335 = vmax.f32 %v3334, %v3176
        %3336 = vmax.xlane.f32.xlu0 %v3335
        %v3337 = vpop.xlane.xlu0 %3336
        %v3338 = vmax.f32 %v2987, %v2989
        %v3339 = vmax.f32 %v3338, %v3180
        %v3340 = vmax.f32 %v3339, %v3182
        %3341 = vmax.xlane.f32.xlu0 %v3340
        %v3342 = vpop.xlane.xlu0 %3341
        %v3343 = vmax.f32 %v2991, %v2993
        %v3344 = vmax.f32 %v3343, %v3184
        %v3345 = vmax.f32 %v3344, %v3186
        %3346 = vmax.xlane.f32.xlu0 %v3345
        %v3347 = vpop.xlane.xlu0 %3346
        %v3348 = vmax.f32 %v2997, %v2999
        %v3349 = vmax.f32 %v3348, %v3190
        %v3350 = vmax.f32 %v3349, %v3192
        %3351 = vmax.xlane.f32.xlu0 %v3350
        %v3352 = vpop.xlane.xlu0 %3351
        %v3353 = vmax.f32 %v3001, %v3003
        %v3354 = vmax.f32 %v3353, %v3194
        %v3355 = vmax.f32 %v3354, %v3196
        %3356 = vmax.xlane.f32.xlu0 %v3355
        %v3357 = vpop.xlane.xlu0 %3356
        %v3358 = vmax.f32 %v3007, %v3009
        %v3359 = vmax.f32 %v3358, %v3200
        %v3360 = vmax.f32 %v3359, %v3202
        %3361 = vmax.xlane.f32.xlu0 %v3360
        %v3362 = vpop.xlane.xlu0 %3361
        %v3363 = vmax.f32 %v3011, %v3013
        %v3364 = vmax.f32 %v3363, %v3204
        %v3365 = vmax.f32 %v3364, %v3206
        %3366 = vmax.xlane.f32.xlu0 %v3365
        %v3367 = vpop.xlane.xlu0 %3366
        %v3368 = vmax.f32 %v3017, %v3019
        %v3369 = vmax.f32 %v3368, %v3210
        %v3370 = vmax.f32 %v3369, %v3212
        %3371 = vmax.xlane.f32.xlu0 %v3370
        %v3372 = vpop.xlane.xlu0 %3371
        %v3373 = vmax.f32 %v3021, %v3023
        %v3374 = vmax.f32 %v3373, %v3214
        %v3375 = vmax.f32 %v3374, %v3216
        %3376 = vmax.xlane.f32.xlu0 %v3375
        %v3377 = vpop.xlane.xlu0 %3376
        %v3378 = vmax.f32 %v3027, %v3029
        %v3379 = vmax.f32 %v3378, %v3220
        %v3380 = vmax.f32 %v3379, %v3222
        %3381 = vmax.xlane.f32.xlu0 %v3380
        %v3382 = vpop.xlane.xlu0 %3381
        %v3383 = vmax.f32 %v3031, %v3033
        %v3384 = vmax.f32 %v3383, %v3224
        %v3385 = vmax.f32 %v3384, %v3226
        %3386 = vmax.xlane.f32.xlu0 %v3385
        %v3387 = vpop.xlane.xlu0 %3386
        %v3388 = vmax.f32 %v3037, %v3039
        %v3389 = vmax.f32 %v3388, %v3230
        %v3390 = vmax.f32 %v3389, %v3232
        %3391 = vmax.xlane.f32.xlu0 %v3390
        %v3392 = vpop.xlane.xlu0 %3391
        %v3393 = vmax.f32 %v3041, %v3043
        %v3394 = vmax.f32 %v3393, %v3234
        %v3395 = vmax.f32 %v3394, %v3236
        %3396 = vmax.xlane.f32.xlu0 %v3395
        %v3397 = vpop.xlane.xlu0 %3396
        %v3398 = vmax.f32 %v3047, %v3049
        %v3399 = vmax.f32 %v3398, %v3240
        %v3400 = vmax.f32 %v3399, %v3242
        %3401 = vmax.xlane.f32.xlu0 %v3400
        %v3402 = vpop.xlane.xlu0 %3401
        %v3403 = vmax.f32 %v3051, %v3053
        %v3404 = vmax.f32 %v3403, %v3244
        %v3405 = vmax.f32 %v3404, %v3246
        %3406 = vmax.xlane.f32.xlu0 %v3405
        %v3407 = vpop.xlane.xlu0 %3406
        %v3408 = vmax.f32 %v3057, %v3059
        %v3409 = vmax.f32 %v3408, %v3250
        %v3410 = vmax.f32 %v3409, %v3252
        %3411 = vmax.xlane.f32.xlu0 %v3410
        %v3412 = vpop.xlane.xlu0 %3411
        %v3413 = vmax.f32 %v3061, %v3063
        %v3414 = vmax.f32 %v3413, %v3254
        %v3415 = vmax.f32 %v3414, %v3256
        %3416 = vmax.xlane.f32.xlu0 %v3415
        %v3417 = vpop.xlane.xlu0 %3416
        %v3418 = vmax.f32 %v3067, %v3069
        %v3419 = vmax.f32 %v3418, %v3260
        %v3420 = vmax.f32 %v3419, %v3262
        %3421 = vmax.xlane.f32.xlu0 %v3420
        %v3422 = vpop.xlane.xlu0 %3421
        %v3423 = vmax.f32 %v3071, %v3073
        %v3424 = vmax.f32 %v3423, %v3264
        %v3425 = vmax.f32 %v3424, %v3266
        %3426 = vmax.xlane.f32.xlu0 %v3425
        %v3427 = vpop.xlane.xlu0 %3426
        %v3428 = vmax.f32 %v3077, %v3079
        %v3429 = vmax.f32 %v3428, %v3270
        %v3430 = vmax.f32 %v3429, %v3272
        %3431 = vmax.xlane.f32.xlu0 %v3430
        %v3432 = vpop.xlane.xlu0 %3431
        %v3433 = vmax.f32 %v3081, %v3083
        %v3434 = vmax.f32 %v3433, %v3274
        %v3435 = vmax.f32 %v3434, %v3276
        %3436 = vmax.xlane.f32.xlu0 %v3435
        %v3437 = vpop.xlane.xlu0 %3436
        %v3438 = vmax.f32 %v3087, %v3089
        %v3439 = vmax.f32 %v3438, %v3280
        %v3440 = vmax.f32 %v3439, %v3282
        %3441 = vmax.xlane.f32.xlu0 %v3440
        %v3442 = vpop.xlane.xlu0 %3441
        %v3443 = vmax.f32 %v3091, %v3093
        %v3444 = vmax.f32 %v3443, %v3284
        %v3445 = vmax.f32 %v3444, %v3286
        %3446 = vmax.xlane.f32.xlu0 %v3445
        %v3447 = vpop.xlane.xlu0 %3446
        %v3448 = vsub.f32 %v2937, %v3292
        %v3449 = vsub.f32 %v2939, %v3292
        %v3450 = vsub.f32 %v3130, %v3292
        %v3451 = vsub.f32 %v3132, %v3292
        %v3452 = vsub.f32 %v2941, %v3297
        %v3453 = vsub.f32 %v2943, %v3297
        %v3454 = vsub.f32 %v3134, %v3297
        %v3455 = vsub.f32 %v3136, %v3297
        %v3456 = vsub.f32 %v2947, %v3302
        %v3457 = vsub.f32 %v2949, %v3302
        %v3458 = vsub.f32 %v3140, %v3302
        %v3459 = vsub.f32 %v3142, %v3302
        %v3460 = vsub.f32 %v2951, %v3307
        %v3461 = vsub.f32 %v2953, %v3307
        %v3462 = vsub.f32 %v3144, %v3307
        %v3463 = vsub.f32 %v3146, %v3307
        %v3464 = vsub.f32 %v2957, %v3312
        %v3465 = vsub.f32 %v2959, %v3312
        %v3466 = vsub.f32 %v3150, %v3312
        %v3467 = vsub.f32 %v3152, %v3312
        %v3468 = vsub.f32 %v2961, %v3317
        %v3469 = vsub.f32 %v2963, %v3317
        %v3470 = vsub.f32 %v3154, %v3317
        %v3471 = vsub.f32 %v3156, %v3317
        %v3472 = vsub.f32 %v2967, %v3322
        %v3473 = vsub.f32 %v2969, %v3322
        %v3474 = vsub.f32 %v3160, %v3322
        %v3475 = vsub.f32 %v3162, %v3322
        %v3476 = vsub.f32 %v2971, %v3327
        %v3477 = vsub.f32 %v2973, %v3327
        %v3478 = vsub.f32 %v3164, %v3327
        %v3479 = vsub.f32 %v3166, %v3327
        %v3480 = vsub.f32 %v2977, %v3332
        %v3481 = vsub.f32 %v2979, %v3332
        %v3482 = vsub.f32 %v3170, %v3332
        %v3483 = vsub.f32 %v3172, %v3332
        %v3484 = vsub.f32 %v2981, %v3337
        %v3485 = vsub.f32 %v2983, %v3337
        %v3486 = vsub.f32 %v3174, %v3337
        %v3487 = vsub.f32 %v3176, %v3337
        %v3488 = vsub.f32 %v2987, %v3342
        %v3489 = vsub.f32 %v2989, %v3342
        %v3490 = vsub.f32 %v3180, %v3342
        %v3491 = vsub.f32 %v3182, %v3342
        %v3492 = vsub.f32 %v2991, %v3347
        %v3493 = vsub.f32 %v2993, %v3347
        %v3494 = vsub.f32 %v3184, %v3347
        %v3495 = vsub.f32 %v3186, %v3347
        %v3496 = vsub.f32 %v2997, %v3352
        %v3497 = vsub.f32 %v2999, %v3352
        %v3498 = vsub.f32 %v3190, %v3352
        %v3499 = vsub.f32 %v3192, %v3352
        %v3500 = vsub.f32 %v3001, %v3357
        %v3501 = vsub.f32 %v3003, %v3357
        %v3502 = vsub.f32 %v3194, %v3357
        %v3503 = vsub.f32 %v3196, %v3357
        %v3504 = vsub.f32 %v3007, %v3362
        %v3505 = vsub.f32 %v3009, %v3362
        %v3506 = vsub.f32 %v3200, %v3362
        %v3507 = vsub.f32 %v3202, %v3362
        %v3508 = vsub.f32 %v3011, %v3367
        %v3509 = vsub.f32 %v3013, %v3367
        %v3510 = vsub.f32 %v3204, %v3367
        %v3511 = vsub.f32 %v3206, %v3367
        %v3512 = vsub.f32 %v3017, %v3372
        %v3513 = vsub.f32 %v3019, %v3372
        %v3514 = vsub.f32 %v3210, %v3372
        %v3515 = vsub.f32 %v3212, %v3372
        %v3516 = vsub.f32 %v3021, %v3377
        %v3517 = vsub.f32 %v3023, %v3377
        %v3518 = vsub.f32 %v3214, %v3377
        %v3519 = vsub.f32 %v3216, %v3377
        %v3520 = vsub.f32 %v3027, %v3382
        %v3521 = vsub.f32 %v3029, %v3382
        %v3522 = vsub.f32 %v3220, %v3382
        %v3523 = vsub.f32 %v3222, %v3382
        %v3524 = vsub.f32 %v3031, %v3387
        %v3525 = vsub.f32 %v3033, %v3387
        %v3526 = vsub.f32 %v3224, %v3387
        %v3527 = vsub.f32 %v3226, %v3387
        %v3528 = vsub.f32 %v3037, %v3392
        %v3529 = vsub.f32 %v3039, %v3392
        %v3530 = vsub.f32 %v3230, %v3392
        %v3531 = vsub.f32 %v3232, %v3392
        %v3532 = vsub.f32 %v3041, %v3397
        %v3533 = vsub.f32 %v3043, %v3397
        %v3534 = vsub.f32 %v3234, %v3397
        %v3535 = vsub.f32 %v3236, %v3397
        %v3536 = vsub.f32 %v3047, %v3402
        %v3537 = vsub.f32 %v3049, %v3402
        %v3538 = vsub.f32 %v3240, %v3402
        %v3539 = vsub.f32 %v3242, %v3402
        %v3540 = vsub.f32 %v3051, %v3407
        %v3541 = vsub.f32 %v3053, %v3407
        %v3542 = vsub.f32 %v3244, %v3407
        %v3543 = vsub.f32 %v3246, %v3407
        %v3544 = vsub.f32 %v3057, %v3412
        %v3545 = vsub.f32 %v3059, %v3412
        %v3546 = vsub.f32 %v3250, %v3412
        %v3547 = vsub.f32 %v3252, %v3412
        %v3548 = vsub.f32 %v3061, %v3417
        %v3549 = vsub.f32 %v3063, %v3417
        %v3550 = vsub.f32 %v3254, %v3417
        %v3551 = vsub.f32 %v3256, %v3417
        %v3552 = vsub.f32 %v3067, %v3422
        %v3553 = vsub.f32 %v3069, %v3422
        %v3554 = vsub.f32 %v3260, %v3422
        %v3555 = vsub.f32 %v3262, %v3422
        %v3556 = vsub.f32 %v3071, %v3427
        %v3557 = vsub.f32 %v3073, %v3427
        %v3558 = vsub.f32 %v3264, %v3427
        %v3559 = vsub.f32 %v3266, %v3427
        %v3560 = vsub.f32 %v3077, %v3432
        %v3561 = vsub.f32 %v3079, %v3432
        %v3562 = vsub.f32 %v3270, %v3432
        %v3563 = vsub.f32 %v3272, %v3432
        %v3564 = vsub.f32 %v3081, %v3437
        %v3565 = vsub.f32 %v3083, %v3437
        %v3566 = vsub.f32 %v3274, %v3437
        %v3567 = vsub.f32 %v3276, %v3437
        %v3568 = vsub.f32 %v3087, %v3442
        %v3569 = vsub.f32 %v3089, %v3442
        %v3570 = vsub.f32 %v3280, %v3442
        %v3571 = vsub.f32 %v3282, %v3442
        %v3572 = vsub.f32 %v3091, %v3447
        %v3573 = vsub.f32 %v3093, %v3447
        %v3574 = vsub.f32 %v3284, %v3447
        %v3575 = vsub.f32 %v3286, %v3447
        %v3576 = vpack.c.bf16 %v3452, %v3448
        %v3577 = vpack.c.bf16 %v3453, %v3449
        %v3578 = vpack.c.bf16 %v3454, %v3450
        %v3579 = vpack.c.bf16 %v3455, %v3451
        %v3580 = vpack.c.bf16 %v3460, %v3456
        %v3581 = vpack.c.bf16 %v3461, %v3457
        %v3582 = vpack.c.bf16 %v3462, %v3458
        %v3583 = vpack.c.bf16 %v3463, %v3459
        %v3584 = vpack.c.bf16 %v3468, %v3464
        %v3585 = vpack.c.bf16 %v3469, %v3465
        %v3586 = vpack.c.bf16 %v3470, %v3466
        %v3587 = vpack.c.bf16 %v3471, %v3467
        %v3588 = vpack.c.bf16 %v3476, %v3472
        %v3589 = vpack.c.bf16 %v3477, %v3473
        %v3590 = vpack.c.bf16 %v3478, %v3474
        %v3591 = vpack.c.bf16 %v3479, %v3475
        %v3592 = vpack.c.bf16 %v3484, %v3480
        %v3593 = vpack.c.bf16 %v3485, %v3481
        %v3594 = vpack.c.bf16 %v3486, %v3482
        %v3595 = vpack.c.bf16 %v3487, %v3483
        %v3596 = vpack.c.bf16 %v3492, %v3488
        %v3597 = vpack.c.bf16 %v3493, %v3489
        %v3598 = vpack.c.bf16 %v3494, %v3490
        %v3599 = vpack.c.bf16 %v3495, %v3491
        %v3600 = vpack.c.bf16 %v3500, %v3496
        %v3601 = vpack.c.bf16 %v3501, %v3497
        %v3602 = vpack.c.bf16 %v3502, %v3498
        %v3603 = vpack.c.bf16 %v3503, %v3499
        %v3604 = vpack.c.bf16 %v3508, %v3504
        %v3605 = vpack.c.bf16 %v3509, %v3505
        %v3606 = vpack.c.bf16 %v3510, %v3506
        %v3607 = vpack.c.bf16 %v3511, %v3507
        %v3608 = vpack.c.bf16 %v3516, %v3512
        %v3609 = vpack.c.bf16 %v3517, %v3513
        %v3610 = vpack.c.bf16 %v3518, %v3514
        %v3611 = vpack.c.bf16 %v3519, %v3515
        %v3612 = vpack.c.bf16 %v3524, %v3520
        %v3613 = vpack.c.bf16 %v3525, %v3521
        %v3614 = vpack.c.bf16 %v3526, %v3522
        %v3615 = vpack.c.bf16 %v3527, %v3523
        %v3616 = vpack.c.bf16 %v3532, %v3528
        %v3617 = vpack.c.bf16 %v3533, %v3529
        %v3618 = vpack.c.bf16 %v3534, %v3530
        %v3619 = vpack.c.bf16 %v3535, %v3531
        %v3620 = vpack.c.bf16 %v3540, %v3536
        %v3621 = vpack.c.bf16 %v3541, %v3537
        %v3622 = vpack.c.bf16 %v3542, %v3538
        %v3623 = vpack.c.bf16 %v3543, %v3539
        %v3624 = vpack.c.bf16 %v3548, %v3544
        %v3625 = vpack.c.bf16 %v3549, %v3545
        %v3626 = vpack.c.bf16 %v3550, %v3546
        %v3627 = vpack.c.bf16 %v3551, %v3547
        %v3628 = vpack.c.bf16 %v3556, %v3552
        %v3629 = vpack.c.bf16 %v3557, %v3553
        %v3630 = vpack.c.bf16 %v3558, %v3554
        %v3631 = vpack.c.bf16 %v3559, %v3555
        %v3632 = vpack.c.bf16 %v3564, %v3560
        %v3633 = vpack.c.bf16 %v3565, %v3561
        %v3634 = vpack.c.bf16 %v3566, %v3562
        %v3635 = vpack.c.bf16 %v3567, %v3563
        %v3636 = vpack.c.bf16 %v3572, %v3568
        %v3637 = vpack.c.bf16 %v3573, %v3569
        %v3638 = vpack.c.bf16 %v3574, %v3570
        %v3639 = vpack.c.bf16 %v3575, %v3571
        %v3641 = vmul.bf16 %v3576, 1069105081
        %v3642 = vpow.bf16.pop %v3641
        %v3644 = vmul.bf16 %v3577, 1069105081
        %v3645 = vpow.bf16.pop %v3644
        %v3647 = vmul.bf16 %v3578, 1069105081
        %v3648 = vpow.bf16.pop %v3647
        %v3650 = vmul.bf16 %v3579, 1069105081
        %v3651 = vpow.bf16.pop %v3650
        %v3653 = vmul.bf16 %v3580, 1069105081
        %v3654 = vpow.bf16.pop %v3653
        %v3656 = vmul.bf16 %v3581, 1069105081
        %v3657 = vpow.bf16.pop %v3656
        %v3659 = vmul.bf16 %v3582, 1069105081
        %v3660 = vpow.bf16.pop %v3659
        %v3662 = vmul.bf16 %v3583, 1069105081
        %v3663 = vpow.bf16.pop %v3662
        %v3665 = vmul.bf16 %v3584, 1069105081
        %v3666 = vpow.bf16.pop %v3665
        %v3668 = vmul.bf16 %v3585, 1069105081
        %v3669 = vpow.bf16.pop %v3668
        %v3671 = vmul.bf16 %v3586, 1069105081
        %v3672 = vpow.bf16.pop %v3671
        %v3674 = vmul.bf16 %v3587, 1069105081
        %v3675 = vpow.bf16.pop %v3674
        %v3677 = vmul.bf16 %v3588, 1069105081
        %v3678 = vpow.bf16.pop %v3677
        %v3680 = vmul.bf16 %v3589, 1069105081
        %v3681 = vpow.bf16.pop %v3680
        %v3683 = vmul.bf16 %v3590, 1069105081
        %v3684 = vpow.bf16.pop %v3683
        %v3686 = vmul.bf16 %v3591, 1069105081
        %v3687 = vpow.bf16.pop %v3686
        %v3689 = vmul.bf16 %v3592, 1069105081
        %v3690 = vpow.bf16.pop %v3689
        %v3692 = vmul.bf16 %v3593, 1069105081
        %v3693 = vpow.bf16.pop %v3692
        %v3695 = vmul.bf16 %v3594, 1069105081
        %v3696 = vpow.bf16.pop %v3695
        %v3698 = vmul.bf16 %v3595, 1069105081
        %v3699 = vpow.bf16.pop %v3698
        %v3701 = vmul.bf16 %v3596, 1069105081
        %v3702 = vpow.bf16.pop %v3701
        %v3704 = vmul.bf16 %v3597, 1069105081
        %v3705 = vpow.bf16.pop %v3704
        %v3707 = vmul.bf16 %v3598, 1069105081
        %v3708 = vpow.bf16.pop %v3707
        %v3710 = vmul.bf16 %v3599, 1069105081
        %v3711 = vpow.bf16.pop %v3710
        %v3713 = vmul.bf16 %v3600, 1069105081
        %v3714 = vpow.bf16.pop %v3713
        %v3716 = vmul.bf16 %v3601, 1069105081
        %v3717 = vpow.bf16.pop %v3716
        %v3719 = vmul.bf16 %v3602, 1069105081
        %v3720 = vpow.bf16.pop %v3719
        %v3722 = vmul.bf16 %v3603, 1069105081
        %v3723 = vpow.bf16.pop %v3722
        %v3725 = vmul.bf16 %v3604, 1069105081
        %v3726 = vpow.bf16.pop %v3725
        %v3728 = vmul.bf16 %v3605, 1069105081
        %v3729 = vpow.bf16.pop %v3728
        %v3731 = vmul.bf16 %v3606, 1069105081
        %v3732 = vpow.bf16.pop %v3731
        %v3734 = vmul.bf16 %v3607, 1069105081
        %v3735 = vpow.bf16.pop %v3734
        %v3737 = vmul.bf16 %v3608, 1069105081
        %v3738 = vpow.bf16.pop %v3737
        %v3740 = vmul.bf16 %v3609, 1069105081
        %v3741 = vpow.bf16.pop %v3740
        %v3743 = vmul.bf16 %v3610, 1069105081
        %v3744 = vpow.bf16.pop %v3743
        %v3746 = vmul.bf16 %v3611, 1069105081
        %v3747 = vpow.bf16.pop %v3746
        %v3749 = vmul.bf16 %v3612, 1069105081
        %v3750 = vpow.bf16.pop %v3749
        %v3752 = vmul.bf16 %v3613, 1069105081
        %v3753 = vpow.bf16.pop %v3752
        %v3755 = vmul.bf16 %v3614, 1069105081
        %v3756 = vpow.bf16.pop %v3755
        %v3758 = vmul.bf16 %v3615, 1069105081
        %v3759 = vpow.bf16.pop %v3758
        %v3761 = vmul.bf16 %v3616, 1069105081
        %v3762 = vpow.bf16.pop %v3761
        %v3764 = vmul.bf16 %v3617, 1069105081
        %v3765 = vpow.bf16.pop %v3764
        %v3767 = vmul.bf16 %v3618, 1069105081
        %v3768 = vpow.bf16.pop %v3767
        %v3770 = vmul.bf16 %v3619, 1069105081
        %v3771 = vpow.bf16.pop %v3770
        %v3773 = vmul.bf16 %v3620, 1069105081
        %v3774 = vpow.bf16.pop %v3773
        %v3776 = vmul.bf16 %v3621, 1069105081
        %v3777 = vpow.bf16.pop %v3776
        %v3779 = vmul.bf16 %v3622, 1069105081
        %v3780 = vpow.bf16.pop %v3779
        %v3782 = vmul.bf16 %v3623, 1069105081
        %v3783 = vpow.bf16.pop %v3782
        %v3785 = vmul.bf16 %v3624, 1069105081
        %v3786 = vpow.bf16.pop %v3785
        %v3788 = vmul.bf16 %v3625, 1069105081
        %v3789 = vpow.bf16.pop %v3788
        %v3791 = vmul.bf16 %v3626, 1069105081
        %v3792 = vpow.bf16.pop %v3791
        %v3794 = vmul.bf16 %v3627, 1069105081
        %v3795 = vpow.bf16.pop %v3794
        %v3797 = vmul.bf16 %v3628, 1069105081
        %v3798 = vpow.bf16.pop %v3797
        %v3800 = vmul.bf16 %v3629, 1069105081
        %v3801 = vpow.bf16.pop %v3800
        %v3803 = vmul.bf16 %v3630, 1069105081
        %v3804 = vpow.bf16.pop %v3803
        %v3806 = vmul.bf16 %v3631, 1069105081
        %v3807 = vpow.bf16.pop %v3806
        %v3809 = vmul.bf16 %v3632, 1069105081
        %v3810 = vpow.bf16.pop %v3809
        %v3812 = vmul.bf16 %v3633, 1069105081
        %v3813 = vpow.bf16.pop %v3812
        %v3815 = vmul.bf16 %v3634, 1069105081
        %v3816 = vpow.bf16.pop %v3815
        %v3818 = vmul.bf16 %v3635, 1069105081
        %v3819 = vpow.bf16.pop %v3818
        %v3821 = vmul.bf16 %v3636, 1069105081
        %v3822 = vpow.bf16.pop %v3821
        %v3824 = vmul.bf16 %v3637, 1069105081
        %v3825 = vpow.bf16.pop %v3824
        %v3827 = vmul.bf16 %v3638, 1069105081
        %v3828 = vpow.bf16.pop %v3827
        %v3830 = vmul.bf16 %v3639, 1069105081
        %v3831 = vpow.bf16.pop %v3830
        %v3832 = vunpack.c.l.bf16 %v3642
        %v3833 = vunpack.c.l.bf16 %v3645
        %v3834 = vunpack.c.l.bf16 %v3648
        %v3835 = vunpack.c.l.bf16 %v3651
        %v3836 = vunpack.c.h.bf16 %v3642
        %v3837 = vunpack.c.h.bf16 %v3645
        %v3838 = vunpack.c.h.bf16 %v3648
        %v3839 = vunpack.c.h.bf16 %v3651
        %v3840 = vunpack.c.l.bf16 %v3654
        %v3841 = vunpack.c.l.bf16 %v3657
        %v3842 = vunpack.c.l.bf16 %v3660
        %v3843 = vunpack.c.l.bf16 %v3663
        %v3844 = vunpack.c.h.bf16 %v3654
        %v3845 = vunpack.c.h.bf16 %v3657
        %v3846 = vunpack.c.h.bf16 %v3660
        %v3847 = vunpack.c.h.bf16 %v3663
        %v3848 = vunpack.c.l.bf16 %v3666
        %v3849 = vunpack.c.l.bf16 %v3669
        %v3850 = vunpack.c.l.bf16 %v3672
        %v3851 = vunpack.c.l.bf16 %v3675
        %v3852 = vunpack.c.h.bf16 %v3666
        %v3853 = vunpack.c.h.bf16 %v3669
        %v3854 = vunpack.c.h.bf16 %v3672
        %v3855 = vunpack.c.h.bf16 %v3675
        %v3856 = vunpack.c.l.bf16 %v3678
        %v3857 = vunpack.c.l.bf16 %v3681
        %v3858 = vunpack.c.l.bf16 %v3684
        %v3859 = vunpack.c.l.bf16 %v3687
        %v3860 = vunpack.c.h.bf16 %v3678
        %v3861 = vunpack.c.h.bf16 %v3681
        %v3862 = vunpack.c.h.bf16 %v3684
        %v3863 = vunpack.c.h.bf16 %v3687
        %v3864 = vunpack.c.l.bf16 %v3690
        %v3865 = vunpack.c.l.bf16 %v3693
        %v3866 = vunpack.c.l.bf16 %v3696
        %v3867 = vunpack.c.l.bf16 %v3699
        %v3868 = vunpack.c.h.bf16 %v3690
        %v3869 = vunpack.c.h.bf16 %v3693
        %v3870 = vunpack.c.h.bf16 %v3696
        %v3871 = vunpack.c.h.bf16 %v3699
        %v3872 = vunpack.c.l.bf16 %v3702
        %v3873 = vunpack.c.l.bf16 %v3705
        %v3874 = vunpack.c.l.bf16 %v3708
        %v3875 = vunpack.c.l.bf16 %v3711
        %v3876 = vunpack.c.h.bf16 %v3702
        %v3877 = vunpack.c.h.bf16 %v3705
        %v3878 = vunpack.c.h.bf16 %v3708
        %v3879 = vunpack.c.h.bf16 %v3711
        %v3880 = vunpack.c.l.bf16 %v3714
        %v3881 = vunpack.c.l.bf16 %v3717
        %v3882 = vunpack.c.l.bf16 %v3720
        %v3883 = vunpack.c.l.bf16 %v3723
        %v3884 = vunpack.c.h.bf16 %v3714
        %v3885 = vunpack.c.h.bf16 %v3717
        %v3886 = vunpack.c.h.bf16 %v3720
        %v3887 = vunpack.c.h.bf16 %v3723
        %v3888 = vunpack.c.l.bf16 %v3726
        %v3889 = vunpack.c.l.bf16 %v3729
        %v3890 = vunpack.c.l.bf16 %v3732
        %v3891 = vunpack.c.l.bf16 %v3735
        %v3892 = vunpack.c.h.bf16 %v3726
        %v3893 = vunpack.c.h.bf16 %v3729
        %v3894 = vunpack.c.h.bf16 %v3732
        %v3895 = vunpack.c.h.bf16 %v3735
        %v3896 = vunpack.c.l.bf16 %v3738
        %v3897 = vunpack.c.l.bf16 %v3741
        %v3898 = vunpack.c.l.bf16 %v3744
        %v3899 = vunpack.c.l.bf16 %v3747
        %v3900 = vunpack.c.h.bf16 %v3738
        %v3901 = vunpack.c.h.bf16 %v3741
        %v3902 = vunpack.c.h.bf16 %v3744
        %v3903 = vunpack.c.h.bf16 %v3747
        %v3904 = vunpack.c.l.bf16 %v3750
        %v3905 = vunpack.c.l.bf16 %v3753
        %v3906 = vunpack.c.l.bf16 %v3756
        %v3907 = vunpack.c.l.bf16 %v3759
        %v3908 = vunpack.c.h.bf16 %v3750
        %v3909 = vunpack.c.h.bf16 %v3753
        %v3910 = vunpack.c.h.bf16 %v3756
        %v3911 = vunpack.c.h.bf16 %v3759
        %v3912 = vunpack.c.l.bf16 %v3762
        %v3913 = vunpack.c.l.bf16 %v3765
        %v3914 = vunpack.c.l.bf16 %v3768
        %v3915 = vunpack.c.l.bf16 %v3771
        %v3916 = vunpack.c.h.bf16 %v3762
        %v3917 = vunpack.c.h.bf16 %v3765
        %v3918 = vunpack.c.h.bf16 %v3768
        %v3919 = vunpack.c.h.bf16 %v3771
        %v3920 = vunpack.c.l.bf16 %v3774
        %v3921 = vunpack.c.l.bf16 %v3777
        %v3922 = vunpack.c.l.bf16 %v3780
        %v3923 = vunpack.c.l.bf16 %v3783
        %v3924 = vunpack.c.h.bf16 %v3774
        %v3925 = vunpack.c.h.bf16 %v3777
        %v3926 = vunpack.c.h.bf16 %v3780
        %v3927 = vunpack.c.h.bf16 %v3783
        %v3928 = vunpack.c.l.bf16 %v3786
        %v3929 = vunpack.c.l.bf16 %v3789
        %v3930 = vunpack.c.l.bf16 %v3792
        %v3931 = vunpack.c.l.bf16 %v3795
        %v3932 = vunpack.c.h.bf16 %v3786
        %v3933 = vunpack.c.h.bf16 %v3789
        %v3934 = vunpack.c.h.bf16 %v3792
        %v3935 = vunpack.c.h.bf16 %v3795
        %v3936 = vunpack.c.l.bf16 %v3798
        %v3937 = vunpack.c.l.bf16 %v3801
        %v3938 = vunpack.c.l.bf16 %v3804
        %v3939 = vunpack.c.l.bf16 %v3807
        %v3940 = vunpack.c.h.bf16 %v3798
        %v3941 = vunpack.c.h.bf16 %v3801
        %v3942 = vunpack.c.h.bf16 %v3804
        %v3943 = vunpack.c.h.bf16 %v3807
        %v3944 = vunpack.c.l.bf16 %v3810
        %v3945 = vunpack.c.l.bf16 %v3813
        %v3946 = vunpack.c.l.bf16 %v3816
        %v3947 = vunpack.c.l.bf16 %v3819
        %v3948 = vunpack.c.h.bf16 %v3810
        %v3949 = vunpack.c.h.bf16 %v3813
        %v3950 = vunpack.c.h.bf16 %v3816
        %v3951 = vunpack.c.h.bf16 %v3819
        %v3952 = vunpack.c.l.bf16 %v3822
        %v3953 = vunpack.c.l.bf16 %v3825
        %v3954 = vunpack.c.l.bf16 %v3828
        %v3955 = vunpack.c.l.bf16 %v3831
        %v3956 = vunpack.c.h.bf16 %v3822
        %v3957 = vunpack.c.h.bf16 %v3825
        %v3958 = vunpack.c.h.bf16 %v3828
        %v3959 = vunpack.c.h.bf16 %v3831
        %v3960 = vadd.f32 %v3832, %v3833
        %v3961 = vadd.f32 %v3960, %v3834
        %v3962 = vadd.f32 %v3961, %v3835
        %3963 = vadd.xlane.f32.xlu0 %v3962
        %v3964 = vpop.xlane.xlu0 %3963
        %v3965 = vadd.f32 %v3836, %v3837
        %v3966 = vadd.f32 %v3965, %v3838
        %v3967 = vadd.f32 %v3966, %v3839
        %3968 = vadd.xlane.f32.xlu0 %v3967
        %v3969 = vpop.xlane.xlu0 %3968
        %v3970 = vadd.f32 %v3840, %v3841
        %v3971 = vadd.f32 %v3970, %v3842
        %v3972 = vadd.f32 %v3971, %v3843
        %3973 = vadd.xlane.f32.xlu0 %v3972
        %v3974 = vpop.xlane.xlu0 %3973
        %v3975 = vadd.f32 %v3844, %v3845
        %v3976 = vadd.f32 %v3975, %v3846
        %v3977 = vadd.f32 %v3976, %v3847
        %3978 = vadd.xlane.f32.xlu0 %v3977
        %v3979 = vpop.xlane.xlu0 %3978
        %v3980 = vadd.f32 %v3848, %v3849
        %v3981 = vadd.f32 %v3980, %v3850
        %v3982 = vadd.f32 %v3981, %v3851
        %3983 = vadd.xlane.f32.xlu0 %v3982
        %v3984 = vpop.xlane.xlu0 %3983
        %v3985 = vadd.f32 %v3852, %v3853
        %v3986 = vadd.f32 %v3985, %v3854
        %v3987 = vadd.f32 %v3986, %v3855
        %3988 = vadd.xlane.f32.xlu0 %v3987
        %v3989 = vpop.xlane.xlu0 %3988
        %v3990 = vadd.f32 %v3856, %v3857
        %v3991 = vadd.f32 %v3990, %v3858
        %v3992 = vadd.f32 %v3991, %v3859
        %3993 = vadd.xlane.f32.xlu0 %v3992
        %v3994 = vpop.xlane.xlu0 %3993
        %v3995 = vadd.f32 %v3860, %v3861
        %v3996 = vadd.f32 %v3995, %v3862
        %v3997 = vadd.f32 %v3996, %v3863
        %3998 = vadd.xlane.f32.xlu0 %v3997
        %v3999 = vpop.xlane.xlu0 %3998
        %v4000 = vadd.f32 %v3864, %v3865
        %v4001 = vadd.f32 %v4000, %v3866
        %v4002 = vadd.f32 %v4001, %v3867
        %4003 = vadd.xlane.f32.xlu0 %v4002
        %v4004 = vpop.xlane.xlu0 %4003
        %v4005 = vadd.f32 %v3868, %v3869
        %v4006 = vadd.f32 %v4005, %v3870
        %v4007 = vadd.f32 %v4006, %v3871
        %4008 = vadd.xlane.f32.xlu0 %v4007
        %v4009 = vpop.xlane.xlu0 %4008
        %v4010 = vadd.f32 %v3872, %v3873
        %v4011 = vadd.f32 %v4010, %v3874
        %v4012 = vadd.f32 %v4011, %v3875
        %4013 = vadd.xlane.f32.xlu0 %v4012
        %v4014 = vpop.xlane.xlu0 %4013
        %v4015 = vadd.f32 %v3876, %v3877
        %v4016 = vadd.f32 %v4015, %v3878
        %v4017 = vadd.f32 %v4016, %v3879
        %4018 = vadd.xlane.f32.xlu0 %v4017
        %v4019 = vpop.xlane.xlu0 %4018
        %v4020 = vadd.f32 %v3880, %v3881
        %v4021 = vadd.f32 %v4020, %v3882
        %v4022 = vadd.f32 %v4021, %v3883
        %4023 = vadd.xlane.f32.xlu0 %v4022
        %v4024 = vpop.xlane.xlu0 %4023
        %v4025 = vadd.f32 %v3884, %v3885
        %v4026 = vadd.f32 %v4025, %v3886
        %v4027 = vadd.f32 %v4026, %v3887
        %4028 = vadd.xlane.f32.xlu0 %v4027
        %v4029 = vpop.xlane.xlu0 %4028
        %v4030 = vadd.f32 %v3888, %v3889
        %v4031 = vadd.f32 %v4030, %v3890
        %v4032 = vadd.f32 %v4031, %v3891
        %4033 = vadd.xlane.f32.xlu0 %v4032
        %v4034 = vpop.xlane.xlu0 %4033
        %v4035 = vadd.f32 %v3892, %v3893
        %v4036 = vadd.f32 %v4035, %v3894
        %v4037 = vadd.f32 %v4036, %v3895
        %4038 = vadd.xlane.f32.xlu0 %v4037
        %v4039 = vpop.xlane.xlu0 %4038
        %v4040 = vadd.f32 %v3896, %v3897
        %v4041 = vadd.f32 %v4040, %v3898
        %v4042 = vadd.f32 %v4041, %v3899
        %4043 = vadd.xlane.f32.xlu0 %v4042
        %v4044 = vpop.xlane.xlu0 %4043
        %v4045 = vadd.f32 %v3900, %v3901
        %v4046 = vadd.f32 %v4045, %v3902
        %v4047 = vadd.f32 %v4046, %v3903
        %4048 = vadd.xlane.f32.xlu0 %v4047
        %v4049 = vpop.xlane.xlu0 %4048
        %v4050 = vadd.f32 %v3904, %v3905
        %v4051 = vadd.f32 %v4050, %v3906
        %v4052 = vadd.f32 %v4051, %v3907
        %4053 = vadd.xlane.f32.xlu0 %v4052
        %v4054 = vpop.xlane.xlu0 %4053
        %v4055 = vadd.f32 %v3908, %v3909
        %v4056 = vadd.f32 %v4055, %v3910
        %v4057 = vadd.f32 %v4056, %v3911
        %4058 = vadd.xlane.f32.xlu0 %v4057
        %v4059 = vpop.xlane.xlu0 %4058
        %v4060 = vadd.f32 %v3912, %v3913
        %v4061 = vadd.f32 %v4060, %v3914
        %v4062 = vadd.f32 %v4061, %v3915
        %4063 = vadd.xlane.f32.xlu0 %v4062
        %v4064 = vpop.xlane.xlu0 %4063
        %v4065 = vadd.f32 %v3916, %v3917
        %v4066 = vadd.f32 %v4065, %v3918
        %v4067 = vadd.f32 %v4066, %v3919
        %4068 = vadd.xlane.f32.xlu0 %v4067
        %v4069 = vpop.xlane.xlu0 %4068
        %v4070 = vadd.f32 %v3920, %v3921
        %v4071 = vadd.f32 %v4070, %v3922
        %v4072 = vadd.f32 %v4071, %v3923
        %4073 = vadd.xlane.f32.xlu0 %v4072
        %v4074 = vpop.xlane.xlu0 %4073
        %v4075 = vadd.f32 %v3924, %v3925
        %v4076 = vadd.f32 %v4075, %v3926
        %v4077 = vadd.f32 %v4076, %v3927
        %4078 = vadd.xlane.f32.xlu0 %v4077
        %v4079 = vpop.xlane.xlu0 %4078
        %v4080 = vadd.f32 %v3928, %v3929
        %v4081 = vadd.f32 %v4080, %v3930
        %v4082 = vadd.f32 %v4081, %v3931
        %4083 = vadd.xlane.f32.xlu0 %v4082
        %v4084 = vpop.xlane.xlu0 %4083
        %v4085 = vadd.f32 %v3932, %v3933
        %v4086 = vadd.f32 %v4085, %v3934
        %v4087 = vadd.f32 %v4086, %v3935
        %4088 = vadd.xlane.f32.xlu0 %v4087
        %v4089 = vpop.xlane.xlu0 %4088
        %v4090 = vadd.f32 %v3936, %v3937
        %v4091 = vadd.f32 %v4090, %v3938
        %v4092 = vadd.f32 %v4091, %v3939
        %4093 = vadd.xlane.f32.xlu0 %v4092
        %v4094 = vpop.xlane.xlu0 %4093
        %v4095 = vadd.f32 %v3940, %v3941
        %v4096 = vadd.f32 %v4095, %v3942
        %v4097 = vadd.f32 %v4096, %v3943
        %4098 = vadd.xlane.f32.xlu0 %v4097
        %v4099 = vpop.xlane.xlu0 %4098
        %v4100 = vadd.f32 %v3944, %v3945
        %v4101 = vadd.f32 %v4100, %v3946
        %v4102 = vadd.f32 %v4101, %v3947
        %4103 = vadd.xlane.f32.xlu0 %v4102
        %v4104 = vpop.xlane.xlu0 %4103
        %v4105 = vadd.f32 %v3948, %v3949
        %v4106 = vadd.f32 %v4105, %v3950
        %v4107 = vadd.f32 %v4106, %v3951
        %4108 = vadd.xlane.f32.xlu0 %v4107
        %v4109 = vpop.xlane.xlu0 %4108
        %v4110 = vadd.f32 %v3952, %v3953
        %v4111 = vadd.f32 %v4110, %v3954
        %v4112 = vadd.f32 %v4111, %v3955
        %4113 = vadd.xlane.f32.xlu0 %v4112
        %v4114 = vpop.xlane.xlu0 %4113
        %v4115 = vadd.f32 %v3956, %v3957
        %v4116 = vadd.f32 %v4115, %v3958
        %v4117 = vadd.f32 %v4116, %v3959
        %4118 = vadd.xlane.f32.xlu0 %v4117
        %v4119 = vpop.xlane.xlu0 %4118
        %4120 = vmatprep.subr.bf16.mxu0 0
        %4121 = vmatpush1.bf16.msra.mxu0 %v2725
        %4122 = vmatprep.subr.bf16.mxu0 0
        %4123 = vmatpush1.bf16.msra.mxu0 %v2726
        %4124 = vmatprep.subr.bf16.mxu0 0
        %4125 = vmatpush1.bf16.msra.mxu0 %v2727
        %4126 = vmatprep.subr.bf16.mxu0 0
        %4127 = vmatpush1.bf16.msra.mxu0 %v2728
        %4128 = vmatprep.subr.bf16.mxu0 0
        %4129 = vmatpush1.bf16.msra.mxu0 %v2729
        %4130 = vmatprep.subr.bf16.mxu0 0
        %4131 = vmatpush1.bf16.msra.mxu0 %v2730
        %4132 = vmatprep.subr.bf16.mxu0 0
        %4133 = vmatpush1.bf16.msra.mxu0 %v2731
        %4134 = vmatprep.subr.bf16.mxu0 0
        %4135 = vmatpush1.bf16.msra.mxu0 %v2732
        %4136 = vmatprep.subr.bf16.mxu0 0
        %4137 = vmatpush1.bf16.msra.mxu0 %v2733
        %4138 = vmatprep.subr.bf16.mxu0 0
        %4139 = vmatpush1.bf16.msra.mxu0 %v2734
        %4140 = vmatprep.subr.bf16.mxu0 0
        %4141 = vmatpush1.bf16.msra.mxu0 %v2735
        %4142 = vmatprep.subr.bf16.mxu0 0
        %4143 = vmatpush1.bf16.msra.mxu0 %v2736
        %4144 = vmatprep.subr.bf16.mxu0 0
        %4145 = vmatpush1.bf16.msra.mxu0 %v2737
        %4146 = vmatprep.subr.bf16.mxu0 0
        %4147 = vmatpush1.bf16.msra.mxu0 %v2738
        %4148 = vmatprep.subr.bf16.mxu0 0
        %4149 = vmatpush1.bf16.msra.mxu0 %v2739
        %4150 = vmatprep.subr.bf16.mxu0 0
        %4151 = vmatpush1.bf16.msra.mxu0 %v2740
        %4152 = vmatprep.mubr.bf16.mxu0 %v3645
        %4153 = vmatmul.mubr.bf16.gmra.mrb[0].mxu0 %v3642
        %v4154 = vpop.f32.mrb[0].mxu0
        %v4155 = vadd.f32 0.0, %v4154
        %v4156 = vpop.f32.mrb[0].mxu0
        %v4157 = vpop.f32.mrb[0].mxu0
        %v4158 = vadd.f32 0.0, %v4157
        %v4159 = vpop.f32.mrb[0].mxu0
        %4160 = vmatprep.mubr.bf16.mxu0 %v3657
        %4161 = vmatmul.mubr.bf16.gmra.mrb[0].mxu0 %v3654
        %v4162 = vpop.f32.mrb[0].mxu0
        %v4163 = vadd.f32 0.0, %v4162
        %v4164 = vpop.f32.mrb[0].mxu0
        %v4165 = vpop.f32.mrb[0].mxu0
        %v4166 = vadd.f32 0.0, %v4165
        %v4167 = vpop.f32.mrb[0].mxu0
        %4168 = vmatprep.mubr.bf16.mxu0 %v3669
        %4169 = vmatmul.mubr.bf16.gmra.mrb[0].mxu0 %v3666
        %v4170 = vpop.f32.mrb[0].mxu0
        %v4171 = vadd.f32 0.0, %v4170
        %v4172 = vpop.f32.mrb[0].mxu0
        %v4173 = vpop.f32.mrb[0].mxu0
        %v4174 = vadd.f32 0.0, %v4173
        %v4175 = vpop.f32.mrb[0].mxu0
        %4176 = vmatprep.mubr.bf16.mxu0 %v3681
        %4177 = vmatmul.mubr.bf16.gmra.mrb[0].mxu0 %v3678
        %v4178 = vpop.f32.mrb[0].mxu0
        %v4179 = vadd.f32 0.0, %v4178
        %v4180 = vpop.f32.mrb[0].mxu0
        %v4181 = vpop.f32.mrb[0].mxu0
        %v4182 = vadd.f32 0.0, %v4181
        %v4183 = vpop.f32.mrb[0].mxu0
        %4184 = vmatprep.mubr.bf16.mxu0 %v3693
        %4185 = vmatmul.mubr.bf16.gmra.mrb[0].mxu0 %v3690
        %v4186 = vpop.f32.mrb[0].mxu0
        %v4187 = vadd.f32 0.0, %v4186
        %v4188 = vpop.f32.mrb[0].mxu0
        %v4189 = vpop.f32.mrb[0].mxu0
        %v4190 = vadd.f32 0.0, %v4189
        %v4191 = vpop.f32.mrb[0].mxu0
        %4192 = vmatprep.mubr.bf16.mxu0 %v3705
        %4193 = vmatmul.mubr.bf16.gmra.mrb[0].mxu0 %v3702
        %v4194 = vpop.f32.mrb[0].mxu0
        %v4195 = vadd.f32 0.0, %v4194
        %v4196 = vpop.f32.mrb[0].mxu0
        %v4197 = vpop.f32.mrb[0].mxu0
        %v4198 = vadd.f32 0.0, %v4197
        %v4199 = vpop.f32.mrb[0].mxu0
        %4200 = vmatprep.mubr.bf16.mxu0 %v3717
        %4201 = vmatmul.mubr.bf16.gmra.mrb[0].mxu0 %v3714
        %v4202 = vpop.f32.mrb[0].mxu0
        %v4203 = vadd.f32 0.0, %v4202
        %v4204 = vpop.f32.mrb[0].mxu0
        %v4205 = vpop.f32.mrb[0].mxu0
        %v4206 = vadd.f32 0.0, %v4205
        %v4207 = vpop.f32.mrb[0].mxu0
        %4208 = vmatprep.mubr.bf16.mxu0 %v3729
        %4209 = vmatmul.mubr.bf16.gmra.mrb[0].mxu0 %v3726
        %v4210 = vpop.f32.mrb[0].mxu0
        %v4211 = vadd.f32 0.0, %v4210
        %v4212 = vpop.f32.mrb[0].mxu0
        %v4213 = vpop.f32.mrb[0].mxu0
        %v4214 = vadd.f32 0.0, %v4213
        %v4215 = vpop.f32.mrb[0].mxu0
        %4216 = vmatprep.mubr.bf16.mxu0 %v3741
        %4217 = vmatmul.mubr.bf16.gmra.mrb[0].mxu0 %v3738
        %v4218 = vpop.f32.mrb[0].mxu0
        %v4219 = vadd.f32 0.0, %v4218
        %v4220 = vpop.f32.mrb[0].mxu0
        %v4221 = vpop.f32.mrb[0].mxu0
        %v4222 = vadd.f32 0.0, %v4221
        %v4223 = vpop.f32.mrb[0].mxu0
        %4224 = vmatprep.mubr.bf16.mxu0 %v3753
        %4225 = vmatmul.mubr.bf16.gmra.mrb[0].mxu0 %v3750
        %v4226 = vpop.f32.mrb[0].mxu0
        %v4227 = vadd.f32 0.0, %v4226
        %v4228 = vpop.f32.mrb[0].mxu0
        %v4229 = vpop.f32.mrb[0].mxu0
        %v4230 = vadd.f32 0.0, %v4229
        %v4231 = vpop.f32.mrb[0].mxu0
        %4232 = vmatprep.mubr.bf16.mxu0 %v3765
        %4233 = vmatmul.mubr.bf16.gmra.mrb[0].mxu0 %v3762
        %v4234 = vpop.f32.mrb[0].mxu0
        %v4235 = vadd.f32 0.0, %v4234
        %v4236 = vpop.f32.mrb[0].mxu0
        %v4237 = vpop.f32.mrb[0].mxu0
        %v4238 = vadd.f32 0.0, %v4237
        %v4239 = vpop.f32.mrb[0].mxu0
        %4240 = vmatprep.mubr.bf16.mxu0 %v3777
        %4241 = vmatmul.mubr.bf16.gmra.mrb[0].mxu0 %v3774
        %v4242 = vpop.f32.mrb[0].mxu0
        %v4243 = vadd.f32 0.0, %v4242
        %v4244 = vpop.f32.mrb[0].mxu0
        %v4245 = vpop.f32.mrb[0].mxu0
        %v4246 = vadd.f32 0.0, %v4245
        %v4247 = vpop.f32.mrb[0].mxu0
        %4248 = vmatprep.mubr.bf16.mxu0 %v3789
        %4249 = vmatmul.mubr.bf16.gmra.mrb[0].mxu0 %v3786
        %v4250 = vpop.f32.mrb[0].mxu0
        %v4251 = vadd.f32 0.0, %v4250
        %v4252 = vpop.f32.mrb[0].mxu0
        %v4253 = vpop.f32.mrb[0].mxu0
        %v4254 = vadd.f32 0.0, %v4253
        %v4255 = vpop.f32.mrb[0].mxu0
        %4256 = vmatprep.mubr.bf16.mxu0 %v3801
        %4257 = vmatmul.mubr.bf16.gmra.mrb[0].mxu0 %v3798
        %v4258 = vpop.f32.mrb[0].mxu0
        %v4259 = vadd.f32 0.0, %v4258
        %v4260 = vpop.f32.mrb[0].mxu0
        %v4261 = vpop.f32.mrb[0].mxu0
        %v4262 = vadd.f32 0.0, %v4261
        %v4263 = vpop.f32.mrb[0].mxu0
        %4264 = vmatprep.mubr.bf16.mxu0 %v3813
        %4265 = vmatmul.mubr.bf16.gmra.mrb[0].mxu0 %v3810
        %v4266 = vpop.f32.mrb[0].mxu0
        %v4267 = vadd.f32 0.0, %v4266
        %v4268 = vpop.f32.mrb[0].mxu0
        %v4269 = vpop.f32.mrb[0].mxu0
        %v4270 = vadd.f32 0.0, %v4269
        %v4271 = vpop.f32.mrb[0].mxu0
        %4272 = vmatprep.mubr.bf16.mxu0 %v3825
        %4273 = vmatmul.mubr.bf16.gmra.mrb[0].mxu0 %v3822
        %v4274 = vpop.f32.mrb[0].mxu0
        %v4275 = vadd.f32 0.0, %v4274
        %v4276 = vpop.f32.mrb[0].mxu0
        %v4277 = vpop.f32.mrb[0].mxu0
        %v4278 = vadd.f32 0.0, %v4277
        %v4279 = vpop.f32.mrb[0].mxu0
        %4280 = vdwg.mxu0
        %4281 = vmatprep.subr.bf16.mxu0 0
        %4282 = vmatpush1.bf16.msra.mxu0 %v2741
        %4283 = vmatprep.subr.bf16.mxu0 0
        %4284 = vmatpush1.bf16.msra.mxu0 %v2742
        %4285 = vmatprep.subr.bf16.mxu0 0
        %4286 = vmatpush1.bf16.msra.mxu0 %v2743
        %4287 = vmatprep.subr.bf16.mxu0 0
        %4288 = vmatpush1.bf16.msra.mxu0 %v2744
        %4289 = vmatprep.subr.bf16.mxu0 0
        %4290 = vmatpush1.bf16.msra.mxu0 %v2745
        %4291 = vmatprep.subr.bf16.mxu0 0
        %4292 = vmatpush1.bf16.msra.mxu0 %v2746
        %4293 = vmatprep.subr.bf16.mxu0 0
        %4294 = vmatpush1.bf16.msra.mxu0 %v2747
        %4295 = vmatprep.subr.bf16.mxu0 0
        %4296 = vmatpush1.bf16.msra.mxu0 %v2748
        %4297 = vmatprep.subr.bf16.mxu0 0
        %4298 = vmatpush1.bf16.msra.mxu0 %v2749
        %4299 = vmatprep.subr.bf16.mxu0 0
        %4300 = vmatpush1.bf16.msra.mxu0 %v2750
        %4301 = vmatprep.subr.bf16.mxu0 0
        %4302 = vmatpush1.bf16.msra.mxu0 %v2751
        %4303 = vmatprep.subr.bf16.mxu0 0
        %4304 = vmatpush1.bf16.msra.mxu0 %v2752
        %4305 = vmatprep.subr.bf16.mxu0 0
        %4306 = vmatpush1.bf16.msra.mxu0 %v2753
        %4307 = vmatprep.subr.bf16.mxu0 0
        %4308 = vmatpush1.bf16.msra.mxu0 %v2754
        %4309 = vmatprep.subr.bf16.mxu0 0
        %4310 = vmatpush1.bf16.msra.mxu0 %v2755
        %4311 = vmatprep.subr.bf16.mxu0 0
        %4312 = vmatpush1.bf16.msra.mxu0 %v2756
        %4313 = vmatprep.mubr.bf16.mxu0 %v3651
        %4314 = vmatmul.mubr.bf16.gmra.mrb[0].mxu0 %v3648
        %v4315 = vpop.f32.mrb[0].mxu0
        %v4316 = vadd.f32 %v4155, %v4315
        %v4317 = vpop.f32.mrb[0].mxu0
        %v4318 = vpop.f32.mrb[0].mxu0
        %v4319 = vadd.f32 %v4158, %v4318
        %v4320 = vpop.f32.mrb[0].mxu0
        %4321 = vmatprep.mubr.bf16.mxu0 %v3663
        %4322 = vmatmul.mubr.bf16.gmra.mrb[0].mxu0 %v3660
        %v4323 = vpop.f32.mrb[0].mxu0
        %v4324 = vadd.f32 %v4163, %v4323
        %v4325 = vpop.f32.mrb[0].mxu0
        %v4326 = vpop.f32.mrb[0].mxu0
        %v4327 = vadd.f32 %v4166, %v4326
        %v4328 = vpop.f32.mrb[0].mxu0
        %4329 = vmatprep.mubr.bf16.mxu0 %v3675
        %4330 = vmatmul.mubr.bf16.gmra.mrb[0].mxu0 %v3672
        %v4331 = vpop.f32.mrb[0].mxu0
        %v4332 = vadd.f32 %v4171, %v4331
        %v4333 = vpop.f32.mrb[0].mxu0
        %v4334 = vpop.f32.mrb[0].mxu0
        %v4335 = vadd.f32 %v4174, %v4334
        %v4336 = vpop.f32.mrb[0].mxu0
        %4337 = vmatprep.mubr.bf16.mxu0 %v3687
        %4338 = vmatmul.mubr.bf16.gmra.mrb[0].mxu0 %v3684
        %v4339 = vpop.f32.mrb[0].mxu0
        %v4340 = vadd.f32 %v4179, %v4339
        %v4341 = vpop.f32.mrb[0].mxu0
        %v4342 = vpop.f32.mrb[0].mxu0
        %v4343 = vadd.f32 %v4182, %v4342
        %v4344 = vpop.f32.mrb[0].mxu0
        %4345 = vmatprep.mubr.bf16.mxu0 %v3699
        %4346 = vmatmul.mubr.bf16.gmra.mrb[0].mxu0 %v3696
        %v4347 = vpop.f32.mrb[0].mxu0
        %v4348 = vadd.f32 %v4187, %v4347
        %v4349 = vpop.f32.mrb[0].mxu0
        %v4350 = vpop.f32.mrb[0].mxu0
        %v4351 = vadd.f32 %v4190, %v4350
        %v4352 = vpop.f32.mrb[0].mxu0
        %4353 = vmatprep.mubr.bf16.mxu0 %v3711
        %4354 = vmatmul.mubr.bf16.gmra.mrb[0].mxu0 %v3708
        %v4355 = vpop.f32.mrb[0].mxu0
        %v4356 = vadd.f32 %v4195, %v4355
        %v4357 = vpop.f32.mrb[0].mxu0
        %v4358 = vpop.f32.mrb[0].mxu0
        %v4359 = vadd.f32 %v4198, %v4358
        %v4360 = vpop.f32.mrb[0].mxu0
        %4361 = vmatprep.mubr.bf16.mxu0 %v3723
        %4362 = vmatmul.mubr.bf16.gmra.mrb[0].mxu0 %v3720
        %v4363 = vpop.f32.mrb[0].mxu0
        %v4364 = vadd.f32 %v4203, %v4363
        %v4365 = vpop.f32.mrb[0].mxu0
        %v4366 = vpop.f32.mrb[0].mxu0
        %v4367 = vadd.f32 %v4206, %v4366
        %v4368 = vpop.f32.mrb[0].mxu0
        %4369 = vmatprep.mubr.bf16.mxu0 %v3735
        %4370 = vmatmul.mubr.bf16.gmra.mrb[0].mxu0 %v3732
        %v4371 = vpop.f32.mrb[0].mxu0
        %v4372 = vadd.f32 %v4211, %v4371
        %v4373 = vpop.f32.mrb[0].mxu0
        %v4374 = vpop.f32.mrb[0].mxu0
        %v4375 = vadd.f32 %v4214, %v4374
        %v4376 = vpop.f32.mrb[0].mxu0
        %4377 = vmatprep.mubr.bf16.mxu0 %v3747
        %4378 = vmatmul.mubr.bf16.gmra.mrb[0].mxu0 %v3744
        %v4379 = vpop.f32.mrb[0].mxu0
        %v4380 = vadd.f32 %v4219, %v4379
        %v4381 = vpop.f32.mrb[0].mxu0
        %v4382 = vpop.f32.mrb[0].mxu0
        %v4383 = vadd.f32 %v4222, %v4382
        %v4384 = vpop.f32.mrb[0].mxu0
        %4385 = vmatprep.mubr.bf16.mxu0 %v3759
        %4386 = vmatmul.mubr.bf16.gmra.mrb[0].mxu0 %v3756
        %v4387 = vpop.f32.mrb[0].mxu0
        %v4388 = vadd.f32 %v4227, %v4387
        %v4389 = vpop.f32.mrb[0].mxu0
        %v4390 = vpop.f32.mrb[0].mxu0
        %v4391 = vadd.f32 %v4230, %v4390
        %v4392 = vpop.f32.mrb[0].mxu0
        %4393 = vmatprep.mubr.bf16.mxu0 %v3771
        %4394 = vmatmul.mubr.bf16.gmra.mrb[0].mxu0 %v3768
        %v4395 = vpop.f32.mrb[0].mxu0
        %v4396 = vadd.f32 %v4235, %v4395
        %v4397 = vpop.f32.mrb[0].mxu0
        %v4398 = vpop.f32.mrb[0].mxu0
        %v4399 = vadd.f32 %v4238, %v4398
        %v4400 = vpop.f32.mrb[0].mxu0
        %4401 = vmatprep.mubr.bf16.mxu0 %v3783
        %4402 = vmatmul.mubr.bf16.gmra.mrb[0].mxu0 %v3780
        %v4403 = vpop.f32.mrb[0].mxu0
        %v4404 = vadd.f32 %v4243, %v4403
        %v4405 = vpop.f32.mrb[0].mxu0
        %v4406 = vpop.f32.mrb[0].mxu0
        %v4407 = vadd.f32 %v4246, %v4406
        %v4408 = vpop.f32.mrb[0].mxu0
        %4409 = vmatprep.mubr.bf16.mxu0 %v3795
        %4410 = vmatmul.mubr.bf16.gmra.mrb[0].mxu0 %v3792
        %v4411 = vpop.f32.mrb[0].mxu0
        %v4412 = vadd.f32 %v4251, %v4411
        %v4413 = vpop.f32.mrb[0].mxu0
        %v4414 = vpop.f32.mrb[0].mxu0
        %v4415 = vadd.f32 %v4254, %v4414
        %v4416 = vpop.f32.mrb[0].mxu0
        %4417 = vmatprep.mubr.bf16.mxu0 %v3807
        %4418 = vmatmul.mubr.bf16.gmra.mrb[0].mxu0 %v3804
        %v4419 = vpop.f32.mrb[0].mxu0
        %v4420 = vadd.f32 %v4259, %v4419
        %v4421 = vpop.f32.mrb[0].mxu0
        %v4422 = vpop.f32.mrb[0].mxu0
        %v4423 = vadd.f32 %v4262, %v4422
        %v4424 = vpop.f32.mrb[0].mxu0
        %4425 = vmatprep.mubr.bf16.mxu0 %v3819
        %4426 = vmatmul.mubr.bf16.gmra.mrb[0].mxu0 %v3816
        %v4427 = vpop.f32.mrb[0].mxu0
        %v4428 = vadd.f32 %v4267, %v4427
        %v4429 = vpop.f32.mrb[0].mxu0
        %v4430 = vpop.f32.mrb[0].mxu0
        %v4431 = vadd.f32 %v4270, %v4430
        %v4432 = vpop.f32.mrb[0].mxu0
        %4433 = vmatprep.mubr.bf16.mxu0 %v3831
        %4434 = vmatmul.mubr.bf16.gmra.mrb[0].mxu0 %v3828
        %v4435 = vpop.f32.mrb[0].mxu0
        %v4436 = vadd.f32 %v4275, %v4435
        %v4437 = vpop.f32.mrb[0].mxu0
        %v4438 = vpop.f32.mrb[0].mxu0
        %v4439 = vadd.f32 %v4278, %v4438
        %v4440 = vpop.f32.mrb[0].mxu0
        %4441 = vdwg.mxu0
        %v4442 = vrcp.pop %v3964
        %v4443 = vrcp.pop %v3969
        %v4444 = vrcp.pop %v3974
        %v4445 = vrcp.pop %v3979
        %v4446 = vrcp.pop %v3984
        %v4447 = vrcp.pop %v3989
        %v4448 = vrcp.pop %v3994
        %v4449 = vrcp.pop %v3999
        %v4450 = vrcp.pop %v4004
        %v4451 = vrcp.pop %v4009
        %v4452 = vrcp.pop %v4014
        %v4453 = vrcp.pop %v4019
        %v4454 = vrcp.pop %v4024
        %v4455 = vrcp.pop %v4029
        %v4456 = vrcp.pop %v4034
        %v4457 = vrcp.pop %v4039
        %v4458 = vrcp.pop %v4044
        %v4459 = vrcp.pop %v4049
        %v4460 = vrcp.pop %v4054
        %v4461 = vrcp.pop %v4059
        %v4462 = vrcp.pop %v4064
        %v4463 = vrcp.pop %v4069
        %v4464 = vrcp.pop %v4074
        %v4465 = vrcp.pop %v4079
        %v4466 = vrcp.pop %v4084
        %v4467 = vrcp.pop %v4089
        %v4468 = vrcp.pop %v4094
        %v4469 = vrcp.pop %v4099
        %v4470 = vrcp.pop %v4104
        %v4471 = vrcp.pop %v4109
        %v4472 = vrcp.pop %v4114
        %v4473 = vrcp.pop %v4119
        %v4474 = vmul.f32 %v4316, %v4442
        %v4475 = vmul.f32 %v4319, %v4443
        %v4476 = vmul.f32 %v4324, %v4444
        %v4477 = vmul.f32 %v4327, %v4445
        %v4478 = vmul.f32 %v4332, %v4446
        %v4479 = vmul.f32 %v4335, %v4447
        %v4480 = vmul.f32 %v4340, %v4448
        %v4481 = vmul.f32 %v4343, %v4449
        %v4482 = vmul.f32 %v4348, %v4450
        %v4483 = vmul.f32 %v4351, %v4451
        %v4484 = vmul.f32 %v4356, %v4452
        %v4485 = vmul.f32 %v4359, %v4453
        %v4486 = vmul.f32 %v4364, %v4454
        %v4487 = vmul.f32 %v4367, %v4455
        %v4488 = vmul.f32 %v4372, %v4456
        %v4489 = vmul.f32 %v4375, %v4457
        %v4490 = vmul.f32 %v4380, %v4458
        %v4491 = vmul.f32 %v4383, %v4459
        %v4492 = vmul.f32 %v4388, %v4460
        %v4493 = vmul.f32 %v4391, %v4461
        %v4494 = vmul.f32 %v4396, %v4462
        %v4495 = vmul.f32 %v4399, %v4463
        %v4496 = vmul.f32 %v4404, %v4464
        %v4497 = vmul.f32 %v4407, %v4465
        %v4498 = vmul.f32 %v4412, %v4466
        %v4499 = vmul.f32 %v4415, %v4467
        %v4500 = vmul.f32 %v4420, %v4468
        %v4501 = vmul.f32 %v4423, %v4469
        %v4502 = vmul.f32 %v4428, %v4470
        %v4503 = vmul.f32 %v4431, %v4471
        %v4504 = vmul.f32 %v4436, %v4472
        %v4505 = vmul.f32 %v4439, %v4473
        %v4506 = vpack.c.bf16 %v4475, %v4474
        %v4507 = vpack.c.bf16 %v4477, %v4476
        %v4508 = vpack.c.bf16 %v4479, %v4478
        %v4509 = vpack.c.bf16 %v4481, %v4480
        %v4510 = vpack.c.bf16 %v4483, %v4482
        %v4511 = vpack.c.bf16 %v4485, %v4484
        %v4512 = vpack.c.bf16 %v4487, %v4486
        %v4513 = vpack.c.bf16 %v4489, %v4488
        %v4514 = vpack.c.bf16 %v4491, %v4490
        %v4515 = vpack.c.bf16 %v4493, %v4492
        %v4516 = vpack.c.bf16 %v4495, %v4494
        %v4517 = vpack.c.bf16 %v4497, %v4496
        %v4518 = vpack.c.bf16 %v4499, %v4498
        %v4519 = vpack.c.bf16 %v4501, %v4500
        %v4520 = vpack.c.bf16 %v4503, %v4502
        %v4521 = vpack.c.bf16 %v4505, %v4504
        %4538 = vrot.lane.b32.xlu0 %v2661, 64
        %v4539 = vpop.permute.xlu0 %4538
        %4540 = vrot.lane.b32.xlu0 %v2663, 64
        %v4541 = vpop.permute.xlu0 %4540
        %4542 = vrot.lane.b32.xlu0 %v2665, 64
        %v4543 = vpop.permute.xlu0 %4542
        %4544 = vrot.lane.b32.xlu0 %v2667, 64
        %v4545 = vpop.permute.xlu0 %4544
        %4546 = vrot.lane.b32.xlu0 %v2669, 64
        %v4547 = vpop.permute.xlu0 %4546
        %4548 = vrot.lane.b32.xlu0 %v2671, 64
        %v4549 = vpop.permute.xlu0 %4548
        %4550 = vrot.lane.b32.xlu0 %v2673, 64
        %v4551 = vpop.permute.xlu0 %4550
        %4552 = vrot.lane.b32.xlu0 %v2675, 64
        %v4553 = vpop.permute.xlu0 %4552
        %4554 = vrot.lane.b32.xlu0 %v2677, 64
        %v4555 = vpop.permute.xlu0 %4554
        %4556 = vrot.lane.b32.xlu0 %v2679, 64
        %v4557 = vpop.permute.xlu0 %4556
        %4558 = vrot.lane.b32.xlu0 %v2681, 64
        %v4559 = vpop.permute.xlu0 %4558
        %4560 = vrot.lane.b32.xlu0 %v2683, 64
        %v4561 = vpop.permute.xlu0 %4560
        %4562 = vrot.lane.b32.xlu0 %v2685, 64
        %v4563 = vpop.permute.xlu0 %4562
        %4564 = vrot.lane.b32.xlu0 %v2687, 64
        %v4565 = vpop.permute.xlu0 %4564
        %4566 = vrot.lane.b32.xlu0 %v2689, 64
        %v4567 = vpop.permute.xlu0 %4566
        %4568 = vrot.lane.b32.xlu0 %v2691, 64
        %v4569 = vpop.permute.xlu0 %4568
        %4602 = vrot.lane.b32.xlu0 %v2693, 64
        %v4603 = vpop.permute.xlu0 %4602
        %4604 = vrot.lane.b32.xlu0 %v2694, 64
        %v4605 = vpop.permute.xlu0 %4604
        %4606 = vrot.lane.b32.xlu0 %v2695, 64
        %v4607 = vpop.permute.xlu0 %4606
        %4608 = vrot.lane.b32.xlu0 %v2696, 64
        %v4609 = vpop.permute.xlu0 %4608
        %4610 = vrot.lane.b32.xlu0 %v2697, 64
        %v4611 = vpop.permute.xlu0 %4610
        %4612 = vrot.lane.b32.xlu0 %v2698, 64
        %v4613 = vpop.permute.xlu0 %4612
        %4614 = vrot.lane.b32.xlu0 %v2699, 64
        %v4615 = vpop.permute.xlu0 %4614
        %4616 = vrot.lane.b32.xlu0 %v2700, 64
        %v4617 = vpop.permute.xlu0 %4616
        %4618 = vrot.lane.b32.xlu0 %v2701, 64
        %v4619 = vpop.permute.xlu0 %4618
        %4620 = vrot.lane.b32.xlu0 %v2702, 64
        %v4621 = vpop.permute.xlu0 %4620
        %4622 = vrot.lane.b32.xlu0 %v2703, 64
        %v4623 = vpop.permute.xlu0 %4622
        %4624 = vrot.lane.b32.xlu0 %v2704, 64
        %v4625 = vpop.permute.xlu0 %4624
        %4626 = vrot.lane.b32.xlu0 %v2705, 64
        %v4627 = vpop.permute.xlu0 %4626
        %4628 = vrot.lane.b32.xlu0 %v2706, 64
        %v4629 = vpop.permute.xlu0 %4628
        %4630 = vrot.lane.b32.xlu0 %v2707, 64
        %v4631 = vpop.permute.xlu0 %4630
        %4632 = vrot.lane.b32.xlu0 %v2708, 64
        %v4633 = vpop.permute.xlu0 %4632
        %4634 = vrot.lane.b32.xlu0 %v2709, 64
        %v4635 = vpop.permute.xlu0 %4634
        %4636 = vrot.lane.b32.xlu0 %v2710, 64
        %v4637 = vpop.permute.xlu0 %4636
        %4638 = vrot.lane.b32.xlu0 %v2711, 64
        %v4639 = vpop.permute.xlu0 %4638
        %4640 = vrot.lane.b32.xlu0 %v2712, 64
        %v4641 = vpop.permute.xlu0 %4640
        %4642 = vrot.lane.b32.xlu0 %v2713, 64
        %v4643 = vpop.permute.xlu0 %4642
        %4644 = vrot.lane.b32.xlu0 %v2714, 64
        %v4645 = vpop.permute.xlu0 %4644
        %4646 = vrot.lane.b32.xlu0 %v2715, 64
        %v4647 = vpop.permute.xlu0 %4646
        %4648 = vrot.lane.b32.xlu0 %v2716, 64
        %v4649 = vpop.permute.xlu0 %4648
        %4650 = vrot.lane.b32.xlu0 %v2717, 64
        %v4651 = vpop.permute.xlu0 %4650
        %4652 = vrot.lane.b32.xlu0 %v2718, 64
        %v4653 = vpop.permute.xlu0 %4652
        %4654 = vrot.lane.b32.xlu0 %v2719, 64
        %v4655 = vpop.permute.xlu0 %4654
        %4656 = vrot.lane.b32.xlu0 %v2720, 64
        %v4657 = vpop.permute.xlu0 %4656
        %4658 = vrot.lane.b32.xlu0 %v2721, 64
        %v4659 = vpop.permute.xlu0 %4658
        %4660 = vrot.lane.b32.xlu0 %v2722, 64
        %v4661 = vpop.permute.xlu0 %4660
        %4662 = vrot.lane.b32.xlu0 %v2723, 64
        %v4663 = vpop.permute.xlu0 %4662
        %4664 = vrot.lane.b32.xlu0 %v2724, 64
        %v4665 = vpop.permute.xlu0 %4664
        %v4667 = vsel %vm2757, %v4539, 0
        %v4670 = vsel %vm2757, %v4541, 0
        %v4673 = vsel %vm2757, %v4543, 0
        %v4676 = vsel %vm2757, %v4545, 0
        %v4679 = vsel %vm2757, %v4547, 0
        %v4682 = vsel %vm2757, %v4549, 0
        %v4685 = vsel %vm2757, %v4551, 0
        %v4688 = vsel %vm2757, %v4553, 0
        %v4691 = vsel %vm2757, %v4555, 0
        %v4694 = vsel %vm2757, %v4557, 0
        %v4697 = vsel %vm2757, %v4559, 0
        %v4700 = vsel %vm2757, %v4561, 0
        %v4703 = vsel %vm2757, %v4563, 0
        %v4706 = vsel %vm2757, %v4565, 0
        %v4709 = vsel %vm2757, %v4567, 0
        %v4712 = vsel %vm2757, %v4569, 0
        %v4715 = vsel %vm2757, %v4603, 0
        %v4718 = vsel %vm2757, %v4605, 0
        %v4721 = vsel %vm2757, %v4607, 0
        %v4724 = vsel %vm2757, %v4609, 0
        %v4727 = vsel %vm2757, %v4611, 0
        %v4730 = vsel %vm2757, %v4613, 0
        %v4733 = vsel %vm2757, %v4615, 0
        %v4736 = vsel %vm2757, %v4617, 0
        %v4739 = vsel %vm2757, %v4619, 0
        %v4742 = vsel %vm2757, %v4621, 0
        %v4745 = vsel %vm2757, %v4623, 0
        %v4748 = vsel %vm2757, %v4625, 0
        %v4751 = vsel %vm2757, %v4627, 0
        %v4754 = vsel %vm2757, %v4629, 0
        %v4757 = vsel %vm2757, %v4631, 0
        %v4760 = vsel %vm2757, %v4633, 0
        %v4763 = vsel %vm2757, %v4635, 0
        %v4766 = vsel %vm2757, %v4637, 0
        %v4769 = vsel %vm2757, %v4639, 0
        %v4772 = vsel %vm2757, %v4641, 0
        %v4775 = vsel %vm2757, %v4643, 0
        %v4778 = vsel %vm2757, %v4645, 0
        %v4781 = vsel %vm2757, %v4647, 0
        %v4784 = vsel %vm2757, %v4649, 0
        %v4787 = vsel %vm2757, %v4651, 0
        %v4790 = vsel %vm2757, %v4653, 0
        %v4793 = vsel %vm2757, %v4655, 0
        %v4796 = vsel %vm2757, %v4657, 0
        %v4799 = vsel %vm2757, %v4659, 0
        %v4802 = vsel %vm2757, %v4661, 0
        %v4805 = vsel %vm2757, %v4663, 0
        %v4808 = vsel %vm2757, %v4665, 0
        %4810 = vmatprep.subr.bf16.mxu0 0
        %4811 = vmatpush1.bf16.xpose.msra.mxu0 %v4715
        %4812 = vmatprep.subr.bf16.mxu0 0
        %4813 = vmatpush1.bf16.xpose.msra.mxu0 %v4718
        %4814 = vmatprep.subr.bf16.mxu0 0
        %4815 = vmatpush1.bf16.xpose.msra.mxu0 %v4721
        %4816 = vmatprep.subr.bf16.mxu0 0
        %4817 = vmatpush1.bf16.xpose.msra.mxu0 %v4724
        %4818 = vmatprep.subr.bf16.mxu0 0
        %4819 = vmatpush1.bf16.xpose.msra.mxu0 %v4727
        %4820 = vmatprep.subr.bf16.mxu0 0
        %4821 = vmatpush1.bf16.xpose.msra.mxu0 %v4730
        %4822 = vmatprep.subr.bf16.mxu0 0
        %4823 = vmatpush1.bf16.xpose.msra.mxu0 %v4733
        %4824 = vmatprep.subr.bf16.mxu0 0
        %4825 = vmatpush1.bf16.xpose.msra.mxu0 %v4736
        %4826 = vmatprep.subr.bf16.mxu0 0
        %4827 = vmatpush1.bf16.xpose.msra.mxu0 %v4739
        %4828 = vmatprep.subr.bf16.mxu0 0
        %4829 = vmatpush1.bf16.xpose.msra.mxu0 %v4742
        %4830 = vmatprep.subr.bf16.mxu0 0
        %4831 = vmatpush1.bf16.xpose.msra.mxu0 %v4745
        %4832 = vmatprep.subr.bf16.mxu0 0
        %4833 = vmatpush1.bf16.xpose.msra.mxu0 %v4748
        %4834 = vmatprep.subr.bf16.mxu0 0
        %4835 = vmatpush1.bf16.xpose.msra.mxu0 %v4751
        %4836 = vmatprep.subr.bf16.mxu0 0
        %4837 = vmatpush1.bf16.xpose.msra.mxu0 %v4754
        %4838 = vmatprep.subr.bf16.mxu0 0
        %4839 = vmatpush1.bf16.xpose.msra.mxu0 %v4757
        %4840 = vmatprep.subr.bf16.mxu0 0
        %4841 = vmatpush1.bf16.xpose.msra.mxu0 %v4760
        %4842 = vmatprep.mubr.bf16.mxu0 0
        %4843 = vmatmul.mubr.bf16.gmra.mrb[0].mxu0 %v4667
        %v4844 = vpop.f32.mrb[0].mxu0
        %v4845 = vadd.f32 0.0, %v4844
        %v4846 = vpop.f32.mrb[0].mxu0
        %v4847 = vadd.f32 0.0, %v4846
        %v4848 = vpop.f32.mrb[0].mxu0
        %v4849 = vadd.f32 0.0, %v4848
        %v4850 = vpop.f32.mrb[0].mxu0
        %v4851 = vadd.f32 0.0, %v4850
        %4852 = vmatprep.mubr.bf16.mxu0 0
        %4853 = vmatmul.mubr.bf16.gmra.mrb[0].mxu0 %v4670
        %v4854 = vpop.f32.mrb[0].mxu0
        %v4855 = vadd.f32 0.0, %v4854
        %v4856 = vpop.f32.mrb[0].mxu0
        %v4857 = vadd.f32 0.0, %v4856
        %v4858 = vpop.f32.mrb[0].mxu0
        %v4859 = vadd.f32 0.0, %v4858
        %v4860 = vpop.f32.mrb[0].mxu0
        %v4861 = vadd.f32 0.0, %v4860
        %4862 = vmatprep.mubr.bf16.mxu0 0
        %4863 = vmatmul.mubr.bf16.gmra.mrb[0].mxu0 %v4673
        %v4864 = vpop.f32.mrb[0].mxu0
        %v4865 = vadd.f32 0.0, %v4864
        %v4866 = vpop.f32.mrb[0].mxu0
        %v4867 = vadd.f32 0.0, %v4866
        %v4868 = vpop.f32.mrb[0].mxu0
        %v4869 = vadd.f32 0.0, %v4868
        %v4870 = vpop.f32.mrb[0].mxu0
        %v4871 = vadd.f32 0.0, %v4870
        %4872 = vmatprep.mubr.bf16.mxu0 0
        %4873 = vmatmul.mubr.bf16.gmra.mrb[0].mxu0 %v4676
        %v4874 = vpop.f32.mrb[0].mxu0
        %v4875 = vadd.f32 0.0, %v4874
        %v4876 = vpop.f32.mrb[0].mxu0
        %v4877 = vadd.f32 0.0, %v4876
        %v4878 = vpop.f32.mrb[0].mxu0
        %v4879 = vadd.f32 0.0, %v4878
        %v4880 = vpop.f32.mrb[0].mxu0
        %v4881 = vadd.f32 0.0, %v4880
        %4882 = vmatprep.mubr.bf16.mxu0 0
        %4883 = vmatmul.mubr.bf16.gmra.mrb[0].mxu0 %v4679
        %v4884 = vpop.f32.mrb[0].mxu0
        %v4885 = vadd.f32 0.0, %v4884
        %v4886 = vpop.f32.mrb[0].mxu0
        %v4887 = vadd.f32 0.0, %v4886
        %v4888 = vpop.f32.mrb[0].mxu0
        %v4889 = vadd.f32 0.0, %v4888
        %v4890 = vpop.f32.mrb[0].mxu0
        %v4891 = vadd.f32 0.0, %v4890
        %4892 = vmatprep.mubr.bf16.mxu0 0
        %4893 = vmatmul.mubr.bf16.gmra.mrb[0].mxu0 %v4682
        %v4894 = vpop.f32.mrb[0].mxu0
        %v4895 = vadd.f32 0.0, %v4894
        %v4896 = vpop.f32.mrb[0].mxu0
        %v4897 = vadd.f32 0.0, %v4896
        %v4898 = vpop.f32.mrb[0].mxu0
        %v4899 = vadd.f32 0.0, %v4898
        %v4900 = vpop.f32.mrb[0].mxu0
        %v4901 = vadd.f32 0.0, %v4900
        %4902 = vmatprep.mubr.bf16.mxu0 0
        %4903 = vmatmul.mubr.bf16.gmra.mrb[0].mxu0 %v4685
        %v4904 = vpop.f32.mrb[0].mxu0
        %v4905 = vadd.f32 0.0, %v4904
        %v4906 = vpop.f32.mrb[0].mxu0
        %v4907 = vadd.f32 0.0, %v4906
        %v4908 = vpop.f32.mrb[0].mxu0
        %v4909 = vadd.f32 0.0, %v4908
        %v4910 = vpop.f32.mrb[0].mxu0
        %v4911 = vadd.f32 0.0, %v4910
        %4912 = vmatprep.mubr.bf16.mxu0 0
        %4913 = vmatmul.mubr.bf16.gmra.mrb[0].mxu0 %v4688
        %v4914 = vpop.f32.mrb[0].mxu0
        %v4915 = vadd.f32 0.0, %v4914
        %v4916 = vpop.f32.mrb[0].mxu0
        %v4917 = vadd.f32 0.0, %v4916
        %v4918 = vpop.f32.mrb[0].mxu0
        %v4919 = vadd.f32 0.0, %v4918
        %v4920 = vpop.f32.mrb[0].mxu0
        %v4921 = vadd.f32 0.0, %v4920
        %4922 = vmatprep.mubr.bf16.mxu0 0
        %4923 = vmatmul.mubr.bf16.gmra.mrb[0].mxu0 %v4691
        %v4924 = vpop.f32.mrb[0].mxu0
        %v4925 = vadd.f32 0.0, %v4924
        %v4926 = vpop.f32.mrb[0].mxu0
        %v4927 = vadd.f32 0.0, %v4926
        %v4928 = vpop.f32.mrb[0].mxu0
        %v4929 = vadd.f32 0.0, %v4928
        %v4930 = vpop.f32.mrb[0].mxu0
        %v4931 = vadd.f32 0.0, %v4930
        %4932 = vmatprep.mubr.bf16.mxu0 0
        %4933 = vmatmul.mubr.bf16.gmra.mrb[0].mxu0 %v4694
        %v4934 = vpop.f32.mrb[0].mxu0
        %v4935 = vadd.f32 0.0, %v4934
        %v4936 = vpop.f32.mrb[0].mxu0
        %v4937 = vadd.f32 0.0, %v4936
        %v4938 = vpop.f32.mrb[0].mxu0
        %v4939 = vadd.f32 0.0, %v4938
        %v4940 = vpop.f32.mrb[0].mxu0
        %v4941 = vadd.f32 0.0, %v4940
        %4942 = vmatprep.mubr.bf16.mxu0 0
        %4943 = vmatmul.mubr.bf16.gmra.mrb[0].mxu0 %v4697
        %v4944 = vpop.f32.mrb[0].mxu0
        %v4945 = vadd.f32 0.0, %v4944
        %v4946 = vpop.f32.mrb[0].mxu0
        %v4947 = vadd.f32 0.0, %v4946
        %v4948 = vpop.f32.mrb[0].mxu0
        %v4949 = vadd.f32 0.0, %v4948
        %v4950 = vpop.f32.mrb[0].mxu0
        %v4951 = vadd.f32 0.0, %v4950
        %4952 = vmatprep.mubr.bf16.mxu0 0
        %4953 = vmatmul.mubr.bf16.gmra.mrb[0].mxu0 %v4700
        %v4954 = vpop.f32.mrb[0].mxu0
        %v4955 = vadd.f32 0.0, %v4954
        %v4956 = vpop.f32.mrb[0].mxu0
        %v4957 = vadd.f32 0.0, %v4956
        %v4958 = vpop.f32.mrb[0].mxu0
        %v4959 = vadd.f32 0.0, %v4958
        %v4960 = vpop.f32.mrb[0].mxu0
        %v4961 = vadd.f32 0.0, %v4960
        %4962 = vmatprep.mubr.bf16.mxu0 0
        %4963 = vmatmul.mubr.bf16.gmra.mrb[0].mxu0 %v4703
        %v4964 = vpop.f32.mrb[0].mxu0
        %v4965 = vadd.f32 0.0, %v4964
        %v4966 = vpop.f32.mrb[0].mxu0
        %v4967 = vadd.f32 0.0, %v4966
        %v4968 = vpop.f32.mrb[0].mxu0
        %v4969 = vadd.f32 0.0, %v4968
        %v4970 = vpop.f32.mrb[0].mxu0
        %v4971 = vadd.f32 0.0, %v4970
        %4972 = vmatprep.mubr.bf16.mxu0 0
        %4973 = vmatmul.mubr.bf16.gmra.mrb[0].mxu0 %v4706
        %v4974 = vpop.f32.mrb[0].mxu0
        %v4975 = vadd.f32 0.0, %v4974
        %v4976 = vpop.f32.mrb[0].mxu0
        %v4977 = vadd.f32 0.0, %v4976
        %v4978 = vpop.f32.mrb[0].mxu0
        %v4979 = vadd.f32 0.0, %v4978
        %v4980 = vpop.f32.mrb[0].mxu0
        %v4981 = vadd.f32 0.0, %v4980
        %4982 = vmatprep.mubr.bf16.mxu0 0
        %4983 = vmatmul.mubr.bf16.gmra.mrb[0].mxu0 %v4709
        %v4984 = vpop.f32.mrb[0].mxu0
        %v4985 = vadd.f32 0.0, %v4984
        %v4986 = vpop.f32.mrb[0].mxu0
        %v4987 = vadd.f32 0.0, %v4986
        %v4988 = vpop.f32.mrb[0].mxu0
        %v4989 = vadd.f32 0.0, %v4988
        %v4990 = vpop.f32.mrb[0].mxu0
        %v4991 = vadd.f32 0.0, %v4990
        %4992 = vmatprep.mubr.bf16.mxu0 0
        %4993 = vmatmul.mubr.bf16.gmra.mrb[0].mxu0 %v4712
        %v4994 = vpop.f32.mrb[0].mxu0
        %v4995 = vadd.f32 0.0, %v4994
        %v4996 = vpop.f32.mrb[0].mxu0
        %v4997 = vadd.f32 0.0, %v4996
        %v4998 = vpop.f32.mrb[0].mxu0
        %v4999 = vadd.f32 0.0, %v4998
        %v5000 = vpop.f32.mrb[0].mxu0
        %v5001 = vadd.f32 0.0, %v5000
        %5002 = vdwg.mxu0
        %5003 = vmatprep.subr.bf16.mxu0 0
        %5004 = vmatpush1.bf16.xpose.msra.mxu0 %v4763
        %5005 = vmatprep.subr.bf16.mxu0 0
        %5006 = vmatpush1.bf16.xpose.msra.mxu0 %v4766
        %5007 = vmatprep.subr.bf16.mxu0 0
        %5008 = vmatpush1.bf16.xpose.msra.mxu0 %v4769
        %5009 = vmatprep.subr.bf16.mxu0 0
        %5010 = vmatpush1.bf16.xpose.msra.mxu0 %v4772
        %5011 = vmatprep.subr.bf16.mxu0 0
        %5012 = vmatpush1.bf16.xpose.msra.mxu0 %v4775
        %5013 = vmatprep.subr.bf16.mxu0 0
        %5014 = vmatpush1.bf16.xpose.msra.mxu0 %v4778
        %5015 = vmatprep.subr.bf16.mxu0 0
        %5016 = vmatpush1.bf16.xpose.msra.mxu0 %v4781
        %5017 = vmatprep.subr.bf16.mxu0 0
        %5018 = vmatpush1.bf16.xpose.msra.mxu0 %v4784
        %5019 = vmatprep.subr.bf16.mxu0 0
        %5020 = vmatpush1.bf16.xpose.msra.mxu0 %v4787
        %5021 = vmatprep.subr.bf16.mxu0 0
        %5022 = vmatpush1.bf16.xpose.msra.mxu0 %v4790
        %5023 = vmatprep.subr.bf16.mxu0 0
        %5024 = vmatpush1.bf16.xpose.msra.mxu0 %v4793
        %5025 = vmatprep.subr.bf16.mxu0 0
        %5026 = vmatpush1.bf16.xpose.msra.mxu0 %v4796
        %5027 = vmatprep.subr.bf16.mxu0 0
        %5028 = vmatpush1.bf16.xpose.msra.mxu0 %v4799
        %5029 = vmatprep.subr.bf16.mxu0 0
        %5030 = vmatpush1.bf16.xpose.msra.mxu0 %v4802
        %5031 = vmatprep.subr.bf16.mxu0 0
        %5032 = vmatpush1.bf16.xpose.msra.mxu0 %v4805
        %5033 = vmatprep.subr.bf16.mxu0 0
        %5034 = vmatpush1.bf16.xpose.msra.mxu0 %v4808
        %5035 = vmatprep.mubr.bf16.mxu0 0
        %5036 = vmatmul.mubr.bf16.gmra.mrb[0].mxu0 %v4667
        %v5037 = vpop.f32.mrb[0].mxu0
        %v5038 = vadd.f32 0.0, %v5037
        %v5039 = vpop.f32.mrb[0].mxu0
        %v5040 = vadd.f32 0.0, %v5039
        %v5041 = vpop.f32.mrb[0].mxu0
        %v5042 = vadd.f32 0.0, %v5041
        %v5043 = vpop.f32.mrb[0].mxu0
        %v5044 = vadd.f32 0.0, %v5043
        %5045 = vmatprep.mubr.bf16.mxu0 0
        %5046 = vmatmul.mubr.bf16.gmra.mrb[0].mxu0 %v4670
        %v5047 = vpop.f32.mrb[0].mxu0
        %v5048 = vadd.f32 0.0, %v5047
        %v5049 = vpop.f32.mrb[0].mxu0
        %v5050 = vadd.f32 0.0, %v5049
        %v5051 = vpop.f32.mrb[0].mxu0
        %v5052 = vadd.f32 0.0, %v5051
        %v5053 = vpop.f32.mrb[0].mxu0
        %v5054 = vadd.f32 0.0, %v5053
        %5055 = vmatprep.mubr.bf16.mxu0 0
        %5056 = vmatmul.mubr.bf16.gmra.mrb[0].mxu0 %v4673
        %v5057 = vpop.f32.mrb[0].mxu0
        %v5058 = vadd.f32 0.0, %v5057
        %v5059 = vpop.f32.mrb[0].mxu0
        %v5060 = vadd.f32 0.0, %v5059
        %v5061 = vpop.f32.mrb[0].mxu0
        %v5062 = vadd.f32 0.0, %v5061
        %v5063 = vpop.f32.mrb[0].mxu0
        %v5064 = vadd.f32 0.0, %v5063
        %5065 = vmatprep.mubr.bf16.mxu0 0
        %5066 = vmatmul.mubr.bf16.gmra.mrb[0].mxu0 %v4676
        %v5067 = vpop.f32.mrb[0].mxu0
        %v5068 = vadd.f32 0.0, %v5067
        %v5069 = vpop.f32.mrb[0].mxu0
        %v5070 = vadd.f32 0.0, %v5069
        %v5071 = vpop.f32.mrb[0].mxu0
        %v5072 = vadd.f32 0.0, %v5071
        %v5073 = vpop.f32.mrb[0].mxu0
        %v5074 = vadd.f32 0.0, %v5073
        %5075 = vmatprep.mubr.bf16.mxu0 0
        %5076 = vmatmul.mubr.bf16.gmra.mrb[0].mxu0 %v4679
        %v5077 = vpop.f32.mrb[0].mxu0
        %v5078 = vadd.f32 0.0, %v5077
        %v5079 = vpop.f32.mrb[0].mxu0
        %v5080 = vadd.f32 0.0, %v5079
        %v5081 = vpop.f32.mrb[0].mxu0
        %v5082 = vadd.f32 0.0, %v5081
        %v5083 = vpop.f32.mrb[0].mxu0
        %v5084 = vadd.f32 0.0, %v5083
        %5085 = vmatprep.mubr.bf16.mxu0 0
        %5086 = vmatmul.mubr.bf16.gmra.mrb[0].mxu0 %v4682
        %v5087 = vpop.f32.mrb[0].mxu0
        %v5088 = vadd.f32 0.0, %v5087
        %v5089 = vpop.f32.mrb[0].mxu0
        %v5090 = vadd.f32 0.0, %v5089
        %v5091 = vpop.f32.mrb[0].mxu0
        %v5092 = vadd.f32 0.0, %v5091
        %v5093 = vpop.f32.mrb[0].mxu0
        %v5094 = vadd.f32 0.0, %v5093
        %5095 = vmatprep.mubr.bf16.mxu0 0
        %5096 = vmatmul.mubr.bf16.gmra.mrb[0].mxu0 %v4685
        %v5097 = vpop.f32.mrb[0].mxu0
        %v5098 = vadd.f32 0.0, %v5097
        %v5099 = vpop.f32.mrb[0].mxu0
        %v5100 = vadd.f32 0.0, %v5099
        %v5101 = vpop.f32.mrb[0].mxu0
        %v5102 = vadd.f32 0.0, %v5101
        %v5103 = vpop.f32.mrb[0].mxu0
        %v5104 = vadd.f32 0.0, %v5103
        %5105 = vmatprep.mubr.bf16.mxu0 0
        %5106 = vmatmul.mubr.bf16.gmra.mrb[0].mxu0 %v4688
        %v5107 = vpop.f32.mrb[0].mxu0
        %v5108 = vadd.f32 0.0, %v5107
        %v5109 = vpop.f32.mrb[0].mxu0
        %v5110 = vadd.f32 0.0, %v5109
        %v5111 = vpop.f32.mrb[0].mxu0
        %v5112 = vadd.f32 0.0, %v5111
        %v5113 = vpop.f32.mrb[0].mxu0
        %v5114 = vadd.f32 0.0, %v5113
        %5115 = vmatprep.mubr.bf16.mxu0 0
        %5116 = vmatmul.mubr.bf16.gmra.mrb[0].mxu0 %v4691
        %v5117 = vpop.f32.mrb[0].mxu0
        %v5118 = vadd.f32 0.0, %v5117
        %v5119 = vpop.f32.mrb[0].mxu0
        %v5120 = vadd.f32 0.0, %v5119
        %v5121 = vpop.f32.mrb[0].mxu0
        %v5122 = vadd.f32 0.0, %v5121
        %v5123 = vpop.f32.mrb[0].mxu0
        %v5124 = vadd.f32 0.0, %v5123
        %5125 = vmatprep.mubr.bf16.mxu0 0
        %5126 = vmatmul.mubr.bf16.gmra.mrb[0].mxu0 %v4694
        %v5127 = vpop.f32.mrb[0].mxu0
        %v5128 = vadd.f32 0.0, %v5127
        %v5129 = vpop.f32.mrb[0].mxu0
        %v5130 = vadd.f32 0.0, %v5129
        %v5131 = vpop.f32.mrb[0].mxu0
        %v5132 = vadd.f32 0.0, %v5131
        %v5133 = vpop.f32.mrb[0].mxu0
        %v5134 = vadd.f32 0.0, %v5133
        %5135 = vmatprep.mubr.bf16.mxu0 0
        %5136 = vmatmul.mubr.bf16.gmra.mrb[0].mxu0 %v4697
        %v5137 = vpop.f32.mrb[0].mxu0
        %v5138 = vadd.f32 0.0, %v5137
        %v5139 = vpop.f32.mrb[0].mxu0
        %v5140 = vadd.f32 0.0, %v5139
        %v5141 = vpop.f32.mrb[0].mxu0
        %v5142 = vadd.f32 0.0, %v5141
        %v5143 = vpop.f32.mrb[0].mxu0
        %v5144 = vadd.f32 0.0, %v5143
        %5145 = vmatprep.mubr.bf16.mxu0 0
        %5146 = vmatmul.mubr.bf16.gmra.mrb[0].mxu0 %v4700
        %v5147 = vpop.f32.mrb[0].mxu0
        %v5148 = vadd.f32 0.0, %v5147
        %v5149 = vpop.f32.mrb[0].mxu0
        %v5150 = vadd.f32 0.0, %v5149
        %v5151 = vpop.f32.mrb[0].mxu0
        %v5152 = vadd.f32 0.0, %v5151
        %v5153 = vpop.f32.mrb[0].mxu0
        %v5154 = vadd.f32 0.0, %v5153
        %5155 = vmatprep.mubr.bf16.mxu0 0
        %5156 = vmatmul.mubr.bf16.gmra.mrb[0].mxu0 %v4703
        %v5157 = vpop.f32.mrb[0].mxu0
        %v5158 = vadd.f32 0.0, %v5157
        %v5159 = vpop.f32.mrb[0].mxu0
        %v5160 = vadd.f32 0.0, %v5159
        %v5161 = vpop.f32.mrb[0].mxu0
        %v5162 = vadd.f32 0.0, %v5161
        %v5163 = vpop.f32.mrb[0].mxu0
        %v5164 = vadd.f32 0.0, %v5163
        %5165 = vmatprep.mubr.bf16.mxu0 0
        %5166 = vmatmul.mubr.bf16.gmra.mrb[0].mxu0 %v4706
        %v5167 = vpop.f32.mrb[0].mxu0
        %v5168 = vadd.f32 0.0, %v5167
        %v5169 = vpop.f32.mrb[0].mxu0
        %v5170 = vadd.f32 0.0, %v5169
        %v5171 = vpop.f32.mrb[0].mxu0
        %v5172 = vadd.f32 0.0, %v5171
        %v5173 = vpop.f32.mrb[0].mxu0
        %v5174 = vadd.f32 0.0, %v5173
        %5175 = vmatprep.mubr.bf16.mxu0 0
        %5176 = vmatmul.mubr.bf16.gmra.mrb[0].mxu0 %v4709
        %v5177 = vpop.f32.mrb[0].mxu0
        %v5178 = vadd.f32 0.0, %v5177
        %v5179 = vpop.f32.mrb[0].mxu0
        %v5180 = vadd.f32 0.0, %v5179
        %v5181 = vpop.f32.mrb[0].mxu0
        %v5182 = vadd.f32 0.0, %v5181
        %v5183 = vpop.f32.mrb[0].mxu0
        %v5184 = vadd.f32 0.0, %v5183
        %5185 = vmatprep.mubr.bf16.mxu0 0
        %5186 = vmatmul.mubr.bf16.gmra.mrb[0].mxu0 %v4712
        %v5187 = vpop.f32.mrb[0].mxu0
        %v5188 = vadd.f32 0.0, %v5187
        %v5189 = vpop.f32.mrb[0].mxu0
        %v5190 = vadd.f32 0.0, %v5189
        %v5191 = vpop.f32.mrb[0].mxu0
        %v5192 = vadd.f32 0.0, %v5191
        %v5193 = vpop.f32.mrb[0].mxu0
        %v5194 = vadd.f32 0.0, %v5193
        %5195 = vdwg.mxu0
        %v5196 = vmax.f32 %v4845, %v4847
        %v5197 = vmax.f32 %v5196, %v5038
        %v5198 = vmax.f32 %v5197, %v5040
        %5199 = vmax.xlane.f32.xlu0 %v5198
        %v5200 = vpop.xlane.xlu0 %5199
        %v5201 = vmax.f32 %v4849, %v4851
        %v5202 = vmax.f32 %v5201, %v5042
        %v5203 = vmax.f32 %v5202, %v5044
        %5204 = vmax.xlane.f32.xlu0 %v5203
        %v5205 = vpop.xlane.xlu0 %5204
        %v5206 = vmax.f32 %v4855, %v4857
        %v5207 = vmax.f32 %v5206, %v5048
        %v5208 = vmax.f32 %v5207, %v5050
        %5209 = vmax.xlane.f32.xlu0 %v5208
        %v5210 = vpop.xlane.xlu0 %5209
        %v5211 = vmax.f32 %v4859, %v4861
        %v5212 = vmax.f32 %v5211, %v5052
        %v5213 = vmax.f32 %v5212, %v5054
        %5214 = vmax.xlane.f32.xlu0 %v5213
        %v5215 = vpop.xlane.xlu0 %5214
        %v5216 = vmax.f32 %v4865, %v4867
        %v5217 = vmax.f32 %v5216, %v5058
        %v5218 = vmax.f32 %v5217, %v5060
        %5219 = vmax.xlane.f32.xlu0 %v5218
        %v5220 = vpop.xlane.xlu0 %5219
        %v5221 = vmax.f32 %v4869, %v4871
        %v5222 = vmax.f32 %v5221, %v5062
        %v5223 = vmax.f32 %v5222, %v5064
        %5224 = vmax.xlane.f32.xlu0 %v5223
        %v5225 = vpop.xlane.xlu0 %5224
        %v5226 = vmax.f32 %v4875, %v4877
        %v5227 = vmax.f32 %v5226, %v5068
        %v5228 = vmax.f32 %v5227, %v5070
        %5229 = vmax.xlane.f32.xlu0 %v5228
        %v5230 = vpop.xlane.xlu0 %5229
        %v5231 = vmax.f32 %v4879, %v4881
        %v5232 = vmax.f32 %v5231, %v5072
        %v5233 = vmax.f32 %v5232, %v5074
        %5234 = vmax.xlane.f32.xlu0 %v5233
        %v5235 = vpop.xlane.xlu0 %5234
        %v5236 = vmax.f32 %v4885, %v4887
        %v5237 = vmax.f32 %v5236, %v5078
        %v5238 = vmax.f32 %v5237, %v5080
        %5239 = vmax.xlane.f32.xlu0 %v5238
        %v5240 = vpop.xlane.xlu0 %5239
        %v5241 = vmax.f32 %v4889, %v4891
        %v5242 = vmax.f32 %v5241, %v5082
        %v5243 = vmax.f32 %v5242, %v5084
        %5244 = vmax.xlane.f32.xlu0 %v5243
        %v5245 = vpop.xlane.xlu0 %5244
        %v5246 = vmax.f32 %v4895, %v4897
        %v5247 = vmax.f32 %v5246, %v5088
        %v5248 = vmax.f32 %v5247, %v5090
        %5249 = vmax.xlane.f32.xlu0 %v5248
        %v5250 = vpop.xlane.xlu0 %5249
        %v5251 = vmax.f32 %v4899, %v4901
        %v5252 = vmax.f32 %v5251, %v5092
        %v5253 = vmax.f32 %v5252, %v5094
        %5254 = vmax.xlane.f32.xlu0 %v5253
        %v5255 = vpop.xlane.xlu0 %5254
        %v5256 = vmax.f32 %v4905, %v4907
        %v5257 = vmax.f32 %v5256, %v5098
        %v5258 = vmax.f32 %v5257, %v5100
        %5259 = vmax.xlane.f32.xlu0 %v5258
        %v5260 = vpop.xlane.xlu0 %5259
        %v5261 = vmax.f32 %v4909, %v4911
        %v5262 = vmax.f32 %v5261, %v5102
        %v5263 = vmax.f32 %v5262, %v5104
        %5264 = vmax.xlane.f32.xlu0 %v5263
        %v5265 = vpop.xlane.xlu0 %5264
        %v5266 = vmax.f32 %v4915, %v4917
        %v5267 = vmax.f32 %v5266, %v5108
        %v5268 = vmax.f32 %v5267, %v5110
        %5269 = vmax.xlane.f32.xlu0 %v5268
        %v5270 = vpop.xlane.xlu0 %5269
        %v5271 = vmax.f32 %v4919, %v4921
        %v5272 = vmax.f32 %v5271, %v5112
        %v5273 = vmax.f32 %v5272, %v5114
        %5274 = vmax.xlane.f32.xlu0 %v5273
        %v5275 = vpop.xlane.xlu0 %5274
        %v5276 = vmax.f32 %v4925, %v4927
        %v5277 = vmax.f32 %v5276, %v5118
        %v5278 = vmax.f32 %v5277, %v5120
        %5279 = vmax.xlane.f32.xlu0 %v5278
        %v5280 = vpop.xlane.xlu0 %5279
        %v5281 = vmax.f32 %v4929, %v4931
        %v5282 = vmax.f32 %v5281, %v5122
        %v5283 = vmax.f32 %v5282, %v5124
        %5284 = vmax.xlane.f32.xlu0 %v5283
        %v5285 = vpop.xlane.xlu0 %5284
        %v5286 = vmax.f32 %v4935, %v4937
        %v5287 = vmax.f32 %v5286, %v5128
        %v5288 = vmax.f32 %v5287, %v5130
        %5289 = vmax.xlane.f32.xlu0 %v5288
        %v5290 = vpop.xlane.xlu0 %5289
        %v5291 = vmax.f32 %v4939, %v4941
        %v5292 = vmax.f32 %v5291, %v5132
        %v5293 = vmax.f32 %v5292, %v5134
        %5294 = vmax.xlane.f32.xlu0 %v5293
        %v5295 = vpop.xlane.xlu0 %5294
        %v5296 = vmax.f32 %v4945, %v4947
        %v5297 = vmax.f32 %v5296, %v5138
        %v5298 = vmax.f32 %v5297, %v5140
        %5299 = vmax.xlane.f32.xlu0 %v5298
        %v5300 = vpop.xlane.xlu0 %5299
        %v5301 = vmax.f32 %v4949, %v4951
        %v5302 = vmax.f32 %v5301, %v5142
        %v5303 = vmax.f32 %v5302, %v5144
        %5304 = vmax.xlane.f32.xlu0 %v5303
        %v5305 = vpop.xlane.xlu0 %5304
        %v5306 = vmax.f32 %v4955, %v4957
        %v5307 = vmax.f32 %v5306, %v5148
        %v5308 = vmax.f32 %v5307, %v5150
        %5309 = vmax.xlane.f32.xlu0 %v5308
        %v5310 = vpop.xlane.xlu0 %5309
        %v5311 = vmax.f32 %v4959, %v4961
        %v5312 = vmax.f32 %v5311, %v5152
        %v5313 = vmax.f32 %v5312, %v5154
        %5314 = vmax.xlane.f32.xlu0 %v5313
        %v5315 = vpop.xlane.xlu0 %5314
        %v5316 = vmax.f32 %v4965, %v4967
        %v5317 = vmax.f32 %v5316, %v5158
        %v5318 = vmax.f32 %v5317, %v5160
        %5319 = vmax.xlane.f32.xlu0 %v5318
        %v5320 = vpop.xlane.xlu0 %5319
        %v5321 = vmax.f32 %v4969, %v4971
        %v5322 = vmax.f32 %v5321, %v5162
        %v5323 = vmax.f32 %v5322, %v5164
        %5324 = vmax.xlane.f32.xlu0 %v5323
        %v5325 = vpop.xlane.xlu0 %5324
        %v5326 = vmax.f32 %v4975, %v4977
        %v5327 = vmax.f32 %v5326, %v5168
        %v5328 = vmax.f32 %v5327, %v5170
        %5329 = vmax.xlane.f32.xlu0 %v5328
        %v5330 = vpop.xlane.xlu0 %5329
        %v5331 = vmax.f32 %v4979, %v4981
        %v5332 = vmax.f32 %v5331, %v5172
        %v5333 = vmax.f32 %v5332, %v5174
        %5334 = vmax.xlane.f32.xlu0 %v5333
        %v5335 = vpop.xlane.xlu0 %5334
        %v5336 = vmax.f32 %v4985, %v4987
        %v5337 = vmax.f32 %v5336, %v5178
        %v5338 = vmax.f32 %v5337, %v5180
        %5339 = vmax.xlane.f32.xlu0 %v5338
        %v5340 = vpop.xlane.xlu0 %5339
        %v5341 = vmax.f32 %v4989, %v4991
        %v5342 = vmax.f32 %v5341, %v5182
        %v5343 = vmax.f32 %v5342, %v5184
        %5344 = vmax.xlane.f32.xlu0 %v5343
        %v5345 = vpop.xlane.xlu0 %5344
        %v5346 = vmax.f32 %v4995, %v4997
        %v5347 = vmax.f32 %v5346, %v5188
        %v5348 = vmax.f32 %v5347, %v5190
        %5349 = vmax.xlane.f32.xlu0 %v5348
        %v5350 = vpop.xlane.xlu0 %5349
        %v5351 = vmax.f32 %v4999, %v5001
        %v5352 = vmax.f32 %v5351, %v5192
        %v5353 = vmax.f32 %v5352, %v5194
        %5354 = vmax.xlane.f32.xlu0 %v5353
        %v5355 = vpop.xlane.xlu0 %5354
        %v5356 = vsub.f32 %v4845, %v5200
        %v5357 = vsub.f32 %v4847, %v5200
        %v5358 = vsub.f32 %v5038, %v5200
        %v5359 = vsub.f32 %v5040, %v5200
        %v5360 = vsub.f32 %v4849, %v5205
        %v5361 = vsub.f32 %v4851, %v5205
        %v5362 = vsub.f32 %v5042, %v5205
        %v5363 = vsub.f32 %v5044, %v5205
        %v5364 = vsub.f32 %v4855, %v5210
        %v5365 = vsub.f32 %v4857, %v5210
        %v5366 = vsub.f32 %v5048, %v5210
        %v5367 = vsub.f32 %v5050, %v5210
        %v5368 = vsub.f32 %v4859, %v5215
        %v5369 = vsub.f32 %v4861, %v5215
        %v5370 = vsub.f32 %v5052, %v5215
        %v5371 = vsub.f32 %v5054, %v5215
        %v5372 = vsub.f32 %v4865, %v5220
        %v5373 = vsub.f32 %v4867, %v5220
        %v5374 = vsub.f32 %v5058, %v5220
        %v5375 = vsub.f32 %v5060, %v5220
        %v5376 = vsub.f32 %v4869, %v5225
        %v5377 = vsub.f32 %v4871, %v5225
        %v5378 = vsub.f32 %v5062, %v5225
        %v5379 = vsub.f32 %v5064, %v5225
        %v5380 = vsub.f32 %v4875, %v5230
        %v5381 = vsub.f32 %v4877, %v5230
        %v5382 = vsub.f32 %v5068, %v5230
        %v5383 = vsub.f32 %v5070, %v5230
        %v5384 = vsub.f32 %v4879, %v5235
        %v5385 = vsub.f32 %v4881, %v5235
        %v5386 = vsub.f32 %v5072, %v5235
        %v5387 = vsub.f32 %v5074, %v5235
        %v5388 = vsub.f32 %v4885, %v5240
        %v5389 = vsub.f32 %v4887, %v5240
        %v5390 = vsub.f32 %v5078, %v5240
        %v5391 = vsub.f32 %v5080, %v5240
        %v5392 = vsub.f32 %v4889, %v5245
        %v5393 = vsub.f32 %v4891, %v5245
        %v5394 = vsub.f32 %v5082, %v5245
        %v5395 = vsub.f32 %v5084, %v5245
        %v5396 = vsub.f32 %v4895, %v5250
        %v5397 = vsub.f32 %v4897, %v5250
        %v5398 = vsub.f32 %v5088, %v5250
        %v5399 = vsub.f32 %v5090, %v5250
        %v5400 = vsub.f32 %v4899, %v5255
        %v5401 = vsub.f32 %v4901, %v5255
        %v5402 = vsub.f32 %v5092, %v5255
        %v5403 = vsub.f32 %v5094, %v5255
        %v5404 = vsub.f32 %v4905, %v5260
        %v5405 = vsub.f32 %v4907, %v5260
        %v5406 = vsub.f32 %v5098, %v5260
        %v5407 = vsub.f32 %v5100, %v5260
        %v5408 = vsub.f32 %v4909, %v5265
        %v5409 = vsub.f32 %v4911, %v5265
        %v5410 = vsub.f32 %v5102, %v5265
        %v5411 = vsub.f32 %v5104, %v5265
        %v5412 = vsub.f32 %v4915, %v5270
        %v5413 = vsub.f32 %v4917, %v5270
        %v5414 = vsub.f32 %v5108, %v5270
        %v5415 = vsub.f32 %v5110, %v5270
        %v5416 = vsub.f32 %v4919, %v5275
        %v5417 = vsub.f32 %v4921, %v5275
        %v5418 = vsub.f32 %v5112, %v5275
        %v5419 = vsub.f32 %v5114, %v5275
        %v5420 = vsub.f32 %v4925, %v5280
        %v5421 = vsub.f32 %v4927, %v5280
        %v5422 = vsub.f32 %v5118, %v5280
        %v5423 = vsub.f32 %v5120, %v5280
        %v5424 = vsub.f32 %v4929, %v5285
        %v5425 = vsub.f32 %v4931, %v5285
        %v5426 = vsub.f32 %v5122, %v5285
        %v5427 = vsub.f32 %v5124, %v5285
        %v5428 = vsub.f32 %v4935, %v5290
        %v5429 = vsub.f32 %v4937, %v5290
        %v5430 = vsub.f32 %v5128, %v5290
        %v5431 = vsub.f32 %v5130, %v5290
        %v5432 = vsub.f32 %v4939, %v5295
        %v5433 = vsub.f32 %v4941, %v5295
        %v5434 = vsub.f32 %v5132, %v5295
        %v5435 = vsub.f32 %v5134, %v5295
        %v5436 = vsub.f32 %v4945, %v5300
        %v5437 = vsub.f32 %v4947, %v5300
        %v5438 = vsub.f32 %v5138, %v5300
        %v5439 = vsub.f32 %v5140, %v5300
        %v5440 = vsub.f32 %v4949, %v5305
        %v5441 = vsub.f32 %v4951, %v5305
        %v5442 = vsub.f32 %v5142, %v5305
        %v5443 = vsub.f32 %v5144, %v5305
        %v5444 = vsub.f32 %v4955, %v5310
        %v5445 = vsub.f32 %v4957, %v5310
        %v5446 = vsub.f32 %v5148, %v5310
        %v5447 = vsub.f32 %v5150, %v5310
        %v5448 = vsub.f32 %v4959, %v5315
        %v5449 = vsub.f32 %v4961, %v5315
        %v5450 = vsub.f32 %v5152, %v5315
        %v5451 = vsub.f32 %v5154, %v5315
        %v5452 = vsub.f32 %v4965, %v5320
        %v5453 = vsub.f32 %v4967, %v5320
        %v5454 = vsub.f32 %v5158, %v5320
        %v5455 = vsub.f32 %v5160, %v5320
        %v5456 = vsub.f32 %v4969, %v5325
        %v5457 = vsub.f32 %v4971, %v5325
        %v5458 = vsub.f32 %v5162, %v5325
        %v5459 = vsub.f32 %v5164, %v5325
        %v5460 = vsub.f32 %v4975, %v5330
        %v5461 = vsub.f32 %v4977, %v5330
        %v5462 = vsub.f32 %v5168, %v5330
        %v5463 = vsub.f32 %v5170, %v5330
        %v5464 = vsub.f32 %v4979, %v5335
        %v5465 = vsub.f32 %v4981, %v5335
        %v5466 = vsub.f32 %v5172, %v5335
        %v5467 = vsub.f32 %v5174, %v5335
        %v5468 = vsub.f32 %v4985, %v5340
        %v5469 = vsub.f32 %v4987, %v5340
        %v5470 = vsub.f32 %v5178, %v5340
        %v5471 = vsub.f32 %v5180, %v5340
        %v5472 = vsub.f32 %v4989, %v5345
        %v5473 = vsub.f32 %v4991, %v5345
        %v5474 = vsub.f32 %v5182, %v5345
        %v5475 = vsub.f32 %v5184, %v5345
        %v5476 = vsub.f32 %v4995, %v5350
        %v5477 = vsub.f32 %v4997, %v5350
        %v5478 = vsub.f32 %v5188, %v5350
        %v5479 = vsub.f32 %v5190, %v5350
        %v5480 = vsub.f32 %v4999, %v5355
        %v5481 = vsub.f32 %v5001, %v5355
        %v5482 = vsub.f32 %v5192, %v5355
        %v5483 = vsub.f32 %v5194, %v5355
        %v5484 = vpack.c.bf16 %v5360, %v5356
        %v5485 = vpack.c.bf16 %v5361, %v5357
        %v5486 = vpack.c.bf16 %v5362, %v5358
        %v5487 = vpack.c.bf16 %v5363, %v5359
        %v5488 = vpack.c.bf16 %v5368, %v5364
        %v5489 = vpack.c.bf16 %v5369, %v5365
        %v5490 = vpack.c.bf16 %v5370, %v5366
        %v5491 = vpack.c.bf16 %v5371, %v5367
        %v5492 = vpack.c.bf16 %v5376, %v5372
        %v5493 = vpack.c.bf16 %v5377, %v5373
        %v5494 = vpack.c.bf16 %v5378, %v5374
        %v5495 = vpack.c.bf16 %v5379, %v5375
        %v5496 = vpack.c.bf16 %v5384, %v5380
        %v5497 = vpack.c.bf16 %v5385, %v5381
        %v5498 = vpack.c.bf16 %v5386, %v5382
        %v5499 = vpack.c.bf16 %v5387, %v5383
        %v5500 = vpack.c.bf16 %v5392, %v5388
        %v5501 = vpack.c.bf16 %v5393, %v5389
        %v5502 = vpack.c.bf16 %v5394, %v5390
        %v5503 = vpack.c.bf16 %v5395, %v5391
        %v5504 = vpack.c.bf16 %v5400, %v5396
        %v5505 = vpack.c.bf16 %v5401, %v5397
        %v5506 = vpack.c.bf16 %v5402, %v5398
        %v5507 = vpack.c.bf16 %v5403, %v5399
        %v5508 = vpack.c.bf16 %v5408, %v5404
        %v5509 = vpack.c.bf16 %v5409, %v5405
        %v5510 = vpack.c.bf16 %v5410, %v5406
        %v5511 = vpack.c.bf16 %v5411, %v5407
        %v5512 = vpack.c.bf16 %v5416, %v5412
        %v5513 = vpack.c.bf16 %v5417, %v5413
        %v5514 = vpack.c.bf16 %v5418, %v5414
        %v5515 = vpack.c.bf16 %v5419, %v5415
        %v5516 = vpack.c.bf16 %v5424, %v5420
        %v5517 = vpack.c.bf16 %v5425, %v5421
        %v5518 = vpack.c.bf16 %v5426, %v5422
        %v5519 = vpack.c.bf16 %v5427, %v5423
        %v5520 = vpack.c.bf16 %v5432, %v5428
        %v5521 = vpack.c.bf16 %v5433, %v5429
        %v5522 = vpack.c.bf16 %v5434, %v5430
        %v5523 = vpack.c.bf16 %v5435, %v5431
        %v5524 = vpack.c.bf16 %v5440, %v5436
        %v5525 = vpack.c.bf16 %v5441, %v5437
        %v5526 = vpack.c.bf16 %v5442, %v5438
        %v5527 = vpack.c.bf16 %v5443, %v5439
        %v5528 = vpack.c.bf16 %v5448, %v5444
        %v5529 = vpack.c.bf16 %v5449, %v5445
        %v5530 = vpack.c.bf16 %v5450, %v5446
        %v5531 = vpack.c.bf16 %v5451, %v5447
        %v5532 = vpack.c.bf16 %v5456, %v5452
        %v5533 = vpack.c.bf16 %v5457, %v5453
        %v5534 = vpack.c.bf16 %v5458, %v5454
        %v5535 = vpack.c.bf16 %v5459, %v5455
        %v5536 = vpack.c.bf16 %v5464, %v5460
        %v5537 = vpack.c.bf16 %v5465, %v5461
        %v5538 = vpack.c.bf16 %v5466, %v5462
        %v5539 = vpack.c.bf16 %v5467, %v5463
        %v5540 = vpack.c.bf16 %v5472, %v5468
        %v5541 = vpack.c.bf16 %v5473, %v5469
        %v5542 = vpack.c.bf16 %v5474, %v5470
        %v5543 = vpack.c.bf16 %v5475, %v5471
        %v5544 = vpack.c.bf16 %v5480, %v5476
        %v5545 = vpack.c.bf16 %v5481, %v5477
        %v5546 = vpack.c.bf16 %v5482, %v5478
        %v5547 = vpack.c.bf16 %v5483, %v5479
        %v5549 = vmul.bf16 %v5484, 1069105081
        %v5550 = vpow.bf16.pop %v5549
        %v5552 = vmul.bf16 %v5485, 1069105081
        %v5553 = vpow.bf16.pop %v5552
        %v5555 = vmul.bf16 %v5486, 1069105081
        %v5556 = vpow.bf16.pop %v5555
        %v5558 = vmul.bf16 %v5487, 1069105081
        %v5559 = vpow.bf16.pop %v5558
        %v5561 = vmul.bf16 %v5488, 1069105081
        %v5562 = vpow.bf16.pop %v5561
        %v5564 = vmul.bf16 %v5489, 1069105081
        %v5565 = vpow.bf16.pop %v5564
        %v5567 = vmul.bf16 %v5490, 1069105081
        %v5568 = vpow.bf16.pop %v5567
        %v5570 = vmul.bf16 %v5491, 1069105081
        %v5571 = vpow.bf16.pop %v5570
        %v5573 = vmul.bf16 %v5492, 1069105081
        %v5574 = vpow.bf16.pop %v5573
        %v5576 = vmul.bf16 %v5493, 1069105081
        %v5577 = vpow.bf16.pop %v5576
        %v5579 = vmul.bf16 %v5494, 1069105081
        %v5580 = vpow.bf16.pop %v5579
        %v5582 = vmul.bf16 %v5495, 1069105081
        %v5583 = vpow.bf16.pop %v5582
        %v5585 = vmul.bf16 %v5496, 1069105081
        %v5586 = vpow.bf16.pop %v5585
        %v5588 = vmul.bf16 %v5497, 1069105081
        %v5589 = vpow.bf16.pop %v5588
        %v5591 = vmul.bf16 %v5498, 1069105081
        %v5592 = vpow.bf16.pop %v5591
        %v5594 = vmul.bf16 %v5499, 1069105081
        %v5595 = vpow.bf16.pop %v5594
        %v5597 = vmul.bf16 %v5500, 1069105081
        %v5598 = vpow.bf16.pop %v5597
        %v5600 = vmul.bf16 %v5501, 1069105081
        %v5601 = vpow.bf16.pop %v5600
        %v5603 = vmul.bf16 %v5502, 1069105081
        %v5604 = vpow.bf16.pop %v5603
        %v5606 = vmul.bf16 %v5503, 1069105081
        %v5607 = vpow.bf16.pop %v5606
        %v5609 = vmul.bf16 %v5504, 1069105081
        %v5610 = vpow.bf16.pop %v5609
        %v5612 = vmul.bf16 %v5505, 1069105081
        %v5613 = vpow.bf16.pop %v5612
        %v5615 = vmul.bf16 %v5506, 1069105081
        %v5616 = vpow.bf16.pop %v5615
        %v5618 = vmul.bf16 %v5507, 1069105081
        %v5619 = vpow.bf16.pop %v5618
        %v5621 = vmul.bf16 %v5508, 1069105081
        %v5622 = vpow.bf16.pop %v5621
        %v5624 = vmul.bf16 %v5509, 1069105081
        %v5625 = vpow.bf16.pop %v5624
        %v5627 = vmul.bf16 %v5510, 1069105081
        %v5628 = vpow.bf16.pop %v5627
        %v5630 = vmul.bf16 %v5511, 1069105081
        %v5631 = vpow.bf16.pop %v5630
        %v5633 = vmul.bf16 %v5512, 1069105081
        %v5634 = vpow.bf16.pop %v5633
        %v5636 = vmul.bf16 %v5513, 1069105081
        %v5637 = vpow.bf16.pop %v5636
        %v5639 = vmul.bf16 %v5514, 1069105081
        %v5640 = vpow.bf16.pop %v5639
        %v5642 = vmul.bf16 %v5515, 1069105081
        %v5643 = vpow.bf16.pop %v5642
        %v5645 = vmul.bf16 %v5516, 1069105081
        %v5646 = vpow.bf16.pop %v5645
        %v5648 = vmul.bf16 %v5517, 1069105081
        %v5649 = vpow.bf16.pop %v5648
        %v5651 = vmul.bf16 %v5518, 1069105081
        %v5652 = vpow.bf16.pop %v5651
        %v5654 = vmul.bf16 %v5519, 1069105081
        %v5655 = vpow.bf16.pop %v5654
        %v5657 = vmul.bf16 %v5520, 1069105081
        %v5658 = vpow.bf16.pop %v5657
        %v5660 = vmul.bf16 %v5521, 1069105081
        %v5661 = vpow.bf16.pop %v5660
        %v5663 = vmul.bf16 %v5522, 1069105081
        %v5664 = vpow.bf16.pop %v5663
        %v5666 = vmul.bf16 %v5523, 1069105081
        %v5667 = vpow.bf16.pop %v5666
        %v5669 = vmul.bf16 %v5524, 1069105081
        %v5670 = vpow.bf16.pop %v5669
        %v5672 = vmul.bf16 %v5525, 1069105081
        %v5673 = vpow.bf16.pop %v5672
        %v5675 = vmul.bf16 %v5526, 1069105081
        %v5676 = vpow.bf16.pop %v5675
        %v5678 = vmul.bf16 %v5527, 1069105081
        %v5679 = vpow.bf16.pop %v5678
        %v5681 = vmul.bf16 %v5528, 1069105081
        %v5682 = vpow.bf16.pop %v5681
        %v5684 = vmul.bf16 %v5529, 1069105081
        %v5685 = vpow.bf16.pop %v5684
        %v5687 = vmul.bf16 %v5530, 1069105081
        %v5688 = vpow.bf16.pop %v5687
        %v5690 = vmul.bf16 %v5531, 1069105081
        %v5691 = vpow.bf16.pop %v5690
        %v5693 = vmul.bf16 %v5532, 1069105081
        %v5694 = vpow.bf16.pop %v5693
        %v5696 = vmul.bf16 %v5533, 1069105081
        %v5697 = vpow.bf16.pop %v5696
        %v5699 = vmul.bf16 %v5534, 1069105081
        %v5700 = vpow.bf16.pop %v5699
        %v5702 = vmul.bf16 %v5535, 1069105081
        %v5703 = vpow.bf16.pop %v5702
        %v5705 = vmul.bf16 %v5536, 1069105081
        %v5706 = vpow.bf16.pop %v5705
        %v5708 = vmul.bf16 %v5537, 1069105081
        %v5709 = vpow.bf16.pop %v5708
        %v5711 = vmul.bf16 %v5538, 1069105081
        %v5712 = vpow.bf16.pop %v5711
        %v5714 = vmul.bf16 %v5539, 1069105081
        %v5715 = vpow.bf16.pop %v5714
        %v5717 = vmul.bf16 %v5540, 1069105081
        %v5718 = vpow.bf16.pop %v5717
        %v5720 = vmul.bf16 %v5541, 1069105081
        %v5721 = vpow.bf16.pop %v5720
        %v5723 = vmul.bf16 %v5542, 1069105081
        %v5724 = vpow.bf16.pop %v5723
        %v5726 = vmul.bf16 %v5543, 1069105081
        %v5727 = vpow.bf16.pop %v5726
        %v5729 = vmul.bf16 %v5544, 1069105081
        %v5730 = vpow.bf16.pop %v5729
        %v5732 = vmul.bf16 %v5545, 1069105081
        %v5733 = vpow.bf16.pop %v5732
        %v5735 = vmul.bf16 %v5546, 1069105081
        %v5736 = vpow.bf16.pop %v5735
        %v5738 = vmul.bf16 %v5547, 1069105081
        %v5739 = vpow.bf16.pop %v5738
        %v5740 = vunpack.c.l.bf16 %v5550
        %v5741 = vunpack.c.l.bf16 %v5553
        %v5742 = vunpack.c.l.bf16 %v5556
        %v5743 = vunpack.c.l.bf16 %v5559
        %v5744 = vunpack.c.h.bf16 %v5550
        %v5745 = vunpack.c.h.bf16 %v5553
        %v5746 = vunpack.c.h.bf16 %v5556
        %v5747 = vunpack.c.h.bf16 %v5559
        %v5748 = vunpack.c.l.bf16 %v5562
        %v5749 = vunpack.c.l.bf16 %v5565
        %v5750 = vunpack.c.l.bf16 %v5568
        %v5751 = vunpack.c.l.bf16 %v5571
        %v5752 = vunpack.c.h.bf16 %v5562
        %v5753 = vunpack.c.h.bf16 %v5565
        %v5754 = vunpack.c.h.bf16 %v5568
        %v5755 = vunpack.c.h.bf16 %v5571
        %v5756 = vunpack.c.l.bf16 %v5574
        %v5757 = vunpack.c.l.bf16 %v5577
        %v5758 = vunpack.c.l.bf16 %v5580
        %v5759 = vunpack.c.l.bf16 %v5583
        %v5760 = vunpack.c.h.bf16 %v5574
        %v5761 = vunpack.c.h.bf16 %v5577
        %v5762 = vunpack.c.h.bf16 %v5580
        %v5763 = vunpack.c.h.bf16 %v5583
        %v5764 = vunpack.c.l.bf16 %v5586
        %v5765 = vunpack.c.l.bf16 %v5589
        %v5766 = vunpack.c.l.bf16 %v5592
        %v5767 = vunpack.c.l.bf16 %v5595
        %v5768 = vunpack.c.h.bf16 %v5586
        %v5769 = vunpack.c.h.bf16 %v5589
        %v5770 = vunpack.c.h.bf16 %v5592
        %v5771 = vunpack.c.h.bf16 %v5595
        %v5772 = vunpack.c.l.bf16 %v5598
        %v5773 = vunpack.c.l.bf16 %v5601
        %v5774 = vunpack.c.l.bf16 %v5604
        %v5775 = vunpack.c.l.bf16 %v5607
        %v5776 = vunpack.c.h.bf16 %v5598
        %v5777 = vunpack.c.h.bf16 %v5601
        %v5778 = vunpack.c.h.bf16 %v5604
        %v5779 = vunpack.c.h.bf16 %v5607
        %v5780 = vunpack.c.l.bf16 %v5610
        %v5781 = vunpack.c.l.bf16 %v5613
        %v5782 = vunpack.c.l.bf16 %v5616
        %v5783 = vunpack.c.l.bf16 %v5619
        %v5784 = vunpack.c.h.bf16 %v5610
        %v5785 = vunpack.c.h.bf16 %v5613
        %v5786 = vunpack.c.h.bf16 %v5616
        %v5787 = vunpack.c.h.bf16 %v5619
        %v5788 = vunpack.c.l.bf16 %v5622
        %v5789 = vunpack.c.l.bf16 %v5625
        %v5790 = vunpack.c.l.bf16 %v5628
        %v5791 = vunpack.c.l.bf16 %v5631
        %v5792 = vunpack.c.h.bf16 %v5622
        %v5793 = vunpack.c.h.bf16 %v5625
        %v5794 = vunpack.c.h.bf16 %v5628
        %v5795 = vunpack.c.h.bf16 %v5631
        %v5796 = vunpack.c.l.bf16 %v5634
        %v5797 = vunpack.c.l.bf16 %v5637
        %v5798 = vunpack.c.l.bf16 %v5640
        %v5799 = vunpack.c.l.bf16 %v5643
        %v5800 = vunpack.c.h.bf16 %v5634
        %v5801 = vunpack.c.h.bf16 %v5637
        %v5802 = vunpack.c.h.bf16 %v5640
        %v5803 = vunpack.c.h.bf16 %v5643
        %v5804 = vunpack.c.l.bf16 %v5646
        %v5805 = vunpack.c.l.bf16 %v5649
        %v5806 = vunpack.c.l.bf16 %v5652
        %v5807 = vunpack.c.l.bf16 %v5655
        %v5808 = vunpack.c.h.bf16 %v5646
        %v5809 = vunpack.c.h.bf16 %v5649
        %v5810 = vunpack.c.h.bf16 %v5652
        %v5811 = vunpack.c.h.bf16 %v5655
        %v5812 = vunpack.c.l.bf16 %v5658
        %v5813 = vunpack.c.l.bf16 %v5661
        %v5814 = vunpack.c.l.bf16 %v5664
        %v5815 = vunpack.c.l.bf16 %v5667
        %v5816 = vunpack.c.h.bf16 %v5658
        %v5817 = vunpack.c.h.bf16 %v5661
        %v5818 = vunpack.c.h.bf16 %v5664
        %v5819 = vunpack.c.h.bf16 %v5667
        %v5820 = vunpack.c.l.bf16 %v5670
        %v5821 = vunpack.c.l.bf16 %v5673
        %v5822 = vunpack.c.l.bf16 %v5676
        %v5823 = vunpack.c.l.bf16 %v5679
        %v5824 = vunpack.c.h.bf16 %v5670
        %v5825 = vunpack.c.h.bf16 %v5673
        %v5826 = vunpack.c.h.bf16 %v5676
        %v5827 = vunpack.c.h.bf16 %v5679
        %v5828 = vunpack.c.l.bf16 %v5682
        %v5829 = vunpack.c.l.bf16 %v5685
        %v5830 = vunpack.c.l.bf16 %v5688
        %v5831 = vunpack.c.l.bf16 %v5691
        %v5832 = vunpack.c.h.bf16 %v5682
        %v5833 = vunpack.c.h.bf16 %v5685
        %v5834 = vunpack.c.h.bf16 %v5688
        %v5835 = vunpack.c.h.bf16 %v5691
        %v5836 = vunpack.c.l.bf16 %v5694
        %v5837 = vunpack.c.l.bf16 %v5697
        %v5838 = vunpack.c.l.bf16 %v5700
        %v5839 = vunpack.c.l.bf16 %v5703
        %v5840 = vunpack.c.h.bf16 %v5694
        %v5841 = vunpack.c.h.bf16 %v5697
        %v5842 = vunpack.c.h.bf16 %v5700
        %v5843 = vunpack.c.h.bf16 %v5703
        %v5844 = vunpack.c.l.bf16 %v5706
        %v5845 = vunpack.c.l.bf16 %v5709
        %v5846 = vunpack.c.l.bf16 %v5712
        %v5847 = vunpack.c.l.bf16 %v5715
        %v5848 = vunpack.c.h.bf16 %v5706
        %v5849 = vunpack.c.h.bf16 %v5709
        %v5850 = vunpack.c.h.bf16 %v5712
        %v5851 = vunpack.c.h.bf16 %v5715
        %v5852 = vunpack.c.l.bf16 %v5718
        %v5853 = vunpack.c.l.bf16 %v5721
        %v5854 = vunpack.c.l.bf16 %v5724
        %v5855 = vunpack.c.l.bf16 %v5727
        %v5856 = vunpack.c.h.bf16 %v5718
        %v5857 = vunpack.c.h.bf16 %v5721
        %v5858 = vunpack.c.h.bf16 %v5724
        %v5859 = vunpack.c.h.bf16 %v5727
        %v5860 = vunpack.c.l.bf16 %v5730
        %v5861 = vunpack.c.l.bf16 %v5733
        %v5862 = vunpack.c.l.bf16 %v5736
        %v5863 = vunpack.c.l.bf16 %v5739
        %v5864 = vunpack.c.h.bf16 %v5730
        %v5865 = vunpack.c.h.bf16 %v5733
        %v5866 = vunpack.c.h.bf16 %v5736
        %v5867 = vunpack.c.h.bf16 %v5739
        %v5868 = vadd.f32 %v5740, %v5741
        %v5869 = vadd.f32 %v5868, %v5742
        %v5870 = vadd.f32 %v5869, %v5743
        %5871 = vadd.xlane.f32.xlu0 %v5870
        %v5872 = vpop.xlane.xlu0 %5871
        %v5873 = vadd.f32 %v5744, %v5745
        %v5874 = vadd.f32 %v5873, %v5746
        %v5875 = vadd.f32 %v5874, %v5747
        %5876 = vadd.xlane.f32.xlu0 %v5875
        %v5877 = vpop.xlane.xlu0 %5876
        %v5878 = vadd.f32 %v5748, %v5749
        %v5879 = vadd.f32 %v5878, %v5750
        %v5880 = vadd.f32 %v5879, %v5751
        %5881 = vadd.xlane.f32.xlu0 %v5880
        %v5882 = vpop.xlane.xlu0 %5881
        %v5883 = vadd.f32 %v5752, %v5753
        %v5884 = vadd.f32 %v5883, %v5754
        %v5885 = vadd.f32 %v5884, %v5755
        %5886 = vadd.xlane.f32.xlu0 %v5885
        %v5887 = vpop.xlane.xlu0 %5886
        %v5888 = vadd.f32 %v5756, %v5757
        %v5889 = vadd.f32 %v5888, %v5758
        %v5890 = vadd.f32 %v5889, %v5759
        %5891 = vadd.xlane.f32.xlu0 %v5890
        %v5892 = vpop.xlane.xlu0 %5891
        %v5893 = vadd.f32 %v5760, %v5761
        %v5894 = vadd.f32 %v5893, %v5762
        %v5895 = vadd.f32 %v5894, %v5763
        %5896 = vadd.xlane.f32.xlu0 %v5895
        %v5897 = vpop.xlane.xlu0 %5896
        %v5898 = vadd.f32 %v5764, %v5765
        %v5899 = vadd.f32 %v5898, %v5766
        %v5900 = vadd.f32 %v5899, %v5767
        %5901 = vadd.xlane.f32.xlu0 %v5900
        %v5902 = vpop.xlane.xlu0 %5901
        %v5903 = vadd.f32 %v5768, %v5769
        %v5904 = vadd.f32 %v5903, %v5770
        %v5905 = vadd.f32 %v5904, %v5771
        %5906 = vadd.xlane.f32.xlu0 %v5905
        %v5907 = vpop.xlane.xlu0 %5906
        %v5908 = vadd.f32 %v5772, %v5773
        %v5909 = vadd.f32 %v5908, %v5774
        %v5910 = vadd.f32 %v5909, %v5775
        %5911 = vadd.xlane.f32.xlu0 %v5910
        %v5912 = vpop.xlane.xlu0 %5911
        %v5913 = vadd.f32 %v5776, %v5777
        %v5914 = vadd.f32 %v5913, %v5778
        %v5915 = vadd.f32 %v5914, %v5779
        %5916 = vadd.xlane.f32.xlu0 %v5915
        %v5917 = vpop.xlane.xlu0 %5916
        %v5918 = vadd.f32 %v5780, %v5781
        %v5919 = vadd.f32 %v5918, %v5782
        %v5920 = vadd.f32 %v5919, %v5783
        %5921 = vadd.xlane.f32.xlu0 %v5920
        %v5922 = vpop.xlane.xlu0 %5921
        %v5923 = vadd.f32 %v5784, %v5785
        %v5924 = vadd.f32 %v5923, %v5786
        %v5925 = vadd.f32 %v5924, %v5787
        %5926 = vadd.xlane.f32.xlu0 %v5925
        %v5927 = vpop.xlane.xlu0 %5926
        %v5928 = vadd.f32 %v5788, %v5789
        %v5929 = vadd.f32 %v5928, %v5790
        %v5930 = vadd.f32 %v5929, %v5791
        %5931 = vadd.xlane.f32.xlu0 %v5930
        %v5932 = vpop.xlane.xlu0 %5931
        %v5933 = vadd.f32 %v5792, %v5793
        %v5934 = vadd.f32 %v5933, %v5794
        %v5935 = vadd.f32 %v5934, %v5795
        %5936 = vadd.xlane.f32.xlu0 %v5935
        %v5937 = vpop.xlane.xlu0 %5936
        %v5938 = vadd.f32 %v5796, %v5797
        %v5939 = vadd.f32 %v5938, %v5798
        %v5940 = vadd.f32 %v5939, %v5799
        %5941 = vadd.xlane.f32.xlu0 %v5940
        %v5942 = vpop.xlane.xlu0 %5941
        %v5943 = vadd.f32 %v5800, %v5801
        %v5944 = vadd.f32 %v5943, %v5802
        %v5945 = vadd.f32 %v5944, %v5803
        %5946 = vadd.xlane.f32.xlu0 %v5945
        %v5947 = vpop.xlane.xlu0 %5946
        %v5948 = vadd.f32 %v5804, %v5805
        %v5949 = vadd.f32 %v5948, %v5806
        %v5950 = vadd.f32 %v5949, %v5807
        %5951 = vadd.xlane.f32.xlu0 %v5950
        %v5952 = vpop.xlane.xlu0 %5951
        %v5953 = vadd.f32 %v5808, %v5809
        %v5954 = vadd.f32 %v5953, %v5810
        %v5955 = vadd.f32 %v5954, %v5811
        %5956 = vadd.xlane.f32.xlu0 %v5955
        %v5957 = vpop.xlane.xlu0 %5956
        %v5958 = vadd.f32 %v5812, %v5813
        %v5959 = vadd.f32 %v5958, %v5814
        %v5960 = vadd.f32 %v5959, %v5815
        %5961 = vadd.xlane.f32.xlu0 %v5960
        %v5962 = vpop.xlane.xlu0 %5961
        %v5963 = vadd.f32 %v5816, %v5817
        %v5964 = vadd.f32 %v5963, %v5818
        %v5965 = vadd.f32 %v5964, %v5819
        %5966 = vadd.xlane.f32.xlu0 %v5965
        %v5967 = vpop.xlane.xlu0 %5966
        %v5968 = vadd.f32 %v5820, %v5821
        %v5969 = vadd.f32 %v5968, %v5822
        %v5970 = vadd.f32 %v5969, %v5823
        %5971 = vadd.xlane.f32.xlu0 %v5970
        %v5972 = vpop.xlane.xlu0 %5971
        %v5973 = vadd.f32 %v5824, %v5825
        %v5974 = vadd.f32 %v5973, %v5826
        %v5975 = vadd.f32 %v5974, %v5827
        %5976 = vadd.xlane.f32.xlu0 %v5975
        %v5977 = vpop.xlane.xlu0 %5976
        %v5978 = vadd.f32 %v5828, %v5829
        %v5979 = vadd.f32 %v5978, %v5830
        %v5980 = vadd.f32 %v5979, %v5831
        %5981 = vadd.xlane.f32.xlu0 %v5980
        %v5982 = vpop.xlane.xlu0 %5981
        %v5983 = vadd.f32 %v5832, %v5833
        %v5984 = vadd.f32 %v5983, %v5834
        %v5985 = vadd.f32 %v5984, %v5835
        %5986 = vadd.xlane.f32.xlu0 %v5985
        %v5987 = vpop.xlane.xlu0 %5986
        %v5988 = vadd.f32 %v5836, %v5837
        %v5989 = vadd.f32 %v5988, %v5838
        %v5990 = vadd.f32 %v5989, %v5839
        %5991 = vadd.xlane.f32.xlu0 %v5990
        %v5992 = vpop.xlane.xlu0 %5991
        %v5993 = vadd.f32 %v5840, %v5841
        %v5994 = vadd.f32 %v5993, %v5842
        %v5995 = vadd.f32 %v5994, %v5843
        %5996 = vadd.xlane.f32.xlu0 %v5995
        %v5997 = vpop.xlane.xlu0 %5996
        %v5998 = vadd.f32 %v5844, %v5845
        %v5999 = vadd.f32 %v5998, %v5846
        %v6000 = vadd.f32 %v5999, %v5847
        %6001 = vadd.xlane.f32.xlu0 %v6000
        %v6002 = vpop.xlane.xlu0 %6001
        %v6003 = vadd.f32 %v5848, %v5849
        %v6004 = vadd.f32 %v6003, %v5850
        %v6005 = vadd.f32 %v6004, %v5851
        %6006 = vadd.xlane.f32.xlu0 %v6005
        %v6007 = vpop.xlane.xlu0 %6006
        %v6008 = vadd.f32 %v5852, %v5853
        %v6009 = vadd.f32 %v6008, %v5854
        %v6010 = vadd.f32 %v6009, %v5855
        %6011 = vadd.xlane.f32.xlu0 %v6010
        %v6012 = vpop.xlane.xlu0 %6011
        %v6013 = vadd.f32 %v5856, %v5857
        %v6014 = vadd.f32 %v6013, %v5858
        %v6015 = vadd.f32 %v6014, %v5859
        %6016 = vadd.xlane.f32.xlu0 %v6015
        %v6017 = vpop.xlane.xlu0 %6016
        %v6018 = vadd.f32 %v5860, %v5861
        %v6019 = vadd.f32 %v6018, %v5862
        %v6020 = vadd.f32 %v6019, %v5863
        %6021 = vadd.xlane.f32.xlu0 %v6020
        %v6022 = vpop.xlane.xlu0 %6021
        %v6023 = vadd.f32 %v5864, %v5865
        %v6024 = vadd.f32 %v6023, %v5866
        %v6025 = vadd.f32 %v6024, %v5867
        %6026 = vadd.xlane.f32.xlu0 %v6025
        %v6027 = vpop.xlane.xlu0 %6026
        %6060 = vrot.lane.b32.xlu0 %v2725, 64
        %v6061 = vpop.permute.xlu0 %6060
        %6062 = vrot.lane.b32.xlu0 %v2726, 64
        %v6063 = vpop.permute.xlu0 %6062
        %6064 = vrot.lane.b32.xlu0 %v2727, 64
        %v6065 = vpop.permute.xlu0 %6064
        %6066 = vrot.lane.b32.xlu0 %v2728, 64
        %v6067 = vpop.permute.xlu0 %6066
        %6068 = vrot.lane.b32.xlu0 %v2729, 64
        %v6069 = vpop.permute.xlu0 %6068
        %6070 = vrot.lane.b32.xlu0 %v2730, 64
        %v6071 = vpop.permute.xlu0 %6070
        %6072 = vrot.lane.b32.xlu0 %v2731, 64
        %v6073 = vpop.permute.xlu0 %6072
        %6074 = vrot.lane.b32.xlu0 %v2732, 64
        %v6075 = vpop.permute.xlu0 %6074
        %6076 = vrot.lane.b32.xlu0 %v2733, 64
        %v6077 = vpop.permute.xlu0 %6076
        %6078 = vrot.lane.b32.xlu0 %v2734, 64
        %v6079 = vpop.permute.xlu0 %6078
        %6080 = vrot.lane.b32.xlu0 %v2735, 64
        %v6081 = vpop.permute.xlu0 %6080
        %6082 = vrot.lane.b32.xlu0 %v2736, 64
        %v6083 = vpop.permute.xlu0 %6082
        %6084 = vrot.lane.b32.xlu0 %v2737, 64
        %v6085 = vpop.permute.xlu0 %6084
        %6086 = vrot.lane.b32.xlu0 %v2738, 64
        %v6087 = vpop.permute.xlu0 %6086
        %6088 = vrot.lane.b32.xlu0 %v2739, 64
        %v6089 = vpop.permute.xlu0 %6088
        %6090 = vrot.lane.b32.xlu0 %v2740, 64
        %v6091 = vpop.permute.xlu0 %6090
        %6092 = vrot.lane.b32.xlu0 %v2741, 64
        %v6093 = vpop.permute.xlu0 %6092
        %6094 = vrot.lane.b32.xlu0 %v2742, 64
        %v6095 = vpop.permute.xlu0 %6094
        %6096 = vrot.lane.b32.xlu0 %v2743, 64
        %v6097 = vpop.permute.xlu0 %6096
        %6098 = vrot.lane.b32.xlu0 %v2744, 64
        %v6099 = vpop.permute.xlu0 %6098
        %6100 = vrot.lane.b32.xlu0 %v2745, 64
        %v6101 = vpop.permute.xlu0 %6100
        %6102 = vrot.lane.b32.xlu0 %v2746, 64
        %v6103 = vpop.permute.xlu0 %6102
        %6104 = vrot.lane.b32.xlu0 %v2747, 64
        %v6105 = vpop.permute.xlu0 %6104
        %6106 = vrot.lane.b32.xlu0 %v2748, 64
        %v6107 = vpop.permute.xlu0 %6106
        %6108 = vrot.lane.b32.xlu0 %v2749, 64
        %v6109 = vpop.permute.xlu0 %6108
        %6110 = vrot.lane.b32.xlu0 %v2750, 64
        %v6111 = vpop.permute.xlu0 %6110
        %6112 = vrot.lane.b32.xlu0 %v2751, 64
        %v6113 = vpop.permute.xlu0 %6112
        %6114 = vrot.lane.b32.xlu0 %v2752, 64
        %v6115 = vpop.permute.xlu0 %6114
        %6116 = vrot.lane.b32.xlu0 %v2753, 64
        %v6117 = vpop.permute.xlu0 %6116
        %6118 = vrot.lane.b32.xlu0 %v2754, 64
        %v6119 = vpop.permute.xlu0 %6118
        %6120 = vrot.lane.b32.xlu0 %v2755, 64
        %v6121 = vpop.permute.xlu0 %6120
        %6122 = vrot.lane.b32.xlu0 %v2756, 64
        %v6123 = vpop.permute.xlu0 %6122
        %6156 = vmatprep.subr.bf16.mxu0 0
        %6157 = vmatpush1.bf16.msra.mxu0 %v6061
        %6158 = vmatprep.subr.bf16.mxu0 0
        %6159 = vmatpush1.bf16.msra.mxu0 %v6063
        %6160 = vmatprep.subr.bf16.mxu0 0
        %6161 = vmatpush1.bf16.msra.mxu0 %v6065
        %6162 = vmatprep.subr.bf16.mxu0 0
        %6163 = vmatpush1.bf16.msra.mxu0 %v6067
        %6164 = vmatprep.subr.bf16.mxu0 0
        %6165 = vmatpush1.bf16.msra.mxu0 %v6069
        %6166 = vmatprep.subr.bf16.mxu0 0
        %6167 = vmatpush1.bf16.msra.mxu0 %v6071
        %6168 = vmatprep.subr.bf16.mxu0 0
        %6169 = vmatpush1.bf16.msra.mxu0 %v6073
        %6170 = vmatprep.subr.bf16.mxu0 0
        %6171 = vmatpush1.bf16.msra.mxu0 %v6075
        %6172 = vmatprep.subr.bf16.mxu0 0
        %6173 = vmatpush1.bf16.msra.mxu0 %v6077
        %6174 = vmatprep.subr.bf16.mxu0 0
        %6175 = vmatpush1.bf16.msra.mxu0 %v6079
        %6176 = vmatprep.subr.bf16.mxu0 0
        %6177 = vmatpush1.bf16.msra.mxu0 %v6081
        %6178 = vmatprep.subr.bf16.mxu0 0
        %6179 = vmatpush1.bf16.msra.mxu0 %v6083
        %6180 = vmatprep.subr.bf16.mxu0 0
        %6181 = vmatpush1.bf16.msra.mxu0 %v6085
        %6182 = vmatprep.subr.bf16.mxu0 0
        %6183 = vmatpush1.bf16.msra.mxu0 %v6087
        %6184 = vmatprep.subr.bf16.mxu0 0
        %6185 = vmatpush1.bf16.msra.mxu0 %v6089
        %6186 = vmatprep.subr.bf16.mxu0 0
        %6187 = vmatpush1.bf16.msra.mxu0 %v6091
        %6188 = vmatprep.mubr.bf16.mxu0 %v5553
        %6189 = vmatmul.mubr.bf16.gmra.mrb[0].mxu0 %v5550
        %v6190 = vpop.f32.mrb[0].mxu0
        %v6191 = vadd.f32 0.0, %v6190
        %v6192 = vpop.f32.mrb[0].mxu0
        %v6193 = vpop.f32.mrb[0].mxu0
        %v6194 = vadd.f32 0.0, %v6193
        %v6195 = vpop.f32.mrb[0].mxu0
        %6196 = vmatprep.mubr.bf16.mxu0 %v5565
        %6197 = vmatmul.mubr.bf16.gmra.mrb[0].mxu0 %v5562
        %v6198 = vpop.f32.mrb[0].mxu0
        %v6199 = vadd.f32 0.0, %v6198
        %v6200 = vpop.f32.mrb[0].mxu0
        %v6201 = vpop.f32.mrb[0].mxu0
        %v6202 = vadd.f32 0.0, %v6201
        %v6203 = vpop.f32.mrb[0].mxu0
        %6204 = vmatprep.mubr.bf16.mxu0 %v5577
        %6205 = vmatmul.mubr.bf16.gmra.mrb[0].mxu0 %v5574
        %v6206 = vpop.f32.mrb[0].mxu0
        %v6207 = vadd.f32 0.0, %v6206
        %v6208 = vpop.f32.mrb[0].mxu0
        %v6209 = vpop.f32.mrb[0].mxu0
        %v6210 = vadd.f32 0.0, %v6209
        %v6211 = vpop.f32.mrb[0].mxu0
        %6212 = vmatprep.mubr.bf16.mxu0 %v5589
        %6213 = vmatmul.mubr.bf16.gmra.mrb[0].mxu0 %v5586
        %v6214 = vpop.f32.mrb[0].mxu0
        %v6215 = vadd.f32 0.0, %v6214
        %v6216 = vpop.f32.mrb[0].mxu0
        %v6217 = vpop.f32.mrb[0].mxu0
        %v6218 = vadd.f32 0.0, %v6217
        %v6219 = vpop.f32.mrb[0].mxu0
        %6220 = vmatprep.mubr.bf16.mxu0 %v5601
        %6221 = vmatmul.mubr.bf16.gmra.mrb[0].mxu0 %v5598
        %v6222 = vpop.f32.mrb[0].mxu0
        %v6223 = vadd.f32 0.0, %v6222
        %v6224 = vpop.f32.mrb[0].mxu0
        %v6225 = vpop.f32.mrb[0].mxu0
        %v6226 = vadd.f32 0.0, %v6225
        %v6227 = vpop.f32.mrb[0].mxu0
        %6228 = vmatprep.mubr.bf16.mxu0 %v5613
        %6229 = vmatmul.mubr.bf16.gmra.mrb[0].mxu0 %v5610
        %v6230 = vpop.f32.mrb[0].mxu0
        %v6231 = vadd.f32 0.0, %v6230
        %v6232 = vpop.f32.mrb[0].mxu0
        %v6233 = vpop.f32.mrb[0].mxu0
        %v6234 = vadd.f32 0.0, %v6233
        %v6235 = vpop.f32.mrb[0].mxu0
        %6236 = vmatprep.mubr.bf16.mxu0 %v5625
        %6237 = vmatmul.mubr.bf16.gmra.mrb[0].mxu0 %v5622
        %v6238 = vpop.f32.mrb[0].mxu0
        %v6239 = vadd.f32 0.0, %v6238
        %v6240 = vpop.f32.mrb[0].mxu0
        %v6241 = vpop.f32.mrb[0].mxu0
        %v6242 = vadd.f32 0.0, %v6241
        %v6243 = vpop.f32.mrb[0].mxu0
        %6244 = vmatprep.mubr.bf16.mxu0 %v5637
        %6245 = vmatmul.mubr.bf16.gmra.mrb[0].mxu0 %v5634
        %v6246 = vpop.f32.mrb[0].mxu0
        %v6247 = vadd.f32 0.0, %v6246
        %v6248 = vpop.f32.mrb[0].mxu0
        %v6249 = vpop.f32.mrb[0].mxu0
        %v6250 = vadd.f32 0.0, %v6249
        %v6251 = vpop.f32.mrb[0].mxu0
        %6252 = vmatprep.mubr.bf16.mxu0 %v5649
        %6253 = vmatmul.mubr.bf16.gmra.mrb[0].mxu0 %v5646
        %v6254 = vpop.f32.mrb[0].mxu0
        %v6255 = vadd.f32 0.0, %v6254
        %v6256 = vpop.f32.mrb[0].mxu0
        %v6257 = vpop.f32.mrb[0].mxu0
        %v6258 = vadd.f32 0.0, %v6257
        %v6259 = vpop.f32.mrb[0].mxu0
        %6260 = vmatprep.mubr.bf16.mxu0 %v5661
        %6261 = vmatmul.mubr.bf16.gmra.mrb[0].mxu0 %v5658
        %v6262 = vpop.f32.mrb[0].mxu0
        %v6263 = vadd.f32 0.0, %v6262
        %v6264 = vpop.f32.mrb[0].mxu0
        %v6265 = vpop.f32.mrb[0].mxu0
        %v6266 = vadd.f32 0.0, %v6265
        %v6267 = vpop.f32.mrb[0].mxu0
        %6268 = vmatprep.mubr.bf16.mxu0 %v5673
        %6269 = vmatmul.mubr.bf16.gmra.mrb[0].mxu0 %v5670
        %v6270 = vpop.f32.mrb[0].mxu0
        %v6271 = vadd.f32 0.0, %v6270
        %v6272 = vpop.f32.mrb[0].mxu0
        %v6273 = vpop.f32.mrb[0].mxu0
        %v6274 = vadd.f32 0.0, %v6273
        %v6275 = vpop.f32.mrb[0].mxu0
        %6276 = vmatprep.mubr.bf16.mxu0 %v5685
        %6277 = vmatmul.mubr.bf16.gmra.mrb[0].mxu0 %v5682
        %v6278 = vpop.f32.mrb[0].mxu0
        %v6279 = vadd.f32 0.0, %v6278
        %v6280 = vpop.f32.mrb[0].mxu0
        %v6281 = vpop.f32.mrb[0].mxu0
        %v6282 = vadd.f32 0.0, %v6281
        %v6283 = vpop.f32.mrb[0].mxu0
        %6284 = vmatprep.mubr.bf16.mxu0 %v5697
        %6285 = vmatmul.mubr.bf16.gmra.mrb[0].mxu0 %v5694
        %v6286 = vpop.f32.mrb[0].mxu0
        %v6287 = vadd.f32 0.0, %v6286
        %v6288 = vpop.f32.mrb[0].mxu0
        %v6289 = vpop.f32.mrb[0].mxu0
        %v6290 = vadd.f32 0.0, %v6289
        %v6291 = vpop.f32.mrb[0].mxu0
        %6292 = vmatprep.mubr.bf16.mxu0 %v5709
        %6293 = vmatmul.mubr.bf16.gmra.mrb[0].mxu0 %v5706
        %v6294 = vpop.f32.mrb[0].mxu0
        %v6295 = vadd.f32 0.0, %v6294
        %v6296 = vpop.f32.mrb[0].mxu0
        %v6297 = vpop.f32.mrb[0].mxu0
        %v6298 = vadd.f32 0.0, %v6297
        %v6299 = vpop.f32.mrb[0].mxu0
        %6300 = vmatprep.mubr.bf16.mxu0 %v5721
        %6301 = vmatmul.mubr.bf16.gmra.mrb[0].mxu0 %v5718
        %v6302 = vpop.f32.mrb[0].mxu0
        %v6303 = vadd.f32 0.0, %v6302
        %v6304 = vpop.f32.mrb[0].mxu0
        %v6305 = vpop.f32.mrb[0].mxu0
        %v6306 = vadd.f32 0.0, %v6305
        %v6307 = vpop.f32.mrb[0].mxu0
        %6308 = vmatprep.mubr.bf16.mxu0 %v5733
        %6309 = vmatmul.mubr.bf16.gmra.mrb[0].mxu0 %v5730
        %v6310 = vpop.f32.mrb[0].mxu0
        %v6311 = vadd.f32 0.0, %v6310
        %v6312 = vpop.f32.mrb[0].mxu0
        %v6313 = vpop.f32.mrb[0].mxu0
        %v6314 = vadd.f32 0.0, %v6313
        %v6315 = vpop.f32.mrb[0].mxu0
        %6316 = vdwg.mxu0
        %6317 = vmatprep.subr.bf16.mxu0 0
        %6318 = vmatpush1.bf16.msra.mxu0 %v6093
        %6319 = vmatprep.subr.bf16.mxu0 0
        %6320 = vmatpush1.bf16.msra.mxu0 %v6095
        %6321 = vmatprep.subr.bf16.mxu0 0
        %6322 = vmatpush1.bf16.msra.mxu0 %v6097
        %6323 = vmatprep.subr.bf16.mxu0 0
        %6324 = vmatpush1.bf16.msra.mxu0 %v6099
        %6325 = vmatprep.subr.bf16.mxu0 0
        %6326 = vmatpush1.bf16.msra.mxu0 %v6101
        %6327 = vmatprep.subr.bf16.mxu0 0
        %6328 = vmatpush1.bf16.msra.mxu0 %v6103
        %6329 = vmatprep.subr.bf16.mxu0 0
        %6330 = vmatpush1.bf16.msra.mxu0 %v6105
        %6331 = vmatprep.subr.bf16.mxu0 0
        %6332 = vmatpush1.bf16.msra.mxu0 %v6107
        %6333 = vmatprep.subr.bf16.mxu0 0
        %6334 = vmatpush1.bf16.msra.mxu0 %v6109
        %6335 = vmatprep.subr.bf16.mxu0 0
        %6336 = vmatpush1.bf16.msra.mxu0 %v6111
        %6337 = vmatprep.subr.bf16.mxu0 0
        %6338 = vmatpush1.bf16.msra.mxu0 %v6113
        %6339 = vmatprep.subr.bf16.mxu0 0
        %6340 = vmatpush1.bf16.msra.mxu0 %v6115
        %6341 = vmatprep.subr.bf16.mxu0 0
        %6342 = vmatpush1.bf16.msra.mxu0 %v6117
        %6343 = vmatprep.subr.bf16.mxu0 0
        %6344 = vmatpush1.bf16.msra.mxu0 %v6119
        %6345 = vmatprep.subr.bf16.mxu0 0
        %6346 = vmatpush1.bf16.msra.mxu0 %v6121
        %6347 = vmatprep.subr.bf16.mxu0 0
        %6348 = vmatpush1.bf16.msra.mxu0 %v6123
        %6349 = vmatprep.mubr.bf16.mxu0 %v5559
        %6350 = vmatmul.mubr.bf16.gmra.mrb[0].mxu0 %v5556
        %v6351 = vpop.f32.mrb[0].mxu0
        %v6352 = vadd.f32 %v6191, %v6351
        %v6353 = vpop.f32.mrb[0].mxu0
        %v6354 = vpop.f32.mrb[0].mxu0
        %v6355 = vadd.f32 %v6194, %v6354
        %v6356 = vpop.f32.mrb[0].mxu0
        %6357 = vmatprep.mubr.bf16.mxu0 %v5571
        %6358 = vmatmul.mubr.bf16.gmra.mrb[0].mxu0 %v5568
        %v6359 = vpop.f32.mrb[0].mxu0
        %v6360 = vadd.f32 %v6199, %v6359
        %v6361 = vpop.f32.mrb[0].mxu0
        %v6362 = vpop.f32.mrb[0].mxu0
        %v6363 = vadd.f32 %v6202, %v6362
        %v6364 = vpop.f32.mrb[0].mxu0
        %6365 = vmatprep.mubr.bf16.mxu0 %v5583
        %6366 = vmatmul.mubr.bf16.gmra.mrb[0].mxu0 %v5580
        %v6367 = vpop.f32.mrb[0].mxu0
        %v6368 = vadd.f32 %v6207, %v6367
        %v6369 = vpop.f32.mrb[0].mxu0
        %v6370 = vpop.f32.mrb[0].mxu0
        %v6371 = vadd.f32 %v6210, %v6370
        %v6372 = vpop.f32.mrb[0].mxu0
        %6373 = vmatprep.mubr.bf16.mxu0 %v5595
        %6374 = vmatmul.mubr.bf16.gmra.mrb[0].mxu0 %v5592
        %v6375 = vpop.f32.mrb[0].mxu0
        %v6376 = vadd.f32 %v6215, %v6375
        %v6377 = vpop.f32.mrb[0].mxu0
        %v6378 = vpop.f32.mrb[0].mxu0
        %v6379 = vadd.f32 %v6218, %v6378
        %v6380 = vpop.f32.mrb[0].mxu0
        %6381 = vmatprep.mubr.bf16.mxu0 %v5607
        %6382 = vmatmul.mubr.bf16.gmra.mrb[0].mxu0 %v5604
        %v6383 = vpop.f32.mrb[0].mxu0
        %v6384 = vadd.f32 %v6223, %v6383
        %v6385 = vpop.f32.mrb[0].mxu0
        %v6386 = vpop.f32.mrb[0].mxu0
        %v6387 = vadd.f32 %v6226, %v6386
        %v6388 = vpop.f32.mrb[0].mxu0
        %6389 = vmatprep.mubr.bf16.mxu0 %v5619
        %6390 = vmatmul.mubr.bf16.gmra.mrb[0].mxu0 %v5616
        %v6391 = vpop.f32.mrb[0].mxu0
        %v6392 = vadd.f32 %v6231, %v6391
        %v6393 = vpop.f32.mrb[0].mxu0
        %v6394 = vpop.f32.mrb[0].mxu0
        %v6395 = vadd.f32 %v6234, %v6394
        %v6396 = vpop.f32.mrb[0].mxu0
        %6397 = vmatprep.mubr.bf16.mxu0 %v5631
        %6398 = vmatmul.mubr.bf16.gmra.mrb[0].mxu0 %v5628
        %v6399 = vpop.f32.mrb[0].mxu0
        %v6400 = vadd.f32 %v6239, %v6399
        %v6401 = vpop.f32.mrb[0].mxu0
        %v6402 = vpop.f32.mrb[0].mxu0
        %v6403 = vadd.f32 %v6242, %v6402
        %v6404 = vpop.f32.mrb[0].mxu0
        %6405 = vmatprep.mubr.bf16.mxu0 %v5643
        %6406 = vmatmul.mubr.bf16.gmra.mrb[0].mxu0 %v5640
        %v6407 = vpop.f32.mrb[0].mxu0
        %v6408 = vadd.f32 %v6247, %v6407
        %v6409 = vpop.f32.mrb[0].mxu0
        %v6410 = vpop.f32.mrb[0].mxu0
        %v6411 = vadd.f32 %v6250, %v6410
        %v6412 = vpop.f32.mrb[0].mxu0
        %6413 = vmatprep.mubr.bf16.mxu0 %v5655
        %6414 = vmatmul.mubr.bf16.gmra.mrb[0].mxu0 %v5652
        %v6415 = vpop.f32.mrb[0].mxu0
        %v6416 = vadd.f32 %v6255, %v6415
        %v6417 = vpop.f32.mrb[0].mxu0
        %v6418 = vpop.f32.mrb[0].mxu0
        %v6419 = vadd.f32 %v6258, %v6418
        %v6420 = vpop.f32.mrb[0].mxu0
        %6421 = vmatprep.mubr.bf16.mxu0 %v5667
        %6422 = vmatmul.mubr.bf16.gmra.mrb[0].mxu0 %v5664
        %v6423 = vpop.f32.mrb[0].mxu0
        %v6424 = vadd.f32 %v6263, %v6423
        %v6425 = vpop.f32.mrb[0].mxu0
        %v6426 = vpop.f32.mrb[0].mxu0
        %v6427 = vadd.f32 %v6266, %v6426
        %v6428 = vpop.f32.mrb[0].mxu0
        %6429 = vmatprep.mubr.bf16.mxu0 %v5679
        %6430 = vmatmul.mubr.bf16.gmra.mrb[0].mxu0 %v5676
        %v6431 = vpop.f32.mrb[0].mxu0
        %v6432 = vadd.f32 %v6271, %v6431
        %v6433 = vpop.f32.mrb[0].mxu0
        %v6434 = vpop.f32.mrb[0].mxu0
        %v6435 = vadd.f32 %v6274, %v6434
        %v6436 = vpop.f32.mrb[0].mxu0
        %6437 = vmatprep.mubr.bf16.mxu0 %v5691
        %6438 = vmatmul.mubr.bf16.gmra.mrb[0].mxu0 %v5688
        %v6439 = vpop.f32.mrb[0].mxu0
        %v6440 = vadd.f32 %v6279, %v6439
        %v6441 = vpop.f32.mrb[0].mxu0
        %v6442 = vpop.f32.mrb[0].mxu0
        %v6443 = vadd.f32 %v6282, %v6442
        %v6444 = vpop.f32.mrb[0].mxu0
        %6445 = vmatprep.mubr.bf16.mxu0 %v5703
        %6446 = vmatmul.mubr.bf16.gmra.mrb[0].mxu0 %v5700
        %v6447 = vpop.f32.mrb[0].mxu0
        %v6448 = vadd.f32 %v6287, %v6447
        %v6449 = vpop.f32.mrb[0].mxu0
        %v6450 = vpop.f32.mrb[0].mxu0
        %v6451 = vadd.f32 %v6290, %v6450
        %v6452 = vpop.f32.mrb[0].mxu0
        %6453 = vmatprep.mubr.bf16.mxu0 %v5715
        %6454 = vmatmul.mubr.bf16.gmra.mrb[0].mxu0 %v5712
        %v6455 = vpop.f32.mrb[0].mxu0
        %v6456 = vadd.f32 %v6295, %v6455
        %v6457 = vpop.f32.mrb[0].mxu0
        %v6458 = vpop.f32.mrb[0].mxu0
        %v6459 = vadd.f32 %v6298, %v6458
        %v6460 = vpop.f32.mrb[0].mxu0
        %6461 = vmatprep.mubr.bf16.mxu0 %v5727
        %6462 = vmatmul.mubr.bf16.gmra.mrb[0].mxu0 %v5724
        %v6463 = vpop.f32.mrb[0].mxu0
        %v6464 = vadd.f32 %v6303, %v6463
        %v6465 = vpop.f32.mrb[0].mxu0
        %v6466 = vpop.f32.mrb[0].mxu0
        %v6467 = vadd.f32 %v6306, %v6466
        %v6468 = vpop.f32.mrb[0].mxu0
        %6469 = vmatprep.mubr.bf16.mxu0 %v5739
        %6470 = vmatmul.mubr.bf16.gmra.mrb[0].mxu0 %v5736
        %v6471 = vpop.f32.mrb[0].mxu0
        %v6472 = vadd.f32 %v6311, %v6471
        %v6473 = vpop.f32.mrb[0].mxu0
        %v6474 = vpop.f32.mrb[0].mxu0
        %v6475 = vadd.f32 %v6314, %v6474
        %v6476 = vpop.f32.mrb[0].mxu0
        %6477 = vdwg.mxu0
        %v6478 = vrcp.pop %v5872
        %v6479 = vrcp.pop %v5877
        %v6480 = vrcp.pop %v5882
        %v6481 = vrcp.pop %v5887
        %v6482 = vrcp.pop %v5892
        %v6483 = vrcp.pop %v5897
        %v6484 = vrcp.pop %v5902
        %v6485 = vrcp.pop %v5907
        %v6486 = vrcp.pop %v5912
        %v6487 = vrcp.pop %v5917
        %v6488 = vrcp.pop %v5922
        %v6489 = vrcp.pop %v5927
        %v6490 = vrcp.pop %v5932
        %v6491 = vrcp.pop %v5937
        %v6492 = vrcp.pop %v5942
        %v6493 = vrcp.pop %v5947
        %v6494 = vrcp.pop %v5952
        %v6495 = vrcp.pop %v5957
        %v6496 = vrcp.pop %v5962
        %v6497 = vrcp.pop %v5967
        %v6498 = vrcp.pop %v5972
        %v6499 = vrcp.pop %v5977
        %v6500 = vrcp.pop %v5982
        %v6501 = vrcp.pop %v5987
        %v6502 = vrcp.pop %v5992
        %v6503 = vrcp.pop %v5997
        %v6504 = vrcp.pop %v6002
        %v6505 = vrcp.pop %v6007
        %v6506 = vrcp.pop %v6012
        %v6507 = vrcp.pop %v6017
        %v6508 = vrcp.pop %v6022
        %v6509 = vrcp.pop %v6027
        %v6510 = vmul.f32 %v6352, %v6478
        %v6511 = vmul.f32 %v6355, %v6479
        %v6512 = vmul.f32 %v6360, %v6480
        %v6513 = vmul.f32 %v6363, %v6481
        %v6514 = vmul.f32 %v6368, %v6482
        %v6515 = vmul.f32 %v6371, %v6483
        %v6516 = vmul.f32 %v6376, %v6484
        %v6517 = vmul.f32 %v6379, %v6485
        %v6518 = vmul.f32 %v6384, %v6486
        %v6519 = vmul.f32 %v6387, %v6487
        %v6520 = vmul.f32 %v6392, %v6488
        %v6521 = vmul.f32 %v6395, %v6489
        %v6522 = vmul.f32 %v6400, %v6490
        %v6523 = vmul.f32 %v6403, %v6491
        %v6524 = vmul.f32 %v6408, %v6492
        %v6525 = vmul.f32 %v6411, %v6493
        %v6526 = vmul.f32 %v6416, %v6494
        %v6527 = vmul.f32 %v6419, %v6495
        %v6528 = vmul.f32 %v6424, %v6496
        %v6529 = vmul.f32 %v6427, %v6497
        %v6530 = vmul.f32 %v6432, %v6498
        %v6531 = vmul.f32 %v6435, %v6499
        %v6532 = vmul.f32 %v6440, %v6500
        %v6533 = vmul.f32 %v6443, %v6501
        %v6534 = vmul.f32 %v6448, %v6502
        %v6535 = vmul.f32 %v6451, %v6503
        %v6536 = vmul.f32 %v6456, %v6504
        %v6537 = vmul.f32 %v6459, %v6505
        %v6538 = vmul.f32 %v6464, %v6506
        %v6539 = vmul.f32 %v6467, %v6507
        %v6540 = vmul.f32 %v6472, %v6508
        %v6541 = vmul.f32 %v6475, %v6509
        %v6542 = vpack.c.bf16 %v6511, %v6510
        %v6543 = vpack.c.bf16 %v6513, %v6512
        %v6544 = vpack.c.bf16 %v6515, %v6514
        %v6545 = vpack.c.bf16 %v6517, %v6516
        %v6546 = vpack.c.bf16 %v6519, %v6518
        %v6547 = vpack.c.bf16 %v6521, %v6520
        %v6548 = vpack.c.bf16 %v6523, %v6522
        %v6549 = vpack.c.bf16 %v6525, %v6524
        %v6550 = vpack.c.bf16 %v6527, %v6526
        %v6551 = vpack.c.bf16 %v6529, %v6528
        %v6552 = vpack.c.bf16 %v6531, %v6530
        %v6553 = vpack.c.bf16 %v6533, %v6532
        %v6554 = vpack.c.bf16 %v6535, %v6534
        %v6555 = vpack.c.bf16 %v6537, %v6536
        %v6556 = vpack.c.bf16 %v6539, %v6538
        %v6557 = vpack.c.bf16 %v6541, %v6540
        %6574 = vrot.lane.b32.xlu0 %v6542, 64
        %v6575 = vpop.permute.xlu0 %6574
        %6576 = vrot.lane.b32.xlu0 %v6543, 64
        %v6577 = vpop.permute.xlu0 %6576
        %6578 = vrot.lane.b32.xlu0 %v6544, 64
        %v6579 = vpop.permute.xlu0 %6578
        %6580 = vrot.lane.b32.xlu0 %v6545, 64
        %v6581 = vpop.permute.xlu0 %6580
        %6582 = vrot.lane.b32.xlu0 %v6546, 64
        %v6583 = vpop.permute.xlu0 %6582
        %6584 = vrot.lane.b32.xlu0 %v6547, 64
        %v6585 = vpop.permute.xlu0 %6584
        %6586 = vrot.lane.b32.xlu0 %v6548, 64
        %v6587 = vpop.permute.xlu0 %6586
        %6588 = vrot.lane.b32.xlu0 %v6549, 64
        %v6589 = vpop.permute.xlu0 %6588
        %6590 = vrot.lane.b32.xlu0 %v6550, 64
        %v6591 = vpop.permute.xlu0 %6590
        %6592 = vrot.lane.b32.xlu0 %v6551, 64
        %v6593 = vpop.permute.xlu0 %6592
        %6594 = vrot.lane.b32.xlu0 %v6552, 64
        %v6595 = vpop.permute.xlu0 %6594
        %6596 = vrot.lane.b32.xlu0 %v6553, 64
        %v6597 = vpop.permute.xlu0 %6596
        %6598 = vrot.lane.b32.xlu0 %v6554, 64
        %v6599 = vpop.permute.xlu0 %6598
        %6600 = vrot.lane.b32.xlu0 %v6555, 64
        %v6601 = vpop.permute.xlu0 %6600
        %6602 = vrot.lane.b32.xlu0 %v6556, 64
        %v6603 = vpop.permute.xlu0 %6602
        %6604 = vrot.lane.b32.xlu0 %v6557, 64
        %v6605 = vpop.permute.xlu0 %6604
        %v6608 = vsel %vm2757, %v4506, %v6575
        %v6612 = vsel %vm2757, %v4507, %v6577
        %v6616 = vsel %vm2757, %v4508, %v6579
        %v6620 = vsel %vm2757, %v4509, %v6581
        %v6624 = vsel %vm2757, %v4510, %v6583
        %v6628 = vsel %vm2757, %v4511, %v6585
        %v6632 = vsel %vm2757, %v4512, %v6587
        %v6636 = vsel %vm2757, %v4513, %v6589
        %v6640 = vsel %vm2757, %v4514, %v6591
        %v6644 = vsel %vm2757, %v4515, %v6593
        %v6648 = vsel %vm2757, %v4516, %v6595
        %v6652 = vsel %vm2757, %v4517, %v6597
        %v6656 = vsel %vm2757, %v4518, %v6599
        %v6660 = vsel %vm2757, %v4519, %v6601
        %v6664 = vsel %vm2757, %v4520, %v6603
        %v6668 = vsel %vm2757, %v4521, %v6605
        %6670 = vst [vmem:[#allocation4] sm:$0xff] %v6608
        %6671 = vst [vmem:[#allocation4 + $0x10] sm:$0xff] %v6612
        %6672 = vst [vmem:[#allocation4 + $0x20] sm:$0xff] %v6616
        %6673 = vst [vmem:[#allocation4 + $0x30] sm:$0xff] %v6620
        %6674 = vst [vmem:[#allocation4 + $0x40] sm:$0xff] %v6624
        %6675 = vst [vmem:[#allocation4 + $0x50] sm:$0xff] %v6628
        %6676 = vst [vmem:[#allocation4 + $0x60] sm:$0xff] %v6632
        %6677 = vst [vmem:[#allocation4 + $0x70] sm:$0xff] %v6636
        %6678 = vst [vmem:[#allocation4 + $0x80] sm:$0xff] %v6640
        %6679 = vst [vmem:[#allocation4 + $0x90] sm:$0xff] %v6644
        %6680 = vst [vmem:[#allocation4 + $0xa0] sm:$0xff] %v6648
        %6681 = vst [vmem:[#allocation4 + $0xb0] sm:$0xff] %v6652
        %6682 = vst [vmem:[#allocation4 + $0xc0] sm:$0xff] %v6656
        %6683 = vst [vmem:[#allocation4 + $0xd0] sm:$0xff] %v6660
        %6684 = vst [vmem:[#allocation4 + $0xe0] sm:$0xff] %v6664
        %6685 = vst [vmem:[#allocation4 + $0xf0] sm:$0xff] %v6668
        %v6686 = vld [vmem:[#allocation2 + $0x8] sm:$0xff]
        %v6687 = vld [vmem:[#allocation2 + $0x18] sm:$0xff]
        %v6688 = vld [vmem:[#allocation2 + $0x28] sm:$0xff]
        %v6689 = vld [vmem:[#allocation2 + $0x38] sm:$0xff]
        %v6690 = vld [vmem:[#allocation2 + $0x48] sm:$0xff]
        %v6691 = vld [vmem:[#allocation2 + $0x58] sm:$0xff]
        %v6692 = vld [vmem:[#allocation2 + $0x68] sm:$0xff]
        %v6693 = vld [vmem:[#allocation2 + $0x78] sm:$0xff]
        %v6694 = vld [vmem:[#allocation2 + $0x88] sm:$0xff]
        %v6695 = vld [vmem:[#allocation2 + $0x98] sm:$0xff]
        %v6696 = vld [vmem:[#allocation2 + $0xa8] sm:$0xff]
        %v6697 = vld [vmem:[#allocation2 + $0xb8] sm:$0xff]
        %v6698 = vld [vmem:[#allocation2 + $0xc8] sm:$0xff]
        %v6699 = vld [vmem:[#allocation2 + $0xd8] sm:$0xff]
        %v6700 = vld [vmem:[#allocation2 + $0xe8] sm:$0xff]
        %v6701 = vld [vmem:[#allocation2 + $0xf8] sm:$0xff]
        %v6702 = vld [vmem:[#allocation2 + $0x108] sm:$0xff]
        %v6703 = vld [vmem:[#allocation2 + $0x118] sm:$0xff]
        %v6704 = vld [vmem:[#allocation2 + $0x128] sm:$0xff]
        %v6705 = vld [vmem:[#allocation2 + $0x138] sm:$0xff]
        %v6706 = vld [vmem:[#allocation2 + $0x148] sm:$0xff]
        %v6707 = vld [vmem:[#allocation2 + $0x158] sm:$0xff]
        %v6708 = vld [vmem:[#allocation2 + $0x168] sm:$0xff]
        %v6709 = vld [vmem:[#allocation2 + $0x178] sm:$0xff]
        %v6710 = vld [vmem:[#allocation2 + $0x188] sm:$0xff]
        %v6711 = vld [vmem:[#allocation2 + $0x198] sm:$0xff]
        %v6712 = vld [vmem:[#allocation2 + $0x1a8] sm:$0xff]
        %v6713 = vld [vmem:[#allocation2 + $0x1b8] sm:$0xff]
        %v6714 = vld [vmem:[#allocation2 + $0x1c8] sm:$0xff]
        %v6715 = vld [vmem:[#allocation2 + $0x1d8] sm:$0xff]
        %v6716 = vld [vmem:[#allocation2 + $0x1e8] sm:$0xff]
        %v6717 = vld [vmem:[#allocation2 + $0x1f8] sm:$0xff]
        %v6718 = vld [vmem:[#allocation3 + $0x8] sm:$0xff]
        %v6719 = vld [vmem:[#allocation3 + $0x18] sm:$0xff]
        %v6720 = vld [vmem:[#allocation3 + $0x28] sm:$0xff]
        %v6721 = vld [vmem:[#allocation3 + $0x38] sm:$0xff]
        %v6722 = vld [vmem:[#allocation3 + $0x48] sm:$0xff]
        %v6723 = vld [vmem:[#allocation3 + $0x58] sm:$0xff]
        %v6724 = vld [vmem:[#allocation3 + $0x68] sm:$0xff]
        %v6725 = vld [vmem:[#allocation3 + $0x78] sm:$0xff]
        %v6726 = vld [vmem:[#allocation3 + $0x88] sm:$0xff]
        %v6727 = vld [vmem:[#allocation3 + $0x98] sm:$0xff]
        %v6728 = vld [vmem:[#allocation3 + $0xa8] sm:$0xff]
        %v6729 = vld [vmem:[#allocation3 + $0xb8] sm:$0xff]
        %v6730 = vld [vmem:[#allocation3 + $0xc8] sm:$0xff]
        %v6731 = vld [vmem:[#allocation3 + $0xd8] sm:$0xff]
        %v6732 = vld [vmem:[#allocation3 + $0xe8] sm:$0xff]
        %v6733 = vld [vmem:[#allocation3 + $0xf8] sm:$0xff]
        %v6734 = vld [vmem:[#allocation3 + $0x108] sm:$0xff]
        %v6735 = vld [vmem:[#allocation3 + $0x118] sm:$0xff]
        %v6736 = vld [vmem:[#allocation3 + $0x128] sm:$0xff]
        %v6737 = vld [vmem:[#allocation3 + $0x138] sm:$0xff]
        %v6738 = vld [vmem:[#allocation3 + $0x148] sm:$0xff]
        %v6739 = vld [vmem:[#allocation3 + $0x158] sm:$0xff]
        %v6740 = vld [vmem:[#allocation3 + $0x168] sm:$0xff]
        %v6741 = vld [vmem:[#allocation3 + $0x178] sm:$0xff]
        %v6742 = vld [vmem:[#allocation3 + $0x188] sm:$0xff]
        %v6743 = vld [vmem:[#allocation3 + $0x198] sm:$0xff]
        %v6744 = vld [vmem:[#allocation3 + $0x1a8] sm:$0xff]
        %v6745 = vld [vmem:[#allocation3 + $0x1b8] sm:$0xff]
        %v6746 = vld [vmem:[#allocation3 + $0x1c8] sm:$0xff]
        %v6747 = vld [vmem:[#allocation3 + $0x1d8] sm:$0xff]
        %v6748 = vld [vmem:[#allocation3 + $0x1e8] sm:$0xff]
        %v6749 = vld [vmem:[#allocation3 + $0x1f8] sm:$0xff]
        %v6751 = vsel %vm2757, %v2662, 0
        %v6754 = vsel %vm2757, %v2664, 0
        %v6757 = vsel %vm2757, %v2666, 0
        %v6760 = vsel %vm2757, %v2668, 0
        %v6763 = vsel %vm2757, %v2670, 0
        %v6766 = vsel %vm2757, %v2672, 0
        %v6769 = vsel %vm2757, %v2674, 0
        %v6772 = vsel %vm2757, %v2676, 0
        %v6775 = vsel %vm2757, %v2678, 0
        %v6778 = vsel %vm2757, %v2680, 0
        %v6781 = vsel %vm2757, %v2682, 0
        %v6784 = vsel %vm2757, %v2684, 0
        %v6787 = vsel %vm2757, %v2686, 0
        %v6790 = vsel %vm2757, %v2688, 0
        %v6793 = vsel %vm2757, %v2690, 0
        %v6796 = vsel %vm2757, %v2692, 0
        %v6799 = vsel %vm2757, %v6686, 0
        %v6802 = vsel %vm2757, %v6687, 0
        %v6805 = vsel %vm2757, %v6688, 0
        %v6808 = vsel %vm2757, %v6689, 0
        %v6811 = vsel %vm2757, %v6690, 0
        %v6814 = vsel %vm2757, %v6691, 0
        %v6817 = vsel %vm2757, %v6692, 0
        %v6820 = vsel %vm2757, %v6693, 0
        %v6823 = vsel %vm2757, %v6694, 0
        %v6826 = vsel %vm2757, %v6695, 0
        %v6829 = vsel %vm2757, %v6696, 0
        %v6832 = vsel %vm2757, %v6697, 0
        %v6835 = vsel %vm2757, %v6698, 0
        %v6838 = vsel %vm2757, %v6699, 0
        %v6841 = vsel %vm2757, %v6700, 0
        %v6844 = vsel %vm2757, %v6701, 0
        %v6847 = vsel %vm2757, %v6702, 0
        %v6850 = vsel %vm2757, %v6703, 0
        %v6853 = vsel %vm2757, %v6704, 0
        %v6856 = vsel %vm2757, %v6705, 0
        %v6859 = vsel %vm2757, %v6706, 0
        %v6862 = vsel %vm2757, %v6707, 0
        %v6865 = vsel %vm2757, %v6708, 0
        %v6868 = vsel %vm2757, %v6709, 0
        %v6871 = vsel %vm2757, %v6710, 0
        %v6874 = vsel %vm2757, %v6711, 0
        %v6877 = vsel %vm2757, %v6712, 0
        %v6880 = vsel %vm2757, %v6713, 0
        %v6883 = vsel %vm2757, %v6714, 0
        %v6886 = vsel %vm2757, %v6715, 0
        %v6889 = vsel %vm2757, %v6716, 0
        %v6892 = vsel %vm2757, %v6717, 0
        %6894 = vmatprep.subr.bf16.mxu0 0
        %6895 = vmatpush1.bf16.xpose.msra.mxu0 %v6799
        %6896 = vmatprep.subr.bf16.mxu0 0
        %6897 = vmatpush1.bf16.xpose.msra.mxu0 %v6802
        %6898 = vmatprep.subr.bf16.mxu0 0
        %6899 = vmatpush1.bf16.xpose.msra.mxu0 %v6805
        %6900 = vmatprep.subr.bf16.mxu0 0
        %6901 = vmatpush1.bf16.xpose.msra.mxu0 %v6808
        %6902 = vmatprep.subr.bf16.mxu0 0
        %6903 = vmatpush1.bf16.xpose.msra.mxu0 %v6811
        %6904 = vmatprep.subr.bf16.mxu0 0
        %6905 = vmatpush1.bf16.xpose.msra.mxu0 %v6814
        %6906 = vmatprep.subr.bf16.mxu0 0
        %6907 = vmatpush1.bf16.xpose.msra.mxu0 %v6817
        %6908 = vmatprep.subr.bf16.mxu0 0
        %6909 = vmatpush1.bf16.xpose.msra.mxu0 %v6820
        %6910 = vmatprep.subr.bf16.mxu0 0
        %6911 = vmatpush1.bf16.xpose.msra.mxu0 %v6823
        %6912 = vmatprep.subr.bf16.mxu0 0
        %6913 = vmatpush1.bf16.xpose.msra.mxu0 %v6826
        %6914 = vmatprep.subr.bf16.mxu0 0
        %6915 = vmatpush1.bf16.xpose.msra.mxu0 %v6829
        %6916 = vmatprep.subr.bf16.mxu0 0
        %6917 = vmatpush1.bf16.xpose.msra.mxu0 %v6832
        %6918 = vmatprep.subr.bf16.mxu0 0
        %6919 = vmatpush1.bf16.xpose.msra.mxu0 %v6835
        %6920 = vmatprep.subr.bf16.mxu0 0
        %6921 = vmatpush1.bf16.xpose.msra.mxu0 %v6838
        %6922 = vmatprep.subr.bf16.mxu0 0
        %6923 = vmatpush1.bf16.xpose.msra.mxu0 %v6841
        %6924 = vmatprep.subr.bf16.mxu0 0
        %6925 = vmatpush1.bf16.xpose.msra.mxu0 %v6844
        %6926 = vmatprep.mubr.bf16.mxu0 0
        %6927 = vmatmul.mubr.bf16.gmra.mrb[0].mxu0 %v6751
        %v6928 = vpop.f32.mrb[0].mxu0
        %v6929 = vadd.f32 0.0, %v6928
        %v6930 = vpop.f32.mrb[0].mxu0
        %v6931 = vadd.f32 0.0, %v6930
        %v6932 = vpop.f32.mrb[0].mxu0
        %v6933 = vadd.f32 0.0, %v6932
        %v6934 = vpop.f32.mrb[0].mxu0
        %v6935 = vadd.f32 0.0, %v6934
        %6936 = vmatprep.mubr.bf16.mxu0 0
        %6937 = vmatmul.mubr.bf16.gmra.mrb[0].mxu0 %v6754
        %v6938 = vpop.f32.mrb[0].mxu0
        %v6939 = vadd.f32 0.0, %v6938
        %v6940 = vpop.f32.mrb[0].mxu0
        %v6941 = vadd.f32 0.0, %v6940
        %v6942 = vpop.f32.mrb[0].mxu0
        %v6943 = vadd.f32 0.0, %v6942
        %v6944 = vpop.f32.mrb[0].mxu0
        %v6945 = vadd.f32 0.0, %v6944
        %6946 = vmatprep.mubr.bf16.mxu0 0
        %6947 = vmatmul.mubr.bf16.gmra.mrb[0].mxu0 %v6757
        %v6948 = vpop.f32.mrb[0].mxu0
        %v6949 = vadd.f32 0.0, %v6948
        %v6950 = vpop.f32.mrb[0].mxu0
        %v6951 = vadd.f32 0.0, %v6950
        %v6952 = vpop.f32.mrb[0].mxu0
        %v6953 = vadd.f32 0.0, %v6952
        %v6954 = vpop.f32.mrb[0].mxu0
        %v6955 = vadd.f32 0.0, %v6954
        %6956 = vmatprep.mubr.bf16.mxu0 0
        %6957 = vmatmul.mubr.bf16.gmra.mrb[0].mxu0 %v6760
        %v6958 = vpop.f32.mrb[0].mxu0
        %v6959 = vadd.f32 0.0, %v6958
        %v6960 = vpop.f32.mrb[0].mxu0
        %v6961 = vadd.f32 0.0, %v6960
        %v6962 = vpop.f32.mrb[0].mxu0
        %v6963 = vadd.f32 0.0, %v6962
        %v6964 = vpop.f32.mrb[0].mxu0
        %v6965 = vadd.f32 0.0, %v6964
        %6966 = vmatprep.mubr.bf16.mxu0 0
        %6967 = vmatmul.mubr.bf16.gmra.mrb[0].mxu0 %v6763
        %v6968 = vpop.f32.mrb[0].mxu0
        %v6969 = vadd.f32 0.0, %v6968
        %v6970 = vpop.f32.mrb[0].mxu0
        %v6971 = vadd.f32 0.0, %v6970
        %v6972 = vpop.f32.mrb[0].mxu0
        %v6973 = vadd.f32 0.0, %v6972
        %v6974 = vpop.f32.mrb[0].mxu0
        %v6975 = vadd.f32 0.0, %v6974
        %6976 = vmatprep.mubr.bf16.mxu0 0
        %6977 = vmatmul.mubr.bf16.gmra.mrb[0].mxu0 %v6766
        %v6978 = vpop.f32.mrb[0].mxu0
        %v6979 = vadd.f32 0.0, %v6978
        %v6980 = vpop.f32.mrb[0].mxu0
        %v6981 = vadd.f32 0.0, %v6980
        %v6982 = vpop.f32.mrb[0].mxu0
        %v6983 = vadd.f32 0.0, %v6982
        %v6984 = vpop.f32.mrb[0].mxu0
        %v6985 = vadd.f32 0.0, %v6984
        %6986 = vmatprep.mubr.bf16.mxu0 0
        %6987 = vmatmul.mubr.bf16.gmra.mrb[0].mxu0 %v6769
        %v6988 = vpop.f32.mrb[0].mxu0
        %v6989 = vadd.f32 0.0, %v6988
        %v6990 = vpop.f32.mrb[0].mxu0
        %v6991 = vadd.f32 0.0, %v6990
        %v6992 = vpop.f32.mrb[0].mxu0
        %v6993 = vadd.f32 0.0, %v6992
        %v6994 = vpop.f32.mrb[0].mxu0
        %v6995 = vadd.f32 0.0, %v6994
        %6996 = vmatprep.mubr.bf16.mxu0 0
        %6997 = vmatmul.mubr.bf16.gmra.mrb[0].mxu0 %v6772
        %v6998 = vpop.f32.mrb[0].mxu0
        %v6999 = vadd.f32 0.0, %v6998
        %v7000 = vpop.f32.mrb[0].mxu0
        %v7001 = vadd.f32 0.0, %v7000
        %v7002 = vpop.f32.mrb[0].mxu0
        %v7003 = vadd.f32 0.0, %v7002
        %v7004 = vpop.f32.mrb[0].mxu0
        %v7005 = vadd.f32 0.0, %v7004
        %7006 = vmatprep.mubr.bf16.mxu0 0
        %7007 = vmatmul.mubr.bf16.gmra.mrb[0].mxu0 %v6775
        %v7008 = vpop.f32.mrb[0].mxu0
        %v7009 = vadd.f32 0.0, %v7008
        %v7010 = vpop.f32.mrb[0].mxu0
        %v7011 = vadd.f32 0.0, %v7010
        %v7012 = vpop.f32.mrb[0].mxu0
        %v7013 = vadd.f32 0.0, %v7012
        %v7014 = vpop.f32.mrb[0].mxu0
        %v7015 = vadd.f32 0.0, %v7014
        %7016 = vmatprep.mubr.bf16.mxu0 0
        %7017 = vmatmul.mubr.bf16.gmra.mrb[0].mxu0 %v6778
        %v7018 = vpop.f32.mrb[0].mxu0
        %v7019 = vadd.f32 0.0, %v7018
        %v7020 = vpop.f32.mrb[0].mxu0
        %v7021 = vadd.f32 0.0, %v7020
        %v7022 = vpop.f32.mrb[0].mxu0
        %v7023 = vadd.f32 0.0, %v7022
        %v7024 = vpop.f32.mrb[0].mxu0
        %v7025 = vadd.f32 0.0, %v7024
        %7026 = vmatprep.mubr.bf16.mxu0 0
        %7027 = vmatmul.mubr.bf16.gmra.mrb[0].mxu0 %v6781
        %v7028 = vpop.f32.mrb[0].mxu0
        %v7029 = vadd.f32 0.0, %v7028
        %v7030 = vpop.f32.mrb[0].mxu0
        %v7031 = vadd.f32 0.0, %v7030
        %v7032 = vpop.f32.mrb[0].mxu0
        %v7033 = vadd.f32 0.0, %v7032
        %v7034 = vpop.f32.mrb[0].mxu0
        %v7035 = vadd.f32 0.0, %v7034
        %7036 = vmatprep.mubr.bf16.mxu0 0
        %7037 = vmatmul.mubr.bf16.gmra.mrb[0].mxu0 %v6784
        %v7038 = vpop.f32.mrb[0].mxu0
        %v7039 = vadd.f32 0.0, %v7038
        %v7040 = vpop.f32.mrb[0].mxu0
        %v7041 = vadd.f32 0.0, %v7040
        %v7042 = vpop.f32.mrb[0].mxu0
        %v7043 = vadd.f32 0.0, %v7042
        %v7044 = vpop.f32.mrb[0].mxu0
        %v7045 = vadd.f32 0.0, %v7044
        %7046 = vmatprep.mubr.bf16.mxu0 0
        %7047 = vmatmul.mubr.bf16.gmra.mrb[0].mxu0 %v6787
        %v7048 = vpop.f32.mrb[0].mxu0
        %v7049 = vadd.f32 0.0, %v7048
        %v7050 = vpop.f32.mrb[0].mxu0
        %v7051 = vadd.f32 0.0, %v7050
        %v7052 = vpop.f32.mrb[0].mxu0
        %v7053 = vadd.f32 0.0, %v7052
        %v7054 = vpop.f32.mrb[0].mxu0
        %v7055 = vadd.f32 0.0, %v7054
        %7056 = vmatprep.mubr.bf16.mxu0 0
        %7057 = vmatmul.mubr.bf16.gmra.mrb[0].mxu0 %v6790
        %v7058 = vpop.f32.mrb[0].mxu0
        %v7059 = vadd.f32 0.0, %v7058
        %v7060 = vpop.f32.mrb[0].mxu0
        %v7061 = vadd.f32 0.0, %v7060
        %v7062 = vpop.f32.mrb[0].mxu0
        %v7063 = vadd.f32 0.0, %v7062
        %v7064 = vpop.f32.mrb[0].mxu0
        %v7065 = vadd.f32 0.0, %v7064
        %7066 = vmatprep.mubr.bf16.mxu0 0
        %7067 = vmatmul.mubr.bf16.gmra.mrb[0].mxu0 %v6793
        %v7068 = vpop.f32.mrb[0].mxu0
        %v7069 = vadd.f32 0.0, %v7068
        %v7070 = vpop.f32.mrb[0].mxu0
        %v7071 = vadd.f32 0.0, %v7070
        %v7072 = vpop.f32.mrb[0].mxu0
        %v7073 = vadd.f32 0.0, %v7072
        %v7074 = vpop.f32.mrb[0].mxu0
        %v7075 = vadd.f32 0.0, %v7074
        %7076 = vmatprep.mubr.bf16.mxu0 0
        %7077 = vmatmul.mubr.bf16.gmra.mrb[0].mxu0 %v6796
        %v7078 = vpop.f32.mrb[0].mxu0
        %v7079 = vadd.f32 0.0, %v7078
        %v7080 = vpop.f32.mrb[0].mxu0
        %v7081 = vadd.f32 0.0, %v7080
        %v7082 = vpop.f32.mrb[0].mxu0
        %v7083 = vadd.f32 0.0, %v7082
        %v7084 = vpop.f32.mrb[0].mxu0
        %v7085 = vadd.f32 0.0, %v7084
        %7086 = vdwg.mxu0
        %7087 = vmatprep.subr.bf16.mxu0 0
        %7088 = vmatpush1.bf16.xpose.msra.mxu0 %v6847
        %7089 = vmatprep.subr.bf16.mxu0 0
        %7090 = vmatpush1.bf16.xpose.msra.mxu0 %v6850
        %7091 = vmatprep.subr.bf16.mxu0 0
        %7092 = vmatpush1.bf16.xpose.msra.mxu0 %v6853
        %7093 = vmatprep.subr.bf16.mxu0 0
        %7094 = vmatpush1.bf16.xpose.msra.mxu0 %v6856
        %7095 = vmatprep.subr.bf16.mxu0 0
        %7096 = vmatpush1.bf16.xpose.msra.mxu0 %v6859
        %7097 = vmatprep.subr.bf16.mxu0 0
        %7098 = vmatpush1.bf16.xpose.msra.mxu0 %v6862
        %7099 = vmatprep.subr.bf16.mxu0 0
        %7100 = vmatpush1.bf16.xpose.msra.mxu0 %v6865
        %7101 = vmatprep.subr.bf16.mxu0 0
        %7102 = vmatpush1.bf16.xpose.msra.mxu0 %v6868
        %7103 = vmatprep.subr.bf16.mxu0 0
        %7104 = vmatpush1.bf16.xpose.msra.mxu0 %v6871
        %7105 = vmatprep.subr.bf16.mxu0 0
        %7106 = vmatpush1.bf16.xpose.msra.mxu0 %v6874
        %7107 = vmatprep.subr.bf16.mxu0 0
        %7108 = vmatpush1.bf16.xpose.msra.mxu0 %v6877
        %7109 = vmatprep.subr.bf16.mxu0 0
        %7110 = vmatpush1.bf16.xpose.msra.mxu0 %v6880
        %7111 = vmatprep.subr.bf16.mxu0 0
        %7112 = vmatpush1.bf16.xpose.msra.mxu0 %v6883
        %7113 = vmatprep.subr.bf16.mxu0 0
        %7114 = vmatpush1.bf16.xpose.msra.mxu0 %v6886
        %7115 = vmatprep.subr.bf16.mxu0 0
        %7116 = vmatpush1.bf16.xpose.msra.mxu0 %v6889
        %7117 = vmatprep.subr.bf16.mxu0 0
        %7118 = vmatpush1.bf16.xpose.msra.mxu0 %v6892
        %7119 = vmatprep.mubr.bf16.mxu0 0
        %7120 = vmatmul.mubr.bf16.gmra.mrb[0].mxu0 %v6751
        %v7121 = vpop.f32.mrb[0].mxu0
        %v7122 = vadd.f32 0.0, %v7121
        %v7123 = vpop.f32.mrb[0].mxu0
        %v7124 = vadd.f32 0.0, %v7123
        %v7125 = vpop.f32.mrb[0].mxu0
        %v7126 = vadd.f32 0.0, %v7125
        %v7127 = vpop.f32.mrb[0].mxu0
        %v7128 = vadd.f32 0.0, %v7127
        %7129 = vmatprep.mubr.bf16.mxu0 0
        %7130 = vmatmul.mubr.bf16.gmra.mrb[0].mxu0 %v6754
        %v7131 = vpop.f32.mrb[0].mxu0
        %v7132 = vadd.f32 0.0, %v7131
        %v7133 = vpop.f32.mrb[0].mxu0
        %v7134 = vadd.f32 0.0, %v7133
        %v7135 = vpop.f32.mrb[0].mxu0
        %v7136 = vadd.f32 0.0, %v7135
        %v7137 = vpop.f32.mrb[0].mxu0
        %v7138 = vadd.f32 0.0, %v7137
        %7139 = vmatprep.mubr.bf16.mxu0 0
        %7140 = vmatmul.mubr.bf16.gmra.mrb[0].mxu0 %v6757
        %v7141 = vpop.f32.mrb[0].mxu0
        %v7142 = vadd.f32 0.0, %v7141
        %v7143 = vpop.f32.mrb[0].mxu0
        %v7144 = vadd.f32 0.0, %v7143
        %v7145 = vpop.f32.mrb[0].mxu0
        %v7146 = vadd.f32 0.0, %v7145
        %v7147 = vpop.f32.mrb[0].mxu0
        %v7148 = vadd.f32 0.0, %v7147
        %7149 = vmatprep.mubr.bf16.mxu0 0
        %7150 = vmatmul.mubr.bf16.gmra.mrb[0].mxu0 %v6760
        %v7151 = vpop.f32.mrb[0].mxu0
        %v7152 = vadd.f32 0.0, %v7151
        %v7153 = vpop.f32.mrb[0].mxu0
        %v7154 = vadd.f32 0.0, %v7153
        %v7155 = vpop.f32.mrb[0].mxu0
        %v7156 = vadd.f32 0.0, %v7155
        %v7157 = vpop.f32.mrb[0].mxu0
        %v7158 = vadd.f32 0.0, %v7157
        %7159 = vmatprep.mubr.bf16.mxu0 0
        %7160 = vmatmul.mubr.bf16.gmra.mrb[0].mxu0 %v6763
        %v7161 = vpop.f32.mrb[0].mxu0
        %v7162 = vadd.f32 0.0, %v7161
        %v7163 = vpop.f32.mrb[0].mxu0
        %v7164 = vadd.f32 0.0, %v7163
        %v7165 = vpop.f32.mrb[0].mxu0
        %v7166 = vadd.f32 0.0, %v7165
        %v7167 = vpop.f32.mrb[0].mxu0
        %v7168 = vadd.f32 0.0, %v7167
        %7169 = vmatprep.mubr.bf16.mxu0 0
        %7170 = vmatmul.mubr.bf16.gmra.mrb[0].mxu0 %v6766
        %v7171 = vpop.f32.mrb[0].mxu0
        %v7172 = vadd.f32 0.0, %v7171
        %v7173 = vpop.f32.mrb[0].mxu0
        %v7174 = vadd.f32 0.0, %v7173
        %v7175 = vpop.f32.mrb[0].mxu0
        %v7176 = vadd.f32 0.0, %v7175
        %v7177 = vpop.f32.mrb[0].mxu0
        %v7178 = vadd.f32 0.0, %v7177
        %7179 = vmatprep.mubr.bf16.mxu0 0
        %7180 = vmatmul.mubr.bf16.gmra.mrb[0].mxu0 %v6769
        %v7181 = vpop.f32.mrb[0].mxu0
        %v7182 = vadd.f32 0.0, %v7181
        %v7183 = vpop.f32.mrb[0].mxu0
        %v7184 = vadd.f32 0.0, %v7183
        %v7185 = vpop.f32.mrb[0].mxu0
        %v7186 = vadd.f32 0.0, %v7185
        %v7187 = vpop.f32.mrb[0].mxu0
        %v7188 = vadd.f32 0.0, %v7187
        %7189 = vmatprep.mubr.bf16.mxu0 0
        %7190 = vmatmul.mubr.bf16.gmra.mrb[0].mxu0 %v6772
        %v7191 = vpop.f32.mrb[0].mxu0
        %v7192 = vadd.f32 0.0, %v7191
        %v7193 = vpop.f32.mrb[0].mxu0
        %v7194 = vadd.f32 0.0, %v7193
        %v7195 = vpop.f32.mrb[0].mxu0
        %v7196 = vadd.f32 0.0, %v7195
        %v7197 = vpop.f32.mrb[0].mxu0
        %v7198 = vadd.f32 0.0, %v7197
        %7199 = vmatprep.mubr.bf16.mxu0 0
        %7200 = vmatmul.mubr.bf16.gmra.mrb[0].mxu0 %v6775
        %v7201 = vpop.f32.mrb[0].mxu0
        %v7202 = vadd.f32 0.0, %v7201
        %v7203 = vpop.f32.mrb[0].mxu0
        %v7204 = vadd.f32 0.0, %v7203
        %v7205 = vpop.f32.mrb[0].mxu0
        %v7206 = vadd.f32 0.0, %v7205
        %v7207 = vpop.f32.mrb[0].mxu0
        %v7208 = vadd.f32 0.0, %v7207
        %7209 = vmatprep.mubr.bf16.mxu0 0
        %7210 = vmatmul.mubr.bf16.gmra.mrb[0].mxu0 %v6778
        %v7211 = vpop.f32.mrb[0].mxu0
        %v7212 = vadd.f32 0.0, %v7211
        %v7213 = vpop.f32.mrb[0].mxu0
        %v7214 = vadd.f32 0.0, %v7213
        %v7215 = vpop.f32.mrb[0].mxu0
        %v7216 = vadd.f32 0.0, %v7215
        %v7217 = vpop.f32.mrb[0].mxu0
        %v7218 = vadd.f32 0.0, %v7217
        %7219 = vmatprep.mubr.bf16.mxu0 0
        %7220 = vmatmul.mubr.bf16.gmra.mrb[0].mxu0 %v6781
        %v7221 = vpop.f32.mrb[0].mxu0
        %v7222 = vadd.f32 0.0, %v7221
        %v7223 = vpop.f32.mrb[0].mxu0
        %v7224 = vadd.f32 0.0, %v7223
        %v7225 = vpop.f32.mrb[0].mxu0
        %v7226 = vadd.f32 0.0, %v7225
        %v7227 = vpop.f32.mrb[0].mxu0
        %v7228 = vadd.f32 0.0, %v7227
        %7229 = vmatprep.mubr.bf16.mxu0 0
        %7230 = vmatmul.mubr.bf16.gmra.mrb[0].mxu0 %v6784
        %v7231 = vpop.f32.mrb[0].mxu0
        %v7232 = vadd.f32 0.0, %v7231
        %v7233 = vpop.f32.mrb[0].mxu0
        %v7234 = vadd.f32 0.0, %v7233
        %v7235 = vpop.f32.mrb[0].mxu0
        %v7236 = vadd.f32 0.0, %v7235
        %v7237 = vpop.f32.mrb[0].mxu0
        %v7238 = vadd.f32 0.0, %v7237
        %7239 = vmatprep.mubr.bf16.mxu0 0
        %7240 = vmatmul.mubr.bf16.gmra.mrb[0].mxu0 %v6787
        %v7241 = vpop.f32.mrb[0].mxu0
        %v7242 = vadd.f32 0.0, %v7241
        %v7243 = vpop.f32.mrb[0].mxu0
        %v7244 = vadd.f32 0.0, %v7243
        %v7245 = vpop.f32.mrb[0].mxu0
        %v7246 = vadd.f32 0.0, %v7245
        %v7247 = vpop.f32.mrb[0].mxu0
        %v7248 = vadd.f32 0.0, %v7247
        %7249 = vmatprep.mubr.bf16.mxu0 0
        %7250 = vmatmul.mubr.bf16.gmra.mrb[0].mxu0 %v6790
        %v7251 = vpop.f32.mrb[0].mxu0
        %v7252 = vadd.f32 0.0, %v7251
        %v7253 = vpop.f32.mrb[0].mxu0
        %v7254 = vadd.f32 0.0, %v7253
        %v7255 = vpop.f32.mrb[0].mxu0
        %v7256 = vadd.f32 0.0, %v7255
        %v7257 = vpop.f32.mrb[0].mxu0
        %v7258 = vadd.f32 0.0, %v7257
        %7259 = vmatprep.mubr.bf16.mxu0 0
        %7260 = vmatmul.mubr.bf16.gmra.mrb[0].mxu0 %v6793
        %v7261 = vpop.f32.mrb[0].mxu0
        %v7262 = vadd.f32 0.0, %v7261
        %v7263 = vpop.f32.mrb[0].mxu0
        %v7264 = vadd.f32 0.0, %v7263
        %v7265 = vpop.f32.mrb[0].mxu0
        %v7266 = vadd.f32 0.0, %v7265
        %v7267 = vpop.f32.mrb[0].mxu0
        %v7268 = vadd.f32 0.0, %v7267
        %7269 = vmatprep.mubr.bf16.mxu0 0
        %7270 = vmatmul.mubr.bf16.gmra.mrb[0].mxu0 %v6796
        %v7271 = vpop.f32.mrb[0].mxu0
        %v7272 = vadd.f32 0.0, %v7271
        %v7273 = vpop.f32.mrb[0].mxu0
        %v7274 = vadd.f32 0.0, %v7273
        %v7275 = vpop.f32.mrb[0].mxu0
        %v7276 = vadd.f32 0.0, %v7275
        %v7277 = vpop.f32.mrb[0].mxu0
        %v7278 = vadd.f32 0.0, %v7277
        %7279 = vdwg.mxu0
        %v7280 = vmax.f32 %v6929, %v6931
        %v7281 = vmax.f32 %v7280, %v7122
        %v7282 = vmax.f32 %v7281, %v7124
        %7283 = vmax.xlane.f32.xlu0 %v7282
        %v7284 = vpop.xlane.xlu0 %7283
        %v7285 = vmax.f32 %v6933, %v6935
        %v7286 = vmax.f32 %v7285, %v7126
        %v7287 = vmax.f32 %v7286, %v7128
        %7288 = vmax.xlane.f32.xlu0 %v7287
        %v7289 = vpop.xlane.xlu0 %7288
        %v7290 = vmax.f32 %v6939, %v6941
        %v7291 = vmax.f32 %v7290, %v7132
        %v7292 = vmax.f32 %v7291, %v7134
        %7293 = vmax.xlane.f32.xlu0 %v7292
        %v7294 = vpop.xlane.xlu0 %7293
        %v7295 = vmax.f32 %v6943, %v6945
        %v7296 = vmax.f32 %v7295, %v7136
        %v7297 = vmax.f32 %v7296, %v7138
        %7298 = vmax.xlane.f32.xlu0 %v7297
        %v7299 = vpop.xlane.xlu0 %7298
        %v7300 = vmax.f32 %v6949, %v6951
        %v7301 = vmax.f32 %v7300, %v7142
        %v7302 = vmax.f32 %v7301, %v7144
        %7303 = vmax.xlane.f32.xlu0 %v7302
        %v7304 = vpop.xlane.xlu0 %7303
        %v7305 = vmax.f32 %v6953, %v6955
        %v7306 = vmax.f32 %v7305, %v7146
        %v7307 = vmax.f32 %v7306, %v7148
        %7308 = vmax.xlane.f32.xlu0 %v7307
        %v7309 = vpop.xlane.xlu0 %7308
        %v7310 = vmax.f32 %v6959, %v6961
        %v7311 = vmax.f32 %v7310, %v7152
        %v7312 = vmax.f32 %v7311, %v7154
        %7313 = vmax.xlane.f32.xlu0 %v7312
        %v7314 = vpop.xlane.xlu0 %7313
        %v7315 = vmax.f32 %v6963, %v6965
        %v7316 = vmax.f32 %v7315, %v7156
        %v7317 = vmax.f32 %v7316, %v7158
        %7318 = vmax.xlane.f32.xlu0 %v7317
        %v7319 = vpop.xlane.xlu0 %7318
        %v7320 = vmax.f32 %v6969, %v6971
        %v7321 = vmax.f32 %v7320, %v7162
        %v7322 = vmax.f32 %v7321, %v7164
        %7323 = vmax.xlane.f32.xlu0 %v7322
        %v7324 = vpop.xlane.xlu0 %7323
        %v7325 = vmax.f32 %v6973, %v6975
        %v7326 = vmax.f32 %v7325, %v7166
        %v7327 = vmax.f32 %v7326, %v7168
        %7328 = vmax.xlane.f32.xlu0 %v7327
        %v7329 = vpop.xlane.xlu0 %7328
        %v7330 = vmax.f32 %v6979, %v6981
        %v7331 = vmax.f32 %v7330, %v7172
        %v7332 = vmax.f32 %v7331, %v7174
        %7333 = vmax.xlane.f32.xlu0 %v7332
        %v7334 = vpop.xlane.xlu0 %7333
        %v7335 = vmax.f32 %v6983, %v6985
        %v7336 = vmax.f32 %v7335, %v7176
        %v7337 = vmax.f32 %v7336, %v7178
        %7338 = vmax.xlane.f32.xlu0 %v7337
        %v7339 = vpop.xlane.xlu0 %7338
        %v7340 = vmax.f32 %v6989, %v6991
        %v7341 = vmax.f32 %v7340, %v7182
        %v7342 = vmax.f32 %v7341, %v7184
        %7343 = vmax.xlane.f32.xlu0 %v7342
        %v7344 = vpop.xlane.xlu0 %7343
        %v7345 = vmax.f32 %v6993, %v6995
        %v7346 = vmax.f32 %v7345, %v7186
        %v7347 = vmax.f32 %v7346, %v7188
        %7348 = vmax.xlane.f32.xlu0 %v7347
        %v7349 = vpop.xlane.xlu0 %7348
        %v7350 = vmax.f32 %v6999, %v7001
        %v7351 = vmax.f32 %v7350, %v7192
        %v7352 = vmax.f32 %v7351, %v7194
        %7353 = vmax.xlane.f32.xlu0 %v7352
        %v7354 = vpop.xlane.xlu0 %7353
        %v7355 = vmax.f32 %v7003, %v7005
        %v7356 = vmax.f32 %v7355, %v7196
        %v7357 = vmax.f32 %v7356, %v7198
        %7358 = vmax.xlane.f32.xlu0 %v7357
        %v7359 = vpop.xlane.xlu0 %7358
        %v7360 = vmax.f32 %v7009, %v7011
        %v7361 = vmax.f32 %v7360, %v7202
        %v7362 = vmax.f32 %v7361, %v7204
        %7363 = vmax.xlane.f32.xlu0 %v7362
        %v7364 = vpop.xlane.xlu0 %7363
        %v7365 = vmax.f32 %v7013, %v7015
        %v7366 = vmax.f32 %v7365, %v7206
        %v7367 = vmax.f32 %v7366, %v7208
        %7368 = vmax.xlane.f32.xlu0 %v7367
        %v7369 = vpop.xlane.xlu0 %7368
        %v7370 = vmax.f32 %v7019, %v7021
        %v7371 = vmax.f32 %v7370, %v7212
        %v7372 = vmax.f32 %v7371, %v7214
        %7373 = vmax.xlane.f32.xlu0 %v7372
        %v7374 = vpop.xlane.xlu0 %7373
        %v7375 = vmax.f32 %v7023, %v7025
        %v7376 = vmax.f32 %v7375, %v7216
        %v7377 = vmax.f32 %v7376, %v7218
        %7378 = vmax.xlane.f32.xlu0 %v7377
        %v7379 = vpop.xlane.xlu0 %7378
        %v7380 = vmax.f32 %v7029, %v7031
        %v7381 = vmax.f32 %v7380, %v7222
        %v7382 = vmax.f32 %v7381, %v7224
        %7383 = vmax.xlane.f32.xlu0 %v7382
        %v7384 = vpop.xlane.xlu0 %7383
        %v7385 = vmax.f32 %v7033, %v7035
        %v7386 = vmax.f32 %v7385, %v7226
        %v7387 = vmax.f32 %v7386, %v7228
        %7388 = vmax.xlane.f32.xlu0 %v7387
        %v7389 = vpop.xlane.xlu0 %7388
        %v7390 = vmax.f32 %v7039, %v7041
        %v7391 = vmax.f32 %v7390, %v7232
        %v7392 = vmax.f32 %v7391, %v7234
        %7393 = vmax.xlane.f32.xlu0 %v7392
        %v7394 = vpop.xlane.xlu0 %7393
        %v7395 = vmax.f32 %v7043, %v7045
        %v7396 = vmax.f32 %v7395, %v7236
        %v7397 = vmax.f32 %v7396, %v7238
        %7398 = vmax.xlane.f32.xlu0 %v7397
        %v7399 = vpop.xlane.xlu0 %7398
        %v7400 = vmax.f32 %v7049, %v7051
        %v7401 = vmax.f32 %v7400, %v7242
        %v7402 = vmax.f32 %v7401, %v7244
        %7403 = vmax.xlane.f32.xlu0 %v7402
        %v7404 = vpop.xlane.xlu0 %7403
        %v7405 = vmax.f32 %v7053, %v7055
        %v7406 = vmax.f32 %v7405, %v7246
        %v7407 = vmax.f32 %v7406, %v7248
        %7408 = vmax.xlane.f32.xlu0 %v7407
        %v7409 = vpop.xlane.xlu0 %7408
        %v7410 = vmax.f32 %v7059, %v7061
        %v7411 = vmax.f32 %v7410, %v7252
        %v7412 = vmax.f32 %v7411, %v7254
        %7413 = vmax.xlane.f32.xlu0 %v7412
        %v7414 = vpop.xlane.xlu0 %7413
        %v7415 = vmax.f32 %v7063, %v7065
        %v7416 = vmax.f32 %v7415, %v7256
        %v7417 = vmax.f32 %v7416, %v7258
        %7418 = vmax.xlane.f32.xlu0 %v7417
        %v7419 = vpop.xlane.xlu0 %7418
        %v7420 = vmax.f32 %v7069, %v7071
        %v7421 = vmax.f32 %v7420, %v7262
        %v7422 = vmax.f32 %v7421, %v7264
        %7423 = vmax.xlane.f32.xlu0 %v7422
        %v7424 = vpop.xlane.xlu0 %7423
        %v7425 = vmax.f32 %v7073, %v7075
        %v7426 = vmax.f32 %v7425, %v7266
        %v7427 = vmax.f32 %v7426, %v7268
        %7428 = vmax.xlane.f32.xlu0 %v7427
        %v7429 = vpop.xlane.xlu0 %7428
        %v7430 = vmax.f32 %v7079, %v7081
        %v7431 = vmax.f32 %v7430, %v7272
        %v7432 = vmax.f32 %v7431, %v7274
        %7433 = vmax.xlane.f32.xlu0 %v7432
        %v7434 = vpop.xlane.xlu0 %7433
        %v7435 = vmax.f32 %v7083, %v7085
        %v7436 = vmax.f32 %v7435, %v7276
        %v7437 = vmax.f32 %v7436, %v7278
        %7438 = vmax.xlane.f32.xlu0 %v7437
        %v7439 = vpop.xlane.xlu0 %7438
        %v7440 = vsub.f32 %v6929, %v7284
        %v7441 = vsub.f32 %v6931, %v7284
        %v7442 = vsub.f32 %v7122, %v7284
        %v7443 = vsub.f32 %v7124, %v7284
        %v7444 = vsub.f32 %v6933, %v7289
        %v7445 = vsub.f32 %v6935, %v7289
        %v7446 = vsub.f32 %v7126, %v7289
        %v7447 = vsub.f32 %v7128, %v7289
        %v7448 = vsub.f32 %v6939, %v7294
        %v7449 = vsub.f32 %v6941, %v7294
        %v7450 = vsub.f32 %v7132, %v7294
        %v7451 = vsub.f32 %v7134, %v7294
        %v7452 = vsub.f32 %v6943, %v7299
        %v7453 = vsub.f32 %v6945, %v7299
        %v7454 = vsub.f32 %v7136, %v7299
        %v7455 = vsub.f32 %v7138, %v7299
        %v7456 = vsub.f32 %v6949, %v7304
        %v7457 = vsub.f32 %v6951, %v7304
        %v7458 = vsub.f32 %v7142, %v7304
        %v7459 = vsub.f32 %v7144, %v7304
        %v7460 = vsub.f32 %v6953, %v7309
        %v7461 = vsub.f32 %v6955, %v7309
        %v7462 = vsub.f32 %v7146, %v7309
        %v7463 = vsub.f32 %v7148, %v7309
        %v7464 = vsub.f32 %v6959, %v7314
        %v7465 = vsub.f32 %v6961, %v7314
        %v7466 = vsub.f32 %v7152, %v7314
        %v7467 = vsub.f32 %v7154, %v7314
        %v7468 = vsub.f32 %v6963, %v7319
        %v7469 = vsub.f32 %v6965, %v7319
        %v7470 = vsub.f32 %v7156, %v7319
        %v7471 = vsub.f32 %v7158, %v7319
        %v7472 = vsub.f32 %v6969, %v7324
        %v7473 = vsub.f32 %v6971, %v7324
        %v7474 = vsub.f32 %v7162, %v7324
        %v7475 = vsub.f32 %v7164, %v7324
        %v7476 = vsub.f32 %v6973, %v7329
        %v7477 = vsub.f32 %v6975, %v7329
        %v7478 = vsub.f32 %v7166, %v7329
        %v7479 = vsub.f32 %v7168, %v7329
        %v7480 = vsub.f32 %v6979, %v7334
        %v7481 = vsub.f32 %v6981, %v7334
        %v7482 = vsub.f32 %v7172, %v7334
        %v7483 = vsub.f32 %v7174, %v7334
        %v7484 = vsub.f32 %v6983, %v7339
        %v7485 = vsub.f32 %v6985, %v7339
        %v7486 = vsub.f32 %v7176, %v7339
        %v7487 = vsub.f32 %v7178, %v7339
        %v7488 = vsub.f32 %v6989, %v7344
        %v7489 = vsub.f32 %v6991, %v7344
        %v7490 = vsub.f32 %v7182, %v7344
        %v7491 = vsub.f32 %v7184, %v7344
        %v7492 = vsub.f32 %v6993, %v7349
        %v7493 = vsub.f32 %v6995, %v7349
        %v7494 = vsub.f32 %v7186, %v7349
        %v7495 = vsub.f32 %v7188, %v7349
        %v7496 = vsub.f32 %v6999, %v7354
        %v7497 = vsub.f32 %v7001, %v7354
        %v7498 = vsub.f32 %v7192, %v7354
        %v7499 = vsub.f32 %v7194, %v7354
        %v7500 = vsub.f32 %v7003, %v7359
        %v7501 = vsub.f32 %v7005, %v7359
        %v7502 = vsub.f32 %v7196, %v7359
        %v7503 = vsub.f32 %v7198, %v7359
        %v7504 = vsub.f32 %v7009, %v7364
        %v7505 = vsub.f32 %v7011, %v7364
        %v7506 = vsub.f32 %v7202, %v7364
        %v7507 = vsub.f32 %v7204, %v7364
        %v7508 = vsub.f32 %v7013, %v7369
        %v7509 = vsub.f32 %v7015, %v7369
        %v7510 = vsub.f32 %v7206, %v7369
        %v7511 = vsub.f32 %v7208, %v7369
        %v7512 = vsub.f32 %v7019, %v7374
        %v7513 = vsub.f32 %v7021, %v7374
        %v7514 = vsub.f32 %v7212, %v7374
        %v7515 = vsub.f32 %v7214, %v7374
        %v7516 = vsub.f32 %v7023, %v7379
        %v7517 = vsub.f32 %v7025, %v7379
        %v7518 = vsub.f32 %v7216, %v7379
        %v7519 = vsub.f32 %v7218, %v7379
        %v7520 = vsub.f32 %v7029, %v7384
        %v7521 = vsub.f32 %v7031, %v7384
        %v7522 = vsub.f32 %v7222, %v7384
        %v7523 = vsub.f32 %v7224, %v7384
        %v7524 = vsub.f32 %v7033, %v7389
        %v7525 = vsub.f32 %v7035, %v7389
        %v7526 = vsub.f32 %v7226, %v7389
        %v7527 = vsub.f32 %v7228, %v7389
        %v7528 = vsub.f32 %v7039, %v7394
        %v7529 = vsub.f32 %v7041, %v7394
        %v7530 = vsub.f32 %v7232, %v7394
        %v7531 = vsub.f32 %v7234, %v7394
        %v7532 = vsub.f32 %v7043, %v7399
        %v7533 = vsub.f32 %v7045, %v7399
        %v7534 = vsub.f32 %v7236, %v7399
        %v7535 = vsub.f32 %v7238, %v7399
        %v7536 = vsub.f32 %v7049, %v7404
        %v7537 = vsub.f32 %v7051, %v7404
        %v7538 = vsub.f32 %v7242, %v7404
        %v7539 = vsub.f32 %v7244, %v7404
        %v7540 = vsub.f32 %v7053, %v7409
        %v7541 = vsub.f32 %v7055, %v7409
        %v7542 = vsub.f32 %v7246, %v7409
        %v7543 = vsub.f32 %v7248, %v7409
        %v7544 = vsub.f32 %v7059, %v7414
        %v7545 = vsub.f32 %v7061, %v7414
        %v7546 = vsub.f32 %v7252, %v7414
        %v7547 = vsub.f32 %v7254, %v7414
        %v7548 = vsub.f32 %v7063, %v7419
        %v7549 = vsub.f32 %v7065, %v7419
        %v7550 = vsub.f32 %v7256, %v7419
        %v7551 = vsub.f32 %v7258, %v7419
        %v7552 = vsub.f32 %v7069, %v7424
        %v7553 = vsub.f32 %v7071, %v7424
        %v7554 = vsub.f32 %v7262, %v7424
        %v7555 = vsub.f32 %v7264, %v7424
        %v7556 = vsub.f32 %v7073, %v7429
        %v7557 = vsub.f32 %v7075, %v7429
        %v7558 = vsub.f32 %v7266, %v7429
        %v7559 = vsub.f32 %v7268, %v7429
        %v7560 = vsub.f32 %v7079, %v7434
        %v7561 = vsub.f32 %v7081, %v7434
        %v7562 = vsub.f32 %v7272, %v7434
        %v7563 = vsub.f32 %v7274, %v7434
        %v7564 = vsub.f32 %v7083, %v7439
        %v7565 = vsub.f32 %v7085, %v7439
        %v7566 = vsub.f32 %v7276, %v7439
        %v7567 = vsub.f32 %v7278, %v7439
        %v7568 = vpack.c.bf16 %v7444, %v7440
        %v7569 = vpack.c.bf16 %v7445, %v7441
        %v7570 = vpack.c.bf16 %v7446, %v7442
        %v7571 = vpack.c.bf16 %v7447, %v7443
        %v7572 = vpack.c.bf16 %v7452, %v7448
        %v7573 = vpack.c.bf16 %v7453, %v7449
        %v7574 = vpack.c.bf16 %v7454, %v7450
        %v7575 = vpack.c.bf16 %v7455, %v7451
        %v7576 = vpack.c.bf16 %v7460, %v7456
        %v7577 = vpack.c.bf16 %v7461, %v7457
        %v7578 = vpack.c.bf16 %v7462, %v7458
        %v7579 = vpack.c.bf16 %v7463, %v7459
        %v7580 = vpack.c.bf16 %v7468, %v7464
        %v7581 = vpack.c.bf16 %v7469, %v7465
        %v7582 = vpack.c.bf16 %v7470, %v7466
        %v7583 = vpack.c.bf16 %v7471, %v7467
        %v7584 = vpack.c.bf16 %v7476, %v7472
        %v7585 = vpack.c.bf16 %v7477, %v7473
        %v7586 = vpack.c.bf16 %v7478, %v7474
        %v7587 = vpack.c.bf16 %v7479, %v7475
        %v7588 = vpack.c.bf16 %v7484, %v7480
        %v7589 = vpack.c.bf16 %v7485, %v7481
        %v7590 = vpack.c.bf16 %v7486, %v7482
        %v7591 = vpack.c.bf16 %v7487, %v7483
        %v7592 = vpack.c.bf16 %v7492, %v7488
        %v7593 = vpack.c.bf16 %v7493, %v7489
        %v7594 = vpack.c.bf16 %v7494, %v7490
        %v7595 = vpack.c.bf16 %v7495, %v7491
        %v7596 = vpack.c.bf16 %v7500, %v7496
        %v7597 = vpack.c.bf16 %v7501, %v7497
        %v7598 = vpack.c.bf16 %v7502, %v7498
        %v7599 = vpack.c.bf16 %v7503, %v7499
        %v7600 = vpack.c.bf16 %v7508, %v7504
        %v7601 = vpack.c.bf16 %v7509, %v7505
        %v7602 = vpack.c.bf16 %v7510, %v7506
        %v7603 = vpack.c.bf16 %v7511, %v7507
        %v7604 = vpack.c.bf16 %v7516, %v7512
        %v7605 = vpack.c.bf16 %v7517, %v7513
        %v7606 = vpack.c.bf16 %v7518, %v7514
        %v7607 = vpack.c.bf16 %v7519, %v7515
        %v7608 = vpack.c.bf16 %v7524, %v7520
        %v7609 = vpack.c.bf16 %v7525, %v7521
        %v7610 = vpack.c.bf16 %v7526, %v7522
        %v7611 = vpack.c.bf16 %v7527, %v7523
        %v7612 = vpack.c.bf16 %v7532, %v7528
        %v7613 = vpack.c.bf16 %v7533, %v7529
        %v7614 = vpack.c.bf16 %v7534, %v7530
        %v7615 = vpack.c.bf16 %v7535, %v7531
        %v7616 = vpack.c.bf16 %v7540, %v7536
        %v7617 = vpack.c.bf16 %v7541, %v7537
        %v7618 = vpack.c.bf16 %v7542, %v7538
        %v7619 = vpack.c.bf16 %v7543, %v7539
        %v7620 = vpack.c.bf16 %v7548, %v7544
        %v7621 = vpack.c.bf16 %v7549, %v7545
        %v7622 = vpack.c.bf16 %v7550, %v7546
        %v7623 = vpack.c.bf16 %v7551, %v7547
        %v7624 = vpack.c.bf16 %v7556, %v7552
        %v7625 = vpack.c.bf16 %v7557, %v7553
        %v7626 = vpack.c.bf16 %v7558, %v7554
        %v7627 = vpack.c.bf16 %v7559, %v7555
        %v7628 = vpack.c.bf16 %v7564, %v7560
        %v7629 = vpack.c.bf16 %v7565, %v7561
        %v7630 = vpack.c.bf16 %v7566, %v7562
        %v7631 = vpack.c.bf16 %v7567, %v7563
        %v7633 = vmul.bf16 %v7568, 1069105081
        %v7634 = vpow.bf16.pop %v7633
        %v7636 = vmul.bf16 %v7569, 1069105081
        %v7637 = vpow.bf16.pop %v7636
        %v7639 = vmul.bf16 %v7570, 1069105081
        %v7640 = vpow.bf16.pop %v7639
        %v7642 = vmul.bf16 %v7571, 1069105081
        %v7643 = vpow.bf16.pop %v7642
        %v7645 = vmul.bf16 %v7572, 1069105081
        %v7646 = vpow.bf16.pop %v7645
        %v7648 = vmul.bf16 %v7573, 1069105081
        %v7649 = vpow.bf16.pop %v7648
        %v7651 = vmul.bf16 %v7574, 1069105081
        %v7652 = vpow.bf16.pop %v7651
        %v7654 = vmul.bf16 %v7575, 1069105081
        %v7655 = vpow.bf16.pop %v7654
        %v7657 = vmul.bf16 %v7576, 1069105081
        %v7658 = vpow.bf16.pop %v7657
        %v7660 = vmul.bf16 %v7577, 1069105081
        %v7661 = vpow.bf16.pop %v7660
        %v7663 = vmul.bf16 %v7578, 1069105081
        %v7664 = vpow.bf16.pop %v7663
        %v7666 = vmul.bf16 %v7579, 1069105081
        %v7667 = vpow.bf16.pop %v7666
        %v7669 = vmul.bf16 %v7580, 1069105081
        %v7670 = vpow.bf16.pop %v7669
        %v7672 = vmul.bf16 %v7581, 1069105081
        %v7673 = vpow.bf16.pop %v7672
        %v7675 = vmul.bf16 %v7582, 1069105081
        %v7676 = vpow.bf16.pop %v7675
        %v7678 = vmul.bf16 %v7583, 1069105081
        %v7679 = vpow.bf16.pop %v7678
        %v7681 = vmul.bf16 %v7584, 1069105081
        %v7682 = vpow.bf16.pop %v7681
        %v7684 = vmul.bf16 %v7585, 1069105081
        %v7685 = vpow.bf16.pop %v7684
        %v7687 = vmul.bf16 %v7586, 1069105081
        %v7688 = vpow.bf16.pop %v7687
        %v7690 = vmul.bf16 %v7587, 1069105081
        %v7691 = vpow.bf16.pop %v7690
        %v7693 = vmul.bf16 %v7588, 1069105081
        %v7694 = vpow.bf16.pop %v7693
        %v7696 = vmul.bf16 %v7589, 1069105081
        %v7697 = vpow.bf16.pop %v7696
        %v7699 = vmul.bf16 %v7590, 1069105081
        %v7700 = vpow.bf16.pop %v7699
        %v7702 = vmul.bf16 %v7591, 1069105081
        %v7703 = vpow.bf16.pop %v7702
        %v7705 = vmul.bf16 %v7592, 1069105081
        %v7706 = vpow.bf16.pop %v7705
        %v7708 = vmul.bf16 %v7593, 1069105081
        %v7709 = vpow.bf16.pop %v7708
        %v7711 = vmul.bf16 %v7594, 1069105081
        %v7712 = vpow.bf16.pop %v7711
        %v7714 = vmul.bf16 %v7595, 1069105081
        %v7715 = vpow.bf16.pop %v7714
        %v7717 = vmul.bf16 %v7596, 1069105081
        %v7718 = vpow.bf16.pop %v7717
        %v7720 = vmul.bf16 %v7597, 1069105081
        %v7721 = vpow.bf16.pop %v7720
        %v7723 = vmul.bf16 %v7598, 1069105081
        %v7724 = vpow.bf16.pop %v7723
        %v7726 = vmul.bf16 %v7599, 1069105081
        %v7727 = vpow.bf16.pop %v7726
        %v7729 = vmul.bf16 %v7600, 1069105081
        %v7730 = vpow.bf16.pop %v7729
        %v7732 = vmul.bf16 %v7601, 1069105081
        %v7733 = vpow.bf16.pop %v7732
        %v7735 = vmul.bf16 %v7602, 1069105081
        %v7736 = vpow.bf16.pop %v7735
        %v7738 = vmul.bf16 %v7603, 1069105081
        %v7739 = vpow.bf16.pop %v7738
        %v7741 = vmul.bf16 %v7604, 1069105081
        %v7742 = vpow.bf16.pop %v7741
        %v7744 = vmul.bf16 %v7605, 1069105081
        %v7745 = vpow.bf16.pop %v7744
        %v7747 = vmul.bf16 %v7606, 1069105081
        %v7748 = vpow.bf16.pop %v7747
        %v7750 = vmul.bf16 %v7607, 1069105081
        %v7751 = vpow.bf16.pop %v7750
        %v7753 = vmul.bf16 %v7608, 1069105081
        %v7754 = vpow.bf16.pop %v7753
        %v7756 = vmul.bf16 %v7609, 1069105081
        %v7757 = vpow.bf16.pop %v7756
        %v7759 = vmul.bf16 %v7610, 1069105081
        %v7760 = vpow.bf16.pop %v7759
        %v7762 = vmul.bf16 %v7611, 1069105081
        %v7763 = vpow.bf16.pop %v7762
        %v7765 = vmul.bf16 %v7612, 1069105081
        %v7766 = vpow.bf16.pop %v7765
        %v7768 = vmul.bf16 %v7613, 1069105081
        %v7769 = vpow.bf16.pop %v7768
        %v7771 = vmul.bf16 %v7614, 1069105081
        %v7772 = vpow.bf16.pop %v7771
        %v7774 = vmul.bf16 %v7615, 1069105081
        %v7775 = vpow.bf16.pop %v7774
        %v7777 = vmul.bf16 %v7616, 1069105081
        %v7778 = vpow.bf16.pop %v7777
        %v7780 = vmul.bf16 %v7617, 1069105081
        %v7781 = vpow.bf16.pop %v7780
        %v7783 = vmul.bf16 %v7618, 1069105081
        %v7784 = vpow.bf16.pop %v7783
        %v7786 = vmul.bf16 %v7619, 1069105081
        %v7787 = vpow.bf16.pop %v7786
        %v7789 = vmul.bf16 %v7620, 1069105081
        %v7790 = vpow.bf16.pop %v7789
        %v7792 = vmul.bf16 %v7621, 1069105081
        %v7793 = vpow.bf16.pop %v7792
        %v7795 = vmul.bf16 %v7622, 1069105081
        %v7796 = vpow.bf16.pop %v7795
        %v7798 = vmul.bf16 %v7623, 1069105081
        %v7799 = vpow.bf16.pop %v7798
        %v7801 = vmul.bf16 %v7624, 1069105081
        %v7802 = vpow.bf16.pop %v7801
        %v7804 = vmul.bf16 %v7625, 1069105081
        %v7805 = vpow.bf16.pop %v7804
        %v7807 = vmul.bf16 %v7626, 1069105081
        %v7808 = vpow.bf16.pop %v7807
        %v7810 = vmul.bf16 %v7627, 1069105081
        %v7811 = vpow.bf16.pop %v7810
        %v7813 = vmul.bf16 %v7628, 1069105081
        %v7814 = vpow.bf16.pop %v7813
        %v7816 = vmul.bf16 %v7629, 1069105081
        %v7817 = vpow.bf16.pop %v7816
        %v7819 = vmul.bf16 %v7630, 1069105081
        %v7820 = vpow.bf16.pop %v7819
        %v7822 = vmul.bf16 %v7631, 1069105081
        %v7823 = vpow.bf16.pop %v7822
        %v7824 = vunpack.c.l.bf16 %v7634
        %v7825 = vunpack.c.l.bf16 %v7637
        %v7826 = vunpack.c.l.bf16 %v7640
        %v7827 = vunpack.c.l.bf16 %v7643
        %v7828 = vunpack.c.h.bf16 %v7634
        %v7829 = vunpack.c.h.bf16 %v7637
        %v7830 = vunpack.c.h.bf16 %v7640
        %v7831 = vunpack.c.h.bf16 %v7643
        %v7832 = vunpack.c.l.bf16 %v7646
        %v7833 = vunpack.c.l.bf16 %v7649
        %v7834 = vunpack.c.l.bf16 %v7652
        %v7835 = vunpack.c.l.bf16 %v7655
        %v7836 = vunpack.c.h.bf16 %v7646
        %v7837 = vunpack.c.h.bf16 %v7649
        %v7838 = vunpack.c.h.bf16 %v7652
        %v7839 = vunpack.c.h.bf16 %v7655
        %v7840 = vunpack.c.l.bf16 %v7658
        %v7841 = vunpack.c.l.bf16 %v7661
        %v7842 = vunpack.c.l.bf16 %v7664
        %v7843 = vunpack.c.l.bf16 %v7667
        %v7844 = vunpack.c.h.bf16 %v7658
        %v7845 = vunpack.c.h.bf16 %v7661
        %v7846 = vunpack.c.h.bf16 %v7664
        %v7847 = vunpack.c.h.bf16 %v7667
        %v7848 = vunpack.c.l.bf16 %v7670
        %v7849 = vunpack.c.l.bf16 %v7673
        %v7850 = vunpack.c.l.bf16 %v7676
        %v7851 = vunpack.c.l.bf16 %v7679
        %v7852 = vunpack.c.h.bf16 %v7670
        %v7853 = vunpack.c.h.bf16 %v7673
        %v7854 = vunpack.c.h.bf16 %v7676
        %v7855 = vunpack.c.h.bf16 %v7679
        %v7856 = vunpack.c.l.bf16 %v7682
        %v7857 = vunpack.c.l.bf16 %v7685
        %v7858 = vunpack.c.l.bf16 %v7688
        %v7859 = vunpack.c.l.bf16 %v7691
        %v7860 = vunpack.c.h.bf16 %v7682
        %v7861 = vunpack.c.h.bf16 %v7685
        %v7862 = vunpack.c.h.bf16 %v7688
        %v7863 = vunpack.c.h.bf16 %v7691
        %v7864 = vunpack.c.l.bf16 %v7694
        %v7865 = vunpack.c.l.bf16 %v7697
        %v7866 = vunpack.c.l.bf16 %v7700
        %v7867 = vunpack.c.l.bf16 %v7703
        %v7868 = vunpack.c.h.bf16 %v7694
        %v7869 = vunpack.c.h.bf16 %v7697
        %v7870 = vunpack.c.h.bf16 %v7700
        %v7871 = vunpack.c.h.bf16 %v7703
        %v7872 = vunpack.c.l.bf16 %v7706
        %v7873 = vunpack.c.l.bf16 %v7709
        %v7874 = vunpack.c.l.bf16 %v7712
        %v7875 = vunpack.c.l.bf16 %v7715
        %v7876 = vunpack.c.h.bf16 %v7706
        %v7877 = vunpack.c.h.bf16 %v7709
        %v7878 = vunpack.c.h.bf16 %v7712
        %v7879 = vunpack.c.h.bf16 %v7715
        %v7880 = vunpack.c.l.bf16 %v7718
        %v7881 = vunpack.c.l.bf16 %v7721
        %v7882 = vunpack.c.l.bf16 %v7724
        %v7883 = vunpack.c.l.bf16 %v7727
        %v7884 = vunpack.c.h.bf16 %v7718
        %v7885 = vunpack.c.h.bf16 %v7721
        %v7886 = vunpack.c.h.bf16 %v7724
        %v7887 = vunpack.c.h.bf16 %v7727
        %v7888 = vunpack.c.l.bf16 %v7730
        %v7889 = vunpack.c.l.bf16 %v7733
        %v7890 = vunpack.c.l.bf16 %v7736
        %v7891 = vunpack.c.l.bf16 %v7739
        %v7892 = vunpack.c.h.bf16 %v7730
        %v7893 = vunpack.c.h.bf16 %v7733
        %v7894 = vunpack.c.h.bf16 %v7736
        %v7895 = vunpack.c.h.bf16 %v7739
        %v7896 = vunpack.c.l.bf16 %v7742
        %v7897 = vunpack.c.l.bf16 %v7745
        %v7898 = vunpack.c.l.bf16 %v7748
        %v7899 = vunpack.c.l.bf16 %v7751
        %v7900 = vunpack.c.h.bf16 %v7742
        %v7901 = vunpack.c.h.bf16 %v7745
        %v7902 = vunpack.c.h.bf16 %v7748
        %v7903 = vunpack.c.h.bf16 %v7751
        %v7904 = vunpack.c.l.bf16 %v7754
        %v7905 = vunpack.c.l.bf16 %v7757
        %v7906 = vunpack.c.l.bf16 %v7760
        %v7907 = vunpack.c.l.bf16 %v7763
        %v7908 = vunpack.c.h.bf16 %v7754
        %v7909 = vunpack.c.h.bf16 %v7757
        %v7910 = vunpack.c.h.bf16 %v7760
        %v7911 = vunpack.c.h.bf16 %v7763
        %v7912 = vunpack.c.l.bf16 %v7766
        %v7913 = vunpack.c.l.bf16 %v7769
        %v7914 = vunpack.c.l.bf16 %v7772
        %v7915 = vunpack.c.l.bf16 %v7775
        %v7916 = vunpack.c.h.bf16 %v7766
        %v7917 = vunpack.c.h.bf16 %v7769
        %v7918 = vunpack.c.h.bf16 %v7772
        %v7919 = vunpack.c.h.bf16 %v7775
        %v7920 = vunpack.c.l.bf16 %v7778
        %v7921 = vunpack.c.l.bf16 %v7781
        %v7922 = vunpack.c.l.bf16 %v7784
        %v7923 = vunpack.c.l.bf16 %v7787
        %v7924 = vunpack.c.h.bf16 %v7778
        %v7925 = vunpack.c.h.bf16 %v7781
        %v7926 = vunpack.c.h.bf16 %v7784
        %v7927 = vunpack.c.h.bf16 %v7787
        %v7928 = vunpack.c.l.bf16 %v7790
        %v7929 = vunpack.c.l.bf16 %v7793
        %v7930 = vunpack.c.l.bf16 %v7796
        %v7931 = vunpack.c.l.bf16 %v7799
        %v7932 = vunpack.c.h.bf16 %v7790
        %v7933 = vunpack.c.h.bf16 %v7793
        %v7934 = vunpack.c.h.bf16 %v7796
        %v7935 = vunpack.c.h.bf16 %v7799
        %v7936 = vunpack.c.l.bf16 %v7802
        %v7937 = vunpack.c.l.bf16 %v7805
        %v7938 = vunpack.c.l.bf16 %v7808
        %v7939 = vunpack.c.l.bf16 %v7811
        %v7940 = vunpack.c.h.bf16 %v7802
        %v7941 = vunpack.c.h.bf16 %v7805
        %v7942 = vunpack.c.h.bf16 %v7808
        %v7943 = vunpack.c.h.bf16 %v7811
        %v7944 = vunpack.c.l.bf16 %v7814
        %v7945 = vunpack.c.l.bf16 %v7817
        %v7946 = vunpack.c.l.bf16 %v7820
        %v7947 = vunpack.c.l.bf16 %v7823
        %v7948 = vunpack.c.h.bf16 %v7814
        %v7949 = vunpack.c.h.bf16 %v7817
        %v7950 = vunpack.c.h.bf16 %v7820
        %v7951 = vunpack.c.h.bf16 %v7823
        %v7952 = vadd.f32 %v7824, %v7825
        %v7953 = vadd.f32 %v7952, %v7826
        %v7954 = vadd.f32 %v7953, %v7827
        %7955 = vadd.xlane.f32.xlu0 %v7954
        %v7956 = vpop.xlane.xlu0 %7955
        %v7957 = vadd.f32 %v7828, %v7829
        %v7958 = vadd.f32 %v7957, %v7830
        %v7959 = vadd.f32 %v7958, %v7831
        %7960 = vadd.xlane.f32.xlu0 %v7959
        %v7961 = vpop.xlane.xlu0 %7960
        %v7962 = vadd.f32 %v7832, %v7833
        %v7963 = vadd.f32 %v7962, %v7834
        %v7964 = vadd.f32 %v7963, %v7835
        %7965 = vadd.xlane.f32.xlu0 %v7964
        %v7966 = vpop.xlane.xlu0 %7965
        %v7967 = vadd.f32 %v7836, %v7837
        %v7968 = vadd.f32 %v7967, %v7838
        %v7969 = vadd.f32 %v7968, %v7839
        %7970 = vadd.xlane.f32.xlu0 %v7969
        %v7971 = vpop.xlane.xlu0 %7970
        %v7972 = vadd.f32 %v7840, %v7841
        %v7973 = vadd.f32 %v7972, %v7842
        %v7974 = vadd.f32 %v7973, %v7843
        %7975 = vadd.xlane.f32.xlu0 %v7974
        %v7976 = vpop.xlane.xlu0 %7975
        %v7977 = vadd.f32 %v7844, %v7845
        %v7978 = vadd.f32 %v7977, %v7846
        %v7979 = vadd.f32 %v7978, %v7847
        %7980 = vadd.xlane.f32.xlu0 %v7979
        %v7981 = vpop.xlane.xlu0 %7980
        %v7982 = vadd.f32 %v7848, %v7849
        %v7983 = vadd.f32 %v7982, %v7850
        %v7984 = vadd.f32 %v7983, %v7851
        %7985 = vadd.xlane.f32.xlu0 %v7984
        %v7986 = vpop.xlane.xlu0 %7985
        %v7987 = vadd.f32 %v7852, %v7853
        %v7988 = vadd.f32 %v7987, %v7854
        %v7989 = vadd.f32 %v7988, %v7855
        %7990 = vadd.xlane.f32.xlu0 %v7989
        %v7991 = vpop.xlane.xlu0 %7990
        %v7992 = vadd.f32 %v7856, %v7857
        %v7993 = vadd.f32 %v7992, %v7858
        %v7994 = vadd.f32 %v7993, %v7859
        %7995 = vadd.xlane.f32.xlu0 %v7994
        %v7996 = vpop.xlane.xlu0 %7995
        %v7997 = vadd.f32 %v7860, %v7861
        %v7998 = vadd.f32 %v7997, %v7862
        %v7999 = vadd.f32 %v7998, %v7863
        %8000 = vadd.xlane.f32.xlu0 %v7999
        %v8001 = vpop.xlane.xlu0 %8000
        %v8002 = vadd.f32 %v7864, %v7865
        %v8003 = vadd.f32 %v8002, %v7866
        %v8004 = vadd.f32 %v8003, %v7867
        %8005 = vadd.xlane.f32.xlu0 %v8004
        %v8006 = vpop.xlane.xlu0 %8005
        %v8007 = vadd.f32 %v7868, %v7869
        %v8008 = vadd.f32 %v8007, %v7870
        %v8009 = vadd.f32 %v8008, %v7871
        %8010 = vadd.xlane.f32.xlu0 %v8009
        %v8011 = vpop.xlane.xlu0 %8010
        %v8012 = vadd.f32 %v7872, %v7873
        %v8013 = vadd.f32 %v8012, %v7874
        %v8014 = vadd.f32 %v8013, %v7875
        %8015 = vadd.xlane.f32.xlu0 %v8014
        %v8016 = vpop.xlane.xlu0 %8015
        %v8017 = vadd.f32 %v7876, %v7877
        %v8018 = vadd.f32 %v8017, %v7878
        %v8019 = vadd.f32 %v8018, %v7879
        %8020 = vadd.xlane.f32.xlu0 %v8019
        %v8021 = vpop.xlane.xlu0 %8020
        %v8022 = vadd.f32 %v7880, %v7881
        %v8023 = vadd.f32 %v8022, %v7882
        %v8024 = vadd.f32 %v8023, %v7883
        %8025 = vadd.xlane.f32.xlu0 %v8024
        %v8026 = vpop.xlane.xlu0 %8025
        %v8027 = vadd.f32 %v7884, %v7885
        %v8028 = vadd.f32 %v8027, %v7886
        %v8029 = vadd.f32 %v8028, %v7887
        %8030 = vadd.xlane.f32.xlu0 %v8029
        %v8031 = vpop.xlane.xlu0 %8030
        %v8032 = vadd.f32 %v7888, %v7889
        %v8033 = vadd.f32 %v8032, %v7890
        %v8034 = vadd.f32 %v8033, %v7891
        %8035 = vadd.xlane.f32.xlu0 %v8034
        %v8036 = vpop.xlane.xlu0 %8035
        %v8037 = vadd.f32 %v7892, %v7893
        %v8038 = vadd.f32 %v8037, %v7894
        %v8039 = vadd.f32 %v8038, %v7895
        %8040 = vadd.xlane.f32.xlu0 %v8039
        %v8041 = vpop.xlane.xlu0 %8040
        %v8042 = vadd.f32 %v7896, %v7897
        %v8043 = vadd.f32 %v8042, %v7898
        %v8044 = vadd.f32 %v8043, %v7899
        %8045 = vadd.xlane.f32.xlu0 %v8044
        %v8046 = vpop.xlane.xlu0 %8045
        %v8047 = vadd.f32 %v7900, %v7901
        %v8048 = vadd.f32 %v8047, %v7902
        %v8049 = vadd.f32 %v8048, %v7903
        %8050 = vadd.xlane.f32.xlu0 %v8049
        %v8051 = vpop.xlane.xlu0 %8050
        %v8052 = vadd.f32 %v7904, %v7905
        %v8053 = vadd.f32 %v8052, %v7906
        %v8054 = vadd.f32 %v8053, %v7907
        %8055 = vadd.xlane.f32.xlu0 %v8054
        %v8056 = vpop.xlane.xlu0 %8055
        %v8057 = vadd.f32 %v7908, %v7909
        %v8058 = vadd.f32 %v8057, %v7910
        %v8059 = vadd.f32 %v8058, %v7911
        %8060 = vadd.xlane.f32.xlu0 %v8059
        %v8061 = vpop.xlane.xlu0 %8060
        %v8062 = vadd.f32 %v7912, %v7913
        %v8063 = vadd.f32 %v8062, %v7914
        %v8064 = vadd.f32 %v8063, %v7915
        %8065 = vadd.xlane.f32.xlu0 %v8064
        %v8066 = vpop.xlane.xlu0 %8065
        %v8067 = vadd.f32 %v7916, %v7917
        %v8068 = vadd.f32 %v8067, %v7918
        %v8069 = vadd.f32 %v8068, %v7919
        %8070 = vadd.xlane.f32.xlu0 %v8069
        %v8071 = vpop.xlane.xlu0 %8070
        %v8072 = vadd.f32 %v7920, %v7921
        %v8073 = vadd.f32 %v8072, %v7922
        %v8074 = vadd.f32 %v8073, %v7923
        %8075 = vadd.xlane.f32.xlu0 %v8074
        %v8076 = vpop.xlane.xlu0 %8075
        %v8077 = vadd.f32 %v7924, %v7925
        %v8078 = vadd.f32 %v8077, %v7926
        %v8079 = vadd.f32 %v8078, %v7927
        %8080 = vadd.xlane.f32.xlu0 %v8079
        %v8081 = vpop.xlane.xlu0 %8080
        %v8082 = vadd.f32 %v7928, %v7929
        %v8083 = vadd.f32 %v8082, %v7930
        %v8084 = vadd.f32 %v8083, %v7931
        %8085 = vadd.xlane.f32.xlu0 %v8084
        %v8086 = vpop.xlane.xlu0 %8085
        %v8087 = vadd.f32 %v7932, %v7933
        %v8088 = vadd.f32 %v8087, %v7934
        %v8089 = vadd.f32 %v8088, %v7935
        %8090 = vadd.xlane.f32.xlu0 %v8089
        %v8091 = vpop.xlane.xlu0 %8090
        %v8092 = vadd.f32 %v7936, %v7937
        %v8093 = vadd.f32 %v8092, %v7938
        %v8094 = vadd.f32 %v8093, %v7939
        %8095 = vadd.xlane.f32.xlu0 %v8094
        %v8096 = vpop.xlane.xlu0 %8095
        %v8097 = vadd.f32 %v7940, %v7941
        %v8098 = vadd.f32 %v8097, %v7942
        %v8099 = vadd.f32 %v8098, %v7943
        %8100 = vadd.xlane.f32.xlu0 %v8099
        %v8101 = vpop.xlane.xlu0 %8100
        %v8102 = vadd.f32 %v7944, %v7945
        %v8103 = vadd.f32 %v8102, %v7946
        %v8104 = vadd.f32 %v8103, %v7947
        %8105 = vadd.xlane.f32.xlu0 %v8104
        %v8106 = vpop.xlane.xlu0 %8105
        %v8107 = vadd.f32 %v7948, %v7949
        %v8108 = vadd.f32 %v8107, %v7950
        %v8109 = vadd.f32 %v8108, %v7951
        %8110 = vadd.xlane.f32.xlu0 %v8109
        %v8111 = vpop.xlane.xlu0 %8110
        %8112 = vmatprep.subr.bf16.mxu0 0
        %8113 = vmatpush1.bf16.msra.mxu0 %v6718
        %8114 = vmatprep.subr.bf16.mxu0 0
        %8115 = vmatpush1.bf16.msra.mxu0 %v6719
        %8116 = vmatprep.subr.bf16.mxu0 0
        %8117 = vmatpush1.bf16.msra.mxu0 %v6720
        %8118 = vmatprep.subr.bf16.mxu0 0
        %8119 = vmatpush1.bf16.msra.mxu0 %v6721
        %8120 = vmatprep.subr.bf16.mxu0 0
        %8121 = vmatpush1.bf16.msra.mxu0 %v6722
        %8122 = vmatprep.subr.bf16.mxu0 0
        %8123 = vmatpush1.bf16.msra.mxu0 %v6723
        %8124 = vmatprep.subr.bf16.mxu0 0
        %8125 = vmatpush1.bf16.msra.mxu0 %v6724
        %8126 = vmatprep.subr.bf16.mxu0 0
        %8127 = vmatpush1.bf16.msra.mxu0 %v6725
        %8128 = vmatprep.subr.bf16.mxu0 0
        %8129 = vmatpush1.bf16.msra.mxu0 %v6726
        %8130 = vmatprep.subr.bf16.mxu0 0
        %8131 = vmatpush1.bf16.msra.mxu0 %v6727
        %8132 = vmatprep.subr.bf16.mxu0 0
        %8133 = vmatpush1.bf16.msra.mxu0 %v6728
        %8134 = vmatprep.subr.bf16.mxu0 0
        %8135 = vmatpush1.bf16.msra.mxu0 %v6729
        %8136 = vmatprep.subr.bf16.mxu0 0
        %8137 = vmatpush1.bf16.msra.mxu0 %v6730
        %8138 = vmatprep.subr.bf16.mxu0 0
        %8139 = vmatpush1.bf16.msra.mxu0 %v6731
        %8140 = vmatprep.subr.bf16.mxu0 0
        %8141 = vmatpush1.bf16.msra.mxu0 %v6732
        %8142 = vmatprep.subr.bf16.mxu0 0
        %8143 = vmatpush1.bf16.msra.mxu0 %v6733
        %8144 = vmatprep.mubr.bf16.mxu0 %v7637
        %8145 = vmatmul.mubr.bf16.gmra.mrb[0].mxu0 %v7634
        %v8146 = vpop.f32.mrb[0].mxu0
        %v8147 = vadd.f32 0.0, %v8146
        %v8148 = vpop.f32.mrb[0].mxu0
        %v8149 = vpop.f32.mrb[0].mxu0
        %v8150 = vadd.f32 0.0, %v8149
        %v8151 = vpop.f32.mrb[0].mxu0
        %8152 = vmatprep.mubr.bf16.mxu0 %v7649
        %8153 = vmatmul.mubr.bf16.gmra.mrb[0].mxu0 %v7646
        %v8154 = vpop.f32.mrb[0].mxu0
        %v8155 = vadd.f32 0.0, %v8154
        %v8156 = vpop.f32.mrb[0].mxu0
        %v8157 = vpop.f32.mrb[0].mxu0
        %v8158 = vadd.f32 0.0, %v8157
        %v8159 = vpop.f32.mrb[0].mxu0
        %8160 = vmatprep.mubr.bf16.mxu0 %v7661
        %8161 = vmatmul.mubr.bf16.gmra.mrb[0].mxu0 %v7658
        %v8162 = vpop.f32.mrb[0].mxu0
        %v8163 = vadd.f32 0.0, %v8162
        %v8164 = vpop.f32.mrb[0].mxu0
        %v8165 = vpop.f32.mrb[0].mxu0
        %v8166 = vadd.f32 0.0, %v8165
        %v8167 = vpop.f32.mrb[0].mxu0
        %8168 = vmatprep.mubr.bf16.mxu0 %v7673
        %8169 = vmatmul.mubr.bf16.gmra.mrb[0].mxu0 %v7670
        %v8170 = vpop.f32.mrb[0].mxu0
        %v8171 = vadd.f32 0.0, %v8170
        %v8172 = vpop.f32.mrb[0].mxu0
        %v8173 = vpop.f32.mrb[0].mxu0
        %v8174 = vadd.f32 0.0, %v8173
        %v8175 = vpop.f32.mrb[0].mxu0
        %8176 = vmatprep.mubr.bf16.mxu0 %v7685
        %8177 = vmatmul.mubr.bf16.gmra.mrb[0].mxu0 %v7682
        %v8178 = vpop.f32.mrb[0].mxu0
        %v8179 = vadd.f32 0.0, %v8178
        %v8180 = vpop.f32.mrb[0].mxu0
        %v8181 = vpop.f32.mrb[0].mxu0
        %v8182 = vadd.f32 0.0, %v8181
        %v8183 = vpop.f32.mrb[0].mxu0
        %8184 = vmatprep.mubr.bf16.mxu0 %v7697
        %8185 = vmatmul.mubr.bf16.gmra.mrb[0].mxu0 %v7694
        %v8186 = vpop.f32.mrb[0].mxu0
        %v8187 = vadd.f32 0.0, %v8186
        %v8188 = vpop.f32.mrb[0].mxu0
        %v8189 = vpop.f32.mrb[0].mxu0
        %v8190 = vadd.f32 0.0, %v8189
        %v8191 = vpop.f32.mrb[0].mxu0
        %8192 = vmatprep.mubr.bf16.mxu0 %v7709
        %8193 = vmatmul.mubr.bf16.gmra.mrb[0].mxu0 %v7706
        %v8194 = vpop.f32.mrb[0].mxu0
        %v8195 = vadd.f32 0.0, %v8194
        %v8196 = vpop.f32.mrb[0].mxu0
        %v8197 = vpop.f32.mrb[0].mxu0
        %v8198 = vadd.f32 0.0, %v8197
        %v8199 = vpop.f32.mrb[0].mxu0
        %8200 = vmatprep.mubr.bf16.mxu0 %v7721
        %8201 = vmatmul.mubr.bf16.gmra.mrb[0].mxu0 %v7718
        %v8202 = vpop.f32.mrb[0].mxu0
        %v8203 = vadd.f32 0.0, %v8202
        %v8204 = vpop.f32.mrb[0].mxu0
        %v8205 = vpop.f32.mrb[0].mxu0
        %v8206 = vadd.f32 0.0, %v8205
        %v8207 = vpop.f32.mrb[0].mxu0
        %8208 = vmatprep.mubr.bf16.mxu0 %v7733
        %8209 = vmatmul.mubr.bf16.gmra.mrb[0].mxu0 %v7730
        %v8210 = vpop.f32.mrb[0].mxu0
        %v8211 = vadd.f32 0.0, %v8210
        %v8212 = vpop.f32.mrb[0].mxu0
        %v8213 = vpop.f32.mrb[0].mxu0
        %v8214 = vadd.f32 0.0, %v8213
        %v8215 = vpop.f32.mrb[0].mxu0
        %8216 = vmatprep.mubr.bf16.mxu0 %v7745
        %8217 = vmatmul.mubr.bf16.gmra.mrb[0].mxu0 %v7742
        %v8218 = vpop.f32.mrb[0].mxu0
        %v8219 = vadd.f32 0.0, %v8218
        %v8220 = vpop.f32.mrb[0].mxu0
        %v8221 = vpop.f32.mrb[0].mxu0
        %v8222 = vadd.f32 0.0, %v8221
        %v8223 = vpop.f32.mrb[0].mxu0
        %8224 = vmatprep.mubr.bf16.mxu0 %v7757
        %8225 = vmatmul.mubr.bf16.gmra.mrb[0].mxu0 %v7754
        %v8226 = vpop.f32.mrb[0].mxu0
        %v8227 = vadd.f32 0.0, %v8226
        %v8228 = vpop.f32.mrb[0].mxu0
        %v8229 = vpop.f32.mrb[0].mxu0
        %v8230 = vadd.f32 0.0, %v8229
        %v8231 = vpop.f32.mrb[0].mxu0
        %8232 = vmatprep.mubr.bf16.mxu0 %v7769
        %8233 = vmatmul.mubr.bf16.gmra.mrb[0].mxu0 %v7766
        %v8234 = vpop.f32.mrb[0].mxu0
        %v8235 = vadd.f32 0.0, %v8234
        %v8236 = vpop.f32.mrb[0].mxu0
        %v8237 = vpop.f32.mrb[0].mxu0
        %v8238 = vadd.f32 0.0, %v8237
        %v8239 = vpop.f32.mrb[0].mxu0
        %8240 = vmatprep.mubr.bf16.mxu0 %v7781
        %8241 = vmatmul.mubr.bf16.gmra.mrb[0].mxu0 %v7778
        %v8242 = vpop.f32.mrb[0].mxu0
        %v8243 = vadd.f32 0.0, %v8242
        %v8244 = vpop.f32.mrb[0].mxu0
        %v8245 = vpop.f32.mrb[0].mxu0
        %v8246 = vadd.f32 0.0, %v8245
        %v8247 = vpop.f32.mrb[0].mxu0
        %8248 = vmatprep.mubr.bf16.mxu0 %v7793
        %8249 = vmatmul.mubr.bf16.gmra.mrb[0].mxu0 %v7790
        %v8250 = vpop.f32.mrb[0].mxu0
        %v8251 = vadd.f32 0.0, %v8250
        %v8252 = vpop.f32.mrb[0].mxu0
        %v8253 = vpop.f32.mrb[0].mxu0
        %v8254 = vadd.f32 0.0, %v8253
        %v8255 = vpop.f32.mrb[0].mxu0
        %8256 = vmatprep.mubr.bf16.mxu0 %v7805
        %8257 = vmatmul.mubr.bf16.gmra.mrb[0].mxu0 %v7802
        %v8258 = vpop.f32.mrb[0].mxu0
        %v8259 = vadd.f32 0.0, %v8258
        %v8260 = vpop.f32.mrb[0].mxu0
        %v8261 = vpop.f32.mrb[0].mxu0
        %v8262 = vadd.f32 0.0, %v8261
        %v8263 = vpop.f32.mrb[0].mxu0
        %8264 = vmatprep.mubr.bf16.mxu0 %v7817
        %8265 = vmatmul.mubr.bf16.gmra.mrb[0].mxu0 %v7814
        %v8266 = vpop.f32.mrb[0].mxu0
        %v8267 = vadd.f32 0.0, %v8266
        %v8268 = vpop.f32.mrb[0].mxu0
        %v8269 = vpop.f32.mrb[0].mxu0
        %v8270 = vadd.f32 0.0, %v8269
        %v8271 = vpop.f32.mrb[0].mxu0
        %8272 = vdwg.mxu0
        %8273 = vmatprep.subr.bf16.mxu0 0
        %8274 = vmatpush1.bf16.msra.mxu0 %v6734
        %8275 = vmatprep.subr.bf16.mxu0 0
        %8276 = vmatpush1.bf16.msra.mxu0 %v6735
        %8277 = vmatprep.subr.bf16.mxu0 0
        %8278 = vmatpush1.bf16.msra.mxu0 %v6736
        %8279 = vmatprep.subr.bf16.mxu0 0
        %8280 = vmatpush1.bf16.msra.mxu0 %v6737
        %8281 = vmatprep.subr.bf16.mxu0 0
        %8282 = vmatpush1.bf16.msra.mxu0 %v6738
        %8283 = vmatprep.subr.bf16.mxu0 0
        %8284 = vmatpush1.bf16.msra.mxu0 %v6739
        %8285 = vmatprep.subr.bf16.mxu0 0
        %8286 = vmatpush1.bf16.msra.mxu0 %v6740
        %8287 = vmatprep.subr.bf16.mxu0 0
        %8288 = vmatpush1.bf16.msra.mxu0 %v6741
        %8289 = vmatprep.subr.bf16.mxu0 0
        %8290 = vmatpush1.bf16.msra.mxu0 %v6742
        %8291 = vmatprep.subr.bf16.mxu0 0
        %8292 = vmatpush1.bf16.msra.mxu0 %v6743
        %8293 = vmatprep.subr.bf16.mxu0 0
        %8294 = vmatpush1.bf16.msra.mxu0 %v6744
        %8295 = vmatprep.subr.bf16.mxu0 0
        %8296 = vmatpush1.bf16.msra.mxu0 %v6745
        %8297 = vmatprep.subr.bf16.mxu0 0
        %8298 = vmatpush1.bf16.msra.mxu0 %v6746
        %8299 = vmatprep.subr.bf16.mxu0 0
        %8300 = vmatpush1.bf16.msra.mxu0 %v6747
        %8301 = vmatprep.subr.bf16.mxu0 0
        %8302 = vmatpush1.bf16.msra.mxu0 %v6748
        %8303 = vmatprep.subr.bf16.mxu0 0
        %8304 = vmatpush1.bf16.msra.mxu0 %v6749
        %8305 = vmatprep.mubr.bf16.mxu0 %v7643
        %8306 = vmatmul.mubr.bf16.gmra.mrb[0].mxu0 %v7640
        %v8307 = vpop.f32.mrb[0].mxu0
        %v8308 = vadd.f32 %v8147, %v8307
        %v8309 = vpop.f32.mrb[0].mxu0
        %v8310 = vpop.f32.mrb[0].mxu0
        %v8311 = vadd.f32 %v8150, %v8310
        %v8312 = vpop.f32.mrb[0].mxu0
        %8313 = vmatprep.mubr.bf16.mxu0 %v7655
        %8314 = vmatmul.mubr.bf16.gmra.mrb[0].mxu0 %v7652
        %v8315 = vpop.f32.mrb[0].mxu0
        %v8316 = vadd.f32 %v8155, %v8315
        %v8317 = vpop.f32.mrb[0].mxu0
        %v8318 = vpop.f32.mrb[0].mxu0
        %v8319 = vadd.f32 %v8158, %v8318
        %v8320 = vpop.f32.mrb[0].mxu0
        %8321 = vmatprep.mubr.bf16.mxu0 %v7667
        %8322 = vmatmul.mubr.bf16.gmra.mrb[0].mxu0 %v7664
        %v8323 = vpop.f32.mrb[0].mxu0
        %v8324 = vadd.f32 %v8163, %v8323
        %v8325 = vpop.f32.mrb[0].mxu0
        %v8326 = vpop.f32.mrb[0].mxu0
        %v8327 = vadd.f32 %v8166, %v8326
        %v8328 = vpop.f32.mrb[0].mxu0
        %8329 = vmatprep.mubr.bf16.mxu0 %v7679
        %8330 = vmatmul.mubr.bf16.gmra.mrb[0].mxu0 %v7676
        %v8331 = vpop.f32.mrb[0].mxu0
        %v8332 = vadd.f32 %v8171, %v8331
        %v8333 = vpop.f32.mrb[0].mxu0
        %v8334 = vpop.f32.mrb[0].mxu0
        %v8335 = vadd.f32 %v8174, %v8334
        %v8336 = vpop.f32.mrb[0].mxu0
        %8337 = vmatprep.mubr.bf16.mxu0 %v7691
        %8338 = vmatmul.mubr.bf16.gmra.mrb[0].mxu0 %v7688
        %v8339 = vpop.f32.mrb[0].mxu0
        %v8340 = vadd.f32 %v8179, %v8339
        %v8341 = vpop.f32.mrb[0].mxu0
        %v8342 = vpop.f32.mrb[0].mxu0
        %v8343 = vadd.f32 %v8182, %v8342
        %v8344 = vpop.f32.mrb[0].mxu0
        %8345 = vmatprep.mubr.bf16.mxu0 %v7703
        %8346 = vmatmul.mubr.bf16.gmra.mrb[0].mxu0 %v7700
        %v8347 = vpop.f32.mrb[0].mxu0
        %v8348 = vadd.f32 %v8187, %v8347
        %v8349 = vpop.f32.mrb[0].mxu0
        %v8350 = vpop.f32.mrb[0].mxu0
        %v8351 = vadd.f32 %v8190, %v8350
        %v8352 = vpop.f32.mrb[0].mxu0
        %8353 = vmatprep.mubr.bf16.mxu0 %v7715
        %8354 = vmatmul.mubr.bf16.gmra.mrb[0].mxu0 %v7712
        %v8355 = vpop.f32.mrb[0].mxu0
        %v8356 = vadd.f32 %v8195, %v8355
        %v8357 = vpop.f32.mrb[0].mxu0
        %v8358 = vpop.f32.mrb[0].mxu0
        %v8359 = vadd.f32 %v8198, %v8358
        %v8360 = vpop.f32.mrb[0].mxu0
        %8361 = vmatprep.mubr.bf16.mxu0 %v7727
        %8362 = vmatmul.mubr.bf16.gmra.mrb[0].mxu0 %v7724
        %v8363 = vpop.f32.mrb[0].mxu0
        %v8364 = vadd.f32 %v8203, %v8363
        %v8365 = vpop.f32.mrb[0].mxu0
        %v8366 = vpop.f32.mrb[0].mxu0
        %v8367 = vadd.f32 %v8206, %v8366
        %v8368 = vpop.f32.mrb[0].mxu0
        %8369 = vmatprep.mubr.bf16.mxu0 %v7739
        %8370 = vmatmul.mubr.bf16.gmra.mrb[0].mxu0 %v7736
        %v8371 = vpop.f32.mrb[0].mxu0
        %v8372 = vadd.f32 %v8211, %v8371
        %v8373 = vpop.f32.mrb[0].mxu0
        %v8374 = vpop.f32.mrb[0].mxu0
        %v8375 = vadd.f32 %v8214, %v8374
        %v8376 = vpop.f32.mrb[0].mxu0
        %8377 = vmatprep.mubr.bf16.mxu0 %v7751
        %8378 = vmatmul.mubr.bf16.gmra.mrb[0].mxu0 %v7748
        %v8379 = vpop.f32.mrb[0].mxu0
        %v8380 = vadd.f32 %v8219, %v8379
        %v8381 = vpop.f32.mrb[0].mxu0
        %v8382 = vpop.f32.mrb[0].mxu0
        %v8383 = vadd.f32 %v8222, %v8382
        %v8384 = vpop.f32.mrb[0].mxu0
        %8385 = vmatprep.mubr.bf16.mxu0 %v7763
        %8386 = vmatmul.mubr.bf16.gmra.mrb[0].mxu0 %v7760
        %v8387 = vpop.f32.mrb[0].mxu0
        %v8388 = vadd.f32 %v8227, %v8387
        %v8389 = vpop.f32.mrb[0].mxu0
        %v8390 = vpop.f32.mrb[0].mxu0
        %v8391 = vadd.f32 %v8230, %v8390
        %v8392 = vpop.f32.mrb[0].mxu0
        %8393 = vmatprep.mubr.bf16.mxu0 %v7775
        %8394 = vmatmul.mubr.bf16.gmra.mrb[0].mxu0 %v7772
        %v8395 = vpop.f32.mrb[0].mxu0
        %v8396 = vadd.f32 %v8235, %v8395
        %v8397 = vpop.f32.mrb[0].mxu0
        %v8398 = vpop.f32.mrb[0].mxu0
        %v8399 = vadd.f32 %v8238, %v8398
        %v8400 = vpop.f32.mrb[0].mxu0
        %8401 = vmatprep.mubr.bf16.mxu0 %v7787
        %8402 = vmatmul.mubr.bf16.gmra.mrb[0].mxu0 %v7784
        %v8403 = vpop.f32.mrb[0].mxu0
        %v8404 = vadd.f32 %v8243, %v8403
        %v8405 = vpop.f32.mrb[0].mxu0
        %v8406 = vpop.f32.mrb[0].mxu0
        %v8407 = vadd.f32 %v8246, %v8406
        %v8408 = vpop.f32.mrb[0].mxu0
        %8409 = vmatprep.mubr.bf16.mxu0 %v7799
        %8410 = vmatmul.mubr.bf16.gmra.mrb[0].mxu0 %v7796
        %v8411 = vpop.f32.mrb[0].mxu0
        %v8412 = vadd.f32 %v8251, %v8411
        %v8413 = vpop.f32.mrb[0].mxu0
        %v8414 = vpop.f32.mrb[0].mxu0
        %v8415 = vadd.f32 %v8254, %v8414
        %v8416 = vpop.f32.mrb[0].mxu0
        %8417 = vmatprep.mubr.bf16.mxu0 %v7811
        %8418 = vmatmul.mubr.bf16.gmra.mrb[0].mxu0 %v7808
        %v8419 = vpop.f32.mrb[0].mxu0
        %v8420 = vadd.f32 %v8259, %v8419
        %v8421 = vpop.f32.mrb[0].mxu0
        %v8422 = vpop.f32.mrb[0].mxu0
        %v8423 = vadd.f32 %v8262, %v8422
        %v8424 = vpop.f32.mrb[0].mxu0
        %8425 = vmatprep.mubr.bf16.mxu0 %v7823
        %8426 = vmatmul.mubr.bf16.gmra.mrb[0].mxu0 %v7820
        %v8427 = vpop.f32.mrb[0].mxu0
        %v8428 = vadd.f32 %v8267, %v8427
        %v8429 = vpop.f32.mrb[0].mxu0
        %v8430 = vpop.f32.mrb[0].mxu0
        %v8431 = vadd.f32 %v8270, %v8430
        %v8432 = vpop.f32.mrb[0].mxu0
        %8433 = vdwg.mxu0
        %v8434 = vrcp.pop %v7956
        %v8435 = vrcp.pop %v7961
        %v8436 = vrcp.pop %v7966
        %v8437 = vrcp.pop %v7971
        %v8438 = vrcp.pop %v7976
        %v8439 = vrcp.pop %v7981
        %v8440 = vrcp.pop %v7986
        %v8441 = vrcp.pop %v7991
        %v8442 = vrcp.pop %v7996
        %v8443 = vrcp.pop %v8001
        %v8444 = vrcp.pop %v8006
        %v8445 = vrcp.pop %v8011
        %v8446 = vrcp.pop %v8016
        %v8447 = vrcp.pop %v8021
        %v8448 = vrcp.pop %v8026
        %v8449 = vrcp.pop %v8031
        %v8450 = vrcp.pop %v8036
        %v8451 = vrcp.pop %v8041
        %v8452 = vrcp.pop %v8046
        %v8453 = vrcp.pop %v8051
        %v8454 = vrcp.pop %v8056
        %v8455 = vrcp.pop %v8061
        %v8456 = vrcp.pop %v8066
        %v8457 = vrcp.pop %v8071
        %v8458 = vrcp.pop %v8076
        %v8459 = vrcp.pop %v8081
        %v8460 = vrcp.pop %v8086
        %v8461 = vrcp.pop %v8091
        %v8462 = vrcp.pop %v8096
        %v8463 = vrcp.pop %v8101
        %v8464 = vrcp.pop %v8106
        %v8465 = vrcp.pop %v8111
        %v8466 = vmul.f32 %v8308, %v8434
        %v8467 = vmul.f32 %v8311, %v8435
        %v8468 = vmul.f32 %v8316, %v8436
        %v8469 = vmul.f32 %v8319, %v8437
        %v8470 = vmul.f32 %v8324, %v8438
        %v8471 = vmul.f32 %v8327, %v8439
        %v8472 = vmul.f32 %v8332, %v8440
        %v8473 = vmul.f32 %v8335, %v8441
        %v8474 = vmul.f32 %v8340, %v8442
        %v8475 = vmul.f32 %v8343, %v8443
        %v8476 = vmul.f32 %v8348, %v8444
        %v8477 = vmul.f32 %v8351, %v8445
        %v8478 = vmul.f32 %v8356, %v8446
        %v8479 = vmul.f32 %v8359, %v8447
        %v8480 = vmul.f32 %v8364, %v8448
        %v8481 = vmul.f32 %v8367, %v8449
        %v8482 = vmul.f32 %v8372, %v8450
        %v8483 = vmul.f32 %v8375, %v8451
        %v8484 = vmul.f32 %v8380, %v8452
        %v8485 = vmul.f32 %v8383, %v8453
        %v8486 = vmul.f32 %v8388, %v8454
        %v8487 = vmul.f32 %v8391, %v8455
        %v8488 = vmul.f32 %v8396, %v8456
        %v8489 = vmul.f32 %v8399, %v8457
        %v8490 = vmul.f32 %v8404, %v8458
        %v8491 = vmul.f32 %v8407, %v8459
        %v8492 = vmul.f32 %v8412, %v8460
        %v8493 = vmul.f32 %v8415, %v8461
        %v8494 = vmul.f32 %v8420, %v8462
        %v8495 = vmul.f32 %v8423, %v8463
        %v8496 = vmul.f32 %v8428, %v8464
        %v8497 = vmul.f32 %v8431, %v8465
        %v8498 = vpack.c.bf16 %v8467, %v8466
        %v8499 = vpack.c.bf16 %v8469, %v8468
        %v8500 = vpack.c.bf16 %v8471, %v8470
        %v8501 = vpack.c.bf16 %v8473, %v8472
        %v8502 = vpack.c.bf16 %v8475, %v8474
        %v8503 = vpack.c.bf16 %v8477, %v8476
        %v8504 = vpack.c.bf16 %v8479, %v8478
        %v8505 = vpack.c.bf16 %v8481, %v8480
        %v8506 = vpack.c.bf16 %v8483, %v8482
        %v8507 = vpack.c.bf16 %v8485, %v8484
        %v8508 = vpack.c.bf16 %v8487, %v8486
        %v8509 = vpack.c.bf16 %v8489, %v8488
        %v8510 = vpack.c.bf16 %v8491, %v8490
        %v8511 = vpack.c.bf16 %v8493, %v8492
        %v8512 = vpack.c.bf16 %v8495, %v8494
        %v8513 = vpack.c.bf16 %v8497, %v8496
        %8530 = vrot.lane.b32.xlu0 %v2662, 64
        %v8531 = vpop.permute.xlu0 %8530
        %8532 = vrot.lane.b32.xlu0 %v2664, 64
        %v8533 = vpop.permute.xlu0 %8532
        %8534 = vrot.lane.b32.xlu0 %v2666, 64
        %v8535 = vpop.permute.xlu0 %8534
        %8536 = vrot.lane.b32.xlu0 %v2668, 64
        %v8537 = vpop.permute.xlu0 %8536
        %8538 = vrot.lane.b32.xlu0 %v2670, 64
        %v8539 = vpop.permute.xlu0 %8538
        %8540 = vrot.lane.b32.xlu0 %v2672, 64
        %v8541 = vpop.permute.xlu0 %8540
        %8542 = vrot.lane.b32.xlu0 %v2674, 64
        %v8543 = vpop.permute.xlu0 %8542
        %8544 = vrot.lane.b32.xlu0 %v2676, 64
        %v8545 = vpop.permute.xlu0 %8544
        %8546 = vrot.lane.b32.xlu0 %v2678, 64
        %v8547 = vpop.permute.xlu0 %8546
        %8548 = vrot.lane.b32.xlu0 %v2680, 64
        %v8549 = vpop.permute.xlu0 %8548
        %8550 = vrot.lane.b32.xlu0 %v2682, 64
        %v8551 = vpop.permute.xlu0 %8550
        %8552 = vrot.lane.b32.xlu0 %v2684, 64
        %v8553 = vpop.permute.xlu0 %8552
        %8554 = vrot.lane.b32.xlu0 %v2686, 64
        %v8555 = vpop.permute.xlu0 %8554
        %8556 = vrot.lane.b32.xlu0 %v2688, 64
        %v8557 = vpop.permute.xlu0 %8556
        %8558 = vrot.lane.b32.xlu0 %v2690, 64
        %v8559 = vpop.permute.xlu0 %8558
        %8560 = vrot.lane.b32.xlu0 %v2692, 64
        %v8561 = vpop.permute.xlu0 %8560
        %8594 = vrot.lane.b32.xlu0 %v6686, 64
        %v8595 = vpop.permute.xlu0 %8594
        %8596 = vrot.lane.b32.xlu0 %v6687, 64
        %v8597 = vpop.permute.xlu0 %8596
        %8598 = vrot.lane.b32.xlu0 %v6688, 64
        %v8599 = vpop.permute.xlu0 %8598
        %8600 = vrot.lane.b32.xlu0 %v6689, 64
        %v8601 = vpop.permute.xlu0 %8600
        %8602 = vrot.lane.b32.xlu0 %v6690, 64
        %v8603 = vpop.permute.xlu0 %8602
        %8604 = vrot.lane.b32.xlu0 %v6691, 64
        %v8605 = vpop.permute.xlu0 %8604
        %8606 = vrot.lane.b32.xlu0 %v6692, 64
        %v8607 = vpop.permute.xlu0 %8606
        %8608 = vrot.lane.b32.xlu0 %v6693, 64
        %v8609 = vpop.permute.xlu0 %8608
        %8610 = vrot.lane.b32.xlu0 %v6694, 64
        %v8611 = vpop.permute.xlu0 %8610
        %8612 = vrot.lane.b32.xlu0 %v6695, 64
        %v8613 = vpop.permute.xlu0 %8612
        %8614 = vrot.lane.b32.xlu0 %v6696, 64
        %v8615 = vpop.permute.xlu0 %8614
        %8616 = vrot.lane.b32.xlu0 %v6697, 64
        %v8617 = vpop.permute.xlu0 %8616
        %8618 = vrot.lane.b32.xlu0 %v6698, 64
        %v8619 = vpop.permute.xlu0 %8618
        %8620 = vrot.lane.b32.xlu0 %v6699, 64
        %v8621 = vpop.permute.xlu0 %8620
        %8622 = vrot.lane.b32.xlu0 %v6700, 64
        %v8623 = vpop.permute.xlu0 %8622
        %8624 = vrot.lane.b32.xlu0 %v6701, 64
        %v8625 = vpop.permute.xlu0 %8624
        %8626 = vrot.lane.b32.xlu0 %v6702, 64
        %v8627 = vpop.permute.xlu0 %8626
        %8628 = vrot.lane.b32.xlu0 %v6703, 64
        %v8629 = vpop.permute.xlu0 %8628
        %8630 = vrot.lane.b32.xlu0 %v6704, 64
        %v8631 = vpop.permute.xlu0 %8630
        %8632 = vrot.lane.b32.xlu0 %v6705, 64
        %v8633 = vpop.permute.xlu0 %8632
        %8634 = vrot.lane.b32.xlu0 %v6706, 64
        %v8635 = vpop.permute.xlu0 %8634
        %8636 = vrot.lane.b32.xlu0 %v6707, 64
        %v8637 = vpop.permute.xlu0 %8636
        %8638 = vrot.lane.b32.xlu0 %v6708, 64
        %v8639 = vpop.permute.xlu0 %8638
        %8640 = vrot.lane.b32.xlu0 %v6709, 64
        %v8641 = vpop.permute.xlu0 %8640
        %8642 = vrot.lane.b32.xlu0 %v6710, 64
        %v8643 = vpop.permute.xlu0 %8642
        %8644 = vrot.lane.b32.xlu0 %v6711, 64
        %v8645 = vpop.permute.xlu0 %8644
        %8646 = vrot.lane.b32.xlu0 %v6712, 64
        %v8647 = vpop.permute.xlu0 %8646
        %8648 = vrot.lane.b32.xlu0 %v6713, 64
        %v8649 = vpop.permute.xlu0 %8648
        %8650 = vrot.lane.b32.xlu0 %v6714, 64
        %v8651 = vpop.permute.xlu0 %8650
        %8652 = vrot.lane.b32.xlu0 %v6715, 64
        %v8653 = vpop.permute.xlu0 %8652
        %8654 = vrot.lane.b32.xlu0 %v6716, 64
        %v8655 = vpop.permute.xlu0 %8654
        %8656 = vrot.lane.b32.xlu0 %v6717, 64
        %v8657 = vpop.permute.xlu0 %8656
        %v8659 = vsel %vm2757, %v8531, 0
        %v8662 = vsel %vm2757, %v8533, 0
        %v8665 = vsel %vm2757, %v8535, 0
        %v8668 = vsel %vm2757, %v8537, 0
        %v8671 = vsel %vm2757, %v8539, 0
        %v8674 = vsel %vm2757, %v8541, 0
        %v8677 = vsel %vm2757, %v8543, 0
        %v8680 = vsel %vm2757, %v8545, 0
        %v8683 = vsel %vm2757, %v8547, 0
        %v8686 = vsel %vm2757, %v8549, 0
        %v8689 = vsel %vm2757, %v8551, 0
        %v8692 = vsel %vm2757, %v8553, 0
        %v8695 = vsel %vm2757, %v8555, 0
        %v8698 = vsel %vm2757, %v8557, 0
        %v8701 = vsel %vm2757, %v8559, 0
        %v8704 = vsel %vm2757, %v8561, 0
        %v8707 = vsel %vm2757, %v8595, 0
        %v8710 = vsel %vm2757, %v8597, 0
        %v8713 = vsel %vm2757, %v8599, 0
        %v8716 = vsel %vm2757, %v8601, 0
        %v8719 = vsel %vm2757, %v8603, 0
        %v8722 = vsel %vm2757, %v8605, 0
        %v8725 = vsel %vm2757, %v8607, 0
        %v8728 = vsel %vm2757, %v8609, 0
        %v8731 = vsel %vm2757, %v8611, 0
        %v8734 = vsel %vm2757, %v8613, 0
        %v8737 = vsel %vm2757, %v8615, 0
        %v8740 = vsel %vm2757, %v8617, 0
        %v8743 = vsel %vm2757, %v8619, 0
        %v8746 = vsel %vm2757, %v8621, 0
        %v8749 = vsel %vm2757, %v8623, 0
        %v8752 = vsel %vm2757, %v8625, 0
        %v8755 = vsel %vm2757, %v8627, 0
        %v8758 = vsel %vm2757, %v8629, 0
        %v8761 = vsel %vm2757, %v8631, 0
        %v8764 = vsel %vm2757, %v8633, 0
        %v8767 = vsel %vm2757, %v8635, 0
        %v8770 = vsel %vm2757, %v8637, 0
        %v8773 = vsel %vm2757, %v8639, 0
        %v8776 = vsel %vm2757, %v8641, 0
        %v8779 = vsel %vm2757, %v8643, 0
        %v8782 = vsel %vm2757, %v8645, 0
        %v8785 = vsel %vm2757, %v8647, 0
        %v8788 = vsel %vm2757, %v8649, 0
        %v8791 = vsel %vm2757, %v8651, 0
        %v8794 = vsel %vm2757, %v8653, 0
        %v8797 = vsel %vm2757, %v8655, 0
        %v8800 = vsel %vm2757, %v8657, 0
        %8802 = vmatprep.subr.bf16.mxu0 0
        %8803 = vmatpush1.bf16.xpose.msra.mxu0 %v8707
        %8804 = vmatprep.subr.bf16.mxu0 0
        %8805 = vmatpush1.bf16.xpose.msra.mxu0 %v8710
        %8806 = vmatprep.subr.bf16.mxu0 0
        %8807 = vmatpush1.bf16.xpose.msra.mxu0 %v8713
        %8808 = vmatprep.subr.bf16.mxu0 0
        %8809 = vmatpush1.bf16.xpose.msra.mxu0 %v8716
        %8810 = vmatprep.subr.bf16.mxu0 0
        %8811 = vmatpush1.bf16.xpose.msra.mxu0 %v8719
        %8812 = vmatprep.subr.bf16.mxu0 0
        %8813 = vmatpush1.bf16.xpose.msra.mxu0 %v8722
        %8814 = vmatprep.subr.bf16.mxu0 0
        %8815 = vmatpush1.bf16.xpose.msra.mxu0 %v8725
        %8816 = vmatprep.subr.bf16.mxu0 0
        %8817 = vmatpush1.bf16.xpose.msra.mxu0 %v8728
        %8818 = vmatprep.subr.bf16.mxu0 0
        %8819 = vmatpush1.bf16.xpose.msra.mxu0 %v8731
        %8820 = vmatprep.subr.bf16.mxu0 0
        %8821 = vmatpush1.bf16.xpose.msra.mxu0 %v8734
        %8822 = vmatprep.subr.bf16.mxu0 0
        %8823 = vmatpush1.bf16.xpose.msra.mxu0 %v8737
        %8824 = vmatprep.subr.bf16.mxu0 0
        %8825 = vmatpush1.bf16.xpose.msra.mxu0 %v8740
        %8826 = vmatprep.subr.bf16.mxu0 0
        %8827 = vmatpush1.bf16.xpose.msra.mxu0 %v8743
        %8828 = vmatprep.subr.bf16.mxu0 0
        %8829 = vmatpush1.bf16.xpose.msra.mxu0 %v8746
        %8830 = vmatprep.subr.bf16.mxu0 0
        %8831 = vmatpush1.bf16.xpose.msra.mxu0 %v8749
        %8832 = vmatprep.subr.bf16.mxu0 0
        %8833 = vmatpush1.bf16.xpose.msra.mxu0 %v8752
        %8834 = vmatprep.mubr.bf16.mxu0 0
        %8835 = vmatmul.mubr.bf16.gmra.mrb[0].mxu0 %v8659
        %v8836 = vpop.f32.mrb[0].mxu0
        %v8837 = vadd.f32 0.0, %v8836
        %v8838 = vpop.f32.mrb[0].mxu0
        %v8839 = vadd.f32 0.0, %v8838
        %v8840 = vpop.f32.mrb[0].mxu0
        %v8841 = vadd.f32 0.0, %v8840
        %v8842 = vpop.f32.mrb[0].mxu0
        %v8843 = vadd.f32 0.0, %v8842
        %8844 = vmatprep.mubr.bf16.mxu0 0
        %8845 = vmatmul.mubr.bf16.gmra.mrb[0].mxu0 %v8662
        %v8846 = vpop.f32.mrb[0].mxu0
        %v8847 = vadd.f32 0.0, %v8846
        %v8848 = vpop.f32.mrb[0].mxu0
        %v8849 = vadd.f32 0.0, %v8848
        %v8850 = vpop.f32.mrb[0].mxu0
        %v8851 = vadd.f32 0.0, %v8850
        %v8852 = vpop.f32.mrb[0].mxu0
        %v8853 = vadd.f32 0.0, %v8852
        %8854 = vmatprep.mubr.bf16.mxu0 0
        %8855 = vmatmul.mubr.bf16.gmra.mrb[0].mxu0 %v8665
        %v8856 = vpop.f32.mrb[0].mxu0
        %v8857 = vadd.f32 0.0, %v8856
        %v8858 = vpop.f32.mrb[0].mxu0
        %v8859 = vadd.f32 0.0, %v8858
        %v8860 = vpop.f32.mrb[0].mxu0
        %v8861 = vadd.f32 0.0, %v8860
        %v8862 = vpop.f32.mrb[0].mxu0
        %v8863 = vadd.f32 0.0, %v8862
        %8864 = vmatprep.mubr.bf16.mxu0 0
        %8865 = vmatmul.mubr.bf16.gmra.mrb[0].mxu0 %v8668
        %v8866 = vpop.f32.mrb[0].mxu0
        %v8867 = vadd.f32 0.0, %v8866
        %v8868 = vpop.f32.mrb[0].mxu0
        %v8869 = vadd.f32 0.0, %v8868
        %v8870 = vpop.f32.mrb[0].mxu0
        %v8871 = vadd.f32 0.0, %v8870
        %v8872 = vpop.f32.mrb[0].mxu0
        %v8873 = vadd.f32 0.0, %v8872
        %8874 = vmatprep.mubr.bf16.mxu0 0
        %8875 = vmatmul.mubr.bf16.gmra.mrb[0].mxu0 %v8671
        %v8876 = vpop.f32.mrb[0].mxu0
        %v8877 = vadd.f32 0.0, %v8876
        %v8878 = vpop.f32.mrb[0].mxu0
        %v8879 = vadd.f32 0.0, %v8878
        %v8880 = vpop.f32.mrb[0].mxu0
        %v8881 = vadd.f32 0.0, %v8880
        %v8882 = vpop.f32.mrb[0].mxu0
        %v8883 = vadd.f32 0.0, %v8882
        %8884 = vmatprep.mubr.bf16.mxu0 0
        %8885 = vmatmul.mubr.bf16.gmra.mrb[0].mxu0 %v8674
        %v8886 = vpop.f32.mrb[0].mxu0
        %v8887 = vadd.f32 0.0, %v8886
        %v8888 = vpop.f32.mrb[0].mxu0
        %v8889 = vadd.f32 0.0, %v8888
        %v8890 = vpop.f32.mrb[0].mxu0
        %v8891 = vadd.f32 0.0, %v8890
        %v8892 = vpop.f32.mrb[0].mxu0
        %v8893 = vadd.f32 0.0, %v8892
        %8894 = vmatprep.mubr.bf16.mxu0 0
        %8895 = vmatmul.mubr.bf16.gmra.mrb[0].mxu0 %v8677
        %v8896 = vpop.f32.mrb[0].mxu0
        %v8897 = vadd.f32 0.0, %v8896
        %v8898 = vpop.f32.mrb[0].mxu0
        %v8899 = vadd.f32 0.0, %v8898
        %v8900 = vpop.f32.mrb[0].mxu0
        %v8901 = vadd.f32 0.0, %v8900
        %v8902 = vpop.f32.mrb[0].mxu0
        %v8903 = vadd.f32 0.0, %v8902
        %8904 = vmatprep.mubr.bf16.mxu0 0
        %8905 = vmatmul.mubr.bf16.gmra.mrb[0].mxu0 %v8680
        %v8906 = vpop.f32.mrb[0].mxu0
        %v8907 = vadd.f32 0.0, %v8906
        %v8908 = vpop.f32.mrb[0].mxu0
        %v8909 = vadd.f32 0.0, %v8908
        %v8910 = vpop.f32.mrb[0].mxu0
        %v8911 = vadd.f32 0.0, %v8910
        %v8912 = vpop.f32.mrb[0].mxu0
        %v8913 = vadd.f32 0.0, %v8912
        %8914 = vmatprep.mubr.bf16.mxu0 0
        %8915 = vmatmul.mubr.bf16.gmra.mrb[0].mxu0 %v8683
        %v8916 = vpop.f32.mrb[0].mxu0
        %v8917 = vadd.f32 0.0, %v8916
        %v8918 = vpop.f32.mrb[0].mxu0
        %v8919 = vadd.f32 0.0, %v8918
        %v8920 = vpop.f32.mrb[0].mxu0
        %v8921 = vadd.f32 0.0, %v8920
        %v8922 = vpop.f32.mrb[0].mxu0
        %v8923 = vadd.f32 0.0, %v8922
        %8924 = vmatprep.mubr.bf16.mxu0 0
        %8925 = vmatmul.mubr.bf16.gmra.mrb[0].mxu0 %v8686
        %v8926 = vpop.f32.mrb[0].mxu0
        %v8927 = vadd.f32 0.0, %v8926
        %v8928 = vpop.f32.mrb[0].mxu0
        %v8929 = vadd.f32 0.0, %v8928
        %v8930 = vpop.f32.mrb[0].mxu0
        %v8931 = vadd.f32 0.0, %v8930
        %v8932 = vpop.f32.mrb[0].mxu0
        %v8933 = vadd.f32 0.0, %v8932
        %8934 = vmatprep.mubr.bf16.mxu0 0
        %8935 = vmatmul.mubr.bf16.gmra.mrb[0].mxu0 %v8689
        %v8936 = vpop.f32.mrb[0].mxu0
        %v8937 = vadd.f32 0.0, %v8936
        %v8938 = vpop.f32.mrb[0].mxu0
        %v8939 = vadd.f32 0.0, %v8938
        %v8940 = vpop.f32.mrb[0].mxu0
        %v8941 = vadd.f32 0.0, %v8940
        %v8942 = vpop.f32.mrb[0].mxu0
        %v8943 = vadd.f32 0.0, %v8942
        %8944 = vmatprep.mubr.bf16.mxu0 0
        %8945 = vmatmul.mubr.bf16.gmra.mrb[0].mxu0 %v8692
        %v8946 = vpop.f32.mrb[0].mxu0
        %v8947 = vadd.f32 0.0, %v8946
        %v8948 = vpop.f32.mrb[0].mxu0
        %v8949 = vadd.f32 0.0, %v8948
        %v8950 = vpop.f32.mrb[0].mxu0
        %v8951 = vadd.f32 0.0, %v8950
        %v8952 = vpop.f32.mrb[0].mxu0
        %v8953 = vadd.f32 0.0, %v8952
        %8954 = vmatprep.mubr.bf16.mxu0 0
        %8955 = vmatmul.mubr.bf16.gmra.mrb[0].mxu0 %v8695
        %v8956 = vpop.f32.mrb[0].mxu0
        %v8957 = vadd.f32 0.0, %v8956
        %v8958 = vpop.f32.mrb[0].mxu0
        %v8959 = vadd.f32 0.0, %v8958
        %v8960 = vpop.f32.mrb[0].mxu0
        %v8961 = vadd.f32 0.0, %v8960
        %v8962 = vpop.f32.mrb[0].mxu0
        %v8963 = vadd.f32 0.0, %v8962
        %8964 = vmatprep.mubr.bf16.mxu0 0
        %8965 = vmatmul.mubr.bf16.gmra.mrb[0].mxu0 %v8698
        %v8966 = vpop.f32.mrb[0].mxu0
        %v8967 = vadd.f32 0.0, %v8966
        %v8968 = vpop.f32.mrb[0].mxu0
        %v8969 = vadd.f32 0.0, %v8968
        %v8970 = vpop.f32.mrb[0].mxu0
        %v8971 = vadd.f32 0.0, %v8970
        %v8972 = vpop.f32.mrb[0].mxu0
        %v8973 = vadd.f32 0.0, %v8972
        %8974 = vmatprep.mubr.bf16.mxu0 0
        %8975 = vmatmul.mubr.bf16.gmra.mrb[0].mxu0 %v8701
        %v8976 = vpop.f32.mrb[0].mxu0
        %v8977 = vadd.f32 0.0, %v8976
        %v8978 = vpop.f32.mrb[0].mxu0
        %v8979 = vadd.f32 0.0, %v8978
        %v8980 = vpop.f32.mrb[0].mxu0
        %v8981 = vadd.f32 0.0, %v8980
        %v8982 = vpop.f32.mrb[0].mxu0
        %v8983 = vadd.f32 0.0, %v8982
        %8984 = vmatprep.mubr.bf16.mxu0 0
        %8985 = vmatmul.mubr.bf16.gmra.mrb[0].mxu0 %v8704
        %v8986 = vpop.f32.mrb[0].mxu0
        %v8987 = vadd.f32 0.0, %v8986
        %v8988 = vpop.f32.mrb[0].mxu0
        %v8989 = vadd.f32 0.0, %v8988
        %v8990 = vpop.f32.mrb[0].mxu0
        %v8991 = vadd.f32 0.0, %v8990
        %v8992 = vpop.f32.mrb[0].mxu0
        %v8993 = vadd.f32 0.0, %v8992
        %8994 = vdwg.mxu0
        %8995 = vmatprep.subr.bf16.mxu0 0
        %8996 = vmatpush1.bf16.xpose.msra.mxu0 %v8755
        %8997 = vmatprep.subr.bf16.mxu0 0
        %8998 = vmatpush1.bf16.xpose.msra.mxu0 %v8758
        %8999 = vmatprep.subr.bf16.mxu0 0
        %9000 = vmatpush1.bf16.xpose.msra.mxu0 %v8761
        %9001 = vmatprep.subr.bf16.mxu0 0
        %9002 = vmatpush1.bf16.xpose.msra.mxu0 %v8764
        %9003 = vmatprep.subr.bf16.mxu0 0
        %9004 = vmatpush1.bf16.xpose.msra.mxu0 %v8767
        %9005 = vmatprep.subr.bf16.mxu0 0
        %9006 = vmatpush1.bf16.xpose.msra.mxu0 %v8770
        %9007 = vmatprep.subr.bf16.mxu0 0
        %9008 = vmatpush1.bf16.xpose.msra.mxu0 %v8773
        %9009 = vmatprep.subr.bf16.mxu0 0
        %9010 = vmatpush1.bf16.xpose.msra.mxu0 %v8776
        %9011 = vmatprep.subr.bf16.mxu0 0
        %9012 = vmatpush1.bf16.xpose.msra.mxu0 %v8779
        %9013 = vmatprep.subr.bf16.mxu0 0
        %9014 = vmatpush1.bf16.xpose.msra.mxu0 %v8782
        %9015 = vmatprep.subr.bf16.mxu0 0
        %9016 = vmatpush1.bf16.xpose.msra.mxu0 %v8785
        %9017 = vmatprep.subr.bf16.mxu0 0
        %9018 = vmatpush1.bf16.xpose.msra.mxu0 %v8788
        %9019 = vmatprep.subr.bf16.mxu0 0
        %9020 = vmatpush1.bf16.xpose.msra.mxu0 %v8791
        %9021 = vmatprep.subr.bf16.mxu0 0
        %9022 = vmatpush1.bf16.xpose.msra.mxu0 %v8794
        %9023 = vmatprep.subr.bf16.mxu0 0
        %9024 = vmatpush1.bf16.xpose.msra.mxu0 %v8797
        %9025 = vmatprep.subr.bf16.mxu0 0
        %9026 = vmatpush1.bf16.xpose.msra.mxu0 %v8800
        %9027 = vmatprep.mubr.bf16.mxu0 0
        %9028 = vmatmul.mubr.bf16.gmra.mrb[0].mxu0 %v8659
        %v9029 = vpop.f32.mrb[0].mxu0
        %v9030 = vadd.f32 0.0, %v9029
        %v9031 = vpop.f32.mrb[0].mxu0
        %v9032 = vadd.f32 0.0, %v9031
        %v9033 = vpop.f32.mrb[0].mxu0
        %v9034 = vadd.f32 0.0, %v9033
        %v9035 = vpop.f32.mrb[0].mxu0
        %v9036 = vadd.f32 0.0, %v9035
        %9037 = vmatprep.mubr.bf16.mxu0 0
        %9038 = vmatmul.mubr.bf16.gmra.mrb[0].mxu0 %v8662
        %v9039 = vpop.f32.mrb[0].mxu0
        %v9040 = vadd.f32 0.0, %v9039
        %v9041 = vpop.f32.mrb[0].mxu0
        %v9042 = vadd.f32 0.0, %v9041
        %v9043 = vpop.f32.mrb[0].mxu0
        %v9044 = vadd.f32 0.0, %v9043
        %v9045 = vpop.f32.mrb[0].mxu0
        %v9046 = vadd.f32 0.0, %v9045
        %9047 = vmatprep.mubr.bf16.mxu0 0
        %9048 = vmatmul.mubr.bf16.gmra.mrb[0].mxu0 %v8665
        %v9049 = vpop.f32.mrb[0].mxu0
        %v9050 = vadd.f32 0.0, %v9049
        %v9051 = vpop.f32.mrb[0].mxu0
        %v9052 = vadd.f32 0.0, %v9051
        %v9053 = vpop.f32.mrb[0].mxu0
        %v9054 = vadd.f32 0.0, %v9053
        %v9055 = vpop.f32.mrb[0].mxu0
        %v9056 = vadd.f32 0.0, %v9055
        %9057 = vmatprep.mubr.bf16.mxu0 0
        %9058 = vmatmul.mubr.bf16.gmra.mrb[0].mxu0 %v8668
        %v9059 = vpop.f32.mrb[0].mxu0
        %v9060 = vadd.f32 0.0, %v9059
        %v9061 = vpop.f32.mrb[0].mxu0
        %v9062 = vadd.f32 0.0, %v9061
        %v9063 = vpop.f32.mrb[0].mxu0
        %v9064 = vadd.f32 0.0, %v9063
        %v9065 = vpop.f32.mrb[0].mxu0
        %v9066 = vadd.f32 0.0, %v9065
        %9067 = vmatprep.mubr.bf16.mxu0 0
        %9068 = vmatmul.mubr.bf16.gmra.mrb[0].mxu0 %v8671
        %v9069 = vpop.f32.mrb[0].mxu0
        %v9070 = vadd.f32 0.0, %v9069
        %v9071 = vpop.f32.mrb[0].mxu0
        %v9072 = vadd.f32 0.0, %v9071
        %v9073 = vpop.f32.mrb[0].mxu0
        %v9074 = vadd.f32 0.0, %v9073
        %v9075 = vpop.f32.mrb[0].mxu0
        %v9076 = vadd.f32 0.0, %v9075
        %9077 = vmatprep.mubr.bf16.mxu0 0
        %9078 = vmatmul.mubr.bf16.gmra.mrb[0].mxu0 %v8674
        %v9079 = vpop.f32.mrb[0].mxu0
        %v9080 = vadd.f32 0.0, %v9079
        %v9081 = vpop.f32.mrb[0].mxu0
        %v9082 = vadd.f32 0.0, %v9081
        %v9083 = vpop.f32.mrb[0].mxu0
        %v9084 = vadd.f32 0.0, %v9083
        %v9085 = vpop.f32.mrb[0].mxu0
        %v9086 = vadd.f32 0.0, %v9085
        %9087 = vmatprep.mubr.bf16.mxu0 0
        %9088 = vmatmul.mubr.bf16.gmra.mrb[0].mxu0 %v8677
        %v9089 = vpop.f32.mrb[0].mxu0
        %v9090 = vadd.f32 0.0, %v9089
        %v9091 = vpop.f32.mrb[0].mxu0
        %v9092 = vadd.f32 0.0, %v9091
        %v9093 = vpop.f32.mrb[0].mxu0
        %v9094 = vadd.f32 0.0, %v9093
        %v9095 = vpop.f32.mrb[0].mxu0
        %v9096 = vadd.f32 0.0, %v9095
        %9097 = vmatprep.mubr.bf16.mxu0 0
        %9098 = vmatmul.mubr.bf16.gmra.mrb[0].mxu0 %v8680
        %v9099 = vpop.f32.mrb[0].mxu0
        %v9100 = vadd.f32 0.0, %v9099
        %v9101 = vpop.f32.mrb[0].mxu0
        %v9102 = vadd.f32 0.0, %v9101
        %v9103 = vpop.f32.mrb[0].mxu0
        %v9104 = vadd.f32 0.0, %v9103
        %v9105 = vpop.f32.mrb[0].mxu0
        %v9106 = vadd.f32 0.0, %v9105
        %9107 = vmatprep.mubr.bf16.mxu0 0
        %9108 = vmatmul.mubr.bf16.gmra.mrb[0].mxu0 %v8683
        %v9109 = vpop.f32.mrb[0].mxu0
        %v9110 = vadd.f32 0.0, %v9109
        %v9111 = vpop.f32.mrb[0].mxu0
        %v9112 = vadd.f32 0.0, %v9111
        %v9113 = vpop.f32.mrb[0].mxu0
        %v9114 = vadd.f32 0.0, %v9113
        %v9115 = vpop.f32.mrb[0].mxu0
        %v9116 = vadd.f32 0.0, %v9115
        %9117 = vmatprep.mubr.bf16.mxu0 0
        %9118 = vmatmul.mubr.bf16.gmra.mrb[0].mxu0 %v8686
        %v9119 = vpop.f32.mrb[0].mxu0
        %v9120 = vadd.f32 0.0, %v9119
        %v9121 = vpop.f32.mrb[0].mxu0
        %v9122 = vadd.f32 0.0, %v9121
        %v9123 = vpop.f32.mrb[0].mxu0
        %v9124 = vadd.f32 0.0, %v9123
        %v9125 = vpop.f32.mrb[0].mxu0
        %v9126 = vadd.f32 0.0, %v9125
        %9127 = vmatprep.mubr.bf16.mxu0 0
        %9128 = vmatmul.mubr.bf16.gmra.mrb[0].mxu0 %v8689
        %v9129 = vpop.f32.mrb[0].mxu0
        %v9130 = vadd.f32 0.0, %v9129
        %v9131 = vpop.f32.mrb[0].mxu0
        %v9132 = vadd.f32 0.0, %v9131
        %v9133 = vpop.f32.mrb[0].mxu0
        %v9134 = vadd.f32 0.0, %v9133
        %v9135 = vpop.f32.mrb[0].mxu0
        %v9136 = vadd.f32 0.0, %v9135
        %9137 = vmatprep.mubr.bf16.mxu0 0
        %9138 = vmatmul.mubr.bf16.gmra.mrb[0].mxu0 %v8692
        %v9139 = vpop.f32.mrb[0].mxu0
        %v9140 = vadd.f32 0.0, %v9139
        %v9141 = vpop.f32.mrb[0].mxu0
        %v9142 = vadd.f32 0.0, %v9141
        %v9143 = vpop.f32.mrb[0].mxu0
        %v9144 = vadd.f32 0.0, %v9143
        %v9145 = vpop.f32.mrb[0].mxu0
        %v9146 = vadd.f32 0.0, %v9145
        %9147 = vmatprep.mubr.bf16.mxu0 0
        %9148 = vmatmul.mubr.bf16.gmra.mrb[0].mxu0 %v8695
        %v9149 = vpop.f32.mrb[0].mxu0
        %v9150 = vadd.f32 0.0, %v9149
        %v9151 = vpop.f32.mrb[0].mxu0
        %v9152 = vadd.f32 0.0, %v9151
        %v9153 = vpop.f32.mrb[0].mxu0
        %v9154 = vadd.f32 0.0, %v9153
        %v9155 = vpop.f32.mrb[0].mxu0
        %v9156 = vadd.f32 0.0, %v9155
        %9157 = vmatprep.mubr.bf16.mxu0 0
        %9158 = vmatmul.mubr.bf16.gmra.mrb[0].mxu0 %v8698
        %v9159 = vpop.f32.mrb[0].mxu0
        %v9160 = vadd.f32 0.0, %v9159
        %v9161 = vpop.f32.mrb[0].mxu0
        %v9162 = vadd.f32 0.0, %v9161
        %v9163 = vpop.f32.mrb[0].mxu0
        %v9164 = vadd.f32 0.0, %v9163
        %v9165 = vpop.f32.mrb[0].mxu0
        %v9166 = vadd.f32 0.0, %v9165
        %9167 = vmatprep.mubr.bf16.mxu0 0
        %9168 = vmatmul.mubr.bf16.gmra.mrb[0].mxu0 %v8701
        %v9169 = vpop.f32.mrb[0].mxu0
        %v9170 = vadd.f32 0.0, %v9169
        %v9171 = vpop.f32.mrb[0].mxu0
        %v9172 = vadd.f32 0.0, %v9171
        %v9173 = vpop.f32.mrb[0].mxu0
        %v9174 = vadd.f32 0.0, %v9173
        %v9175 = vpop.f32.mrb[0].mxu0
        %v9176 = vadd.f32 0.0, %v9175
        %9177 = vmatprep.mubr.bf16.mxu0 0
        %9178 = vmatmul.mubr.bf16.gmra.mrb[0].mxu0 %v8704
        %v9179 = vpop.f32.mrb[0].mxu0
        %v9180 = vadd.f32 0.0, %v9179
        %v9181 = vpop.f32.mrb[0].mxu0
        %v9182 = vadd.f32 0.0, %v9181
        %v9183 = vpop.f32.mrb[0].mxu0
        %v9184 = vadd.f32 0.0, %v9183
        %v9185 = vpop.f32.mrb[0].mxu0
        %v9186 = vadd.f32 0.0, %v9185
        %9187 = vdwg.mxu0
        %v9188 = vmax.f32 %v8837, %v8839
        %v9189 = vmax.f32 %v9188, %v9030
        %v9190 = vmax.f32 %v9189, %v9032
        %9191 = vmax.xlane.f32.xlu0 %v9190
        %v9192 = vpop.xlane.xlu0 %9191
        %v9193 = vmax.f32 %v8841, %v8843
        %v9194 = vmax.f32 %v9193, %v9034
        %v9195 = vmax.f32 %v9194, %v9036
        %9196 = vmax.xlane.f32.xlu0 %v9195
        %v9197 = vpop.xlane.xlu0 %9196
        %v9198 = vmax.f32 %v8847, %v8849
        %v9199 = vmax.f32 %v9198, %v9040
        %v9200 = vmax.f32 %v9199, %v9042
        %9201 = vmax.xlane.f32.xlu0 %v9200
        %v9202 = vpop.xlane.xlu0 %9201
        %v9203 = vmax.f32 %v8851, %v8853
        %v9204 = vmax.f32 %v9203, %v9044
        %v9205 = vmax.f32 %v9204, %v9046
        %9206 = vmax.xlane.f32.xlu0 %v9205
        %v9207 = vpop.xlane.xlu0 %9206
        %v9208 = vmax.f32 %v8857, %v8859
        %v9209 = vmax.f32 %v9208, %v9050
        %v9210 = vmax.f32 %v9209, %v9052
        %9211 = vmax.xlane.f32.xlu0 %v9210
        %v9212 = vpop.xlane.xlu0 %9211
        %v9213 = vmax.f32 %v8861, %v8863
        %v9214 = vmax.f32 %v9213, %v9054
        %v9215 = vmax.f32 %v9214, %v9056
        %9216 = vmax.xlane.f32.xlu0 %v9215
        %v9217 = vpop.xlane.xlu0 %9216
        %v9218 = vmax.f32 %v8867, %v8869
        %v9219 = vmax.f32 %v9218, %v9060
        %v9220 = vmax.f32 %v9219, %v9062
        %9221 = vmax.xlane.f32.xlu0 %v9220
        %v9222 = vpop.xlane.xlu0 %9221
        %v9223 = vmax.f32 %v8871, %v8873
        %v9224 = vmax.f32 %v9223, %v9064
        %v9225 = vmax.f32 %v9224, %v9066
        %9226 = vmax.xlane.f32.xlu0 %v9225
        %v9227 = vpop.xlane.xlu0 %9226
        %v9228 = vmax.f32 %v8877, %v8879
        %v9229 = vmax.f32 %v9228, %v9070
        %v9230 = vmax.f32 %v9229, %v9072
        %9231 = vmax.xlane.f32.xlu0 %v9230
        %v9232 = vpop.xlane.xlu0 %9231
        %v9233 = vmax.f32 %v8881, %v8883
        %v9234 = vmax.f32 %v9233, %v9074
        %v9235 = vmax.f32 %v9234, %v9076
        %9236 = vmax.xlane.f32.xlu0 %v9235
        %v9237 = vpop.xlane.xlu0 %9236
        %v9238 = vmax.f32 %v8887, %v8889
        %v9239 = vmax.f32 %v9238, %v9080
        %v9240 = vmax.f32 %v9239, %v9082
        %9241 = vmax.xlane.f32.xlu0 %v9240
        %v9242 = vpop.xlane.xlu0 %9241
        %v9243 = vmax.f32 %v8891, %v8893
        %v9244 = vmax.f32 %v9243, %v9084
        %v9245 = vmax.f32 %v9244, %v9086
        %9246 = vmax.xlane.f32.xlu0 %v9245
        %v9247 = vpop.xlane.xlu0 %9246
        %v9248 = vmax.f32 %v8897, %v8899
        %v9249 = vmax.f32 %v9248, %v9090
        %v9250 = vmax.f32 %v9249, %v9092
        %9251 = vmax.xlane.f32.xlu0 %v9250
        %v9252 = vpop.xlane.xlu0 %9251
        %v9253 = vmax.f32 %v8901, %v8903
        %v9254 = vmax.f32 %v9253, %v9094
        %v9255 = vmax.f32 %v9254, %v9096
        %9256 = vmax.xlane.f32.xlu0 %v9255
        %v9257 = vpop.xlane.xlu0 %9256
        %v9258 = vmax.f32 %v8907, %v8909
        %v9259 = vmax.f32 %v9258, %v9100
        %v9260 = vmax.f32 %v9259, %v9102
        %9261 = vmax.xlane.f32.xlu0 %v9260
        %v9262 = vpop.xlane.xlu0 %9261
        %v9263 = vmax.f32 %v8911, %v8913
        %v9264 = vmax.f32 %v9263, %v9104
        %v9265 = vmax.f32 %v9264, %v9106
        %9266 = vmax.xlane.f32.xlu0 %v9265
        %v9267 = vpop.xlane.xlu0 %9266
        %v9268 = vmax.f32 %v8917, %v8919
        %v9269 = vmax.f32 %v9268, %v9110
        %v9270 = vmax.f32 %v9269, %v9112
        %9271 = vmax.xlane.f32.xlu0 %v9270
        %v9272 = vpop.xlane.xlu0 %9271
        %v9273 = vmax.f32 %v8921, %v8923
        %v9274 = vmax.f32 %v9273, %v9114
        %v9275 = vmax.f32 %v9274, %v9116
        %9276 = vmax.xlane.f32.xlu0 %v9275
        %v9277 = vpop.xlane.xlu0 %9276
        %v9278 = vmax.f32 %v8927, %v8929
        %v9279 = vmax.f32 %v9278, %v9120
        %v9280 = vmax.f32 %v9279, %v9122
        %9281 = vmax.xlane.f32.xlu0 %v9280
        %v9282 = vpop.xlane.xlu0 %9281
        %v9283 = vmax.f32 %v8931, %v8933
        %v9284 = vmax.f32 %v9283, %v9124
        %v9285 = vmax.f32 %v9284, %v9126
        %9286 = vmax.xlane.f32.xlu0 %v9285
        %v9287 = vpop.xlane.xlu0 %9286
        %v9288 = vmax.f32 %v8937, %v8939
        %v9289 = vmax.f32 %v9288, %v9130
        %v9290 = vmax.f32 %v9289, %v9132
        %9291 = vmax.xlane.f32.xlu0 %v9290
        %v9292 = vpop.xlane.xlu0 %9291
        %v9293 = vmax.f32 %v8941, %v8943
        %v9294 = vmax.f32 %v9293, %v9134
        %v9295 = vmax.f32 %v9294, %v9136
        %9296 = vmax.xlane.f32.xlu0 %v9295
        %v9297 = vpop.xlane.xlu0 %9296
        %v9298 = vmax.f32 %v8947, %v8949
        %v9299 = vmax.f32 %v9298, %v9140
        %v9300 = vmax.f32 %v9299, %v9142
        %9301 = vmax.xlane.f32.xlu0 %v9300
        %v9302 = vpop.xlane.xlu0 %9301
        %v9303 = vmax.f32 %v8951, %v8953
        %v9304 = vmax.f32 %v9303, %v9144
        %v9305 = vmax.f32 %v9304, %v9146
        %9306 = vmax.xlane.f32.xlu0 %v9305
        %v9307 = vpop.xlane.xlu0 %9306
        %v9308 = vmax.f32 %v8957, %v8959
        %v9309 = vmax.f32 %v9308, %v9150
        %v9310 = vmax.f32 %v9309, %v9152
        %9311 = vmax.xlane.f32.xlu0 %v9310
        %v9312 = vpop.xlane.xlu0 %9311
        %v9313 = vmax.f32 %v8961, %v8963
        %v9314 = vmax.f32 %v9313, %v9154
        %v9315 = vmax.f32 %v9314, %v9156
        %9316 = vmax.xlane.f32.xlu0 %v9315
        %v9317 = vpop.xlane.xlu0 %9316
        %v9318 = vmax.f32 %v8967, %v8969
        %v9319 = vmax.f32 %v9318, %v9160
        %v9320 = vmax.f32 %v9319, %v9162
        %9321 = vmax.xlane.f32.xlu0 %v9320
        %v9322 = vpop.xlane.xlu0 %9321
        %v9323 = vmax.f32 %v8971, %v8973
        %v9324 = vmax.f32 %v9323, %v9164
        %v9325 = vmax.f32 %v9324, %v9166
        %9326 = vmax.xlane.f32.xlu0 %v9325
        %v9327 = vpop.xlane.xlu0 %9326
        %v9328 = vmax.f32 %v8977, %v8979
        %v9329 = vmax.f32 %v9328, %v9170
        %v9330 = vmax.f32 %v9329, %v9172
        %9331 = vmax.xlane.f32.xlu0 %v9330
        %v9332 = vpop.xlane.xlu0 %9331
        %v9333 = vmax.f32 %v8981, %v8983
        %v9334 = vmax.f32 %v9333, %v9174
        %v9335 = vmax.f32 %v9334, %v9176
        %9336 = vmax.xlane.f32.xlu0 %v9335
        %v9337 = vpop.xlane.xlu0 %9336
        %v9338 = vmax.f32 %v8987, %v8989
        %v9339 = vmax.f32 %v9338, %v9180
        %v9340 = vmax.f32 %v9339, %v9182
        %9341 = vmax.xlane.f32.xlu0 %v9340
        %v9342 = vpop.xlane.xlu0 %9341
        %v9343 = vmax.f32 %v8991, %v8993
        %v9344 = vmax.f32 %v9343, %v9184
        %v9345 = vmax.f32 %v9344, %v9186
        %9346 = vmax.xlane.f32.xlu0 %v9345
        %v9347 = vpop.xlane.xlu0 %9346
        %v9348 = vsub.f32 %v8837, %v9192
        %v9349 = vsub.f32 %v8839, %v9192
        %v9350 = vsub.f32 %v9030, %v9192
        %v9351 = vsub.f32 %v9032, %v9192
        %v9352 = vsub.f32 %v8841, %v9197
        %v9353 = vsub.f32 %v8843, %v9197
        %v9354 = vsub.f32 %v9034, %v9197
        %v9355 = vsub.f32 %v9036, %v9197
        %v9356 = vsub.f32 %v8847, %v9202
        %v9357 = vsub.f32 %v8849, %v9202
        %v9358 = vsub.f32 %v9040, %v9202
        %v9359 = vsub.f32 %v9042, %v9202
        %v9360 = vsub.f32 %v8851, %v9207
        %v9361 = vsub.f32 %v8853, %v9207
        %v9362 = vsub.f32 %v9044, %v9207
        %v9363 = vsub.f32 %v9046, %v9207
        %v9364 = vsub.f32 %v8857, %v9212
        %v9365 = vsub.f32 %v8859, %v9212
        %v9366 = vsub.f32 %v9050, %v9212
        %v9367 = vsub.f32 %v9052, %v9212
        %v9368 = vsub.f32 %v8861, %v9217
        %v9369 = vsub.f32 %v8863, %v9217
        %v9370 = vsub.f32 %v9054, %v9217
        %v9371 = vsub.f32 %v9056, %v9217
        %v9372 = vsub.f32 %v8867, %v9222
        %v9373 = vsub.f32 %v8869, %v9222
        %v9374 = vsub.f32 %v9060, %v9222
        %v9375 = vsub.f32 %v9062, %v9222
        %v9376 = vsub.f32 %v8871, %v9227
        %v9377 = vsub.f32 %v8873, %v9227
        %v9378 = vsub.f32 %v9064, %v9227
        %v9379 = vsub.f32 %v9066, %v9227
        %v9380 = vsub.f32 %v8877, %v9232
        %v9381 = vsub.f32 %v8879, %v9232
        %v9382 = vsub.f32 %v9070, %v9232
        %v9383 = vsub.f32 %v9072, %v9232
        %v9384 = vsub.f32 %v8881, %v9237
        %v9385 = vsub.f32 %v8883, %v9237
        %v9386 = vsub.f32 %v9074, %v9237
        %v9387 = vsub.f32 %v9076, %v9237
        %v9388 = vsub.f32 %v8887, %v9242
        %v9389 = vsub.f32 %v8889, %v9242
        %v9390 = vsub.f32 %v9080, %v9242
        %v9391 = vsub.f32 %v9082, %v9242
        %v9392 = vsub.f32 %v8891, %v9247
        %v9393 = vsub.f32 %v8893, %v9247
        %v9394 = vsub.f32 %v9084, %v9247
        %v9395 = vsub.f32 %v9086, %v9247
        %v9396 = vsub.f32 %v8897, %v9252
        %v9397 = vsub.f32 %v8899, %v9252
        %v9398 = vsub.f32 %v9090, %v9252
        %v9399 = vsub.f32 %v9092, %v9252
        %v9400 = vsub.f32 %v8901, %v9257
        %v9401 = vsub.f32 %v8903, %v9257
        %v9402 = vsub.f32 %v9094, %v9257
        %v9403 = vsub.f32 %v9096, %v9257
        %v9404 = vsub.f32 %v8907, %v9262
        %v9405 = vsub.f32 %v8909, %v9262
        %v9406 = vsub.f32 %v9100, %v9262
        %v9407 = vsub.f32 %v9102, %v9262
        %v9408 = vsub.f32 %v8911, %v9267
        %v9409 = vsub.f32 %v8913, %v9267
        %v9410 = vsub.f32 %v9104, %v9267
        %v9411 = vsub.f32 %v9106, %v9267
        %v9412 = vsub.f32 %v8917, %v9272
        %v9413 = vsub.f32 %v8919, %v9272
        %v9414 = vsub.f32 %v9110, %v9272
        %v9415 = vsub.f32 %v9112, %v9272
        %v9416 = vsub.f32 %v8921, %v9277
        %v9417 = vsub.f32 %v8923, %v9277
        %v9418 = vsub.f32 %v9114, %v9277
        %v9419 = vsub.f32 %v9116, %v9277
        %v9420 = vsub.f32 %v8927, %v9282
        %v9421 = vsub.f32 %v8929, %v9282
        %v9422 = vsub.f32 %v9120, %v9282
        %v9423 = vsub.f32 %v9122, %v9282
        %v9424 = vsub.f32 %v8931, %v9287
        %v9425 = vsub.f32 %v8933, %v9287
        %v9426 = vsub.f32 %v9124, %v9287
        %v9427 = vsub.f32 %v9126, %v9287
        %v9428 = vsub.f32 %v8937, %v9292
        %v9429 = vsub.f32 %v8939, %v9292
        %v9430 = vsub.f32 %v9130, %v9292
        %v9431 = vsub.f32 %v9132, %v9292
        %v9432 = vsub.f32 %v8941, %v9297
        %v9433 = vsub.f32 %v8943, %v9297
        %v9434 = vsub.f32 %v9134, %v9297
        %v9435 = vsub.f32 %v9136, %v9297
        %v9436 = vsub.f32 %v8947, %v9302
        %v9437 = vsub.f32 %v8949, %v9302
        %v9438 = vsub.f32 %v9140, %v9302
        %v9439 = vsub.f32 %v9142, %v9302
        %v9440 = vsub.f32 %v8951, %v9307
        %v9441 = vsub.f32 %v8953, %v9307
        %v9442 = vsub.f32 %v9144, %v9307
        %v9443 = vsub.f32 %v9146, %v9307
        %v9444 = vsub.f32 %v8957, %v9312
        %v9445 = vsub.f32 %v8959, %v9312
        %v9446 = vsub.f32 %v9150, %v9312
        %v9447 = vsub.f32 %v9152, %v9312
        %v9448 = vsub.f32 %v8961, %v9317
        %v9449 = vsub.f32 %v8963, %v9317
        %v9450 = vsub.f32 %v9154, %v9317
        %v9451 = vsub.f32 %v9156, %v9317
        %v9452 = vsub.f32 %v8967, %v9322
        %v9453 = vsub.f32 %v8969, %v9322
        %v9454 = vsub.f32 %v9160, %v9322
        %v9455 = vsub.f32 %v9162, %v9322
        %v9456 = vsub.f32 %v8971, %v9327
        %v9457 = vsub.f32 %v8973, %v9327
        %v9458 = vsub.f32 %v9164, %v9327
        %v9459 = vsub.f32 %v9166, %v9327
        %v9460 = vsub.f32 %v8977, %v9332
        %v9461 = vsub.f32 %v8979, %v9332
        %v9462 = vsub.f32 %v9170, %v9332
        %v9463 = vsub.f32 %v9172, %v9332
        %v9464 = vsub.f32 %v8981, %v9337
        %v9465 = vsub.f32 %v8983, %v9337
        %v9466 = vsub.f32 %v9174, %v9337
        %v9467 = vsub.f32 %v9176, %v9337
        %v9468 = vsub.f32 %v8987, %v9342
        %v9469 = vsub.f32 %v8989, %v9342
        %v9470 = vsub.f32 %v9180, %v9342
        %v9471 = vsub.f32 %v9182, %v9342
        %v9472 = vsub.f32 %v8991, %v9347
        %v9473 = vsub.f32 %v8993, %v9347
        %v9474 = vsub.f32 %v9184, %v9347
        %v9475 = vsub.f32 %v9186, %v9347
        %v9476 = vpack.c.bf16 %v9352, %v9348
        %v9477 = vpack.c.bf16 %v9353, %v9349
        %v9478 = vpack.c.bf16 %v9354, %v9350
        %v9479 = vpack.c.bf16 %v9355, %v9351
        %v9480 = vpack.c.bf16 %v9360, %v9356
        %v9481 = vpack.c.bf16 %v9361, %v9357
        %v9482 = vpack.c.bf16 %v9362, %v9358
        %v9483 = vpack.c.bf16 %v9363, %v9359
        %v9484 = vpack.c.bf16 %v9368, %v9364
        %v9485 = vpack.c.bf16 %v9369, %v9365
        %v9486 = vpack.c.bf16 %v9370, %v9366
        %v9487 = vpack.c.bf16 %v9371, %v9367
        %v9488 = vpack.c.bf16 %v9376, %v9372
        %v9489 = vpack.c.bf16 %v9377, %v9373
        %v9490 = vpack.c.bf16 %v9378, %v9374
        %v9491 = vpack.c.bf16 %v9379, %v9375
        %v9492 = vpack.c.bf16 %v9384, %v9380
        %v9493 = vpack.c.bf16 %v9385, %v9381
        %v9494 = vpack.c.bf16 %v9386, %v9382
        %v9495 = vpack.c.bf16 %v9387, %v9383
        %v9496 = vpack.c.bf16 %v9392, %v9388
        %v9497 = vpack.c.bf16 %v9393, %v9389
        %v9498 = vpack.c.bf16 %v9394, %v9390
        %v9499 = vpack.c.bf16 %v9395, %v9391
        %v9500 = vpack.c.bf16 %v9400, %v9396
        %v9501 = vpack.c.bf16 %v9401, %v9397
        %v9502 = vpack.c.bf16 %v9402, %v9398
        %v9503 = vpack.c.bf16 %v9403, %v9399
        %v9504 = vpack.c.bf16 %v9408, %v9404
        %v9505 = vpack.c.bf16 %v9409, %v9405
        %v9506 = vpack.c.bf16 %v9410, %v9406
        %v9507 = vpack.c.bf16 %v9411, %v9407
        %v9508 = vpack.c.bf16 %v9416, %v9412
        %v9509 = vpack.c.bf16 %v9417, %v9413
        %v9510 = vpack.c.bf16 %v9418, %v9414
        %v9511 = vpack.c.bf16 %v9419, %v9415
        %v9512 = vpack.c.bf16 %v9424, %v9420
        %v9513 = vpack.c.bf16 %v9425, %v9421
        %v9514 = vpack.c.bf16 %v9426, %v9422
        %v9515 = vpack.c.bf16 %v9427, %v9423
        %v9516 = vpack.c.bf16 %v9432, %v9428
        %v9517 = vpack.c.bf16 %v9433, %v9429
        %v9518 = vpack.c.bf16 %v9434, %v9430
        %v9519 = vpack.c.bf16 %v9435, %v9431
        %v9520 = vpack.c.bf16 %v9440, %v9436
        %v9521 = vpack.c.bf16 %v9441, %v9437
        %v9522 = vpack.c.bf16 %v9442, %v9438
        %v9523 = vpack.c.bf16 %v9443, %v9439
        %v9524 = vpack.c.bf16 %v9448, %v9444
        %v9525 = vpack.c.bf16 %v9449, %v9445
        %v9526 = vpack.c.bf16 %v9450, %v9446
        %v9527 = vpack.c.bf16 %v9451, %v9447
        %v9528 = vpack.c.bf16 %v9456, %v9452
        %v9529 = vpack.c.bf16 %v9457, %v9453
        %v9530 = vpack.c.bf16 %v9458, %v9454
        %v9531 = vpack.c.bf16 %v9459, %v9455
        %v9532 = vpack.c.bf16 %v9464, %v9460
        %v9533 = vpack.c.bf16 %v9465, %v9461
        %v9534 = vpack.c.bf16 %v9466, %v9462
        %v9535 = vpack.c.bf16 %v9467, %v9463
        %v9536 = vpack.c.bf16 %v9472, %v9468
        %v9537 = vpack.c.bf16 %v9473, %v9469
        %v9538 = vpack.c.bf16 %v9474, %v9470
        %v9539 = vpack.c.bf16 %v9475, %v9471
        %v9541 = vmul.bf16 %v9476, 1069105081
        %v9542 = vpow.bf16.pop %v9541
        %v9544 = vmul.bf16 %v9477, 1069105081
        %v9545 = vpow.bf16.pop %v9544
        %v9547 = vmul.bf16 %v9478, 1069105081
        %v9548 = vpow.bf16.pop %v9547
        %v9550 = vmul.bf16 %v9479, 1069105081
        %v9551 = vpow.bf16.pop %v9550
        %v9553 = vmul.bf16 %v9480, 1069105081
        %v9554 = vpow.bf16.pop %v9553
        %v9556 = vmul.bf16 %v9481, 1069105081
        %v9557 = vpow.bf16.pop %v9556
        %v9559 = vmul.bf16 %v9482, 1069105081
        %v9560 = vpow.bf16.pop %v9559
        %v9562 = vmul.bf16 %v9483, 1069105081
        %v9563 = vpow.bf16.pop %v9562
        %v9565 = vmul.bf16 %v9484, 1069105081
        %v9566 = vpow.bf16.pop %v9565
        %v9568 = vmul.bf16 %v9485, 1069105081
        %v9569 = vpow.bf16.pop %v9568
        %v9571 = vmul.bf16 %v9486, 1069105081
        %v9572 = vpow.bf16.pop %v9571
        %v9574 = vmul.bf16 %v9487, 1069105081
        %v9575 = vpow.bf16.pop %v9574
        %v9577 = vmul.bf16 %v9488, 1069105081
        %v9578 = vpow.bf16.pop %v9577
        %v9580 = vmul.bf16 %v9489, 1069105081
        %v9581 = vpow.bf16.pop %v9580
        %v9583 = vmul.bf16 %v9490, 1069105081
        %v9584 = vpow.bf16.pop %v9583
        %v9586 = vmul.bf16 %v9491, 1069105081
        %v9587 = vpow.bf16.pop %v9586
        %v9589 = vmul.bf16 %v9492, 1069105081
        %v9590 = vpow.bf16.pop %v9589
        %v9592 = vmul.bf16 %v9493, 1069105081
        %v9593 = vpow.bf16.pop %v9592
        %v9595 = vmul.bf16 %v9494, 1069105081
        %v9596 = vpow.bf16.pop %v9595
        %v9598 = vmul.bf16 %v9495, 1069105081
        %v9599 = vpow.bf16.pop %v9598
        %v9601 = vmul.bf16 %v9496, 1069105081
        %v9602 = vpow.bf16.pop %v9601
        %v9604 = vmul.bf16 %v9497, 1069105081
        %v9605 = vpow.bf16.pop %v9604
        %v9607 = vmul.bf16 %v9498, 1069105081
        %v9608 = vpow.bf16.pop %v9607
        %v9610 = vmul.bf16 %v9499, 1069105081
        %v9611 = vpow.bf16.pop %v9610
        %v9613 = vmul.bf16 %v9500, 1069105081
        %v9614 = vpow.bf16.pop %v9613
        %v9616 = vmul.bf16 %v9501, 1069105081
        %v9617 = vpow.bf16.pop %v9616
        %v9619 = vmul.bf16 %v9502, 1069105081
        %v9620 = vpow.bf16.pop %v9619
        %v9622 = vmul.bf16 %v9503, 1069105081
        %v9623 = vpow.bf16.pop %v9622
        %v9625 = vmul.bf16 %v9504, 1069105081
        %v9626 = vpow.bf16.pop %v9625
        %v9628 = vmul.bf16 %v9505, 1069105081
        %v9629 = vpow.bf16.pop %v9628
        %v9631 = vmul.bf16 %v9506, 1069105081
        %v9632 = vpow.bf16.pop %v9631
        %v9634 = vmul.bf16 %v9507, 1069105081
        %v9635 = vpow.bf16.pop %v9634
        %v9637 = vmul.bf16 %v9508, 1069105081
        %v9638 = vpow.bf16.pop %v9637
        %v9640 = vmul.bf16 %v9509, 1069105081
        %v9641 = vpow.bf16.pop %v9640
        %v9643 = vmul.bf16 %v9510, 1069105081
        %v9644 = vpow.bf16.pop %v9643
        %v9646 = vmul.bf16 %v9511, 1069105081
        %v9647 = vpow.bf16.pop %v9646
        %v9649 = vmul.bf16 %v9512, 1069105081
        %v9650 = vpow.bf16.pop %v9649
        %v9652 = vmul.bf16 %v9513, 1069105081
        %v9653 = vpow.bf16.pop %v9652
        %v9655 = vmul.bf16 %v9514, 1069105081
        %v9656 = vpow.bf16.pop %v9655
        %v9658 = vmul.bf16 %v9515, 1069105081
        %v9659 = vpow.bf16.pop %v9658
        %v9661 = vmul.bf16 %v9516, 1069105081
        %v9662 = vpow.bf16.pop %v9661
        %v9664 = vmul.bf16 %v9517, 1069105081
        %v9665 = vpow.bf16.pop %v9664
        %v9667 = vmul.bf16 %v9518, 1069105081
        %v9668 = vpow.bf16.pop %v9667
        %v9670 = vmul.bf16 %v9519, 1069105081
        %v9671 = vpow.bf16.pop %v9670
        %v9673 = vmul.bf16 %v9520, 1069105081
        %v9674 = vpow.bf16.pop %v9673
        %v9676 = vmul.bf16 %v9521, 1069105081
        %v9677 = vpow.bf16.pop %v9676
        %v9679 = vmul.bf16 %v9522, 1069105081
        %v9680 = vpow.bf16.pop %v9679
        %v9682 = vmul.bf16 %v9523, 1069105081
        %v9683 = vpow.bf16.pop %v9682
        %v9685 = vmul.bf16 %v9524, 1069105081
        %v9686 = vpow.bf16.pop %v9685
        %v9688 = vmul.bf16 %v9525, 1069105081
        %v9689 = vpow.bf16.pop %v9688
        %v9691 = vmul.bf16 %v9526, 1069105081
        %v9692 = vpow.bf16.pop %v9691
        %v9694 = vmul.bf16 %v9527, 1069105081
        %v9695 = vpow.bf16.pop %v9694
        %v9697 = vmul.bf16 %v9528, 1069105081
        %v9698 = vpow.bf16.pop %v9697
        %v9700 = vmul.bf16 %v9529, 1069105081
        %v9701 = vpow.bf16.pop %v9700
        %v9703 = vmul.bf16 %v9530, 1069105081
        %v9704 = vpow.bf16.pop %v9703
        %v9706 = vmul.bf16 %v9531, 1069105081
        %v9707 = vpow.bf16.pop %v9706
        %v9709 = vmul.bf16 %v9532, 1069105081
        %v9710 = vpow.bf16.pop %v9709
        %v9712 = vmul.bf16 %v9533, 1069105081
        %v9713 = vpow.bf16.pop %v9712
        %v9715 = vmul.bf16 %v9534, 1069105081
        %v9716 = vpow.bf16.pop %v9715
        %v9718 = vmul.bf16 %v9535, 1069105081
        %v9719 = vpow.bf16.pop %v9718
        %v9721 = vmul.bf16 %v9536, 1069105081
        %v9722 = vpow.bf16.pop %v9721
        %v9724 = vmul.bf16 %v9537, 1069105081
        %v9725 = vpow.bf16.pop %v9724
        %v9727 = vmul.bf16 %v9538, 1069105081
        %v9728 = vpow.bf16.pop %v9727
        %v9730 = vmul.bf16 %v9539, 1069105081
        %v9731 = vpow.bf16.pop %v9730
        %v9732 = vunpack.c.l.bf16 %v9542
        %v9733 = vunpack.c.l.bf16 %v9545
        %v9734 = vunpack.c.l.bf16 %v9548
        %v9735 = vunpack.c.l.bf16 %v9551
        %v9736 = vunpack.c.h.bf16 %v9542
        %v9737 = vunpack.c.h.bf16 %v9545
        %v9738 = vunpack.c.h.bf16 %v9548
        %v9739 = vunpack.c.h.bf16 %v9551
        %v9740 = vunpack.c.l.bf16 %v9554
        %v9741 = vunpack.c.l.bf16 %v9557
        %v9742 = vunpack.c.l.bf16 %v9560
        %v9743 = vunpack.c.l.bf16 %v9563
        %v9744 = vunpack.c.h.bf16 %v9554
        %v9745 = vunpack.c.h.bf16 %v9557
        %v9746 = vunpack.c.h.bf16 %v9560
        %v9747 = vunpack.c.h.bf16 %v9563
        %v9748 = vunpack.c.l.bf16 %v9566
        %v9749 = vunpack.c.l.bf16 %v9569
        %v9750 = vunpack.c.l.bf16 %v9572
        %v9751 = vunpack.c.l.bf16 %v9575
        %v9752 = vunpack.c.h.bf16 %v9566
        %v9753 = vunpack.c.h.bf16 %v9569
        %v9754 = vunpack.c.h.bf16 %v9572
        %v9755 = vunpack.c.h.bf16 %v9575
        %v9756 = vunpack.c.l.bf16 %v9578
        %v9757 = vunpack.c.l.bf16 %v9581
        %v9758 = vunpack.c.l.bf16 %v9584
        %v9759 = vunpack.c.l.bf16 %v9587
        %v9760 = vunpack.c.h.bf16 %v9578
        %v9761 = vunpack.c.h.bf16 %v9581
        %v9762 = vunpack.c.h.bf16 %v9584
        %v9763 = vunpack.c.h.bf16 %v9587
        %v9764 = vunpack.c.l.bf16 %v9590
        %v9765 = vunpack.c.l.bf16 %v9593
        %v9766 = vunpack.c.l.bf16 %v9596
        %v9767 = vunpack.c.l.bf16 %v9599
        %v9768 = vunpack.c.h.bf16 %v9590
        %v9769 = vunpack.c.h.bf16 %v9593
        %v9770 = vunpack.c.h.bf16 %v9596
        %v9771 = vunpack.c.h.bf16 %v9599
        %v9772 = vunpack.c.l.bf16 %v9602
        %v9773 = vunpack.c.l.bf16 %v9605
        %v9774 = vunpack.c.l.bf16 %v9608
        %v9775 = vunpack.c.l.bf16 %v9611
        %v9776 = vunpack.c.h.bf16 %v9602
        %v9777 = vunpack.c.h.bf16 %v9605
        %v9778 = vunpack.c.h.bf16 %v9608
        %v9779 = vunpack.c.h.bf16 %v9611
        %v9780 = vunpack.c.l.bf16 %v9614
        %v9781 = vunpack.c.l.bf16 %v9617
        %v9782 = vunpack.c.l.bf16 %v9620
        %v9783 = vunpack.c.l.bf16 %v9623
        %v9784 = vunpack.c.h.bf16 %v9614
        %v9785 = vunpack.c.h.bf16 %v9617
        %v9786 = vunpack.c.h.bf16 %v9620
        %v9787 = vunpack.c.h.bf16 %v9623
        %v9788 = vunpack.c.l.bf16 %v9626
        %v9789 = vunpack.c.l.bf16 %v9629
        %v9790 = vunpack.c.l.bf16 %v9632
        %v9791 = vunpack.c.l.bf16 %v9635
        %v9792 = vunpack.c.h.bf16 %v9626
        %v9793 = vunpack.c.h.bf16 %v9629
        %v9794 = vunpack.c.h.bf16 %v9632
        %v9795 = vunpack.c.h.bf16 %v9635
        %v9796 = vunpack.c.l.bf16 %v9638
        %v9797 = vunpack.c.l.bf16 %v9641
        %v9798 = vunpack.c.l.bf16 %v9644
        %v9799 = vunpack.c.l.bf16 %v9647
        %v9800 = vunpack.c.h.bf16 %v9638
        %v9801 = vunpack.c.h.bf16 %v9641
        %v9802 = vunpack.c.h.bf16 %v9644
        %v9803 = vunpack.c.h.bf16 %v9647
        %v9804 = vunpack.c.l.bf16 %v9650
        %v9805 = vunpack.c.l.bf16 %v9653
        %v9806 = vunpack.c.l.bf16 %v9656
        %v9807 = vunpack.c.l.bf16 %v9659
        %v9808 = vunpack.c.h.bf16 %v9650
        %v9809 = vunpack.c.h.bf16 %v9653
        %v9810 = vunpack.c.h.bf16 %v9656
        %v9811 = vunpack.c.h.bf16 %v9659
        %v9812 = vunpack.c.l.bf16 %v9662
        %v9813 = vunpack.c.l.bf16 %v9665
        %v9814 = vunpack.c.l.bf16 %v9668
        %v9815 = vunpack.c.l.bf16 %v9671
        %v9816 = vunpack.c.h.bf16 %v9662
        %v9817 = vunpack.c.h.bf16 %v9665
        %v9818 = vunpack.c.h.bf16 %v9668
        %v9819 = vunpack.c.h.bf16 %v9671
        %v9820 = vunpack.c.l.bf16 %v9674
        %v9821 = vunpack.c.l.bf16 %v9677
        %v9822 = vunpack.c.l.bf16 %v9680
        %v9823 = vunpack.c.l.bf16 %v9683
        %v9824 = vunpack.c.h.bf16 %v9674
        %v9825 = vunpack.c.h.bf16 %v9677
        %v9826 = vunpack.c.h.bf16 %v9680
        %v9827 = vunpack.c.h.bf16 %v9683
        %v9828 = vunpack.c.l.bf16 %v9686
        %v9829 = vunpack.c.l.bf16 %v9689
        %v9830 = vunpack.c.l.bf16 %v9692
        %v9831 = vunpack.c.l.bf16 %v9695
        %v9832 = vunpack.c.h.bf16 %v9686
        %v9833 = vunpack.c.h.bf16 %v9689
        %v9834 = vunpack.c.h.bf16 %v9692
        %v9835 = vunpack.c.h.bf16 %v9695
        %v9836 = vunpack.c.l.bf16 %v9698
        %v9837 = vunpack.c.l.bf16 %v9701
        %v9838 = vunpack.c.l.bf16 %v9704
        %v9839 = vunpack.c.l.bf16 %v9707
        %v9840 = vunpack.c.h.bf16 %v9698
        %v9841 = vunpack.c.h.bf16 %v9701
        %v9842 = vunpack.c.h.bf16 %v9704
        %v9843 = vunpack.c.h.bf16 %v9707
        %v9844 = vunpack.c.l.bf16 %v9710
        %v9845 = vunpack.c.l.bf16 %v9713
        %v9846 = vunpack.c.l.bf16 %v9716
        %v9847 = vunpack.c.l.bf16 %v9719
        %v9848 = vunpack.c.h.bf16 %v9710
        %v9849 = vunpack.c.h.bf16 %v9713
        %v9850 = vunpack.c.h.bf16 %v9716
        %v9851 = vunpack.c.h.bf16 %v9719
        %v9852 = vunpack.c.l.bf16 %v9722
        %v9853 = vunpack.c.l.bf16 %v9725
        %v9854 = vunpack.c.l.bf16 %v9728
        %v9855 = vunpack.c.l.bf16 %v9731
        %v9856 = vunpack.c.h.bf16 %v9722
        %v9857 = vunpack.c.h.bf16 %v9725
        %v9858 = vunpack.c.h.bf16 %v9728
        %v9859 = vunpack.c.h.bf16 %v9731
        %v9860 = vadd.f32 %v9732, %v9733
        %v9861 = vadd.f32 %v9860, %v9734
        %v9862 = vadd.f32 %v9861, %v9735
        %9863 = vadd.xlane.f32.xlu0 %v9862
        %v9864 = vpop.xlane.xlu0 %9863
        %v9865 = vadd.f32 %v9736, %v9737
        %v9866 = vadd.f32 %v9865, %v9738
        %v9867 = vadd.f32 %v9866, %v9739
        %9868 = vadd.xlane.f32.xlu0 %v9867
        %v9869 = vpop.xlane.xlu0 %9868
        %v9870 = vadd.f32 %v9740, %v9741
        %v9871 = vadd.f32 %v9870, %v9742
        %v9872 = vadd.f32 %v9871, %v9743
        %9873 = vadd.xlane.f32.xlu0 %v9872
        %v9874 = vpop.xlane.xlu0 %9873
        %v9875 = vadd.f32 %v9744, %v9745
        %v9876 = vadd.f32 %v9875, %v9746
        %v9877 = vadd.f32 %v9876, %v9747
        %9878 = vadd.xlane.f32.xlu0 %v9877
        %v9879 = vpop.xlane.xlu0 %9878
        %v9880 = vadd.f32 %v9748, %v9749
        %v9881 = vadd.f32 %v9880, %v9750
        %v9882 = vadd.f32 %v9881, %v9751
        %9883 = vadd.xlane.f32.xlu0 %v9882
        %v9884 = vpop.xlane.xlu0 %9883
        %v9885 = vadd.f32 %v9752, %v9753
        %v9886 = vadd.f32 %v9885, %v9754
        %v9887 = vadd.f32 %v9886, %v9755
        %9888 = vadd.xlane.f32.xlu0 %v9887
        %v9889 = vpop.xlane.xlu0 %9888
        %v9890 = vadd.f32 %v9756, %v9757
        %v9891 = vadd.f32 %v9890, %v9758
        %v9892 = vadd.f32 %v9891, %v9759
        %9893 = vadd.xlane.f32.xlu0 %v9892
        %v9894 = vpop.xlane.xlu0 %9893
        %v9895 = vadd.f32 %v9760, %v9761
        %v9896 = vadd.f32 %v9895, %v9762
        %v9897 = vadd.f32 %v9896, %v9763
        %9898 = vadd.xlane.f32.xlu0 %v9897
        %v9899 = vpop.xlane.xlu0 %9898
        %v9900 = vadd.f32 %v9764, %v9765
        %v9901 = vadd.f32 %v9900, %v9766
        %v9902 = vadd.f32 %v9901, %v9767
        %9903 = vadd.xlane.f32.xlu0 %v9902
        %v9904 = vpop.xlane.xlu0 %9903
        %v9905 = vadd.f32 %v9768, %v9769
        %v9906 = vadd.f32 %v9905, %v9770
        %v9907 = vadd.f32 %v9906, %v9771
        %9908 = vadd.xlane.f32.xlu0 %v9907
        %v9909 = vpop.xlane.xlu0 %9908
        %v9910 = vadd.f32 %v9772, %v9773
        %v9911 = vadd.f32 %v9910, %v9774
        %v9912 = vadd.f32 %v9911, %v9775
        %9913 = vadd.xlane.f32.xlu0 %v9912
        %v9914 = vpop.xlane.xlu0 %9913
        %v9915 = vadd.f32 %v9776, %v9777
        %v9916 = vadd.f32 %v9915, %v9778
        %v9917 = vadd.f32 %v9916, %v9779
        %9918 = vadd.xlane.f32.xlu0 %v9917
        %v9919 = vpop.xlane.xlu0 %9918
        %v9920 = vadd.f32 %v9780, %v9781
        %v9921 = vadd.f32 %v9920, %v9782
        %v9922 = vadd.f32 %v9921, %v9783
        %9923 = vadd.xlane.f32.xlu0 %v9922
        %v9924 = vpop.xlane.xlu0 %9923
        %v9925 = vadd.f32 %v9784, %v9785
        %v9926 = vadd.f32 %v9925, %v9786
        %v9927 = vadd.f32 %v9926, %v9787
        %9928 = vadd.xlane.f32.xlu0 %v9927
        %v9929 = vpop.xlane.xlu0 %9928
        %v9930 = vadd.f32 %v9788, %v9789
        %v9931 = vadd.f32 %v9930, %v9790
        %v9932 = vadd.f32 %v9931, %v9791
        %9933 = vadd.xlane.f32.xlu0 %v9932
        %v9934 = vpop.xlane.xlu0 %9933
        %v9935 = vadd.f32 %v9792, %v9793
        %v9936 = vadd.f32 %v9935, %v9794
        %v9937 = vadd.f32 %v9936, %v9795
        %9938 = vadd.xlane.f32.xlu0 %v9937
        %v9939 = vpop.xlane.xlu0 %9938
        %v9940 = vadd.f32 %v9796, %v9797
        %v9941 = vadd.f32 %v9940, %v9798
        %v9942 = vadd.f32 %v9941, %v9799
        %9943 = vadd.xlane.f32.xlu0 %v9942
        %v9944 = vpop.xlane.xlu0 %9943
        %v9945 = vadd.f32 %v9800, %v9801
        %v9946 = vadd.f32 %v9945, %v9802
        %v9947 = vadd.f32 %v9946, %v9803
        %9948 = vadd.xlane.f32.xlu0 %v9947
        %v9949 = vpop.xlane.xlu0 %9948
        %v9950 = vadd.f32 %v9804, %v9805
        %v9951 = vadd.f32 %v9950, %v9806
        %v9952 = vadd.f32 %v9951, %v9807
        %9953 = vadd.xlane.f32.xlu0 %v9952
        %v9954 = vpop.xlane.xlu0 %9953
        %v9955 = vadd.f32 %v9808, %v9809
        %v9956 = vadd.f32 %v9955, %v9810
        %v9957 = vadd.f32 %v9956, %v9811
        %9958 = vadd.xlane.f32.xlu0 %v9957
        %v9959 = vpop.xlane.xlu0 %9958
        %v9960 = vadd.f32 %v9812, %v9813
        %v9961 = vadd.f32 %v9960, %v9814
        %v9962 = vadd.f32 %v9961, %v9815
        %9963 = vadd.xlane.f32.xlu0 %v9962
        %v9964 = vpop.xlane.xlu0 %9963
        %v9965 = vadd.f32 %v9816, %v9817
        %v9966 = vadd.f32 %v9965, %v9818
        %v9967 = vadd.f32 %v9966, %v9819
        %9968 = vadd.xlane.f32.xlu0 %v9967
        %v9969 = vpop.xlane.xlu0 %9968
        %v9970 = vadd.f32 %v9820, %v9821
        %v9971 = vadd.f32 %v9970, %v9822
        %v9972 = vadd.f32 %v9971, %v9823
        %9973 = vadd.xlane.f32.xlu0 %v9972
        %v9974 = vpop.xlane.xlu0 %9973
        %v9975 = vadd.f32 %v9824, %v9825
        %v9976 = vadd.f32 %v9975, %v9826
        %v9977 = vadd.f32 %v9976, %v9827
        %9978 = vadd.xlane.f32.xlu0 %v9977
        %v9979 = vpop.xlane.xlu0 %9978
        %v9980 = vadd.f32 %v9828, %v9829
        %v9981 = vadd.f32 %v9980, %v9830
        %v9982 = vadd.f32 %v9981, %v9831
        %9983 = vadd.xlane.f32.xlu0 %v9982
        %v9984 = vpop.xlane.xlu0 %9983
        %v9985 = vadd.f32 %v9832, %v9833
        %v9986 = vadd.f32 %v9985, %v9834
        %v9987 = vadd.f32 %v9986, %v9835
        %9988 = vadd.xlane.f32.xlu0 %v9987
        %v9989 = vpop.xlane.xlu0 %9988
        %v9990 = vadd.f32 %v9836, %v9837
        %v9991 = vadd.f32 %v9990, %v9838
        %v9992 = vadd.f32 %v9991, %v9839
        %9993 = vadd.xlane.f32.xlu0 %v9992
        %v9994 = vpop.xlane.xlu0 %9993
        %v9995 = vadd.f32 %v9840, %v9841
        %v9996 = vadd.f32 %v9995, %v9842
        %v9997 = vadd.f32 %v9996, %v9843
        %9998 = vadd.xlane.f32.xlu0 %v9997
        %v9999 = vpop.xlane.xlu0 %9998
        %v10000 = vadd.f32 %v9844, %v9845
        %v10001 = vadd.f32 %v10000, %v9846
        %v10002 = vadd.f32 %v10001, %v9847
        %10003 = vadd.xlane.f32.xlu0 %v10002
        %v10004 = vpop.xlane.xlu0 %10003
        %v10005 = vadd.f32 %v9848, %v9849
        %v10006 = vadd.f32 %v10005, %v9850
        %v10007 = vadd.f32 %v10006, %v9851
        %10008 = vadd.xlane.f32.xlu0 %v10007
        %v10009 = vpop.xlane.xlu0 %10008
        %v10010 = vadd.f32 %v9852, %v9853
        %v10011 = vadd.f32 %v10010, %v9854
        %v10012 = vadd.f32 %v10011, %v9855
        %10013 = vadd.xlane.f32.xlu0 %v10012
        %v10014 = vpop.xlane.xlu0 %10013
        %v10015 = vadd.f32 %v9856, %v9857
        %v10016 = vadd.f32 %v10015, %v9858
        %v10017 = vadd.f32 %v10016, %v9859
        %10018 = vadd.xlane.f32.xlu0 %v10017
        %v10019 = vpop.xlane.xlu0 %10018
        %10052 = vrot.lane.b32.xlu0 %v6718, 64
        %v10053 = vpop.permute.xlu0 %10052
        %10054 = vrot.lane.b32.xlu0 %v6719, 64
        %v10055 = vpop.permute.xlu0 %10054
        %10056 = vrot.lane.b32.xlu0 %v6720, 64
        %v10057 = vpop.permute.xlu0 %10056
        %10058 = vrot.lane.b32.xlu0 %v6721, 64
        %v10059 = vpop.permute.xlu0 %10058
        %10060 = vrot.lane.b32.xlu0 %v6722, 64
        %v10061 = vpop.permute.xlu0 %10060
        %10062 = vrot.lane.b32.xlu0 %v6723, 64
        %v10063 = vpop.permute.xlu0 %10062
        %10064 = vrot.lane.b32.xlu0 %v6724, 64
        %v10065 = vpop.permute.xlu0 %10064
        %10066 = vrot.lane.b32.xlu0 %v6725, 64
        %v10067 = vpop.permute.xlu0 %10066
        %10068 = vrot.lane.b32.xlu0 %v6726, 64
        %v10069 = vpop.permute.xlu0 %10068
        %10070 = vrot.lane.b32.xlu0 %v6727, 64
        %v10071 = vpop.permute.xlu0 %10070
        %10072 = vrot.lane.b32.xlu0 %v6728, 64
        %v10073 = vpop.permute.xlu0 %10072
        %10074 = vrot.lane.b32.xlu0 %v6729, 64
        %v10075 = vpop.permute.xlu0 %10074
        %10076 = vrot.lane.b32.xlu0 %v6730, 64
        %v10077 = vpop.permute.xlu0 %10076
        %10078 = vrot.lane.b32.xlu0 %v6731, 64
        %v10079 = vpop.permute.xlu0 %10078
        %10080 = vrot.lane.b32.xlu0 %v6732, 64
        %v10081 = vpop.permute.xlu0 %10080
        %10082 = vrot.lane.b32.xlu0 %v6733, 64
        %v10083 = vpop.permute.xlu0 %10082
        %10084 = vrot.lane.b32.xlu0 %v6734, 64
        %v10085 = vpop.permute.xlu0 %10084
        %10086 = vrot.lane.b32.xlu0 %v6735, 64
        %v10087 = vpop.permute.xlu0 %10086
        %10088 = vrot.lane.b32.xlu0 %v6736, 64
        %v10089 = vpop.permute.xlu0 %10088
        %10090 = vrot.lane.b32.xlu0 %v6737, 64
        %v10091 = vpop.permute.xlu0 %10090
        %10092 = vrot.lane.b32.xlu0 %v6738, 64
        %v10093 = vpop.permute.xlu0 %10092
        %10094 = vrot.lane.b32.xlu0 %v6739, 64
        %v10095 = vpop.permute.xlu0 %10094
        %10096 = vrot.lane.b32.xlu0 %v6740, 64
        %v10097 = vpop.permute.xlu0 %10096
        %10098 = vrot.lane.b32.xlu0 %v6741, 64
        %v10099 = vpop.permute.xlu0 %10098
        %10100 = vrot.lane.b32.xlu0 %v6742, 64
        %v10101 = vpop.permute.xlu0 %10100
        %10102 = vrot.lane.b32.xlu0 %v6743, 64
        %v10103 = vpop.permute.xlu0 %10102
        %10104 = vrot.lane.b32.xlu0 %v6744, 64
        %v10105 = vpop.permute.xlu0 %10104
        %10106 = vrot.lane.b32.xlu0 %v6745, 64
        %v10107 = vpop.permute.xlu0 %10106
        %10108 = vrot.lane.b32.xlu0 %v6746, 64
        %v10109 = vpop.permute.xlu0 %10108
        %10110 = vrot.lane.b32.xlu0 %v6747, 64
        %v10111 = vpop.permute.xlu0 %10110
        %10112 = vrot.lane.b32.xlu0 %v6748, 64
        %v10113 = vpop.permute.xlu0 %10112
        %10114 = vrot.lane.b32.xlu0 %v6749, 64
        %v10115 = vpop.permute.xlu0 %10114
        %10148 = vmatprep.subr.bf16.mxu0 0
        %10149 = vmatpush1.bf16.msra.mxu0 %v10053
        %10150 = vmatprep.subr.bf16.mxu0 0
        %10151 = vmatpush1.bf16.msra.mxu0 %v10055
        %10152 = vmatprep.subr.bf16.mxu0 0
        %10153 = vmatpush1.bf16.msra.mxu0 %v10057
        %10154 = vmatprep.subr.bf16.mxu0 0
        %10155 = vmatpush1.bf16.msra.mxu0 %v10059
        %10156 = vmatprep.subr.bf16.mxu0 0
        %10157 = vmatpush1.bf16.msra.mxu0 %v10061
        %10158 = vmatprep.subr.bf16.mxu0 0
        %10159 = vmatpush1.bf16.msra.mxu0 %v10063
        %10160 = vmatprep.subr.bf16.mxu0 0
        %10161 = vmatpush1.bf16.msra.mxu0 %v10065
        %10162 = vmatprep.subr.bf16.mxu0 0
        %10163 = vmatpush1.bf16.msra.mxu0 %v10067
        %10164 = vmatprep.subr.bf16.mxu0 0
        %10165 = vmatpush1.bf16.msra.mxu0 %v10069
        %10166 = vmatprep.subr.bf16.mxu0 0
        %10167 = vmatpush1.bf16.msra.mxu0 %v10071
        %10168 = vmatprep.subr.bf16.mxu0 0
        %10169 = vmatpush1.bf16.msra.mxu0 %v10073
        %10170 = vmatprep.subr.bf16.mxu0 0
        %10171 = vmatpush1.bf16.msra.mxu0 %v10075
        %10172 = vmatprep.subr.bf16.mxu0 0
        %10173 = vmatpush1.bf16.msra.mxu0 %v10077
        %10174 = vmatprep.subr.bf16.mxu0 0
        %10175 = vmatpush1.bf16.msra.mxu0 %v10079
        %10176 = vmatprep.subr.bf16.mxu0 0
        %10177 = vmatpush1.bf16.msra.mxu0 %v10081
        %10178 = vmatprep.subr.bf16.mxu0 0
        %10179 = vmatpush1.bf16.msra.mxu0 %v10083
        %10180 = vmatprep.mubr.bf16.mxu0 %v9545
        %10181 = vmatmul.mubr.bf16.gmra.mrb[0].mxu0 %v9542
        %v10182 = vpop.f32.mrb[0].mxu0
        %v10183 = vadd.f32 0.0, %v10182
        %v10184 = vpop.f32.mrb[0].mxu0
        %v10185 = vpop.f32.mrb[0].mxu0
        %v10186 = vadd.f32 0.0, %v10185
        %v10187 = vpop.f32.mrb[0].mxu0
        %10188 = vmatprep.mubr.bf16.mxu0 %v9557
        %10189 = vmatmul.mubr.bf16.gmra.mrb[0].mxu0 %v9554
        %v10190 = vpop.f32.mrb[0].mxu0
        %v10191 = vadd.f32 0.0, %v10190
        %v10192 = vpop.f32.mrb[0].mxu0
        %v10193 = vpop.f32.mrb[0].mxu0
        %v10194 = vadd.f32 0.0, %v10193
        %v10195 = vpop.f32.mrb[0].mxu0
        %10196 = vmatprep.mubr.bf16.mxu0 %v9569
        %10197 = vmatmul.mubr.bf16.gmra.mrb[0].mxu0 %v9566
        %v10198 = vpop.f32.mrb[0].mxu0
        %v10199 = vadd.f32 0.0, %v10198
        %v10200 = vpop.f32.mrb[0].mxu0
        %v10201 = vpop.f32.mrb[0].mxu0
        %v10202 = vadd.f32 0.0, %v10201
        %v10203 = vpop.f32.mrb[0].mxu0
        %10204 = vmatprep.mubr.bf16.mxu0 %v9581
        %10205 = vmatmul.mubr.bf16.gmra.mrb[0].mxu0 %v9578
        %v10206 = vpop.f32.mrb[0].mxu0
        %v10207 = vadd.f32 0.0, %v10206
        %v10208 = vpop.f32.mrb[0].mxu0
        %v10209 = vpop.f32.mrb[0].mxu0
        %v10210 = vadd.f32 0.0, %v10209
        %v10211 = vpop.f32.mrb[0].mxu0
        %10212 = vmatprep.mubr.bf16.mxu0 %v9593
        %10213 = vmatmul.mubr.bf16.gmra.mrb[0].mxu0 %v9590
        %v10214 = vpop.f32.mrb[0].mxu0
        %v10215 = vadd.f32 0.0, %v10214
        %v10216 = vpop.f32.mrb[0].mxu0
        %v10217 = vpop.f32.mrb[0].mxu0
        %v10218 = vadd.f32 0.0, %v10217
        %v10219 = vpop.f32.mrb[0].mxu0
        %10220 = vmatprep.mubr.bf16.mxu0 %v9605
        %10221 = vmatmul.mubr.bf16.gmra.mrb[0].mxu0 %v9602
        %v10222 = vpop.f32.mrb[0].mxu0
        %v10223 = vadd.f32 0.0, %v10222
        %v10224 = vpop.f32.mrb[0].mxu0
        %v10225 = vpop.f32.mrb[0].mxu0
        %v10226 = vadd.f32 0.0, %v10225
        %v10227 = vpop.f32.mrb[0].mxu0
        %10228 = vmatprep.mubr.bf16.mxu0 %v9617
        %10229 = vmatmul.mubr.bf16.gmra.mrb[0].mxu0 %v9614
        %v10230 = vpop.f32.mrb[0].mxu0
        %v10231 = vadd.f32 0.0, %v10230
        %v10232 = vpop.f32.mrb[0].mxu0
        %v10233 = vpop.f32.mrb[0].mxu0
        %v10234 = vadd.f32 0.0, %v10233
        %v10235 = vpop.f32.mrb[0].mxu0
        %10236 = vmatprep.mubr.bf16.mxu0 %v9629
        %10237 = vmatmul.mubr.bf16.gmra.mrb[0].mxu0 %v9626
        %v10238 = vpop.f32.mrb[0].mxu0
        %v10239 = vadd.f32 0.0, %v10238
        %v10240 = vpop.f32.mrb[0].mxu0
        %v10241 = vpop.f32.mrb[0].mxu0
        %v10242 = vadd.f32 0.0, %v10241
        %v10243 = vpop.f32.mrb[0].mxu0
        %10244 = vmatprep.mubr.bf16.mxu0 %v9641
        %10245 = vmatmul.mubr.bf16.gmra.mrb[0].mxu0 %v9638
        %v10246 = vpop.f32.mrb[0].mxu0
        %v10247 = vadd.f32 0.0, %v10246
        %v10248 = vpop.f32.mrb[0].mxu0
        %v10249 = vpop.f32.mrb[0].mxu0
        %v10250 = vadd.f32 0.0, %v10249
        %v10251 = vpop.f32.mrb[0].mxu0
        %10252 = vmatprep.mubr.bf16.mxu0 %v9653
        %10253 = vmatmul.mubr.bf16.gmra.mrb[0].mxu0 %v9650
        %v10254 = vpop.f32.mrb[0].mxu0
        %v10255 = vadd.f32 0.0, %v10254
        %v10256 = vpop.f32.mrb[0].mxu0
        %v10257 = vpop.f32.mrb[0].mxu0
        %v10258 = vadd.f32 0.0, %v10257
        %v10259 = vpop.f32.mrb[0].mxu0
        %10260 = vmatprep.mubr.bf16.mxu0 %v9665
        %10261 = vmatmul.mubr.bf16.gmra.mrb[0].mxu0 %v9662
        %v10262 = vpop.f32.mrb[0].mxu0
        %v10263 = vadd.f32 0.0, %v10262
        %v10264 = vpop.f32.mrb[0].mxu0
        %v10265 = vpop.f32.mrb[0].mxu0
        %v10266 = vadd.f32 0.0, %v10265
        %v10267 = vpop.f32.mrb[0].mxu0
        %10268 = vmatprep.mubr.bf16.mxu0 %v9677
        %10269 = vmatmul.mubr.bf16.gmra.mrb[0].mxu0 %v9674
        %v10270 = vpop.f32.mrb[0].mxu0
        %v10271 = vadd.f32 0.0, %v10270
        %v10272 = vpop.f32.mrb[0].mxu0
        %v10273 = vpop.f32.mrb[0].mxu0
        %v10274 = vadd.f32 0.0, %v10273
        %v10275 = vpop.f32.mrb[0].mxu0
        %10276 = vmatprep.mubr.bf16.mxu0 %v9689
        %10277 = vmatmul.mubr.bf16.gmra.mrb[0].mxu0 %v9686
        %v10278 = vpop.f32.mrb[0].mxu0
        %v10279 = vadd.f32 0.0, %v10278
        %v10280 = vpop.f32.mrb[0].mxu0
        %v10281 = vpop.f32.mrb[0].mxu0
        %v10282 = vadd.f32 0.0, %v10281
        %v10283 = vpop.f32.mrb[0].mxu0
        %10284 = vmatprep.mubr.bf16.mxu0 %v9701
        %10285 = vmatmul.mubr.bf16.gmra.mrb[0].mxu0 %v9698
        %v10286 = vpop.f32.mrb[0].mxu0
        %v10287 = vadd.f32 0.0, %v10286
        %v10288 = vpop.f32.mrb[0].mxu0
        %v10289 = vpop.f32.mrb[0].mxu0
        %v10290 = vadd.f32 0.0, %v10289
        %v10291 = vpop.f32.mrb[0].mxu0
        %10292 = vmatprep.mubr.bf16.mxu0 %v9713
        %10293 = vmatmul.mubr.bf16.gmra.mrb[0].mxu0 %v9710
        %v10294 = vpop.f32.mrb[0].mxu0
        %v10295 = vadd.f32 0.0, %v10294
        %v10296 = vpop.f32.mrb[0].mxu0
        %v10297 = vpop.f32.mrb[0].mxu0
        %v10298 = vadd.f32 0.0, %v10297
        %v10299 = vpop.f32.mrb[0].mxu0
        %10300 = vmatprep.mubr.bf16.mxu0 %v9725
        %10301 = vmatmul.mubr.bf16.gmra.mrb[0].mxu0 %v9722
        %v10302 = vpop.f32.mrb[0].mxu0
        %v10303 = vadd.f32 0.0, %v10302
        %v10304 = vpop.f32.mrb[0].mxu0
        %v10305 = vpop.f32.mrb[0].mxu0
        %v10306 = vadd.f32 0.0, %v10305
        %v10307 = vpop.f32.mrb[0].mxu0
        %10308 = vdwg.mxu0
        %10309 = vmatprep.subr.bf16.mxu0 0
        %10310 = vmatpush1.bf16.msra.mxu0 %v10085
        %10311 = vmatprep.subr.bf16.mxu0 0
        %10312 = vmatpush1.bf16.msra.mxu0 %v10087
        %10313 = vmatprep.subr.bf16.mxu0 0
        %10314 = vmatpush1.bf16.msra.mxu0 %v10089
        %10315 = vmatprep.subr.bf16.mxu0 0
        %10316 = vmatpush1.bf16.msra.mxu0 %v10091
        %10317 = vmatprep.subr.bf16.mxu0 0
        %10318 = vmatpush1.bf16.msra.mxu0 %v10093
        %10319 = vmatprep.subr.bf16.mxu0 0
        %10320 = vmatpush1.bf16.msra.mxu0 %v10095
        %10321 = vmatprep.subr.bf16.mxu0 0
        %10322 = vmatpush1.bf16.msra.mxu0 %v10097
        %10323 = vmatprep.subr.bf16.mxu0 0
        %10324 = vmatpush1.bf16.msra.mxu0 %v10099
        %10325 = vmatprep.subr.bf16.mxu0 0
        %10326 = vmatpush1.bf16.msra.mxu0 %v10101
        %10327 = vmatprep.subr.bf16.mxu0 0
        %10328 = vmatpush1.bf16.msra.mxu0 %v10103
        %10329 = vmatprep.subr.bf16.mxu0 0
        %10330 = vmatpush1.bf16.msra.mxu0 %v10105
        %10331 = vmatprep.subr.bf16.mxu0 0
        %10332 = vmatpush1.bf16.msra.mxu0 %v10107
        %10333 = vmatprep.subr.bf16.mxu0 0
        %10334 = vmatpush1.bf16.msra.mxu0 %v10109
        %10335 = vmatprep.subr.bf16.mxu0 0
        %10336 = vmatpush1.bf16.msra.mxu0 %v10111
        %10337 = vmatprep.subr.bf16.mxu0 0
        %10338 = vmatpush1.bf16.msra.mxu0 %v10113
        %10339 = vmatprep.subr.bf16.mxu0 0
        %10340 = vmatpush1.bf16.msra.mxu0 %v10115
        %10341 = vmatprep.mubr.bf16.mxu0 %v9551
        %10342 = vmatmul.mubr.bf16.gmra.mrb[0].mxu0 %v9548
        %v10343 = vpop.f32.mrb[0].mxu0
        %v10344 = vadd.f32 %v10183, %v10343
        %v10345 = vpop.f32.mrb[0].mxu0
        %v10346 = vpop.f32.mrb[0].mxu0
        %v10347 = vadd.f32 %v10186, %v10346
        %v10348 = vpop.f32.mrb[0].mxu0
        %10349 = vmatprep.mubr.bf16.mxu0 %v9563
        %10350 = vmatmul.mubr.bf16.gmra.mrb[0].mxu0 %v9560
        %v10351 = vpop.f32.mrb[0].mxu0
        %v10352 = vadd.f32 %v10191, %v10351
        %v10353 = vpop.f32.mrb[0].mxu0
        %v10354 = vpop.f32.mrb[0].mxu0
        %v10355 = vadd.f32 %v10194, %v10354
        %v10356 = vpop.f32.mrb[0].mxu0
        %10357 = vmatprep.mubr.bf16.mxu0 %v9575
        %10358 = vmatmul.mubr.bf16.gmra.mrb[0].mxu0 %v9572
        %v10359 = vpop.f32.mrb[0].mxu0
        %v10360 = vadd.f32 %v10199, %v10359
        %v10361 = vpop.f32.mrb[0].mxu0
        %v10362 = vpop.f32.mrb[0].mxu0
        %v10363 = vadd.f32 %v10202, %v10362
        %v10364 = vpop.f32.mrb[0].mxu0
        %10365 = vmatprep.mubr.bf16.mxu0 %v9587
        %10366 = vmatmul.mubr.bf16.gmra.mrb[0].mxu0 %v9584
        %v10367 = vpop.f32.mrb[0].mxu0
        %v10368 = vadd.f32 %v10207, %v10367
        %v10369 = vpop.f32.mrb[0].mxu0
        %v10370 = vpop.f32.mrb[0].mxu0
        %v10371 = vadd.f32 %v10210, %v10370
        %v10372 = vpop.f32.mrb[0].mxu0
        %10373 = vmatprep.mubr.bf16.mxu0 %v9599
        %10374 = vmatmul.mubr.bf16.gmra.mrb[0].mxu0 %v9596
        %v10375 = vpop.f32.mrb[0].mxu0
        %v10376 = vadd.f32 %v10215, %v10375
        %v10377 = vpop.f32.mrb[0].mxu0
        %v10378 = vpop.f32.mrb[0].mxu0
        %v10379 = vadd.f32 %v10218, %v10378
        %v10380 = vpop.f32.mrb[0].mxu0
        %10381 = vmatprep.mubr.bf16.mxu0 %v9611
        %10382 = vmatmul.mubr.bf16.gmra.mrb[0].mxu0 %v9608
        %v10383 = vpop.f32.mrb[0].mxu0
        %v10384 = vadd.f32 %v10223, %v10383
        %v10385 = vpop.f32.mrb[0].mxu0
        %v10386 = vpop.f32.mrb[0].mxu0
        %v10387 = vadd.f32 %v10226, %v10386
        %v10388 = vpop.f32.mrb[0].mxu0
        %10389 = vmatprep.mubr.bf16.mxu0 %v9623
        %10390 = vmatmul.mubr.bf16.gmra.mrb[0].mxu0 %v9620
        %v10391 = vpop.f32.mrb[0].mxu0
        %v10392 = vadd.f32 %v10231, %v10391
        %v10393 = vpop.f32.mrb[0].mxu0
        %v10394 = vpop.f32.mrb[0].mxu0
        %v10395 = vadd.f32 %v10234, %v10394
        %v10396 = vpop.f32.mrb[0].mxu0
        %10397 = vmatprep.mubr.bf16.mxu0 %v9635
        %10398 = vmatmul.mubr.bf16.gmra.mrb[0].mxu0 %v9632
        %v10399 = vpop.f32.mrb[0].mxu0
        %v10400 = vadd.f32 %v10239, %v10399
        %v10401 = vpop.f32.mrb[0].mxu0
        %v10402 = vpop.f32.mrb[0].mxu0
        %v10403 = vadd.f32 %v10242, %v10402
        %v10404 = vpop.f32.mrb[0].mxu0
        %10405 = vmatprep.mubr.bf16.mxu0 %v9647
        %10406 = vmatmul.mubr.bf16.gmra.mrb[0].mxu0 %v9644
        %v10407 = vpop.f32.mrb[0].mxu0
        %v10408 = vadd.f32 %v10247, %v10407
        %v10409 = vpop.f32.mrb[0].mxu0
        %v10410 = vpop.f32.mrb[0].mxu0
        %v10411 = vadd.f32 %v10250, %v10410
        %v10412 = vpop.f32.mrb[0].mxu0
        %10413 = vmatprep.mubr.bf16.mxu0 %v9659
        %10414 = vmatmul.mubr.bf16.gmra.mrb[0].mxu0 %v9656
        %v10415 = vpop.f32.mrb[0].mxu0
        %v10416 = vadd.f32 %v10255, %v10415
        %v10417 = vpop.f32.mrb[0].mxu0
        %v10418 = vpop.f32.mrb[0].mxu0
        %v10419 = vadd.f32 %v10258, %v10418
        %v10420 = vpop.f32.mrb[0].mxu0
        %10421 = vmatprep.mubr.bf16.mxu0 %v9671
        %10422 = vmatmul.mubr.bf16.gmra.mrb[0].mxu0 %v9668
        %v10423 = vpop.f32.mrb[0].mxu0
        %v10424 = vadd.f32 %v10263, %v10423
        %v10425 = vpop.f32.mrb[0].mxu0
        %v10426 = vpop.f32.mrb[0].mxu0
        %v10427 = vadd.f32 %v10266, %v10426
        %v10428 = vpop.f32.mrb[0].mxu0
        %10429 = vmatprep.mubr.bf16.mxu0 %v9683
        %10430 = vmatmul.mubr.bf16.gmra.mrb[0].mxu0 %v9680
        %v10431 = vpop.f32.mrb[0].mxu0
        %v10432 = vadd.f32 %v10271, %v10431
        %v10433 = vpop.f32.mrb[0].mxu0
        %v10434 = vpop.f32.mrb[0].mxu0
        %v10435 = vadd.f32 %v10274, %v10434
        %v10436 = vpop.f32.mrb[0].mxu0
        %10437 = vmatprep.mubr.bf16.mxu0 %v9695
        %10438 = vmatmul.mubr.bf16.gmra.mrb[0].mxu0 %v9692
        %v10439 = vpop.f32.mrb[0].mxu0
        %v10440 = vadd.f32 %v10279, %v10439
        %v10441 = vpop.f32.mrb[0].mxu0
        %v10442 = vpop.f32.mrb[0].mxu0
        %v10443 = vadd.f32 %v10282, %v10442
        %v10444 = vpop.f32.mrb[0].mxu0
        %10445 = vmatprep.mubr.bf16.mxu0 %v9707
        %10446 = vmatmul.mubr.bf16.gmra.mrb[0].mxu0 %v9704
        %v10447 = vpop.f32.mrb[0].mxu0
        %v10448 = vadd.f32 %v10287, %v10447
        %v10449 = vpop.f32.mrb[0].mxu0
        %v10450 = vpop.f32.mrb[0].mxu0
        %v10451 = vadd.f32 %v10290, %v10450
        %v10452 = vpop.f32.mrb[0].mxu0
        %10453 = vmatprep.mubr.bf16.mxu0 %v9719
        %10454 = vmatmul.mubr.bf16.gmra.mrb[0].mxu0 %v9716
        %v10455 = vpop.f32.mrb[0].mxu0
        %v10456 = vadd.f32 %v10295, %v10455
        %v10457 = vpop.f32.mrb[0].mxu0
        %v10458 = vpop.f32.mrb[0].mxu0
        %v10459 = vadd.f32 %v10298, %v10458
        %v10460 = vpop.f32.mrb[0].mxu0
        %10461 = vmatprep.mubr.bf16.mxu0 %v9731
        %10462 = vmatmul.mubr.bf16.gmra.mrb[0].mxu0 %v9728
        %v10463 = vpop.f32.mrb[0].mxu0
        %v10464 = vadd.f32 %v10303, %v10463
        %v10465 = vpop.f32.mrb[0].mxu0
        %v10466 = vpop.f32.mrb[0].mxu0
        %v10467 = vadd.f32 %v10306, %v10466
        %v10468 = vpop.f32.mrb[0].mxu0
        %10469 = vdwg.mxu0
        %v10470 = vrcp.pop %v9864
        %v10471 = vrcp.pop %v9869
        %v10472 = vrcp.pop %v9874
        %v10473 = vrcp.pop %v9879
        %v10474 = vrcp.pop %v9884
        %v10475 = vrcp.pop %v9889
        %v10476 = vrcp.pop %v9894
        %v10477 = vrcp.pop %v9899
        %v10478 = vrcp.pop %v9904
        %v10479 = vrcp.pop %v9909
        %v10480 = vrcp.pop %v9914
        %v10481 = vrcp.pop %v9919
        %v10482 = vrcp.pop %v9924
        %v10483 = vrcp.pop %v9929
        %v10484 = vrcp.pop %v9934
        %v10485 = vrcp.pop %v9939
        %v10486 = vrcp.pop %v9944
        %v10487 = vrcp.pop %v9949
        %v10488 = vrcp.pop %v9954
        %v10489 = vrcp.pop %v9959
        %v10490 = vrcp.pop %v9964
        %v10491 = vrcp.pop %v9969
        %v10492 = vrcp.pop %v9974
        %v10493 = vrcp.pop %v9979
        %v10494 = vrcp.pop %v9984
        %v10495 = vrcp.pop %v9989
        %v10496 = vrcp.pop %v9994
        %v10497 = vrcp.pop %v9999
        %v10498 = vrcp.pop %v10004
        %v10499 = vrcp.pop %v10009
        %v10500 = vrcp.pop %v10014
        %v10501 = vrcp.pop %v10019
        %v10502 = vmul.f32 %v10344, %v10470
        %v10503 = vmul.f32 %v10347, %v10471
        %v10504 = vmul.f32 %v10352, %v10472
        %v10505 = vmul.f32 %v10355, %v10473
        %v10506 = vmul.f32 %v10360, %v10474
        %v10507 = vmul.f32 %v10363, %v10475
        %v10508 = vmul.f32 %v10368, %v10476
        %v10509 = vmul.f32 %v10371, %v10477
        %v10510 = vmul.f32 %v10376, %v10478
        %v10511 = vmul.f32 %v10379, %v10479
        %v10512 = vmul.f32 %v10384, %v10480
        %v10513 = vmul.f32 %v10387, %v10481
        %v10514 = vmul.f32 %v10392, %v10482
        %v10515 = vmul.f32 %v10395, %v10483
        %v10516 = vmul.f32 %v10400, %v10484
        %v10517 = vmul.f32 %v10403, %v10485
        %v10518 = vmul.f32 %v10408, %v10486
        %v10519 = vmul.f32 %v10411, %v10487
        %v10520 = vmul.f32 %v10416, %v10488
        %v10521 = vmul.f32 %v10419, %v10489
        %v10522 = vmul.f32 %v10424, %v10490
        %v10523 = vmul.f32 %v10427, %v10491
        %v10524 = vmul.f32 %v10432, %v10492
        %v10525 = vmul.f32 %v10435, %v10493
        %v10526 = vmul.f32 %v10440, %v10494
        %v10527 = vmul.f32 %v10443, %v10495
        %v10528 = vmul.f32 %v10448, %v10496
        %v10529 = vmul.f32 %v10451, %v10497
        %v10530 = vmul.f32 %v10456, %v10498
        %v10531 = vmul.f32 %v10459, %v10499
        %v10532 = vmul.f32 %v10464, %v10500
        %v10533 = vmul.f32 %v10467, %v10501
        %v10534 = vpack.c.bf16 %v10503, %v10502
        %v10535 = vpack.c.bf16 %v10505, %v10504
        %v10536 = vpack.c.bf16 %v10507, %v10506
        %v10537 = vpack.c.bf16 %v10509, %v10508
        %v10538 = vpack.c.bf16 %v10511, %v10510
        %v10539 = vpack.c.bf16 %v10513, %v10512
        %v10540 = vpack.c.bf16 %v10515, %v10514
        %v10541 = vpack.c.bf16 %v10517, %v10516
        %v10542 = vpack.c.bf16 %v10519, %v10518
        %v10543 = vpack.c.bf16 %v10521, %v10520
        %v10544 = vpack.c.bf16 %v10523, %v10522
        %v10545 = vpack.c.bf16 %v10525, %v10524
        %v10546 = vpack.c.bf16 %v10527, %v10526
        %v10547 = vpack.c.bf16 %v10529, %v10528
        %v10548 = vpack.c.bf16 %v10531, %v10530
        %v10549 = vpack.c.bf16 %v10533, %v10532
        %10566 = vrot.lane.b32.xlu0 %v10534, 64
        %v10567 = vpop.permute.xlu0 %10566
        %10568 = vrot.lane.b32.xlu0 %v10535, 64
        %v10569 = vpop.permute.xlu0 %10568
        %10570 = vrot.lane.b32.xlu0 %v10536, 64
        %v10571 = vpop.permute.xlu0 %10570
        %10572 = vrot.lane.b32.xlu0 %v10537, 64
        %v10573 = vpop.permute.xlu0 %10572
        %10574 = vrot.lane.b32.xlu0 %v10538, 64
        %v10575 = vpop.permute.xlu0 %10574
        %10576 = vrot.lane.b32.xlu0 %v10539, 64
        %v10577 = vpop.permute.xlu0 %10576
        %10578 = vrot.lane.b32.xlu0 %v10540, 64
        %v10579 = vpop.permute.xlu0 %10578
        %10580 = vrot.lane.b32.xlu0 %v10541, 64
        %v10581 = vpop.permute.xlu0 %10580
        %10582 = vrot.lane.b32.xlu0 %v10542, 64
        %v10583 = vpop.permute.xlu0 %10582
        %10584 = vrot.lane.b32.xlu0 %v10543, 64
        %v10585 = vpop.permute.xlu0 %10584
        %10586 = vrot.lane.b32.xlu0 %v10544, 64
        %v10587 = vpop.permute.xlu0 %10586
        %10588 = vrot.lane.b32.xlu0 %v10545, 64
        %v10589 = vpop.permute.xlu0 %10588
        %10590 = vrot.lane.b32.xlu0 %v10546, 64
        %v10591 = vpop.permute.xlu0 %10590
        %10592 = vrot.lane.b32.xlu0 %v10547, 64
        %v10593 = vpop.permute.xlu0 %10592
        %10594 = vrot.lane.b32.xlu0 %v10548, 64
        %v10595 = vpop.permute.xlu0 %10594
        %10596 = vrot.lane.b32.xlu0 %v10549, 64
        %v10597 = vpop.permute.xlu0 %10596
        %v10600 = vsel %vm2757, %v8498, %v10567
        %v10604 = vsel %vm2757, %v8499, %v10569
        %v10608 = vsel %vm2757, %v8500, %v10571
        %v10612 = vsel %vm2757, %v8501, %v10573
        %v10616 = vsel %vm2757, %v8502, %v10575
        %v10620 = vsel %vm2757, %v8503, %v10577
        %v10624 = vsel %vm2757, %v8504, %v10579
        %v10628 = vsel %vm2757, %v8505, %v10581
        %v10632 = vsel %vm2757, %v8506, %v10583
        %v10636 = vsel %vm2757, %v8507, %v10585
        %v10640 = vsel %vm2757, %v8508, %v10587
        %v10644 = vsel %vm2757, %v8509, %v10589
        %v10648 = vsel %vm2757, %v8510, %v10591
        %v10652 = vsel %vm2757, %v8511, %v10593
        %v10656 = vsel %vm2757, %v8512, %v10595
        %v10660 = vsel %vm2757, %v8513, %v10597
        %10662 = vst [vmem:[#allocation4 + $0x8] sm:$0xff] %v10600
        %10663 = vst [vmem:[#allocation4 + $0x18] sm:$0xff] %v10604
        %10664 = vst [vmem:[#allocation4 + $0x28] sm:$0xff] %v10608
        %10665 = vst [vmem:[#allocation4 + $0x38] sm:$0xff] %v10612
        %10666 = vst [vmem:[#allocation4 + $0x48] sm:$0xff] %v10616
        %10667 = vst [vmem:[#allocation4 + $0x58] sm:$0xff] %v10620
        %10668 = vst [vmem:[#allocation4 + $0x68] sm:$0xff] %v10624
        %10669 = vst [vmem:[#allocation4 + $0x78] sm:$0xff] %v10628
        %10670 = vst [vmem:[#allocation4 + $0x88] sm:$0xff] %v10632
        %10671 = vst [vmem:[#allocation4 + $0x98] sm:$0xff] %v10636
        %10672 = vst [vmem:[#allocation4 + $0xa8] sm:$0xff] %v10640
        %10673 = vst [vmem:[#allocation4 + $0xb8] sm:$0xff] %v10644
        %10674 = vst [vmem:[#allocation4 + $0xc8] sm:$0xff] %v10648
        %10675 = vst [vmem:[#allocation4 + $0xd8] sm:$0xff] %v10652
        %10676 = vst [vmem:[#allocation4 + $0xe8] sm:$0xff] %v10656
        %10677 = vst [vmem:[#allocation4 + $0xf8] sm:$0xff] %v10660
        %v10678 = vld [vmem:[#allocation4] sm:$0xff]
        %v10679 = vld [vmem:[#allocation4 + $0x8] sm:$0xff]
        %v10680 = vld [vmem:[#allocation4 + $0x10] sm:$0xff]
        %v10681 = vld [vmem:[#allocation4 + $0x18] sm:$0xff]
        %v10682 = vld [vmem:[#allocation4 + $0x20] sm:$0xff]
        %v10683 = vld [vmem:[#allocation4 + $0x28] sm:$0xff]
        %v10684 = vld [vmem:[#allocation4 + $0x30] sm:$0xff]
        %v10685 = vld [vmem:[#allocation4 + $0x38] sm:$0xff]
        %v10686 = vld [vmem:[#allocation4 + $0x40] sm:$0xff]
        %v10687 = vld [vmem:[#allocation4 + $0x48] sm:$0xff]
        %v10688 = vld [vmem:[#allocation4 + $0x50] sm:$0xff]
        %v10689 = vld [vmem:[#allocation4 + $0x58] sm:$0xff]
        %v10690 = vld [vmem:[#allocation4 + $0x60] sm:$0xff]
        %v10691 = vld [vmem:[#allocation4 + $0x68] sm:$0xff]
        %v10692 = vld [vmem:[#allocation4 + $0x70] sm:$0xff]
        %v10693 = vld [vmem:[#allocation4 + $0x78] sm:$0xff]
        %v10694 = vld [vmem:[#allocation4 + $0x80] sm:$0xff]
        %v10695 = vld [vmem:[#allocation4 + $0x88] sm:$0xff]
        %v10696 = vld [vmem:[#allocation4 + $0x90] sm:$0xff]
        %v10697 = vld [vmem:[#allocation4 + $0x98] sm:$0xff]
        %v10698 = vld [vmem:[#allocation4 + $0xa0] sm:$0xff]
        %v10699 = vld [vmem:[#allocation4 + $0xa8] sm:$0xff]
        %v10700 = vld [vmem:[#allocation4 + $0xb0] sm:$0xff]
        %v10701 = vld [vmem:[#allocation4 + $0xb8] sm:$0xff]
        %v10702 = vld [vmem:[#allocation4 + $0xc0] sm:$0xff]
        %v10703 = vld [vmem:[#allocation4 + $0xc8] sm:$0xff]
        %v10704 = vld [vmem:[#allocation4 + $0xd0] sm:$0xff]
        %v10705 = vld [vmem:[#allocation4 + $0xd8] sm:$0xff]
        %v10706 = vld [vmem:[#allocation4 + $0xe0] sm:$0xff]
        %v10707 = vld [vmem:[#allocation4 + $0xe8] sm:$0xff]
        %v10708 = vld [vmem:[#allocation4 + $0xf0] sm:$0xff]
        %v10709 = vld [vmem:[#allocation4 + $0xf8] sm:$0xff]
        %v10710 = vld [vmem:[#allocation13] sm:$0xff]
        %v10711 = vld [vmem:[#allocation13 + $0x8] sm:$0xff]
        %v10712 = vld [vmem:[#allocation13 + $0x10] sm:$0xff]
        %v10713 = vld [vmem:[#allocation13 + $0x18] sm:$0xff]
        %v10714 = vld [vmem:[#allocation13 + $0x20] sm:$0xff]
        %v10715 = vld [vmem:[#allocation13 + $0x28] sm:$0xff]
        %v10716 = vld [vmem:[#allocation13 + $0x30] sm:$0xff]
        %v10717 = vld [vmem:[#allocation13 + $0x38] sm:$0xff]
        %v10718 = vld [vmem:[#allocation13 + $0x40] sm:$0xff]
        %v10719 = vld [vmem:[#allocation13 + $0x48] sm:$0xff]
        %v10720 = vld [vmem:[#allocation13 + $0x50] sm:$0xff]
        %v10721 = vld [vmem:[#allocation13 + $0x58] sm:$0xff]
        %v10722 = vld [vmem:[#allocation13 + $0x60] sm:$0xff]
        %v10723 = vld [vmem:[#allocation13 + $0x68] sm:$0xff]
        %v10724 = vld [vmem:[#allocation13 + $0x70] sm:$0xff]
        %v10725 = vld [vmem:[#allocation13 + $0x78] sm:$0xff]
        %v10726 = vld [vmem:[#allocation13 + $0x80] sm:$0xff]
        %v10727 = vld [vmem:[#allocation13 + $0x88] sm:$0xff]
        %v10728 = vld [vmem:[#allocation13 + $0x90] sm:$0xff]
        %v10729 = vld [vmem:[#allocation13 + $0x98] sm:$0xff]
        %v10730 = vld [vmem:[#allocation13 + $0xa0] sm:$0xff]
        %v10731 = vld [vmem:[#allocation13 + $0xa8] sm:$0xff]
        %v10732 = vld [vmem:[#allocation13 + $0xb0] sm:$0xff]
        %v10733 = vld [vmem:[#allocation13 + $0xb8] sm:$0xff]
        %v10734 = vld [vmem:[#allocation13 + $0xc0] sm:$0xff]
        %v10735 = vld [vmem:[#allocation13 + $0xc8] sm:$0xff]
        %v10736 = vld [vmem:[#allocation13 + $0xd0] sm:$0xff]
        %v10737 = vld [vmem:[#allocation13 + $0xd8] sm:$0xff]
        %v10738 = vld [vmem:[#allocation13 + $0xe0] sm:$0xff]
        %v10739 = vld [vmem:[#allocation13 + $0xe8] sm:$0xff]
        %v10740 = vld [vmem:[#allocation13 + $0xf0] sm:$0xff]
        %v10741 = vld [vmem:[#allocation13 + $0xf8] sm:$0xff]
        %v10742 = vld [vmem:[%s5] sm:$0x3]
        %v10744 = vlaneseq
        %v10745 = vshrl.u32 %v10744, 7
        %v10746 = vsub.s32 0, %v10745
        %v10747 = vrot.slane %v10742, %v10746
        %v10748 = vlaneseq
        %v10749 = vshrl.u32 %v10748, 7
        %v10750 = vsub.s32 1, %v10749
        %v10751 = vrot.slane %v10742, %v10750
        %v10786 = vunpack.c.l.b16 %v10710
        %v10787 = vunpack.c.h.b16 %v10710
        %v10788 = vunpack.c.l.b16 %v10711
        %v10789 = vunpack.c.h.b16 %v10711
        %v10790 = vunpack.c.l.b16 %v10712
        %v10791 = vunpack.c.h.b16 %v10712
        %v10792 = vunpack.c.l.b16 %v10713
        %v10793 = vunpack.c.h.b16 %v10713
        %v10794 = vunpack.c.l.b16 %v10714
        %v10795 = vunpack.c.h.b16 %v10714
        %v10796 = vunpack.c.l.b16 %v10715
        %v10797 = vunpack.c.h.b16 %v10715
        %v10798 = vunpack.c.l.b16 %v10716
        %v10799 = vunpack.c.h.b16 %v10716
        %v10800 = vunpack.c.l.b16 %v10717
        %v10801 = vunpack.c.h.b16 %v10717
        %v10802 = vunpack.c.l.b16 %v10718
        %v10803 = vunpack.c.h.b16 %v10718
        %v10804 = vunpack.c.l.b16 %v10719
        %v10805 = vunpack.c.h.b16 %v10719
        %v10806 = vunpack.c.l.b16 %v10720
        %v10807 = vunpack.c.h.b16 %v10720
        %v10808 = vunpack.c.l.b16 %v10721
        %v10809 = vunpack.c.h.b16 %v10721
        %v10810 = vunpack.c.l.b16 %v10722
        %v10811 = vunpack.c.h.b16 %v10722
        %v10812 = vunpack.c.l.b16 %v10723
        %v10813 = vunpack.c.h.b16 %v10723
        %v10814 = vunpack.c.l.b16 %v10724
        %v10815 = vunpack.c.h.b16 %v10724
        %v10816 = vunpack.c.l.b16 %v10725
        %v10817 = vunpack.c.h.b16 %v10725
        %v10818 = vunpack.c.l.b16 %v10726
        %v10819 = vunpack.c.h.b16 %v10726
        %v10820 = vunpack.c.l.b16 %v10727
        %v10821 = vunpack.c.h.b16 %v10727
        %v10822 = vunpack.c.l.b16 %v10728
        %v10823 = vunpack.c.h.b16 %v10728
        %v10824 = vunpack.c.l.b16 %v10729
        %v10825 = vunpack.c.h.b16 %v10729
        %v10826 = vunpack.c.l.b16 %v10730
        %v10827 = vunpack.c.h.b16 %v10730
        %v10828 = vunpack.c.l.b16 %v10731
        %v10829 = vunpack.c.h.b16 %v10731
        %v10830 = vunpack.c.l.b16 %v10732
        %v10831 = vunpack.c.h.b16 %v10732
        %v10832 = vunpack.c.l.b16 %v10733
        %v10833 = vunpack.c.h.b16 %v10733
        %v10834 = vunpack.c.l.b16 %v10734
        %v10835 = vunpack.c.h.b16 %v10734
        %v10836 = vunpack.c.l.b16 %v10735
        %v10837 = vunpack.c.h.b16 %v10735
        %v10838 = vunpack.c.l.b16 %v10736
        %v10839 = vunpack.c.h.b16 %v10736
        %v10840 = vunpack.c.l.b16 %v10737
        %v10841 = vunpack.c.h.b16 %v10737
        %v10842 = vunpack.c.l.b16 %v10738
        %v10843 = vunpack.c.h.b16 %v10738
        %v10844 = vunpack.c.l.b16 %v10739
        %v10845 = vunpack.c.h.b16 %v10739
        %v10846 = vunpack.c.l.b16 %v10740
        %v10847 = vunpack.c.h.b16 %v10740
        %v10848 = vunpack.c.l.b16 %v10741
        %v10849 = vunpack.c.h.b16 %v10741
        %v10850 = vpack.c.b16 %v10788, %v10786
        %v10851 = vpack.c.b16 %v10789, %v10787
        %v10852 = vpack.c.b16 %v10792, %v10790
        %v10853 = vpack.c.b16 %v10793, %v10791
        %v10854 = vpack.c.b16 %v10796, %v10794
        %v10855 = vpack.c.b16 %v10797, %v10795
        %v10856 = vpack.c.b16 %v10800, %v10798
        %v10857 = vpack.c.b16 %v10801, %v10799
        %v10858 = vpack.c.b16 %v10804, %v10802
        %v10859 = vpack.c.b16 %v10805, %v10803
        %v10860 = vpack.c.b16 %v10808, %v10806
        %v10861 = vpack.c.b16 %v10809, %v10807
        %v10862 = vpack.c.b16 %v10812, %v10810
        %v10863 = vpack.c.b16 %v10813, %v10811
        %v10864 = vpack.c.b16 %v10816, %v10814
        %v10865 = vpack.c.b16 %v10817, %v10815
        %v10866 = vpack.c.b16 %v10820, %v10818
        %v10867 = vpack.c.b16 %v10821, %v10819
        %v10868 = vpack.c.b16 %v10824, %v10822
        %v10869 = vpack.c.b16 %v10825, %v10823
        %v10870 = vpack.c.b16 %v10828, %v10826
        %v10871 = vpack.c.b16 %v10829, %v10827
        %v10872 = vpack.c.b16 %v10832, %v10830
        %v10873 = vpack.c.b16 %v10833, %v10831
        %v10874 = vpack.c.b16 %v10836, %v10834
        %v10875 = vpack.c.b16 %v10837, %v10835
        %v10876 = vpack.c.b16 %v10840, %v10838
        %v10877 = vpack.c.b16 %v10841, %v10839
        %v10878 = vpack.c.b16 %v10844, %v10842
        %v10879 = vpack.c.b16 %v10845, %v10843
        %v10880 = vpack.c.b16 %v10848, %v10846
        %v10881 = vpack.c.b16 %v10849, %v10847
        %10914 = vmatprep.subr.bf16.mxu0 %v10851
        %10915 = vmatpush1.bf16.msra.mxu0 %v10850
        %10916 = vmatprep.subr.bf16.mxu0 %v10853
        %10917 = vmatpush1.bf16.msra.mxu0 %v10852
        %10918 = vmatprep.subr.bf16.mxu0 %v10855
        %10919 = vmatpush1.bf16.msra.mxu0 %v10854
        %10920 = vmatprep.subr.bf16.mxu0 %v10857
        %10921 = vmatpush1.bf16.msra.mxu0 %v10856
        %10922 = vmatprep.subr.bf16.mxu0 %v10859
        %10923 = vmatpush1.bf16.msra.mxu0 %v10858
        %10924 = vmatprep.subr.bf16.mxu0 %v10861
        %10925 = vmatpush1.bf16.msra.mxu0 %v10860
        %10926 = vmatprep.subr.bf16.mxu0 %v10863
        %10927 = vmatpush1.bf16.msra.mxu0 %v10862
        %10928 = vmatprep.subr.bf16.mxu0 %v10865
        %10929 = vmatpush1.bf16.msra.mxu0 %v10864
        %10930 = vmatprep.subr.bf16.mxu0 %v10867
        %10931 = vmatpush1.bf16.msra.mxu0 %v10866
        %10932 = vmatprep.subr.bf16.mxu0 %v10869
        %10933 = vmatpush1.bf16.msra.mxu0 %v10868
        %10934 = vmatprep.subr.bf16.mxu0 %v10871
        %10935 = vmatpush1.bf16.msra.mxu0 %v10870
        %10936 = vmatprep.subr.bf16.mxu0 %v10873
        %10937 = vmatpush1.bf16.msra.mxu0 %v10872
        %10938 = vmatprep.subr.bf16.mxu0 %v10875
        %10939 = vmatpush1.bf16.msra.mxu0 %v10874
        %10940 = vmatprep.subr.bf16.mxu0 %v10877
        %10941 = vmatpush1.bf16.msra.mxu0 %v10876
        %10942 = vmatprep.subr.bf16.mxu0 %v10879
        %10943 = vmatpush1.bf16.msra.mxu0 %v10878
        %10944 = vmatprep.subr.bf16.mxu0 %v10881
        %10945 = vmatpush1.bf16.msra.mxu0 %v10880
        %10946 = vmatprep.mubr.bf16.mxu0 %v10679
        %10947 = vmatmul.mubr.bf16.gmra.mrb[0].mxu0 %v10678
        %v10948 = vpop.f32.mrb[0].mxu0
        %v10949 = vadd.f32 %v10747, %v10948
        %v10950 = vpop.f32.mrb[0].mxu0
        %v10951 = vadd.f32 %v10751, %v10950
        %v10952 = vpop.f32.mrb[0].mxu0
        %v10953 = vadd.f32 %v10747, %v10952
        %v10954 = vpop.f32.mrb[0].mxu0
        %v10955 = vadd.f32 %v10751, %v10954
        %10956 = vmatprep.mubr.bf16.mxu0 %v10681
        %10957 = vmatmul.mubr.bf16.gmra.mrb[0].mxu0 %v10680
        %v10958 = vpop.f32.mrb[0].mxu0
        %v10959 = vadd.f32 %v10747, %v10958
        %v10960 = vpop.f32.mrb[0].mxu0
        %v10961 = vadd.f32 %v10751, %v10960
        %v10962 = vpop.f32.mrb[0].mxu0
        %v10963 = vadd.f32 %v10747, %v10962
        %v10964 = vpop.f32.mrb[0].mxu0
        %v10965 = vadd.f32 %v10751, %v10964
        %10966 = vmatprep.mubr.bf16.mxu0 %v10683
        %10967 = vmatmul.mubr.bf16.gmra.mrb[0].mxu0 %v10682
        %v10968 = vpop.f32.mrb[0].mxu0
        %v10969 = vadd.f32 %v10747, %v10968
        %v10970 = vpop.f32.mrb[0].mxu0
        %v10971 = vadd.f32 %v10751, %v10970
        %v10972 = vpop.f32.mrb[0].mxu0
        %v10973 = vadd.f32 %v10747, %v10972
        %v10974 = vpop.f32.mrb[0].mxu0
        %v10975 = vadd.f32 %v10751, %v10974
        %10976 = vmatprep.mubr.bf16.mxu0 %v10685
        %10977 = vmatmul.mubr.bf16.gmra.mrb[0].mxu0 %v10684
        %v10978 = vpop.f32.mrb[0].mxu0
        %v10979 = vadd.f32 %v10747, %v10978
        %v10980 = vpop.f32.mrb[0].mxu0
        %v10981 = vadd.f32 %v10751, %v10980
        %v10982 = vpop.f32.mrb[0].mxu0
        %v10983 = vadd.f32 %v10747, %v10982
        %v10984 = vpop.f32.mrb[0].mxu0
        %v10985 = vadd.f32 %v10751, %v10984
        %10986 = vmatprep.mubr.bf16.mxu0 %v10687
        %10987 = vmatmul.mubr.bf16.gmra.mrb[0].mxu0 %v10686
        %v10988 = vpop.f32.mrb[0].mxu0
        %v10989 = vadd.f32 %v10747, %v10988
        %v10990 = vpop.f32.mrb[0].mxu0
        %v10991 = vadd.f32 %v10751, %v10990
        %v10992 = vpop.f32.mrb[0].mxu0
        %v10993 = vadd.f32 %v10747, %v10992
        %v10994 = vpop.f32.mrb[0].mxu0
        %v10995 = vadd.f32 %v10751, %v10994
        %10996 = vmatprep.mubr.bf16.mxu0 %v10689
        %10997 = vmatmul.mubr.bf16.gmra.mrb[0].mxu0 %v10688
        %v10998 = vpop.f32.mrb[0].mxu0
        %v10999 = vadd.f32 %v10747, %v10998
        %v11000 = vpop.f32.mrb[0].mxu0
        %v11001 = vadd.f32 %v10751, %v11000
        %v11002 = vpop.f32.mrb[0].mxu0
        %v11003 = vadd.f32 %v10747, %v11002
        %v11004 = vpop.f32.mrb[0].mxu0
        %v11005 = vadd.f32 %v10751, %v11004
        %11006 = vmatprep.mubr.bf16.mxu0 %v10691
        %11007 = vmatmul.mubr.bf16.gmra.mrb[0].mxu0 %v10690
        %v11008 = vpop.f32.mrb[0].mxu0
        %v11009 = vadd.f32 %v10747, %v11008
        %v11010 = vpop.f32.mrb[0].mxu0
        %v11011 = vadd.f32 %v10751, %v11010
        %v11012 = vpop.f32.mrb[0].mxu0
        %v11013 = vadd.f32 %v10747, %v11012
        %v11014 = vpop.f32.mrb[0].mxu0
        %v11015 = vadd.f32 %v10751, %v11014
        %11016 = vmatprep.mubr.bf16.mxu0 %v10693
        %11017 = vmatmul.mubr.bf16.gmra.mrb[0].mxu0 %v10692
        %v11018 = vpop.f32.mrb[0].mxu0
        %v11019 = vadd.f32 %v10747, %v11018
        %v11020 = vpop.f32.mrb[0].mxu0
        %v11021 = vadd.f32 %v10751, %v11020
        %v11022 = vpop.f32.mrb[0].mxu0
        %v11023 = vadd.f32 %v10747, %v11022
        %v11024 = vpop.f32.mrb[0].mxu0
        %v11025 = vadd.f32 %v10751, %v11024
        %11026 = vmatprep.mubr.bf16.mxu0 %v10695
        %11027 = vmatmul.mubr.bf16.gmra.mrb[0].mxu0 %v10694
        %v11028 = vpop.f32.mrb[0].mxu0
        %v11029 = vadd.f32 %v10747, %v11028
        %v11030 = vpop.f32.mrb[0].mxu0
        %v11031 = vadd.f32 %v10751, %v11030
        %v11032 = vpop.f32.mrb[0].mxu0
        %v11033 = vadd.f32 %v10747, %v11032
        %v11034 = vpop.f32.mrb[0].mxu0
        %v11035 = vadd.f32 %v10751, %v11034
        %11036 = vmatprep.mubr.bf16.mxu0 %v10697
        %11037 = vmatmul.mubr.bf16.gmra.mrb[0].mxu0 %v10696
        %v11038 = vpop.f32.mrb[0].mxu0
        %v11039 = vadd.f32 %v10747, %v11038
        %v11040 = vpop.f32.mrb[0].mxu0
        %v11041 = vadd.f32 %v10751, %v11040
        %v11042 = vpop.f32.mrb[0].mxu0
        %v11043 = vadd.f32 %v10747, %v11042
        %v11044 = vpop.f32.mrb[0].mxu0
        %v11045 = vadd.f32 %v10751, %v11044
        %11046 = vmatprep.mubr.bf16.mxu0 %v10699
        %11047 = vmatmul.mubr.bf16.gmra.mrb[0].mxu0 %v10698
        %v11048 = vpop.f32.mrb[0].mxu0
        %v11049 = vadd.f32 %v10747, %v11048
        %v11050 = vpop.f32.mrb[0].mxu0
        %v11051 = vadd.f32 %v10751, %v11050
        %v11052 = vpop.f32.mrb[0].mxu0
        %v11053 = vadd.f32 %v10747, %v11052
        %v11054 = vpop.f32.mrb[0].mxu0
        %v11055 = vadd.f32 %v10751, %v11054
        %11056 = vmatprep.mubr.bf16.mxu0 %v10701
        %11057 = vmatmul.mubr.bf16.gmra.mrb[0].mxu0 %v10700
        %v11058 = vpop.f32.mrb[0].mxu0
        %v11059 = vadd.f32 %v10747, %v11058
        %v11060 = vpop.f32.mrb[0].mxu0
        %v11061 = vadd.f32 %v10751, %v11060
        %v11062 = vpop.f32.mrb[0].mxu0
        %v11063 = vadd.f32 %v10747, %v11062
        %v11064 = vpop.f32.mrb[0].mxu0
        %v11065 = vadd.f32 %v10751, %v11064
        %11066 = vmatprep.mubr.bf16.mxu0 %v10703
        %11067 = vmatmul.mubr.bf16.gmra.mrb[0].mxu0 %v10702
        %v11068 = vpop.f32.mrb[0].mxu0
        %v11069 = vadd.f32 %v10747, %v11068
        %v11070 = vpop.f32.mrb[0].mxu0
        %v11071 = vadd.f32 %v10751, %v11070
        %v11072 = vpop.f32.mrb[0].mxu0
        %v11073 = vadd.f32 %v10747, %v11072
        %v11074 = vpop.f32.mrb[0].mxu0
        %v11075 = vadd.f32 %v10751, %v11074
        %11076 = vmatprep.mubr.bf16.mxu0 %v10705
        %11077 = vmatmul.mubr.bf16.gmra.mrb[0].mxu0 %v10704
        %v11078 = vpop.f32.mrb[0].mxu0
        %v11079 = vadd.f32 %v10747, %v11078
        %v11080 = vpop.f32.mrb[0].mxu0
        %v11081 = vadd.f32 %v10751, %v11080
        %v11082 = vpop.f32.mrb[0].mxu0
        %v11083 = vadd.f32 %v10747, %v11082
        %v11084 = vpop.f32.mrb[0].mxu0
        %v11085 = vadd.f32 %v10751, %v11084
        %11086 = vmatprep.mubr.bf16.mxu0 %v10707
        %11087 = vmatmul.mubr.bf16.gmra.mrb[0].mxu0 %v10706
        %v11088 = vpop.f32.mrb[0].mxu0
        %v11089 = vadd.f32 %v10747, %v11088
        %v11090 = vpop.f32.mrb[0].mxu0
        %v11091 = vadd.f32 %v10751, %v11090
        %v11092 = vpop.f32.mrb[0].mxu0
        %v11093 = vadd.f32 %v10747, %v11092
        %v11094 = vpop.f32.mrb[0].mxu0
        %v11095 = vadd.f32 %v10751, %v11094
        %11096 = vmatprep.mubr.bf16.mxu0 %v10709
        %11097 = vmatmul.mubr.bf16.gmra.mrb[0].mxu0 %v10708
        %v11098 = vpop.f32.mrb[0].mxu0
        %v11099 = vadd.f32 %v10747, %v11098
        %v11100 = vpop.f32.mrb[0].mxu0
        %v11101 = vadd.f32 %v10751, %v11100
        %v11102 = vpop.f32.mrb[0].mxu0
        %v11103 = vadd.f32 %v10747, %v11102
        %v11104 = vpop.f32.mrb[0].mxu0
        %v11105 = vadd.f32 %v10751, %v11104
        %11106 = vdwg.mxu0
        %11107 = vst [vmem:[%s341] sm:$0xff] %v10949
        %11108 = vst [vmem:[%s341 + $0x8] sm:$0xff] %v10951
        %11109 = vst [vmem:[%s341 + $0x10] sm:$0xff] %v10953
        %11110 = vst [vmem:[%s341 + $0x18] sm:$0xff] %v10955
        %11111 = vst [vmem:[%s341 + $0x20] sm:$0xff] %v10959
        %11112 = vst [vmem:[%s341 + $0x28] sm:$0xff] %v10961
        %11113 = vst [vmem:[%s341 + $0x30] sm:$0xff] %v10963
        %11114 = vst [vmem:[%s341 + $0x38] sm:$0xff] %v10965
        %11115 = vst [vmem:[%s341 + $0x40] sm:$0xff] %v10969
        %11116 = vst [vmem:[%s341 + $0x48] sm:$0xff] %v10971
        %11117 = vst [vmem:[%s341 + $0x50] sm:$0xff] %v10973
        %11118 = vst [vmem:[%s341 + $0x58] sm:$0xff] %v10975
        %11119 = vst [vmem:[%s341 + $0x60] sm:$0xff] %v10979
        %11120 = vst [vmem:[%s341 + $0x68] sm:$0xff] %v10981
        %11121 = vst [vmem:[%s341 + $0x70] sm:$0xff] %v10983
        %11122 = vst [vmem:[%s341 + $0x78] sm:$0xff] %v10985
        %11123 = vst [vmem:[%s341 + $0x80] sm:$0xff] %v10989
        %11124 = vst [vmem:[%s341 + $0x88] sm:$0xff] %v10991
        %11125 = vst [vmem:[%s341 + $0x90] sm:$0xff] %v10993
        %11126 = vst [vmem:[%s341 + $0x98] sm:$0xff] %v10995
        %11127 = vst [vmem:[%s341 + $0xa0] sm:$0xff] %v10999
        %11128 = vst [vmem:[%s341 + $0xa8] sm:$0xff] %v11001
        %11129 = vst [vmem:[%s341 + $0xb0] sm:$0xff] %v11003
        %11130 = vst [vmem:[%s341 + $0xb8] sm:$0xff] %v11005
        %11131 = vst [vmem:[%s341 + $0xc0] sm:$0xff] %v11009
        %11132 = vst [vmem:[%s341 + $0xc8] sm:$0xff] %v11011
        %11133 = vst [vmem:[%s341 + $0xd0] sm:$0xff] %v11013
        %11134 = vst [vmem:[%s341 + $0xd8] sm:$0xff] %v11015
        %11135 = vst [vmem:[%s341 + $0xe0] sm:$0xff] %v11019
        %11136 = vst [vmem:[%s341 + $0xe8] sm:$0xff] %v11021
        %11137 = vst [vmem:[%s341 + $0xf0] sm:$0xff] %v11023
        %11138 = vst [vmem:[%s341 + $0xf8] sm:$0xff] %v11025
        %11139 = vst [vmem:[%s341 + $0x100] sm:$0xff] %v11029
        %11140 = vst [vmem:[%s341 + $0x108] sm:$0xff] %v11031
        %11141 = vst [vmem:[%s341 + $0x110] sm:$0xff] %v11033
        %11142 = vst [vmem:[%s341 + $0x118] sm:$0xff] %v11035
        %11143 = vst [vmem:[%s341 + $0x120] sm:$0xff] %v11039
        %11144 = vst [vmem:[%s341 + $0x128] sm:$0xff] %v11041
        %11145 = vst [vmem:[%s341 + $0x130] sm:$0xff] %v11043
        %11146 = vst [vmem:[%s341 + $0x138] sm:$0xff] %v11045
        %11147 = vst [vmem:[%s341 + $0x140] sm:$0xff] %v11049
        %11148 = vst [vmem:[%s341 + $0x148] sm:$0xff] %v11051
        %11149 = vst [vmem:[%s341 + $0x150] sm:$0xff] %v11053
        %11150 = vst [vmem:[%s341 + $0x158] sm:$0xff] %v11055
        %11151 = vst [vmem:[%s341 + $0x160] sm:$0xff] %v11059
        %11152 = vst [vmem:[%s341 + $0x168] sm:$0xff] %v11061
        %11153 = vst [vmem:[%s341 + $0x170] sm:$0xff] %v11063
        %11154 = vst [vmem:[%s341 + $0x178] sm:$0xff] %v11065
        %11155 = vst [vmem:[%s341 + $0x180] sm:$0xff] %v11069
        %11156 = vst [vmem:[%s341 + $0x188] sm:$0xff] %v11071
        %11157 = vst [vmem:[%s341 + $0x190] sm:$0xff] %v11073
        %11158 = vst [vmem:[%s341 + $0x198] sm:$0xff] %v11075
        %11159 = vst [vmem:[%s341 + $0x1a0] sm:$0xff] %v11079
        %11160 = vst [vmem:[%s341 + $0x1a8] sm:$0xff] %v11081
        %11161 = vst [vmem:[%s341 + $0x1b0] sm:$0xff] %v11083
        %11162 = vst [vmem:[%s341 + $0x1b8] sm:$0xff] %v11085
        %11163 = vst [vmem:[%s341 + $0x1c0] sm:$0xff] %v11089
        %11164 = vst [vmem:[%s341 + $0x1c8] sm:$0xff] %v11091
        %11165 = vst [vmem:[%s341 + $0x1d0] sm:$0xff] %v11093
        %11166 = vst [vmem:[%s341 + $0x1d8] sm:$0xff] %v11095
        %11167 = vst [vmem:[%s341 + $0x1e0] sm:$0xff] %v11099
        %11168 = vst [vmem:[%s341 + $0x1e8] sm:$0xff] %v11101
        %11169 = vst [vmem:[%s341 + $0x1f0] sm:$0xff] %v11103
        %11170 = vst [vmem:[%s341 + $0x1f8] sm:$0xff] %v11105
        %s11171 = sand.u32 %s178, 1
        %s11172 = scalar_lea.sflag [#allocation7], %s11171
        %s11173 = sand.u32 %s178, 1
        %s11174 = smul.addr %s11173, 512
        %s11175 = scalar_lea.vmem [#allocation14], %s11174
        // Predicated region
        $region69: #{tpu_custom_call.1} parent=43 // pred_check
          %p11176 = pneg %p188
        $region70: #{tpu_custom_call.1} parent=43 // pred_check_branch
          %11178 = sbr.rel (%p11176) target = $region72
        $region71: #{tpu_custom_call.1} parent=43 // pred_region
          %s11179 = smul.u32 32, %s30
          %s11181 = ssub.s32 8192, 8192
          %11182 = vsyncadd %s11172, %s11181
          %s11183 = smul.addr %s11179, 2
          %s11184 = smul.addr %s29, 128
          %s11185 = sadd.s32 %s11183, %s11184
          %s11186 = smul.addr %s11185, 128
          %s11187 = scalar_lea.hbm %s6, %s11186
          %s11188 = sshll.u32 %s11175, 4
          %s11189 = int_to_ptr.vmem [resolvable:$true] %s11188
          %11194 = dma.vmem_to_hbm [thread:$0]  %s11189, 8192, %s11187, %s11172, 256, 256, 16
        $region72: #{tpu_custom_call.1} parent=43 // pred_fallthru
          _
      $region44: #{tpu_custom_call.1} parent=5 // pred_fallthru
        _
      %p11195 = scmp.le.s32.totalorder 2, %s20
      // Predicated region
      $region73: #{tpu_custom_call.1} parent=5 // pred_check
        %p11196 = pneg %p11195
      $region74: #{tpu_custom_call.1} parent=5 // pred_check_branch
        %11198 = sbr.rel (%p11196) target = $region76
      $region75: #{tpu_custom_call.1} parent=5 // pred_region
        %s11199 = ssub.s32 %s20, 2
        // Predicated region
        $region77: #{tpu_custom_call.1} parent=75 // pred_check
          %p11200 = pneg %p194
        $region78: #{tpu_custom_call.1} parent=75 // pred_check_branch
          %11202 = sbr.rel (%p11200) target = $region80
        $region79: #{tpu_custom_call.1} parent=75 // pred_region
          %s11203 = sand.u32 %s179, 1
          %s11204 = scalar_lea.sflag [#allocation7], %s11203
          %s11205 = sand.u32 %s179, 1
          %s11206 = smul.addr %s11205, 512
          %s11207 = scalar_lea.vmem [#allocation14], %s11206
          %11208 = dma.done %s11204, 8192
        $region80: #{tpu_custom_call.1} parent=75 // pred_fallthru
          _
      $region76: #{tpu_custom_call.1} parent=5 // pred_fallthru
        _
    $region6: #{tpu_custom_call.1} parent=1 // loop_footer
      %s24 = sadd.s32 1, %s20
    $region7: #{tpu_custom_call.1} parent=1 // loop_footer_branch
      %19 = sbr.rel target = $region3
    $region8: #{tpu_custom_call.1} parent=1 // loop_exit
      _
    %11209 = vsyncpa [#allocation6], 1
    %s11210 = scalar_lea.sflag [#allocation6], 1
    %11211 = vsyncpa %s11210, 1
    %11212 = vsyncpa [#allocation9], 1
    %11213 = vsyncpa [#allocation12], 1
    %11214 = vsyncpa [#allocation7], 1
    %s11215 = scalar_lea.sflag [#allocation7], 1
    %11216 = vsyncpa %s11215, 1

</llo_original>
